<compile_context>
chip_gen: v7x
topology: tpu7x:2x2x1
jax: 0.10.0
libtpu: 0.0.40
codegen_flags: <defaults>
</compile_context>

<pallas_src>
import jax
import jax.numpy as jnp
from jax.experimental import pallas as pl
from jax.experimental.pallas import tpu as pltpu

# Original (PyTorch) layer widths and the lane-aligned padded widths used on TPU.
DIMS = (216, 512, 256, 128, 64, 1)
PADDED_DIMS = (256, 512, 256, 128, 128, 128)


def rewardnet_kernel(x_ref,
                     w1_ref, b1_ref,
                     w2_ref, b2_ref,
                     w3_ref, b3_ref,
                     w4_ref, b4_ref,
                     w5_ref, b5_ref,
                     o_ref):
    # x tile: (TB, 256) bf16.  Weights: bf16, (in, out) layout.  Biases: f32, (1, out).
    # MXU dots use bf16 operands + f32 accumulation; elementwise ops stay f32.
    h = jnp.dot(x_ref[...], w1_ref[...], preferred_element_type=jnp.float32) + b1_ref[...]
    h = jnp.maximum(h, 0.0)                                        # ReLU (Dropout(0.3) = id, eval)

    h = jnp.dot(h.astype(jnp.bfloat16), w2_ref[...],
                preferred_element_type=jnp.float32) + b2_ref[...]
    h = jnp.maximum(h, 0.0)                                        # ReLU (Dropout(0.2) = id, eval)

    h = jnp.dot(h.astype(jnp.bfloat16), w3_ref[...],
                preferred_element_type=jnp.float32) + b3_ref[...]
    h = jnp.maximum(h, 0.0)                                        # ReLU (Dropout(0.2) = id, eval)

    h = jnp.dot(h.astype(jnp.bfloat16), w4_ref[...],
                preferred_element_type=jnp.float32) + b4_ref[...]
    h = jnp.maximum(h, 0.0)                                        # ReLU (Dropout(0.1) = id, eval)

    out = jnp.dot(h.astype(jnp.bfloat16), w5_ref[...],
                  preferred_element_type=jnp.float32) + b5_ref[...]
    o_ref[...] = out.astype(o_ref.dtype)       # (TB, 128) lane-dense store; column 0 is the score


def rewardnet_forward(x, padded_params, *, block_tb=1024):
    """x: (B, 216) float32. padded_params: [w1,b1,...,w5,b5] padded/bf16. Returns (B, 1) f32."""
    B = x.shape[0]
    assert x.shape[1] == DIMS[0], x.shape
    in_pad = PADDED_DIMS[0]
    out_pad = PADDED_DIMS[-1]
    tb = block_tb

    padded_b = ((B + tb - 1) // tb) * tb
    # Wrapper-side pad to a full batch tile and lane-aligned feature width; cast stream to bf16.
    xp = jnp.pad(x.astype(jnp.bfloat16), ((0, padded_b - B), (0, in_pad - DIMS[0])))

    grid = (padded_b // tb,)
    in_specs = [pl.BlockSpec((tb, in_pad), lambda i: (i, 0))]
    for p in padded_params:
        # Constant index_map: weights/biases are DMA'd once and stay VMEM-resident.
        in_specs.append(pl.BlockSpec(p.shape, lambda i: (0, 0)))
    out_spec = pl.BlockSpec((tb, out_pad), lambda i: (i, 0))

    # Advisory cost estimate for XLA's scheduler.
    flops = 2 * padded_b * sum(a * b for a, b in zip(PADDED_DIMS[:-1], PADDED_DIMS[1:]))
    param_bytes = sum(int(p.size) * p.dtype.itemsize for p in padded_params)
    bytes_accessed = int(xp.size) * 2 + padded_b * out_pad * 4 + param_bytes

    out = pl.pallas_call(
        rewardnet_kernel,
        out_shape=jax.ShapeDtypeStruct((padded_b, out_pad), jnp.float32),
        grid=grid,
        in_specs=in_specs,
        out_specs=out_spec,
        compiler_params=pltpu.CompilerParams(
            dimension_semantics=("parallel",),          # shard batch tiles across v7x's 2 TCs
            vmem_limit_bytes=48 * 1024 * 1024,          # fits comfortably under v7x's 64 MiB
        ),
        cost_estimate=pl.CostEstimate(
            flops=flops, transcendentals=0, bytes_accessed=bytes_accessed),
    )(xp, *padded_params)

    return out[:B, :1]


def init_params(key):
    """PyTorch nn.Linear default init, stored transposed as (in, out); biases as (1, out)."""
    params = []
    for fan_in, fan_out in zip(DIMS[:-1], DIMS[1:]):
        kw, kb, key = jax.random.split(key, 3)
        bound = float(fan_in) ** -0.5
        w = jax.random.uniform(kw, (fan_in, fan_out), jnp.float32, -bound, bound)
        b = jax.random.uniform(kb, (1, fan_out), jnp.float32, -bound, bound)
        params.extend([w, b])
    return params


def pad_params(params):
    """Zero-pad to lane-aligned widths; weights cast to bf16, biases kept f32."""
    padded = []
    for layer in range(5):
        w, b = params[2 * layer], params[2 * layer + 1]
        pin, pout = PADDED_DIMS[layer], PADDED_DIMS[layer + 1]
        wp = jnp.zeros((pin, pout), jnp.float32).at[:w.shape[0], :w.shape[1]].set(w)
        bp = jnp.zeros((1, pout), jnp.float32).at[:, :b.shape[1]].set(b)
        padded.extend([wp.astype(jnp.bfloat16), bp])
    return padded


def rewardnet_reference_f32(x, params):
    """Pure-f32 reference (the original module's math)."""
    h = x
    for i in range(0, 8, 2):
        h = jnp.maximum(h @ params[i] + params[i + 1], 0.0)
    return h @ params[8] + params[9]


def rewardnet_reference_bf16(x, padded_params):
    """Pure-JAX reference mirroring the kernel's bf16-matmul / f32-accumulate arithmetic."""
    h = jnp.pad(x, ((0, 0), (0, PADDED_DIMS[0] - DIMS[0]))).astype(jnp.bfloat16)
    for layer in range(4):
        w, b = padded_params[2 * layer], padded_params[2 * layer + 1]
        h = jnp.dot(h, w, preferred_element_type=jnp.float32) + b
        h = jnp.maximum(h, 0.0).astype(jnp.bfloat16)
    out = jnp.dot(h, padded_params[8], preferred_element_type=jnp.float32) + padded_params[9]
    return out[:, :1]


if __name__ == "__main__":
    key = jax.random.PRNGKey(0)
    kx, kp = jax.random.split(key)

    batch = 8
    x = jax.random.normal(kx, (batch, DIMS[0]), dtype=jnp.float32)
    params = init_params(kp)
    padded_params = pad_params(params)

    out = rewardnet_forward(x, padded_params, block_tb=1024)
    out = jax.block_until_ready(out)
    assert out.shape == (batch, 1), out.shape

    # Tight check against a reference that uses the same bf16/f32 mixed precision.
    ref_bf16 = rewardnet_reference_bf16(x, padded_params)
    assert jnp.allclose(out, ref_bf16, atol=1e-3, rtol=1e-3), (out, ref_bf16)

    # Loose check against the full-f32 spec semantics (bf16 weight/activation quantization).
    ref_f32 = rewardnet_reference_f32(x, params)
    assert jnp.allclose(out, ref_f32, atol=5e-2, rtol=5e-2), (out, ref_f32)

    print("KERNEL_OK")
</pallas_src>

<mosaic_0001>
module attributes {stable_mosaic.version = 11 : i64} {
  func.func @rewardnet_kernel(%arg0: i32, %arg1: memref<1024x256xbf16, #tpu.memory_space<vmem>>, %arg2: memref<256x512xbf16, #tpu.memory_space<vmem>>, %arg3: memref<1x512xf32, #tpu.memory_space<vmem>>, %arg4: memref<512x256xbf16, #tpu.memory_space<vmem>>, %arg5: memref<1x256xf32, #tpu.memory_space<vmem>>, %arg6: memref<256x128xbf16, #tpu.memory_space<vmem>>, %arg7: memref<1x128xf32, #tpu.memory_space<vmem>>, %arg8: memref<128x128xbf16, #tpu.memory_space<vmem>>, %arg9: memref<1x128xf32, #tpu.memory_space<vmem>>, %arg10: memref<128x128xbf16, #tpu.memory_space<vmem>>, %arg11: memref<1x128xf32, #tpu.memory_space<vmem>>, %arg12: memref<1024x128xf32, #tpu.memory_space<vmem>>) attributes {dimension_semantics = [#tpu.dimension_semantics<parallel>], iteration_bounds = array<i64: 1>, scalar_prefetch = 0 : i64, scratch_operands = 0 : i64, tpu.core_type = #tpu.core_type<tc>, window_params = [{transform_indices = @transform_0, window_bounds = array<i64: 1024, 256>}, {pipeline_mode = #tpu.pipeline_mode<synchronous>, transform_indices = @transform_1, window_bounds = array<i64: 256, 512>}, {pipeline_mode = #tpu.pipeline_mode<synchronous>, transform_indices = @transform_2, window_bounds = array<i64: 1, 512>}, {pipeline_mode = #tpu.pipeline_mode<synchronous>, transform_indices = @transform_3, window_bounds = array<i64: 512, 256>}, {pipeline_mode = #tpu.pipeline_mode<synchronous>, transform_indices = @transform_4, window_bounds = array<i64: 1, 256>}, {pipeline_mode = #tpu.pipeline_mode<synchronous>, transform_indices = @transform_5, window_bounds = array<i64: 256, 128>}, {pipeline_mode = #tpu.pipeline_mode<synchronous>, transform_indices = @transform_6, window_bounds = array<i64: 1, 128>}, {pipeline_mode = #tpu.pipeline_mode<synchronous>, transform_indices = @transform_7, window_bounds = array<i64: 128, 128>}, {pipeline_mode = #tpu.pipeline_mode<synchronous>, transform_indices = @transform_8, window_bounds = array<i64: 1, 128>}, {pipeline_mode = #tpu.pipeline_mode<synchronous>, transform_indices = @transform_9, window_bounds = array<i64: 128, 128>}, {pipeline_mode = #tpu.pipeline_mode<synchronous>, transform_indices = @transform_10, window_bounds = array<i64: 1, 128>}, {transform_indices = @transform_11, window_bounds = array<i64: 1024, 128>}]} {
    %c0 = arith.constant 0 : index
    %c0_0 = arith.constant 0 : index
    %0 = vector.load %arg1[%c0, %c0_0] : memref<1024x256xbf16, #tpu.memory_space<vmem>>, vector<1024x256xbf16>
    %c0_1 = arith.constant 0 : index
    %c0_2 = arith.constant 0 : index
    %1 = vector.load %arg2[%c0_1, %c0_2] : memref<256x512xbf16, #tpu.memory_space<vmem>>, vector<256x512xbf16>
    %cst = arith.constant dense<0.000000e+00> : vector<1024x512xf32>
    %2 = tpu.matmul %0, %1, %cst {dimension_numbers = #tpu.dot_dimension_numbers<[1], [0], [0], [1], [0, 0, 1, 1], [], []>} : vector<1024x256xbf16>, vector<256x512xbf16>, vector<1024x512xf32> -> vector<1024x512xf32>
    %c0_3 = arith.constant 0 : index
    %c0_4 = arith.constant 0 : index
    %3 = vector.load %arg3[%c0_3, %c0_4] : memref<1x512xf32, #tpu.memory_space<vmem>>, vector<1x512xf32>
    %4 = vector.broadcast %3 : vector<1x512xf32> to vector<1024x512xf32>
    %5 = arith.addf %2, %4 : vector<1024x512xf32>
    %cst_5 = arith.constant 0.000000e+00 : f32
    %6 = vector.broadcast %cst_5 : f32 to vector<1024x512xf32>
    %7 = arith.maximumf %5, %6 : vector<1024x512xf32>
    %8 = arith.truncf %7 : vector<1024x512xf32> to vector<1024x512xbf16>
    %c0_6 = arith.constant 0 : index
    %c0_7 = arith.constant 0 : index
    %9 = vector.load %arg4[%c0_6, %c0_7] : memref<512x256xbf16, #tpu.memory_space<vmem>>, vector<512x256xbf16>
    %cst_8 = arith.constant dense<0.000000e+00> : vector<1024x256xf32>
    %10 = tpu.matmul %8, %9, %cst_8 {dimension_numbers = #tpu.dot_dimension_numbers<[1], [0], [0], [1], [0, 0, 1, 1], [], []>} : vector<1024x512xbf16>, vector<512x256xbf16>, vector<1024x256xf32> -> vector<1024x256xf32>
    %c0_9 = arith.constant 0 : index
    %c0_10 = arith.constant 0 : index
    %11 = vector.load %arg5[%c0_9, %c0_10] : memref<1x256xf32, #tpu.memory_space<vmem>>, vector<1x256xf32>
    %12 = vector.broadcast %11 : vector<1x256xf32> to vector<1024x256xf32>
    %13 = arith.addf %10, %12 : vector<1024x256xf32>
    %cst_11 = arith.constant 0.000000e+00 : f32
    %14 = vector.broadcast %cst_11 : f32 to vector<1024x256xf32>
    %15 = arith.maximumf %13, %14 : vector<1024x256xf32>
    %16 = arith.truncf %15 : vector<1024x256xf32> to vector<1024x256xbf16>
    %c0_12 = arith.constant 0 : index
    %c0_13 = arith.constant 0 : index
    %17 = vector.load %arg6[%c0_12, %c0_13] : memref<256x128xbf16, #tpu.memory_space<vmem>>, vector<256x128xbf16>
    %cst_14 = arith.constant dense<0.000000e+00> : vector<1024x128xf32>
    %18 = tpu.matmul %16, %17, %cst_14 {dimension_numbers = #tpu.dot_dimension_numbers<[1], [0], [0], [1], [0, 0, 1, 1], [], []>} : vector<1024x256xbf16>, vector<256x128xbf16>, vector<1024x128xf32> -> vector<1024x128xf32>
    %c0_15 = arith.constant 0 : index
    %c0_16 = arith.constant 0 : index
    %19 = vector.load %arg7[%c0_15, %c0_16] : memref<1x128xf32, #tpu.memory_space<vmem>>, vector<1x128xf32>
    %20 = vector.broadcast %19 : vector<1x128xf32> to vector<1024x128xf32>
    %21 = arith.addf %18, %20 : vector<1024x128xf32>
    %cst_17 = arith.constant 0.000000e+00 : f32
    %22 = vector.broadcast %cst_17 : f32 to vector<1024x128xf32>
    %23 = arith.maximumf %21, %22 : vector<1024x128xf32>
    %24 = arith.truncf %23 : vector<1024x128xf32> to vector<1024x128xbf16>
    %c0_18 = arith.constant 0 : index
    %c0_19 = arith.constant 0 : index
    %25 = vector.load %arg8[%c0_18, %c0_19] : memref<128x128xbf16, #tpu.memory_space<vmem>>, vector<128x128xbf16>
    %cst_20 = arith.constant dense<0.000000e+00> : vector<1024x128xf32>
    %26 = tpu.matmul %24, %25, %cst_20 {dimension_numbers = #tpu.dot_dimension_numbers<[1], [0], [0], [1], [0, 0, 1, 1], [], []>} : vector<1024x128xbf16>, vector<128x128xbf16>, vector<1024x128xf32> -> vector<1024x128xf32>
    %c0_21 = arith.constant 0 : index
    %c0_22 = arith.constant 0 : index
    %27 = vector.load %arg9[%c0_21, %c0_22] : memref<1x128xf32, #tpu.memory_space<vmem>>, vector<1x128xf32>
    %28 = vector.broadcast %27 : vector<1x128xf32> to vector<1024x128xf32>
    %29 = arith.addf %26, %28 : vector<1024x128xf32>
    %cst_23 = arith.constant 0.000000e+00 : f32
    %30 = vector.broadcast %cst_23 : f32 to vector<1024x128xf32>
    %31 = arith.maximumf %29, %30 : vector<1024x128xf32>
    %32 = arith.truncf %31 : vector<1024x128xf32> to vector<1024x128xbf16>
    %c0_24 = arith.constant 0 : index
    %c0_25 = arith.constant 0 : index
    %33 = vector.load %arg10[%c0_24, %c0_25] : memref<128x128xbf16, #tpu.memory_space<vmem>>, vector<128x128xbf16>
    %cst_26 = arith.constant dense<0.000000e+00> : vector<1024x128xf32>
    %34 = tpu.matmul %32, %33, %cst_26 {dimension_numbers = #tpu.dot_dimension_numbers<[1], [0], [0], [1], [0, 0, 1, 1], [], []>} : vector<1024x128xbf16>, vector<128x128xbf16>, vector<1024x128xf32> -> vector<1024x128xf32>
    %c0_27 = arith.constant 0 : index
    %c0_28 = arith.constant 0 : index
    %35 = vector.load %arg11[%c0_27, %c0_28] : memref<1x128xf32, #tpu.memory_space<vmem>>, vector<1x128xf32>
    %36 = vector.broadcast %35 : vector<1x128xf32> to vector<1024x128xf32>
    %37 = arith.addf %34, %36 : vector<1024x128xf32>
    %c0_29 = arith.constant 0 : index
    %c0_30 = arith.constant 0 : index
    %38 = vector.load %arg12[%c0_29, %c0_30] : memref<1024x128xf32, #tpu.memory_space<vmem>>, vector<1024x128xf32>
    tpu.vector_store %arg12[%c0_29, %c0_30], %37 {strides = array<i32>} : memref<1024x128xf32, #tpu.memory_space<vmem>>, vector<1024x128xf32>,
    return
  }
  func.func @transform_0(%arg0: i32) -> (i32, i32) {
    %c0_i32 = arith.constant 0 : i32
    %c0_i32_0 = arith.constant 0 : i32
    return %arg0, %c0_i32 : i32, i32
  }
  func.func @transform_1(%arg0: i32) -> (i32, i32) {
    %c0_i32 = arith.constant 0 : i32
    %c0_i32_0 = arith.constant 0 : i32
    %c0_i32_1 = arith.constant 0 : i32
    return %c0_i32, %c0_i32_0 : i32, i32
  }
  func.func @transform_2(%arg0: i32) -> (i32, i32) {
    %c0_i32 = arith.constant 0 : i32
    %c0_i32_0 = arith.constant 0 : i32
    %c0_i32_1 = arith.constant 0 : i32
    return %c0_i32, %c0_i32_0 : i32, i32
  }
  func.func @transform_3(%arg0: i32) -> (i32, i32) {
    %c0_i32 = arith.constant 0 : i32
    %c0_i32_0 = arith.constant 0 : i32
    %c0_i32_1 = arith.constant 0 : i32
    return %c0_i32, %c0_i32_0 : i32, i32
  }
  func.func @transform_4(%arg0: i32) -> (i32, i32) {
    %c0_i32 = arith.constant 0 : i32
    %c0_i32_0 = arith.constant 0 : i32
    %c0_i32_1 = arith.constant 0 : i32
    return %c0_i32, %c0_i32_0 : i32, i32
  }
  func.func @transform_5(%arg0: i32) -> (i32, i32) {
    %c0_i32 = arith.constant 0 : i32
    %c0_i32_0 = arith.constant 0 : i32
    %c0_i32_1 = arith.constant 0 : i32
    return %c0_i32, %c0_i32_0 : i32, i32
  }
  func.func @transform_6(%arg0: i32) -> (i32, i32) {
    %c0_i32 = arith.constant 0 : i32
    %c0_i32_0 = arith.constant 0 : i32
    %c0_i32_1 = arith.constant 0 : i32
    return %c0_i32, %c0_i32_0 : i32, i32
  }
  func.func @transform_7(%arg0: i32) -> (i32, i32) {
    %c0_i32 = arith.constant 0 : i32
    %c0_i32_0 = arith.constant 0 : i32
    %c0_i32_1 = arith.constant 0 : i32
    return %c0_i32, %c0_i32_0 : i32, i32
  }
  func.func @transform_8(%arg0: i32) -> (i32, i32) {
    %c0_i32 = arith.constant 0 : i32
    %c0_i32_0 = arith.constant 0 : i32
    %c0_i32_1 = arith.constant 0 : i32
    return %c0_i32, %c0_i32_0 : i32, i32
  }
  func.func @transform_9(%arg0: i32) -> (i32, i32) {
    %c0_i32 = arith.constant 0 : i32
    %c0_i32_0 = arith.constant 0 : i32
    %c0_i32_1 = arith.constant 0 : i32
    return %c0_i32, %c0_i32_0 : i32, i32
  }
  func.func @transform_10(%arg0: i32) -> (i32, i32) {
    %c0_i32 = arith.constant 0 : i32
    %c0_i32_0 = arith.constant 0 : i32
    %c0_i32_1 = arith.constant 0 : i32
    return %c0_i32, %c0_i32_0 : i32, i32
  }
  func.func @transform_11(%arg0: i32) -> (i32, i32) {
    %c0_i32 = arith.constant 0 : i32
    %c0_i32_0 = arith.constant 0 : i32
    return %arg0, %c0_i32 : i32, i32
  }
}

</mosaic_0001>

<llo_original>
// kernel: tpu_custom_call.1
$region0: #{tpu_custom_call.1}
  #allocation0 [shape = 'u32[]', space=smem, size = 0x4, offset = 0x4, fixed_abs, tag = 'smem constant byte address 0x4 - core index']
  #allocation1 [shape = 'u32[144,128]{1,0:T(1,128)}', space=vmem, size = 0x12000, scoped, tag = 'internal scratch']
  %s0 = inlined_call_operand.hbm [shape: bf16[1024,256], index: 0, kind: input, shape index: {}]
  %s1 = inlined_call_operand.hbm [shape: bf16[256,512], index: 1, kind: input, shape index: {}]
  %s2 = inlined_call_operand.vmem [shape: f32[1,512], index: 2, kind: input, shape index: {}]
  %s3 = inlined_call_operand.hbm [shape: bf16[512,256], index: 3, kind: input, shape index: {}]
  %s4 = inlined_call_operand.vmem [shape: f32[1,256], index: 4, kind: input, shape index: {}]
  %s5 = inlined_call_operand.hbm [shape: bf16[256,128], index: 5, kind: input, shape index: {}]
  %s6 = inlined_call_operand.vmem [shape: f32[1,128], index: 6, kind: input, shape index: {}]
  %s7 = inlined_call_operand.hbm [shape: bf16[128,128], index: 7, kind: input, shape index: {}]
  %s8 = inlined_call_operand.vmem [shape: f32[1,128], index: 8, kind: input, shape index: {}]
  %s9 = inlined_call_operand.hbm [shape: bf16[128,128], index: 9, kind: input, shape index: {}]
  %s10 = inlined_call_operand.vmem [shape: f32[1,128], index: 10, kind: input, shape index: {}]
  %s11 = inlined_call_operand.hbm [shape: f32[1024,128], index: 11, kind: output, shape index: {}]
  %s12 = sld [smem:[#allocation0]]
  $region78: #{tpu_custom_call.1} parent=0
    _
  %s14 = ssub.s32 1, %s12
  %s15 = scalar_select 0, %s14, %s12
  $region1: #{tpu_custom_call.1} parent=0
    #allocation2 [shape = 'u8[524288]{0}', space=vmem, size = 0x80000, scoped, tag = 'input window, operand 0, single buffered']
    #allocation3 [shape = 's32[1]{0}', space=sflag, size = 0x4, scoped, tag = 'scoped memory for tpu_custom_call.1']
    #allocation4 [shape = 's32[1]{0}', space=sflag, size = 0x4, scoped, tag = 'scoped memory for tpu_custom_call.1']
    #allocation5 [shape = 'u8[262144]{0}', space=vmem, size = 0x40000, scoped, tag = 'input window, operand 1, single buffered']
    #allocation6 [shape = 's32[1]{0}', space=sflag, size = 0x4, scoped, tag = 'scoped memory for tpu_custom_call.1']
    #allocation7 [shape = 'u8[262144]{0}', space=vmem, size = 0x40000, scoped, tag = 'input window, operand 3, single buffered']
    #allocation8 [shape = 'u8[65536]{0}', space=vmem, size = 0x10000, scoped, tag = 'input window, operand 5, single buffered']
    #allocation9 [shape = 's32[1]{0}', space=sflag, size = 0x4, scoped, tag = 'scoped memory for tpu_custom_call.1']
    #allocation10 [shape = 'u8[32768]{0}', space=vmem, size = 0x8000, scoped, tag = 'input window, operand 7, single buffered']
    #allocation11 [shape = 'u8[32768]{0}', space=vmem, size = 0x8000, scoped, tag = 'input window, operand 9, single buffered']
    #allocation12 [shape = 's32[1]{0}', space=sflag, size = 0x4, scoped, tag = 'scoped memory for tpu_custom_call.1']
    #allocation13 [shape = 'u8[524288]{0}', space=vmem, size = 0x80000, scoped, tag = 'output window, operand 0, single buffered']
    %16 = vsyncpa [#allocation3], 0
    %17 = vsyncpa [#allocation6], 0
    %18 = vsyncpa [#allocation9], 0
    %19 = vsyncpa [#allocation12], 0
    %20 = vsyncpa [#allocation4], 0
    // Predicated region
    $region2: #{tpu_custom_call.1} parent=1 // pred_check
      _
    $region3: #{tpu_custom_call.1} parent=1 // pred_check_branch
      %22 = sbr.rel (0) target = $region5
    $region4: #{tpu_custom_call.1} parent=1 // pred_region
      %s24 = ssub.s32 16384, 16384
      %25 = vsyncadd [#allocation3], %s24
      %s26 = sshll.u32 [#allocation2], 4
      %s27 = int_to_ptr.vmem [resolvable:$true] %s26
      %32 = dma.hbm_to_vmem [thread:$0]  %s0, 16384, %s27, [#allocation3], 128, 128, 8
    $region5: #{tpu_custom_call.1} parent=1 // pred_fallthru
      _
    // Predicated region
    $region6: #{tpu_custom_call.1} parent=1 // pred_check
      _
    $region7: #{tpu_custom_call.1} parent=1 // pred_check_branch
      %34 = sbr.rel (0) target = $region9
    $region8: #{tpu_custom_call.1} parent=1 // pred_region
      %s36 = ssub.s32 8192, 8192
      %37 = vsyncadd [#allocation6], %s36
      %s38 = sshll.u32 [#allocation5], 4
      %s39 = int_to_ptr.vmem [resolvable:$true] %s38
      %44 = dma.hbm_to_vmem [thread:$0]  %s1, 8192, %s39, [#allocation6], 256, 256, 16
    $region9: #{tpu_custom_call.1} parent=1 // pred_fallthru
      _
    // Predicated region
    $region10: #{tpu_custom_call.1} parent=1 // pred_check
      _
    $region11: #{tpu_custom_call.1} parent=1 // pred_check_branch
      %46 = sbr.rel (0) target = $region13
    $region12: #{tpu_custom_call.1} parent=1 // pred_region
      _
    $region13: #{tpu_custom_call.1} parent=1 // pred_fallthru
      _
    // Predicated region
    $region14: #{tpu_custom_call.1} parent=1 // pred_check
      _
    $region15: #{tpu_custom_call.1} parent=1 // pred_check_branch
      %48 = sbr.rel (0) target = $region17
    $region16: #{tpu_custom_call.1} parent=1 // pred_region
      %s50 = ssub.s32 8192, 8192
      %51 = vsyncadd [#allocation6], %s50
      %s52 = sshll.u32 [#allocation7], 4
      %s53 = int_to_ptr.vmem [resolvable:$true] %s52
      %58 = dma.hbm_to_vmem [thread:$0]  %s3, 8192, %s53, [#allocation6], 128, 128, 8
    $region17: #{tpu_custom_call.1} parent=1 // pred_fallthru
      _
    // Predicated region
    $region18: #{tpu_custom_call.1} parent=1 // pred_check
      _
    $region19: #{tpu_custom_call.1} parent=1 // pred_check_branch
      %60 = sbr.rel (0) target = $region21
    $region20: #{tpu_custom_call.1} parent=1 // pred_region
      _
    $region21: #{tpu_custom_call.1} parent=1 // pred_fallthru
      _
    // Predicated region
    $region22: #{tpu_custom_call.1} parent=1 // pred_check
      _
    $region23: #{tpu_custom_call.1} parent=1 // pred_check_branch
      %62 = sbr.rel (0) target = $region25
    $region24: #{tpu_custom_call.1} parent=1 // pred_region
      %s64 = ssub.s32 2048, 2048
      %65 = vsyncadd [#allocation9], %s64
      %s66 = sshll.u32 [#allocation8], 4
      %s67 = int_to_ptr.vmem [resolvable:$true] %s66
      %72 = dma.hbm_to_vmem [thread:$0]  %s5, 2048, %s67, [#allocation9], 64, 64, 4
    $region25: #{tpu_custom_call.1} parent=1 // pred_fallthru
      _
    // Predicated region
    $region26: #{tpu_custom_call.1} parent=1 // pred_check
      _
    $region27: #{tpu_custom_call.1} parent=1 // pred_check_branch
      %74 = sbr.rel (0) target = $region29
    $region28: #{tpu_custom_call.1} parent=1 // pred_region
      _
    $region29: #{tpu_custom_call.1} parent=1 // pred_fallthru
      _
    // Predicated region
    $region30: #{tpu_custom_call.1} parent=1 // pred_check
      _
    $region31: #{tpu_custom_call.1} parent=1 // pred_check_branch
      %76 = sbr.rel (0) target = $region33
    $region32: #{tpu_custom_call.1} parent=1 // pred_region
      %s78 = ssub.s32 1024, 1024
      %79 = vsyncadd [#allocation9], %s78
      %s80 = sshll.u32 [#allocation10], 4
      %s81 = int_to_ptr.vmem [resolvable:$true] %s80
      %86 = dma.hbm_to_vmem [thread:$0]  %s7, 1024, %s81, [#allocation9], 64, 64, 4
    $region33: #{tpu_custom_call.1} parent=1 // pred_fallthru
      _
    // Predicated region
    $region34: #{tpu_custom_call.1} parent=1 // pred_check
      _
    $region35: #{tpu_custom_call.1} parent=1 // pred_check_branch
      %88 = sbr.rel (0) target = $region37
    $region36: #{tpu_custom_call.1} parent=1 // pred_region
      _
    $region37: #{tpu_custom_call.1} parent=1 // pred_fallthru
      _
    // Predicated region
    $region38: #{tpu_custom_call.1} parent=1 // pred_check
      _
    $region39: #{tpu_custom_call.1} parent=1 // pred_check_branch
      %90 = sbr.rel (0) target = $region41
    $region40: #{tpu_custom_call.1} parent=1 // pred_region
      %s92 = ssub.s32 1024, 1024
      %93 = vsyncadd [#allocation12], %s92
      %s94 = sshll.u32 [#allocation11], 4
      %s95 = int_to_ptr.vmem [resolvable:$true] %s94
      %100 = dma.hbm_to_vmem [thread:$0]  %s9, 1024, %s95, [#allocation12], 64, 64, 4
    $region41: #{tpu_custom_call.1} parent=1 // pred_fallthru
      _
    // Predicated region
    $region42: #{tpu_custom_call.1} parent=1 // pred_check
      _
    $region43: #{tpu_custom_call.1} parent=1 // pred_check_branch
      %102 = sbr.rel (0) target = $region45
    $region44: #{tpu_custom_call.1} parent=1 // pred_region
      _
    $region45: #{tpu_custom_call.1} parent=1 // pred_fallthru
      _
    // Predicated region
    $region46: #{tpu_custom_call.1} parent=1 // pred_check
      _
    $region47: #{tpu_custom_call.1} parent=1 // pred_check_branch
      %104 = sbr.rel (0) target = $region49
    $region48: #{tpu_custom_call.1} parent=1 // pred_region
      %105 = dma.done [#allocation3], 16384
    $region49: #{tpu_custom_call.1} parent=1 // pred_fallthru
      _
    // Predicated region
    $region50: #{tpu_custom_call.1} parent=1 // pred_check
      _
    $region51: #{tpu_custom_call.1} parent=1 // pred_check_branch
      %107 = sbr.rel (0) target = $region53
    $region52: #{tpu_custom_call.1} parent=1 // pred_region
      %108 = dma.done [#allocation6], 8192
    $region53: #{tpu_custom_call.1} parent=1 // pred_fallthru
      _
    // Predicated region
    $region54: #{tpu_custom_call.1} parent=1 // pred_check
      _
    $region55: #{tpu_custom_call.1} parent=1 // pred_check_branch
      %110 = sbr.rel (0) target = $region57
    $region56: #{tpu_custom_call.1} parent=1 // pred_region
      %111 = dma.done [#allocation6], 8192
    $region57: #{tpu_custom_call.1} parent=1 // pred_fallthru
      _
    // Predicated region
    $region58: #{tpu_custom_call.1} parent=1 // pred_check
      _
    $region59: #{tpu_custom_call.1} parent=1 // pred_check_branch
      %113 = sbr.rel (0) target = $region61
    $region60: #{tpu_custom_call.1} parent=1 // pred_region
      %114 = dma.done [#allocation9], 2048
    $region61: #{tpu_custom_call.1} parent=1 // pred_fallthru
      _
    // Predicated region
    $region62: #{tpu_custom_call.1} parent=1 // pred_check
      _
    $region63: #{tpu_custom_call.1} parent=1 // pred_check_branch
      %116 = sbr.rel (0) target = $region65
    $region64: #{tpu_custom_call.1} parent=1 // pred_region
      %117 = dma.done [#allocation9], 1024
    $region65: #{tpu_custom_call.1} parent=1 // pred_fallthru
      _
    // Predicated region
    $region66: #{tpu_custom_call.1} parent=1 // pred_check
      _
    $region67: #{tpu_custom_call.1} parent=1 // pred_check_branch
      %119 = sbr.rel (0) target = $region69
    $region68: #{tpu_custom_call.1} parent=1 // pred_region
      %120 = dma.done [#allocation12], 1024
    $region69: #{tpu_custom_call.1} parent=1 // pred_fallthru
      _
    %v122 = vld [vmem:[#allocation2] sm:$0xff]
    %v123 = vld [vmem:[#allocation2 + $0x8] sm:$0xff]
    %v124 = vld [vmem:[#allocation2 + $0x10] sm:$0xff]
    %v125 = vld [vmem:[#allocation2 + $0x18] sm:$0xff]
    %v126 = vld [vmem:[#allocation2 + $0x20] sm:$0xff]
    %v127 = vld [vmem:[#allocation2 + $0x28] sm:$0xff]
    %v128 = vld [vmem:[#allocation2 + $0x30] sm:$0xff]
    %v129 = vld [vmem:[#allocation2 + $0x38] sm:$0xff]
    %v130 = vld [vmem:[#allocation2 + $0x40] sm:$0xff]
    %v131 = vld [vmem:[#allocation2 + $0x48] sm:$0xff]
    %v132 = vld [vmem:[#allocation2 + $0x50] sm:$0xff]
    %v133 = vld [vmem:[#allocation2 + $0x58] sm:$0xff]
    %v134 = vld [vmem:[#allocation2 + $0x60] sm:$0xff]
    %v135 = vld [vmem:[#allocation2 + $0x68] sm:$0xff]
    %v136 = vld [vmem:[#allocation2 + $0x70] sm:$0xff]
    %v137 = vld [vmem:[#allocation2 + $0x78] sm:$0xff]
    %v138 = vld [vmem:[#allocation2 + $0x80] sm:$0xff]
    %v139 = vld [vmem:[#allocation2 + $0x88] sm:$0xff]
    %v140 = vld [vmem:[#allocation2 + $0x90] sm:$0xff]
    %v141 = vld [vmem:[#allocation2 + $0x98] sm:$0xff]
    %v142 = vld [vmem:[#allocation2 + $0xa0] sm:$0xff]
    %v143 = vld [vmem:[#allocation2 + $0xa8] sm:$0xff]
    %v144 = vld [vmem:[#allocation2 + $0xb0] sm:$0xff]
    %v145 = vld [vmem:[#allocation2 + $0xb8] sm:$0xff]
    %v146 = vld [vmem:[#allocation2 + $0xc0] sm:$0xff]
    %v147 = vld [vmem:[#allocation2 + $0xc8] sm:$0xff]
    %v148 = vld [vmem:[#allocation2 + $0xd0] sm:$0xff]
    %v149 = vld [vmem:[#allocation2 + $0xd8] sm:$0xff]
    %v150 = vld [vmem:[#allocation2 + $0xe0] sm:$0xff]
    %v151 = vld [vmem:[#allocation2 + $0xe8] sm:$0xff]
    %v152 = vld [vmem:[#allocation2 + $0xf0] sm:$0xff]
    %v153 = vld [vmem:[#allocation2 + $0xf8] sm:$0xff]
    %v154 = vld [vmem:[#allocation2 + $0x100] sm:$0xff]
    %v155 = vld [vmem:[#allocation2 + $0x108] sm:$0xff]
    %v156 = vld [vmem:[#allocation2 + $0x110] sm:$0xff]
    %v157 = vld [vmem:[#allocation2 + $0x118] sm:$0xff]
    %v158 = vld [vmem:[#allocation2 + $0x120] sm:$0xff]
    %v159 = vld [vmem:[#allocation2 + $0x128] sm:$0xff]
    %v160 = vld [vmem:[#allocation2 + $0x130] sm:$0xff]
    %v161 = vld [vmem:[#allocation2 + $0x138] sm:$0xff]
    %v162 = vld [vmem:[#allocation2 + $0x140] sm:$0xff]
    %v163 = vld [vmem:[#allocation2 + $0x148] sm:$0xff]
    %v164 = vld [vmem:[#allocation2 + $0x150] sm:$0xff]
    %v165 = vld [vmem:[#allocation2 + $0x158] sm:$0xff]
    %v166 = vld [vmem:[#allocation2 + $0x160] sm:$0xff]
    %v167 = vld [vmem:[#allocation2 + $0x168] sm:$0xff]
    %v168 = vld [vmem:[#allocation2 + $0x170] sm:$0xff]
    %v169 = vld [vmem:[#allocation2 + $0x178] sm:$0xff]
    %v170 = vld [vmem:[#allocation2 + $0x180] sm:$0xff]
    %v171 = vld [vmem:[#allocation2 + $0x188] sm:$0xff]
    %v172 = vld [vmem:[#allocation2 + $0x190] sm:$0xff]
    %v173 = vld [vmem:[#allocation2 + $0x198] sm:$0xff]
    %v174 = vld [vmem:[#allocation2 + $0x1a0] sm:$0xff]
    %v175 = vld [vmem:[#allocation2 + $0x1a8] sm:$0xff]
    %v176 = vld [vmem:[#allocation2 + $0x1b0] sm:$0xff]
    %v177 = vld [vmem:[#allocation2 + $0x1b8] sm:$0xff]
    %v178 = vld [vmem:[#allocation2 + $0x1c0] sm:$0xff]
    %v179 = vld [vmem:[#allocation2 + $0x1c8] sm:$0xff]
    %v180 = vld [vmem:[#allocation2 + $0x1d0] sm:$0xff]
    %v181 = vld [vmem:[#allocation2 + $0x1d8] sm:$0xff]
    %v182 = vld [vmem:[#allocation2 + $0x1e0] sm:$0xff]
    %v183 = vld [vmem:[#allocation2 + $0x1e8] sm:$0xff]
    %v184 = vld [vmem:[#allocation2 + $0x1f0] sm:$0xff]
    %v185 = vld [vmem:[#allocation2 + $0x1f8] sm:$0xff]
    %v186 = vld [vmem:[#allocation2 + $0x200] sm:$0xff]
    %v187 = vld [vmem:[#allocation2 + $0x208] sm:$0xff]
    %v188 = vld [vmem:[#allocation2 + $0x210] sm:$0xff]
    %v189 = vld [vmem:[#allocation2 + $0x218] sm:$0xff]
    %v190 = vld [vmem:[#allocation2 + $0x220] sm:$0xff]
    %v191 = vld [vmem:[#allocation2 + $0x228] sm:$0xff]
    %v192 = vld [vmem:[#allocation2 + $0x230] sm:$0xff]
    %v193 = vld [vmem:[#allocation2 + $0x238] sm:$0xff]
    %v194 = vld [vmem:[#allocation2 + $0x240] sm:$0xff]
    %v195 = vld [vmem:[#allocation2 + $0x248] sm:$0xff]
    %v196 = vld [vmem:[#allocation2 + $0x250] sm:$0xff]
    %v197 = vld [vmem:[#allocation2 + $0x258] sm:$0xff]
    %v198 = vld [vmem:[#allocation2 + $0x260] sm:$0xff]
    %v199 = vld [vmem:[#allocation2 + $0x268] sm:$0xff]
    %v200 = vld [vmem:[#allocation2 + $0x270] sm:$0xff]
    %v201 = vld [vmem:[#allocation2 + $0x278] sm:$0xff]
    %v202 = vld [vmem:[#allocation2 + $0x280] sm:$0xff]
    %v203 = vld [vmem:[#allocation2 + $0x288] sm:$0xff]
    %v204 = vld [vmem:[#allocation2 + $0x290] sm:$0xff]
    %v205 = vld [vmem:[#allocation2 + $0x298] sm:$0xff]
    %v206 = vld [vmem:[#allocation2 + $0x2a0] sm:$0xff]
    %v207 = vld [vmem:[#allocation2 + $0x2a8] sm:$0xff]
    %v208 = vld [vmem:[#allocation2 + $0x2b0] sm:$0xff]
    %v209 = vld [vmem:[#allocation2 + $0x2b8] sm:$0xff]
    %v210 = vld [vmem:[#allocation2 + $0x2c0] sm:$0xff]
    %v211 = vld [vmem:[#allocation2 + $0x2c8] sm:$0xff]
    %v212 = vld [vmem:[#allocation2 + $0x2d0] sm:$0xff]
    %v213 = vld [vmem:[#allocation2 + $0x2d8] sm:$0xff]
    %v214 = vld [vmem:[#allocation2 + $0x2e0] sm:$0xff]
    %v215 = vld [vmem:[#allocation2 + $0x2e8] sm:$0xff]
    %v216 = vld [vmem:[#allocation2 + $0x2f0] sm:$0xff]
    %v217 = vld [vmem:[#allocation2 + $0x2f8] sm:$0xff]
    %v218 = vld [vmem:[#allocation2 + $0x300] sm:$0xff]
    %v219 = vld [vmem:[#allocation2 + $0x308] sm:$0xff]
    %v220 = vld [vmem:[#allocation2 + $0x310] sm:$0xff]
    %v221 = vld [vmem:[#allocation2 + $0x318] sm:$0xff]
    %v222 = vld [vmem:[#allocation2 + $0x320] sm:$0xff]
    %v223 = vld [vmem:[#allocation2 + $0x328] sm:$0xff]
    %v224 = vld [vmem:[#allocation2 + $0x330] sm:$0xff]
    %v225 = vld [vmem:[#allocation2 + $0x338] sm:$0xff]
    %v226 = vld [vmem:[#allocation2 + $0x340] sm:$0xff]
    %v227 = vld [vmem:[#allocation2 + $0x348] sm:$0xff]
    %v228 = vld [vmem:[#allocation2 + $0x350] sm:$0xff]
    %v229 = vld [vmem:[#allocation2 + $0x358] sm:$0xff]
    %v230 = vld [vmem:[#allocation2 + $0x360] sm:$0xff]
    %v231 = vld [vmem:[#allocation2 + $0x368] sm:$0xff]
    %v232 = vld [vmem:[#allocation2 + $0x370] sm:$0xff]
    %v233 = vld [vmem:[#allocation2 + $0x378] sm:$0xff]
    %v234 = vld [vmem:[#allocation2 + $0x380] sm:$0xff]
    %v235 = vld [vmem:[#allocation2 + $0x388] sm:$0xff]
    %v236 = vld [vmem:[#allocation2 + $0x390] sm:$0xff]
    %v237 = vld [vmem:[#allocation2 + $0x398] sm:$0xff]
    %v238 = vld [vmem:[#allocation2 + $0x3a0] sm:$0xff]
    %v239 = vld [vmem:[#allocation2 + $0x3a8] sm:$0xff]
    %v240 = vld [vmem:[#allocation2 + $0x3b0] sm:$0xff]
    %v241 = vld [vmem:[#allocation2 + $0x3b8] sm:$0xff]
    %v242 = vld [vmem:[#allocation2 + $0x3c0] sm:$0xff]
    %v243 = vld [vmem:[#allocation2 + $0x3c8] sm:$0xff]
    %v244 = vld [vmem:[#allocation2 + $0x3d0] sm:$0xff]
    %v245 = vld [vmem:[#allocation2 + $0x3d8] sm:$0xff]
    %v246 = vld [vmem:[#allocation2 + $0x3e0] sm:$0xff]
    %v247 = vld [vmem:[#allocation2 + $0x3e8] sm:$0xff]
    %v248 = vld [vmem:[#allocation2 + $0x3f0] sm:$0xff]
    %v249 = vld [vmem:[#allocation2 + $0x3f8] sm:$0xff]
    %v250 = vld [vmem:[#allocation5] sm:$0xff]
    %v251 = vld [vmem:[#allocation5 + $0x8] sm:$0xff]
    %v252 = vld [vmem:[#allocation5 + $0x10] sm:$0xff]
    %v253 = vld [vmem:[#allocation5 + $0x18] sm:$0xff]
    %v254 = vld [vmem:[#allocation5 + $0x20] sm:$0xff]
    %v255 = vld [vmem:[#allocation5 + $0x28] sm:$0xff]
    %v256 = vld [vmem:[#allocation5 + $0x30] sm:$0xff]
    %v257 = vld [vmem:[#allocation5 + $0x38] sm:$0xff]
    %v258 = vld [vmem:[#allocation5 + $0x40] sm:$0xff]
    %v259 = vld [vmem:[#allocation5 + $0x48] sm:$0xff]
    %v260 = vld [vmem:[#allocation5 + $0x50] sm:$0xff]
    %v261 = vld [vmem:[#allocation5 + $0x58] sm:$0xff]
    %v262 = vld [vmem:[#allocation5 + $0x60] sm:$0xff]
    %v263 = vld [vmem:[#allocation5 + $0x68] sm:$0xff]
    %v264 = vld [vmem:[#allocation5 + $0x70] sm:$0xff]
    %v265 = vld [vmem:[#allocation5 + $0x78] sm:$0xff]
    %v266 = vld [vmem:[#allocation5 + $0x80] sm:$0xff]
    %v267 = vld [vmem:[#allocation5 + $0x88] sm:$0xff]
    %v268 = vld [vmem:[#allocation5 + $0x90] sm:$0xff]
    %v269 = vld [vmem:[#allocation5 + $0x98] sm:$0xff]
    %v270 = vld [vmem:[#allocation5 + $0xa0] sm:$0xff]
    %v271 = vld [vmem:[#allocation5 + $0xa8] sm:$0xff]
    %v272 = vld [vmem:[#allocation5 + $0xb0] sm:$0xff]
    %v273 = vld [vmem:[#allocation5 + $0xb8] sm:$0xff]
    %v274 = vld [vmem:[#allocation5 + $0xc0] sm:$0xff]
    %v275 = vld [vmem:[#allocation5 + $0xc8] sm:$0xff]
    %v276 = vld [vmem:[#allocation5 + $0xd0] sm:$0xff]
    %v277 = vld [vmem:[#allocation5 + $0xd8] sm:$0xff]
    %v278 = vld [vmem:[#allocation5 + $0xe0] sm:$0xff]
    %v279 = vld [vmem:[#allocation5 + $0xe8] sm:$0xff]
    %v280 = vld [vmem:[#allocation5 + $0xf0] sm:$0xff]
    %v281 = vld [vmem:[#allocation5 + $0xf8] sm:$0xff]
    %v282 = vld [vmem:[#allocation5 + $0x100] sm:$0xff]
    %v283 = vld [vmem:[#allocation5 + $0x108] sm:$0xff]
    %v284 = vld [vmem:[#allocation5 + $0x110] sm:$0xff]
    %v285 = vld [vmem:[#allocation5 + $0x118] sm:$0xff]
    %v286 = vld [vmem:[#allocation5 + $0x120] sm:$0xff]
    %v287 = vld [vmem:[#allocation5 + $0x128] sm:$0xff]
    %v288 = vld [vmem:[#allocation5 + $0x130] sm:$0xff]
    %v289 = vld [vmem:[#allocation5 + $0x138] sm:$0xff]
    %v290 = vld [vmem:[#allocation5 + $0x140] sm:$0xff]
    %v291 = vld [vmem:[#allocation5 + $0x148] sm:$0xff]
    %v292 = vld [vmem:[#allocation5 + $0x150] sm:$0xff]
    %v293 = vld [vmem:[#allocation5 + $0x158] sm:$0xff]
    %v294 = vld [vmem:[#allocation5 + $0x160] sm:$0xff]
    %v295 = vld [vmem:[#allocation5 + $0x168] sm:$0xff]
    %v296 = vld [vmem:[#allocation5 + $0x170] sm:$0xff]
    %v297 = vld [vmem:[#allocation5 + $0x178] sm:$0xff]
    %v298 = vld [vmem:[#allocation5 + $0x180] sm:$0xff]
    %v299 = vld [vmem:[#allocation5 + $0x188] sm:$0xff]
    %v300 = vld [vmem:[#allocation5 + $0x190] sm:$0xff]
    %v301 = vld [vmem:[#allocation5 + $0x198] sm:$0xff]
    %v302 = vld [vmem:[#allocation5 + $0x1a0] sm:$0xff]
    %v303 = vld [vmem:[#allocation5 + $0x1a8] sm:$0xff]
    %v304 = vld [vmem:[#allocation5 + $0x1b0] sm:$0xff]
    %v305 = vld [vmem:[#allocation5 + $0x1b8] sm:$0xff]
    %v306 = vld [vmem:[#allocation5 + $0x1c0] sm:$0xff]
    %v307 = vld [vmem:[#allocation5 + $0x1c8] sm:$0xff]
    %v308 = vld [vmem:[#allocation5 + $0x1d0] sm:$0xff]
    %v309 = vld [vmem:[#allocation5 + $0x1d8] sm:$0xff]
    %v310 = vld [vmem:[#allocation5 + $0x1e0] sm:$0xff]
    %v311 = vld [vmem:[#allocation5 + $0x1e8] sm:$0xff]
    %v312 = vld [vmem:[#allocation5 + $0x1f0] sm:$0xff]
    %v313 = vld [vmem:[#allocation5 + $0x1f8] sm:$0xff]
    %v314 = vld [vmem:[%s2] sm:$0xf]
    %v316 = vlaneseq
    %v317 = vshrl.u32 %v316, 7
    %v318 = vsub.s32 0, %v317
    %v319 = vrot.slane %v314, %v318
    %v320 = vlaneseq
    %v321 = vshrl.u32 %v320, 7
    %v322 = vsub.s32 1, %v321
    %v323 = vrot.slane %v314, %v322
    %v324 = vlaneseq
    %v325 = vshrl.u32 %v324, 7
    %v326 = vsub.s32 2, %v325
    %v327 = vrot.slane %v314, %v326
    %v328 = vlaneseq
    %v329 = vshrl.u32 %v328, 7
    %v330 = vsub.s32 3, %v329
    %v331 = vrot.slane %v314, %v330
    %v464 = vunpack.c.l.b16 %v122
    %v465 = vunpack.c.h.b16 %v122
    %v466 = vunpack.c.l.b16 %v123
    %v467 = vunpack.c.h.b16 %v123
    %v468 = vunpack.c.l.b16 %v124
    %v469 = vunpack.c.h.b16 %v124
    %v470 = vunpack.c.l.b16 %v125
    %v471 = vunpack.c.h.b16 %v125
    %v472 = vunpack.c.l.b16 %v126
    %v473 = vunpack.c.h.b16 %v126
    %v474 = vunpack.c.l.b16 %v127
    %v475 = vunpack.c.h.b16 %v127
    %v476 = vunpack.c.l.b16 %v128
    %v477 = vunpack.c.h.b16 %v128
    %v478 = vunpack.c.l.b16 %v129
    %v479 = vunpack.c.h.b16 %v129
    %v480 = vunpack.c.l.b16 %v130
    %v481 = vunpack.c.h.b16 %v130
    %v482 = vunpack.c.l.b16 %v131
    %v483 = vunpack.c.h.b16 %v131
    %v484 = vunpack.c.l.b16 %v132
    %v485 = vunpack.c.h.b16 %v132
    %v486 = vunpack.c.l.b16 %v133
    %v487 = vunpack.c.h.b16 %v133
    %v488 = vunpack.c.l.b16 %v134
    %v489 = vunpack.c.h.b16 %v134
    %v490 = vunpack.c.l.b16 %v135
    %v491 = vunpack.c.h.b16 %v135
    %v492 = vunpack.c.l.b16 %v136
    %v493 = vunpack.c.h.b16 %v136
    %v494 = vunpack.c.l.b16 %v137
    %v495 = vunpack.c.h.b16 %v137
    %v496 = vunpack.c.l.b16 %v138
    %v497 = vunpack.c.h.b16 %v138
    %v498 = vunpack.c.l.b16 %v139
    %v499 = vunpack.c.h.b16 %v139
    %v500 = vunpack.c.l.b16 %v140
    %v501 = vunpack.c.h.b16 %v140
    %v502 = vunpack.c.l.b16 %v141
    %v503 = vunpack.c.h.b16 %v141
    %v504 = vunpack.c.l.b16 %v142
    %v505 = vunpack.c.h.b16 %v142
    %v506 = vunpack.c.l.b16 %v143
    %v507 = vunpack.c.h.b16 %v143
    %v508 = vunpack.c.l.b16 %v144
    %v509 = vunpack.c.h.b16 %v144
    %v510 = vunpack.c.l.b16 %v145
    %v511 = vunpack.c.h.b16 %v145
    %v512 = vunpack.c.l.b16 %v146
    %v513 = vunpack.c.h.b16 %v146
    %v514 = vunpack.c.l.b16 %v147
    %v515 = vunpack.c.h.b16 %v147
    %v516 = vunpack.c.l.b16 %v148
    %v517 = vunpack.c.h.b16 %v148
    %v518 = vunpack.c.l.b16 %v149
    %v519 = vunpack.c.h.b16 %v149
    %v520 = vunpack.c.l.b16 %v150
    %v521 = vunpack.c.h.b16 %v150
    %v522 = vunpack.c.l.b16 %v151
    %v523 = vunpack.c.h.b16 %v151
    %v524 = vunpack.c.l.b16 %v152
    %v525 = vunpack.c.h.b16 %v152
    %v526 = vunpack.c.l.b16 %v153
    %v527 = vunpack.c.h.b16 %v153
    %v528 = vunpack.c.l.b16 %v154
    %v529 = vunpack.c.h.b16 %v154
    %v530 = vunpack.c.l.b16 %v155
    %v531 = vunpack.c.h.b16 %v155
    %v532 = vunpack.c.l.b16 %v156
    %v533 = vunpack.c.h.b16 %v156
    %v534 = vunpack.c.l.b16 %v157
    %v535 = vunpack.c.h.b16 %v157
    %v536 = vunpack.c.l.b16 %v158
    %v537 = vunpack.c.h.b16 %v158
    %v538 = vunpack.c.l.b16 %v159
    %v539 = vunpack.c.h.b16 %v159
    %v540 = vunpack.c.l.b16 %v160
    %v541 = vunpack.c.h.b16 %v160
    %v542 = vunpack.c.l.b16 %v161
    %v543 = vunpack.c.h.b16 %v161
    %v544 = vunpack.c.l.b16 %v162
    %v545 = vunpack.c.h.b16 %v162
    %v546 = vunpack.c.l.b16 %v163
    %v547 = vunpack.c.h.b16 %v163
    %v548 = vunpack.c.l.b16 %v164
    %v549 = vunpack.c.h.b16 %v164
    %v550 = vunpack.c.l.b16 %v165
    %v551 = vunpack.c.h.b16 %v165
    %v552 = vunpack.c.l.b16 %v166
    %v553 = vunpack.c.h.b16 %v166
    %v554 = vunpack.c.l.b16 %v167
    %v555 = vunpack.c.h.b16 %v167
    %v556 = vunpack.c.l.b16 %v168
    %v557 = vunpack.c.h.b16 %v168
    %v558 = vunpack.c.l.b16 %v169
    %v559 = vunpack.c.h.b16 %v169
    %v560 = vunpack.c.l.b16 %v170
    %v561 = vunpack.c.h.b16 %v170
    %v562 = vunpack.c.l.b16 %v171
    %v563 = vunpack.c.h.b16 %v171
    %v564 = vunpack.c.l.b16 %v172
    %v565 = vunpack.c.h.b16 %v172
    %v566 = vunpack.c.l.b16 %v173
    %v567 = vunpack.c.h.b16 %v173
    %v568 = vunpack.c.l.b16 %v174
    %v569 = vunpack.c.h.b16 %v174
    %v570 = vunpack.c.l.b16 %v175
    %v571 = vunpack.c.h.b16 %v175
    %v572 = vunpack.c.l.b16 %v176
    %v573 = vunpack.c.h.b16 %v176
    %v574 = vunpack.c.l.b16 %v177
    %v575 = vunpack.c.h.b16 %v177
    %v576 = vunpack.c.l.b16 %v178
    %v577 = vunpack.c.h.b16 %v178
    %v578 = vunpack.c.l.b16 %v179
    %v579 = vunpack.c.h.b16 %v179
    %v580 = vunpack.c.l.b16 %v180
    %v581 = vunpack.c.h.b16 %v180
    %v582 = vunpack.c.l.b16 %v181
    %v583 = vunpack.c.h.b16 %v181
    %v584 = vunpack.c.l.b16 %v182
    %v585 = vunpack.c.h.b16 %v182
    %v586 = vunpack.c.l.b16 %v183
    %v587 = vunpack.c.h.b16 %v183
    %v588 = vunpack.c.l.b16 %v184
    %v589 = vunpack.c.h.b16 %v184
    %v590 = vunpack.c.l.b16 %v185
    %v591 = vunpack.c.h.b16 %v185
    %v592 = vunpack.c.l.b16 %v186
    %v593 = vunpack.c.h.b16 %v186
    %v594 = vunpack.c.l.b16 %v187
    %v595 = vunpack.c.h.b16 %v187
    %v596 = vunpack.c.l.b16 %v188
    %v597 = vunpack.c.h.b16 %v188
    %v598 = vunpack.c.l.b16 %v189
    %v599 = vunpack.c.h.b16 %v189
    %v600 = vunpack.c.l.b16 %v190
    %v601 = vunpack.c.h.b16 %v190
    %v602 = vunpack.c.l.b16 %v191
    %v603 = vunpack.c.h.b16 %v191
    %v604 = vunpack.c.l.b16 %v192
    %v605 = vunpack.c.h.b16 %v192
    %v606 = vunpack.c.l.b16 %v193
    %v607 = vunpack.c.h.b16 %v193
    %v608 = vunpack.c.l.b16 %v194
    %v609 = vunpack.c.h.b16 %v194
    %v610 = vunpack.c.l.b16 %v195
    %v611 = vunpack.c.h.b16 %v195
    %v612 = vunpack.c.l.b16 %v196
    %v613 = vunpack.c.h.b16 %v196
    %v614 = vunpack.c.l.b16 %v197
    %v615 = vunpack.c.h.b16 %v197
    %v616 = vunpack.c.l.b16 %v198
    %v617 = vunpack.c.h.b16 %v198
    %v618 = vunpack.c.l.b16 %v199
    %v619 = vunpack.c.h.b16 %v199
    %v620 = vunpack.c.l.b16 %v200
    %v621 = vunpack.c.h.b16 %v200
    %v622 = vunpack.c.l.b16 %v201
    %v623 = vunpack.c.h.b16 %v201
    %v624 = vunpack.c.l.b16 %v202
    %v625 = vunpack.c.h.b16 %v202
    %v626 = vunpack.c.l.b16 %v203
    %v627 = vunpack.c.h.b16 %v203
    %v628 = vunpack.c.l.b16 %v204
    %v629 = vunpack.c.h.b16 %v204
    %v630 = vunpack.c.l.b16 %v205
    %v631 = vunpack.c.h.b16 %v205
    %v632 = vunpack.c.l.b16 %v206
    %v633 = vunpack.c.h.b16 %v206
    %v634 = vunpack.c.l.b16 %v207
    %v635 = vunpack.c.h.b16 %v207
    %v636 = vunpack.c.l.b16 %v208
    %v637 = vunpack.c.h.b16 %v208
    %v638 = vunpack.c.l.b16 %v209
    %v639 = vunpack.c.h.b16 %v209
    %v640 = vunpack.c.l.b16 %v210
    %v641 = vunpack.c.h.b16 %v210
    %v642 = vunpack.c.l.b16 %v211
    %v643 = vunpack.c.h.b16 %v211
    %v644 = vunpack.c.l.b16 %v212
    %v645 = vunpack.c.h.b16 %v212
    %v646 = vunpack.c.l.b16 %v213
    %v647 = vunpack.c.h.b16 %v213
    %v648 = vunpack.c.l.b16 %v214
    %v649 = vunpack.c.h.b16 %v214
    %v650 = vunpack.c.l.b16 %v215
    %v651 = vunpack.c.h.b16 %v215
    %v652 = vunpack.c.l.b16 %v216
    %v653 = vunpack.c.h.b16 %v216
    %v654 = vunpack.c.l.b16 %v217
    %v655 = vunpack.c.h.b16 %v217
    %v656 = vunpack.c.l.b16 %v218
    %v657 = vunpack.c.h.b16 %v218
    %v658 = vunpack.c.l.b16 %v219
    %v659 = vunpack.c.h.b16 %v219
    %v660 = vunpack.c.l.b16 %v220
    %v661 = vunpack.c.h.b16 %v220
    %v662 = vunpack.c.l.b16 %v221
    %v663 = vunpack.c.h.b16 %v221
    %v664 = vunpack.c.l.b16 %v222
    %v665 = vunpack.c.h.b16 %v222
    %v666 = vunpack.c.l.b16 %v223
    %v667 = vunpack.c.h.b16 %v223
    %v668 = vunpack.c.l.b16 %v224
    %v669 = vunpack.c.h.b16 %v224
    %v670 = vunpack.c.l.b16 %v225
    %v671 = vunpack.c.h.b16 %v225
    %v672 = vunpack.c.l.b16 %v226
    %v673 = vunpack.c.h.b16 %v226
    %v674 = vunpack.c.l.b16 %v227
    %v675 = vunpack.c.h.b16 %v227
    %v676 = vunpack.c.l.b16 %v228
    %v677 = vunpack.c.h.b16 %v228
    %v678 = vunpack.c.l.b16 %v229
    %v679 = vunpack.c.h.b16 %v229
    %v680 = vunpack.c.l.b16 %v230
    %v681 = vunpack.c.h.b16 %v230
    %v682 = vunpack.c.l.b16 %v231
    %v683 = vunpack.c.h.b16 %v231
    %v684 = vunpack.c.l.b16 %v232
    %v685 = vunpack.c.h.b16 %v232
    %v686 = vunpack.c.l.b16 %v233
    %v687 = vunpack.c.h.b16 %v233
    %v688 = vunpack.c.l.b16 %v234
    %v689 = vunpack.c.h.b16 %v234
    %v690 = vunpack.c.l.b16 %v235
    %v691 = vunpack.c.h.b16 %v235
    %v692 = vunpack.c.l.b16 %v236
    %v693 = vunpack.c.h.b16 %v236
    %v694 = vunpack.c.l.b16 %v237
    %v695 = vunpack.c.h.b16 %v237
    %v696 = vunpack.c.l.b16 %v238
    %v697 = vunpack.c.h.b16 %v238
    %v698 = vunpack.c.l.b16 %v239
    %v699 = vunpack.c.h.b16 %v239
    %v700 = vunpack.c.l.b16 %v240
    %v701 = vunpack.c.h.b16 %v240
    %v702 = vunpack.c.l.b16 %v241
    %v703 = vunpack.c.h.b16 %v241
    %v704 = vunpack.c.l.b16 %v242
    %v705 = vunpack.c.h.b16 %v242
    %v706 = vunpack.c.l.b16 %v243
    %v707 = vunpack.c.h.b16 %v243
    %v708 = vunpack.c.l.b16 %v244
    %v709 = vunpack.c.h.b16 %v244
    %v710 = vunpack.c.l.b16 %v245
    %v711 = vunpack.c.h.b16 %v245
    %v712 = vunpack.c.l.b16 %v246
    %v713 = vunpack.c.h.b16 %v246
    %v714 = vunpack.c.l.b16 %v247
    %v715 = vunpack.c.h.b16 %v247
    %v716 = vunpack.c.l.b16 %v248
    %v717 = vunpack.c.h.b16 %v248
    %v718 = vunpack.c.l.b16 %v249
    %v719 = vunpack.c.h.b16 %v249
    %v720 = vpack.c.b16 %v466, %v464
    %v721 = vpack.c.b16 %v467, %v465
    %v722 = vpack.c.b16 %v470, %v468
    %v723 = vpack.c.b16 %v471, %v469
    %v724 = vpack.c.b16 %v474, %v472
    %v725 = vpack.c.b16 %v475, %v473
    %v726 = vpack.c.b16 %v478, %v476
    %v727 = vpack.c.b16 %v479, %v477
    %v728 = vpack.c.b16 %v482, %v480
    %v729 = vpack.c.b16 %v483, %v481
    %v730 = vpack.c.b16 %v486, %v484
    %v731 = vpack.c.b16 %v487, %v485
    %v732 = vpack.c.b16 %v490, %v488
    %v733 = vpack.c.b16 %v491, %v489
    %v734 = vpack.c.b16 %v494, %v492
    %v735 = vpack.c.b16 %v495, %v493
    %v736 = vpack.c.b16 %v498, %v496
    %v737 = vpack.c.b16 %v499, %v497
    %v738 = vpack.c.b16 %v502, %v500
    %v739 = vpack.c.b16 %v503, %v501
    %v740 = vpack.c.b16 %v506, %v504
    %v741 = vpack.c.b16 %v507, %v505
    %v742 = vpack.c.b16 %v510, %v508
    %v743 = vpack.c.b16 %v511, %v509
    %v744 = vpack.c.b16 %v514, %v512
    %v745 = vpack.c.b16 %v515, %v513
    %v746 = vpack.c.b16 %v518, %v516
    %v747 = vpack.c.b16 %v519, %v517
    %v748 = vpack.c.b16 %v522, %v520
    %v749 = vpack.c.b16 %v523, %v521
    %v750 = vpack.c.b16 %v526, %v524
    %v751 = vpack.c.b16 %v527, %v525
    %v752 = vpack.c.b16 %v530, %v528
    %v753 = vpack.c.b16 %v531, %v529
    %v754 = vpack.c.b16 %v534, %v532
    %v755 = vpack.c.b16 %v535, %v533
    %v756 = vpack.c.b16 %v538, %v536
    %v757 = vpack.c.b16 %v539, %v537
    %v758 = vpack.c.b16 %v542, %v540
    %v759 = vpack.c.b16 %v543, %v541
    %v760 = vpack.c.b16 %v546, %v544
    %v761 = vpack.c.b16 %v547, %v545
    %v762 = vpack.c.b16 %v550, %v548
    %v763 = vpack.c.b16 %v551, %v549
    %v764 = vpack.c.b16 %v554, %v552
    %v765 = vpack.c.b16 %v555, %v553
    %v766 = vpack.c.b16 %v558, %v556
    %v767 = vpack.c.b16 %v559, %v557
    %v768 = vpack.c.b16 %v562, %v560
    %v769 = vpack.c.b16 %v563, %v561
    %v770 = vpack.c.b16 %v566, %v564
    %v771 = vpack.c.b16 %v567, %v565
    %v772 = vpack.c.b16 %v570, %v568
    %v773 = vpack.c.b16 %v571, %v569
    %v774 = vpack.c.b16 %v574, %v572
    %v775 = vpack.c.b16 %v575, %v573
    %v776 = vpack.c.b16 %v578, %v576
    %v777 = vpack.c.b16 %v579, %v577
    %v778 = vpack.c.b16 %v582, %v580
    %v779 = vpack.c.b16 %v583, %v581
    %v780 = vpack.c.b16 %v586, %v584
    %v781 = vpack.c.b16 %v587, %v585
    %v782 = vpack.c.b16 %v590, %v588
    %v783 = vpack.c.b16 %v591, %v589
    %v784 = vpack.c.b16 %v594, %v592
    %v785 = vpack.c.b16 %v595, %v593
    %v786 = vpack.c.b16 %v598, %v596
    %v787 = vpack.c.b16 %v599, %v597
    %v788 = vpack.c.b16 %v602, %v600
    %v789 = vpack.c.b16 %v603, %v601
    %v790 = vpack.c.b16 %v606, %v604
    %v791 = vpack.c.b16 %v607, %v605
    %v792 = vpack.c.b16 %v610, %v608
    %v793 = vpack.c.b16 %v611, %v609
    %v794 = vpack.c.b16 %v614, %v612
    %v795 = vpack.c.b16 %v615, %v613
    %v796 = vpack.c.b16 %v618, %v616
    %v797 = vpack.c.b16 %v619, %v617
    %v798 = vpack.c.b16 %v622, %v620
    %v799 = vpack.c.b16 %v623, %v621
    %v800 = vpack.c.b16 %v626, %v624
    %v801 = vpack.c.b16 %v627, %v625
    %v802 = vpack.c.b16 %v630, %v628
    %v803 = vpack.c.b16 %v631, %v629
    %v804 = vpack.c.b16 %v634, %v632
    %v805 = vpack.c.b16 %v635, %v633
    %v806 = vpack.c.b16 %v638, %v636
    %v807 = vpack.c.b16 %v639, %v637
    %v808 = vpack.c.b16 %v642, %v640
    %v809 = vpack.c.b16 %v643, %v641
    %v810 = vpack.c.b16 %v646, %v644
    %v811 = vpack.c.b16 %v647, %v645
    %v812 = vpack.c.b16 %v650, %v648
    %v813 = vpack.c.b16 %v651, %v649
    %v814 = vpack.c.b16 %v654, %v652
    %v815 = vpack.c.b16 %v655, %v653
    %v816 = vpack.c.b16 %v658, %v656
    %v817 = vpack.c.b16 %v659, %v657
    %v818 = vpack.c.b16 %v662, %v660
    %v819 = vpack.c.b16 %v663, %v661
    %v820 = vpack.c.b16 %v666, %v664
    %v821 = vpack.c.b16 %v667, %v665
    %v822 = vpack.c.b16 %v670, %v668
    %v823 = vpack.c.b16 %v671, %v669
    %v824 = vpack.c.b16 %v674, %v672
    %v825 = vpack.c.b16 %v675, %v673
    %v826 = vpack.c.b16 %v678, %v676
    %v827 = vpack.c.b16 %v679, %v677
    %v828 = vpack.c.b16 %v682, %v680
    %v829 = vpack.c.b16 %v683, %v681
    %v830 = vpack.c.b16 %v686, %v684
    %v831 = vpack.c.b16 %v687, %v685
    %v832 = vpack.c.b16 %v690, %v688
    %v833 = vpack.c.b16 %v691, %v689
    %v834 = vpack.c.b16 %v694, %v692
    %v835 = vpack.c.b16 %v695, %v693
    %v836 = vpack.c.b16 %v698, %v696
    %v837 = vpack.c.b16 %v699, %v697
    %v838 = vpack.c.b16 %v702, %v700
    %v839 = vpack.c.b16 %v703, %v701
    %v840 = vpack.c.b16 %v706, %v704
    %v841 = vpack.c.b16 %v707, %v705
    %v842 = vpack.c.b16 %v710, %v708
    %v843 = vpack.c.b16 %v711, %v709
    %v844 = vpack.c.b16 %v714, %v712
    %v845 = vpack.c.b16 %v715, %v713
    %v846 = vpack.c.b16 %v718, %v716
    %v847 = vpack.c.b16 %v719, %v717
    %v1040 = vunpack.c.l.b16 %v250
    %v1041 = vunpack.c.h.b16 %v250
    %v1042 = vunpack.c.l.b16 %v251
    %v1043 = vunpack.c.h.b16 %v251
    %v1044 = vunpack.c.l.b16 %v252
    %v1045 = vunpack.c.h.b16 %v252
    %v1046 = vunpack.c.l.b16 %v253
    %v1047 = vunpack.c.h.b16 %v253
    %v1048 = vunpack.c.l.b16 %v254
    %v1049 = vunpack.c.h.b16 %v254
    %v1050 = vunpack.c.l.b16 %v255
    %v1051 = vunpack.c.h.b16 %v255
    %v1052 = vunpack.c.l.b16 %v256
    %v1053 = vunpack.c.h.b16 %v256
    %v1054 = vunpack.c.l.b16 %v257
    %v1055 = vunpack.c.h.b16 %v257
    %v1056 = vunpack.c.l.b16 %v258
    %v1057 = vunpack.c.h.b16 %v258
    %v1058 = vunpack.c.l.b16 %v259
    %v1059 = vunpack.c.h.b16 %v259
    %v1060 = vunpack.c.l.b16 %v260
    %v1061 = vunpack.c.h.b16 %v260
    %v1062 = vunpack.c.l.b16 %v261
    %v1063 = vunpack.c.h.b16 %v261
    %v1064 = vunpack.c.l.b16 %v262
    %v1065 = vunpack.c.h.b16 %v262
    %v1066 = vunpack.c.l.b16 %v263
    %v1067 = vunpack.c.h.b16 %v263
    %v1068 = vunpack.c.l.b16 %v264
    %v1069 = vunpack.c.h.b16 %v264
    %v1070 = vunpack.c.l.b16 %v265
    %v1071 = vunpack.c.h.b16 %v265
    %v1072 = vunpack.c.l.b16 %v266
    %v1073 = vunpack.c.h.b16 %v266
    %v1074 = vunpack.c.l.b16 %v267
    %v1075 = vunpack.c.h.b16 %v267
    %v1076 = vunpack.c.l.b16 %v268
    %v1077 = vunpack.c.h.b16 %v268
    %v1078 = vunpack.c.l.b16 %v269
    %v1079 = vunpack.c.h.b16 %v269
    %v1080 = vunpack.c.l.b16 %v270
    %v1081 = vunpack.c.h.b16 %v270
    %v1082 = vunpack.c.l.b16 %v271
    %v1083 = vunpack.c.h.b16 %v271
    %v1084 = vunpack.c.l.b16 %v272
    %v1085 = vunpack.c.h.b16 %v272
    %v1086 = vunpack.c.l.b16 %v273
    %v1087 = vunpack.c.h.b16 %v273
    %v1088 = vunpack.c.l.b16 %v274
    %v1089 = vunpack.c.h.b16 %v274
    %v1090 = vunpack.c.l.b16 %v275
    %v1091 = vunpack.c.h.b16 %v275
    %v1092 = vunpack.c.l.b16 %v276
    %v1093 = vunpack.c.h.b16 %v276
    %v1094 = vunpack.c.l.b16 %v277
    %v1095 = vunpack.c.h.b16 %v277
    %v1096 = vunpack.c.l.b16 %v278
    %v1097 = vunpack.c.h.b16 %v278
    %v1098 = vunpack.c.l.b16 %v279
    %v1099 = vunpack.c.h.b16 %v279
    %v1100 = vunpack.c.l.b16 %v280
    %v1101 = vunpack.c.h.b16 %v280
    %v1102 = vunpack.c.l.b16 %v281
    %v1103 = vunpack.c.h.b16 %v281
    %v1104 = vunpack.c.l.b16 %v282
    %v1105 = vunpack.c.h.b16 %v282
    %v1106 = vunpack.c.l.b16 %v283
    %v1107 = vunpack.c.h.b16 %v283
    %v1108 = vunpack.c.l.b16 %v284
    %v1109 = vunpack.c.h.b16 %v284
    %v1110 = vunpack.c.l.b16 %v285
    %v1111 = vunpack.c.h.b16 %v285
    %v1112 = vunpack.c.l.b16 %v286
    %v1113 = vunpack.c.h.b16 %v286
    %v1114 = vunpack.c.l.b16 %v287
    %v1115 = vunpack.c.h.b16 %v287
    %v1116 = vunpack.c.l.b16 %v288
    %v1117 = vunpack.c.h.b16 %v288
    %v1118 = vunpack.c.l.b16 %v289
    %v1119 = vunpack.c.h.b16 %v289
    %v1120 = vunpack.c.l.b16 %v290
    %v1121 = vunpack.c.h.b16 %v290
    %v1122 = vunpack.c.l.b16 %v291
    %v1123 = vunpack.c.h.b16 %v291
    %v1124 = vunpack.c.l.b16 %v292
    %v1125 = vunpack.c.h.b16 %v292
    %v1126 = vunpack.c.l.b16 %v293
    %v1127 = vunpack.c.h.b16 %v293
    %v1128 = vunpack.c.l.b16 %v294
    %v1129 = vunpack.c.h.b16 %v294
    %v1130 = vunpack.c.l.b16 %v295
    %v1131 = vunpack.c.h.b16 %v295
    %v1132 = vunpack.c.l.b16 %v296
    %v1133 = vunpack.c.h.b16 %v296
    %v1134 = vunpack.c.l.b16 %v297
    %v1135 = vunpack.c.h.b16 %v297
    %v1136 = vunpack.c.l.b16 %v298
    %v1137 = vunpack.c.h.b16 %v298
    %v1138 = vunpack.c.l.b16 %v299
    %v1139 = vunpack.c.h.b16 %v299
    %v1140 = vunpack.c.l.b16 %v300
    %v1141 = vunpack.c.h.b16 %v300
    %v1142 = vunpack.c.l.b16 %v301
    %v1143 = vunpack.c.h.b16 %v301
    %v1144 = vunpack.c.l.b16 %v302
    %v1145 = vunpack.c.h.b16 %v302
    %v1146 = vunpack.c.l.b16 %v303
    %v1147 = vunpack.c.h.b16 %v303
    %v1148 = vunpack.c.l.b16 %v304
    %v1149 = vunpack.c.h.b16 %v304
    %v1150 = vunpack.c.l.b16 %v305
    %v1151 = vunpack.c.h.b16 %v305
    %v1152 = vunpack.c.l.b16 %v306
    %v1153 = vunpack.c.h.b16 %v306
    %v1154 = vunpack.c.l.b16 %v307
    %v1155 = vunpack.c.h.b16 %v307
    %v1156 = vunpack.c.l.b16 %v308
    %v1157 = vunpack.c.h.b16 %v308
    %v1158 = vunpack.c.l.b16 %v309
    %v1159 = vunpack.c.h.b16 %v309
    %v1160 = vunpack.c.l.b16 %v310
    %v1161 = vunpack.c.h.b16 %v310
    %v1162 = vunpack.c.l.b16 %v311
    %v1163 = vunpack.c.h.b16 %v311
    %v1164 = vunpack.c.l.b16 %v312
    %v1165 = vunpack.c.h.b16 %v312
    %v1166 = vunpack.c.l.b16 %v313
    %v1167 = vunpack.c.h.b16 %v313
    %v1168 = vpack.c.b16 %v1044, %v1040
    %v1169 = vpack.c.b16 %v1045, %v1041
    %v1170 = vpack.c.b16 %v1046, %v1042
    %v1171 = vpack.c.b16 %v1047, %v1043
    %v1172 = vpack.c.b16 %v1052, %v1048
    %v1173 = vpack.c.b16 %v1053, %v1049
    %v1174 = vpack.c.b16 %v1054, %v1050
    %v1175 = vpack.c.b16 %v1055, %v1051
    %v1176 = vpack.c.b16 %v1060, %v1056
    %v1177 = vpack.c.b16 %v1061, %v1057
    %v1178 = vpack.c.b16 %v1062, %v1058
    %v1179 = vpack.c.b16 %v1063, %v1059
    %v1180 = vpack.c.b16 %v1068, %v1064
    %v1181 = vpack.c.b16 %v1069, %v1065
    %v1182 = vpack.c.b16 %v1070, %v1066
    %v1183 = vpack.c.b16 %v1071, %v1067
    %v1184 = vpack.c.b16 %v1076, %v1072
    %v1185 = vpack.c.b16 %v1077, %v1073
    %v1186 = vpack.c.b16 %v1078, %v1074
    %v1187 = vpack.c.b16 %v1079, %v1075
    %v1188 = vpack.c.b16 %v1084, %v1080
    %v1189 = vpack.c.b16 %v1085, %v1081
    %v1190 = vpack.c.b16 %v1086, %v1082
    %v1191 = vpack.c.b16 %v1087, %v1083
    %v1192 = vpack.c.b16 %v1092, %v1088
    %v1193 = vpack.c.b16 %v1093, %v1089
    %v1194 = vpack.c.b16 %v1094, %v1090
    %v1195 = vpack.c.b16 %v1095, %v1091
    %v1196 = vpack.c.b16 %v1100, %v1096
    %v1197 = vpack.c.b16 %v1101, %v1097
    %v1198 = vpack.c.b16 %v1102, %v1098
    %v1199 = vpack.c.b16 %v1103, %v1099
    %v1200 = vpack.c.b16 %v1108, %v1104
    %v1201 = vpack.c.b16 %v1109, %v1105
    %v1202 = vpack.c.b16 %v1110, %v1106
    %v1203 = vpack.c.b16 %v1111, %v1107
    %v1204 = vpack.c.b16 %v1116, %v1112
    %v1205 = vpack.c.b16 %v1117, %v1113
    %v1206 = vpack.c.b16 %v1118, %v1114
    %v1207 = vpack.c.b16 %v1119, %v1115
    %v1208 = vpack.c.b16 %v1124, %v1120
    %v1209 = vpack.c.b16 %v1125, %v1121
    %v1210 = vpack.c.b16 %v1126, %v1122
    %v1211 = vpack.c.b16 %v1127, %v1123
    %v1212 = vpack.c.b16 %v1132, %v1128
    %v1213 = vpack.c.b16 %v1133, %v1129
    %v1214 = vpack.c.b16 %v1134, %v1130
    %v1215 = vpack.c.b16 %v1135, %v1131
    %v1216 = vpack.c.b16 %v1140, %v1136
    %v1217 = vpack.c.b16 %v1141, %v1137
    %v1218 = vpack.c.b16 %v1142, %v1138
    %v1219 = vpack.c.b16 %v1143, %v1139
    %v1220 = vpack.c.b16 %v1148, %v1144
    %v1221 = vpack.c.b16 %v1149, %v1145
    %v1222 = vpack.c.b16 %v1150, %v1146
    %v1223 = vpack.c.b16 %v1151, %v1147
    %v1224 = vpack.c.b16 %v1156, %v1152
    %v1225 = vpack.c.b16 %v1157, %v1153
    %v1226 = vpack.c.b16 %v1158, %v1154
    %v1227 = vpack.c.b16 %v1159, %v1155
    %v1228 = vpack.c.b16 %v1164, %v1160
    %v1229 = vpack.c.b16 %v1165, %v1161
    %v1230 = vpack.c.b16 %v1166, %v1162
    %v1231 = vpack.c.b16 %v1167, %v1163
    %1296 = vmatprep.subr.bf16.mxu0 %v1169
    %1297 = vmatpush1.bf16.msra.mxu0 %v1168
    %1298 = vmatprep.subr.bf16.mxu0 %v1173
    %1299 = vmatpush1.bf16.msra.mxu0 %v1172
    %1300 = vmatprep.subr.bf16.mxu0 %v1177
    %1301 = vmatpush1.bf16.msra.mxu0 %v1176
    %1302 = vmatprep.subr.bf16.mxu0 %v1181
    %1303 = vmatpush1.bf16.msra.mxu0 %v1180
    %1304 = vmatprep.subr.bf16.mxu0 %v1185
    %1305 = vmatpush1.bf16.msra.mxu0 %v1184
    %1306 = vmatprep.subr.bf16.mxu0 %v1189
    %1307 = vmatpush1.bf16.msra.mxu0 %v1188
    %1308 = vmatprep.subr.bf16.mxu0 %v1193
    %1309 = vmatpush1.bf16.msra.mxu0 %v1192
    %1310 = vmatprep.subr.bf16.mxu0 %v1197
    %1311 = vmatpush1.bf16.msra.mxu0 %v1196
    %1312 = vmatprep.subr.bf16.mxu0 %v1201
    %1313 = vmatpush1.bf16.msra.mxu0 %v1200
    %1314 = vmatprep.subr.bf16.mxu0 %v1205
    %1315 = vmatpush1.bf16.msra.mxu0 %v1204
    %1316 = vmatprep.subr.bf16.mxu0 %v1209
    %1317 = vmatpush1.bf16.msra.mxu0 %v1208
    %1318 = vmatprep.subr.bf16.mxu0 %v1213
    %1319 = vmatpush1.bf16.msra.mxu0 %v1212
    %1320 = vmatprep.subr.bf16.mxu0 %v1217
    %1321 = vmatpush1.bf16.msra.mxu0 %v1216
    %1322 = vmatprep.subr.bf16.mxu0 %v1221
    %1323 = vmatpush1.bf16.msra.mxu0 %v1220
    %1324 = vmatprep.subr.bf16.mxu0 %v1225
    %1325 = vmatpush1.bf16.msra.mxu0 %v1224
    %1326 = vmatprep.subr.bf16.mxu0 %v1229
    %1327 = vmatpush1.bf16.msra.mxu0 %v1228
    %1328 = vmatprep.mubr.bf16.mxu0 %v721
    %1329 = vmatmul.mubr.bf16.gmra.mrb[0].mxu0 %v720
    %v1330 = vpop.f32.mrb[0].mxu0
    %v1331 = vadd.f32 %v319, %v1330
    %v1332 = vpop.f32.mrb[0].mxu0
    %v1333 = vadd.f32 %v323, %v1332
    %v1334 = vpop.f32.mrb[0].mxu0
    %v1335 = vadd.f32 %v319, %v1334
    %v1336 = vpop.f32.mrb[0].mxu0
    %v1337 = vadd.f32 %v323, %v1336
    %1338 = vmatprep.mubr.bf16.mxu0 %v723
    %1339 = vmatmul.mubr.bf16.gmra.mrb[0].mxu0 %v722
    %v1340 = vpop.f32.mrb[0].mxu0
    %v1341 = vadd.f32 %v319, %v1340
    %v1342 = vpop.f32.mrb[0].mxu0
    %v1343 = vadd.f32 %v323, %v1342
    %v1344 = vpop.f32.mrb[0].mxu0
    %v1345 = vadd.f32 %v319, %v1344
    %v1346 = vpop.f32.mrb[0].mxu0
    %v1347 = vadd.f32 %v323, %v1346
    %1348 = vmatprep.mubr.bf16.mxu0 %v725
    %1349 = vmatmul.mubr.bf16.gmra.mrb[0].mxu0 %v724
    %v1350 = vpop.f32.mrb[0].mxu0
    %v1351 = vadd.f32 %v319, %v1350
    %v1352 = vpop.f32.mrb[0].mxu0
    %v1353 = vadd.f32 %v323, %v1352
    %v1354 = vpop.f32.mrb[0].mxu0
    %v1355 = vadd.f32 %v319, %v1354
    %v1356 = vpop.f32.mrb[0].mxu0
    %v1357 = vadd.f32 %v323, %v1356
    %1358 = vmatprep.mubr.bf16.mxu0 %v727
    %1359 = vmatmul.mubr.bf16.gmra.mrb[0].mxu0 %v726
    %v1360 = vpop.f32.mrb[0].mxu0
    %v1361 = vadd.f32 %v319, %v1360
    %v1362 = vpop.f32.mrb[0].mxu0
    %v1363 = vadd.f32 %v323, %v1362
    %v1364 = vpop.f32.mrb[0].mxu0
    %v1365 = vadd.f32 %v319, %v1364
    %v1366 = vpop.f32.mrb[0].mxu0
    %v1367 = vadd.f32 %v323, %v1366
    %1368 = vmatprep.mubr.bf16.mxu0 %v729
    %1369 = vmatmul.mubr.bf16.gmra.mrb[0].mxu0 %v728
    %v1370 = vpop.f32.mrb[0].mxu0
    %v1371 = vadd.f32 %v319, %v1370
    %v1372 = vpop.f32.mrb[0].mxu0
    %v1373 = vadd.f32 %v323, %v1372
    %v1374 = vpop.f32.mrb[0].mxu0
    %v1375 = vadd.f32 %v319, %v1374
    %v1376 = vpop.f32.mrb[0].mxu0
    %v1377 = vadd.f32 %v323, %v1376
    %1378 = vmatprep.mubr.bf16.mxu0 %v731
    %1379 = vmatmul.mubr.bf16.gmra.mrb[0].mxu0 %v730
    %v1380 = vpop.f32.mrb[0].mxu0
    %v1381 = vadd.f32 %v319, %v1380
    %v1382 = vpop.f32.mrb[0].mxu0
    %v1383 = vadd.f32 %v323, %v1382
    %v1384 = vpop.f32.mrb[0].mxu0
    %v1385 = vadd.f32 %v319, %v1384
    %v1386 = vpop.f32.mrb[0].mxu0
    %v1387 = vadd.f32 %v323, %v1386
    %1388 = vmatprep.mubr.bf16.mxu0 %v733
    %1389 = vmatmul.mubr.bf16.gmra.mrb[0].mxu0 %v732
    %v1390 = vpop.f32.mrb[0].mxu0
    %v1391 = vadd.f32 %v319, %v1390
    %v1392 = vpop.f32.mrb[0].mxu0
    %v1393 = vadd.f32 %v323, %v1392
    %v1394 = vpop.f32.mrb[0].mxu0
    %v1395 = vadd.f32 %v319, %v1394
    %v1396 = vpop.f32.mrb[0].mxu0
    %v1397 = vadd.f32 %v323, %v1396
    %1398 = vmatprep.mubr.bf16.mxu0 %v735
    %1399 = vmatmul.mubr.bf16.gmra.mrb[0].mxu0 %v734
    %v1400 = vpop.f32.mrb[0].mxu0
    %v1401 = vadd.f32 %v319, %v1400
    %v1402 = vpop.f32.mrb[0].mxu0
    %v1403 = vadd.f32 %v323, %v1402
    %v1404 = vpop.f32.mrb[0].mxu0
    %v1405 = vadd.f32 %v319, %v1404
    %v1406 = vpop.f32.mrb[0].mxu0
    %v1407 = vadd.f32 %v323, %v1406
    %1408 = vmatprep.mubr.bf16.mxu0 %v737
    %1409 = vmatmul.mubr.bf16.gmra.mrb[0].mxu0 %v736
    %v1410 = vpop.f32.mrb[0].mxu0
    %v1411 = vadd.f32 %v319, %v1410
    %v1412 = vpop.f32.mrb[0].mxu0
    %v1413 = vadd.f32 %v323, %v1412
    %v1414 = vpop.f32.mrb[0].mxu0
    %v1415 = vadd.f32 %v319, %v1414
    %v1416 = vpop.f32.mrb[0].mxu0
    %v1417 = vadd.f32 %v323, %v1416
    %1418 = vmatprep.mubr.bf16.mxu0 %v739
    %1419 = vmatmul.mubr.bf16.gmra.mrb[0].mxu0 %v738
    %v1420 = vpop.f32.mrb[0].mxu0
    %v1421 = vadd.f32 %v319, %v1420
    %v1422 = vpop.f32.mrb[0].mxu0
    %v1423 = vadd.f32 %v323, %v1422
    %v1424 = vpop.f32.mrb[0].mxu0
    %v1425 = vadd.f32 %v319, %v1424
    %v1426 = vpop.f32.mrb[0].mxu0
    %v1427 = vadd.f32 %v323, %v1426
    %1428 = vmatprep.mubr.bf16.mxu0 %v741
    %1429 = vmatmul.mubr.bf16.gmra.mrb[0].mxu0 %v740
    %v1430 = vpop.f32.mrb[0].mxu0
    %v1431 = vadd.f32 %v319, %v1430
    %v1432 = vpop.f32.mrb[0].mxu0
    %v1433 = vadd.f32 %v323, %v1432
    %v1434 = vpop.f32.mrb[0].mxu0
    %v1435 = vadd.f32 %v319, %v1434
    %v1436 = vpop.f32.mrb[0].mxu0
    %v1437 = vadd.f32 %v323, %v1436
    %1438 = vmatprep.mubr.bf16.mxu0 %v743
    %1439 = vmatmul.mubr.bf16.gmra.mrb[0].mxu0 %v742
    %v1440 = vpop.f32.mrb[0].mxu0
    %v1441 = vadd.f32 %v319, %v1440
    %v1442 = vpop.f32.mrb[0].mxu0
    %v1443 = vadd.f32 %v323, %v1442
    %v1444 = vpop.f32.mrb[0].mxu0
    %v1445 = vadd.f32 %v319, %v1444
    %v1446 = vpop.f32.mrb[0].mxu0
    %v1447 = vadd.f32 %v323, %v1446
    %1448 = vmatprep.mubr.bf16.mxu0 %v745
    %1449 = vmatmul.mubr.bf16.gmra.mrb[0].mxu0 %v744
    %v1450 = vpop.f32.mrb[0].mxu0
    %v1451 = vadd.f32 %v319, %v1450
    %v1452 = vpop.f32.mrb[0].mxu0
    %v1453 = vadd.f32 %v323, %v1452
    %v1454 = vpop.f32.mrb[0].mxu0
    %v1455 = vadd.f32 %v319, %v1454
    %v1456 = vpop.f32.mrb[0].mxu0
    %v1457 = vadd.f32 %v323, %v1456
    %1458 = vmatprep.mubr.bf16.mxu0 %v747
    %1459 = vmatmul.mubr.bf16.gmra.mrb[0].mxu0 %v746
    %v1460 = vpop.f32.mrb[0].mxu0
    %v1461 = vadd.f32 %v319, %v1460
    %v1462 = vpop.f32.mrb[0].mxu0
    %v1463 = vadd.f32 %v323, %v1462
    %v1464 = vpop.f32.mrb[0].mxu0
    %v1465 = vadd.f32 %v319, %v1464
    %v1466 = vpop.f32.mrb[0].mxu0
    %v1467 = vadd.f32 %v323, %v1466
    %1468 = vmatprep.mubr.bf16.mxu0 %v749
    %1469 = vmatmul.mubr.bf16.gmra.mrb[0].mxu0 %v748
    %v1470 = vpop.f32.mrb[0].mxu0
    %v1471 = vadd.f32 %v319, %v1470
    %v1472 = vpop.f32.mrb[0].mxu0
    %v1473 = vadd.f32 %v323, %v1472
    %v1474 = vpop.f32.mrb[0].mxu0
    %v1475 = vadd.f32 %v319, %v1474
    %v1476 = vpop.f32.mrb[0].mxu0
    %v1477 = vadd.f32 %v323, %v1476
    %1478 = vmatprep.mubr.bf16.mxu0 %v751
    %1479 = vmatmul.mubr.bf16.gmra.mrb[0].mxu0 %v750
    %v1480 = vpop.f32.mrb[0].mxu0
    %v1481 = vadd.f32 %v319, %v1480
    %v1482 = vpop.f32.mrb[0].mxu0
    %v1483 = vadd.f32 %v323, %v1482
    %v1484 = vpop.f32.mrb[0].mxu0
    %v1485 = vadd.f32 %v319, %v1484
    %v1486 = vpop.f32.mrb[0].mxu0
    %v1487 = vadd.f32 %v323, %v1486
    %1488 = vmatprep.mubr.bf16.mxu0 %v753
    %1489 = vmatmul.mubr.bf16.gmra.mrb[0].mxu0 %v752
    %v1490 = vpop.f32.mrb[0].mxu0
    %v1491 = vadd.f32 %v319, %v1490
    %v1492 = vpop.f32.mrb[0].mxu0
    %v1493 = vadd.f32 %v323, %v1492
    %v1494 = vpop.f32.mrb[0].mxu0
    %v1495 = vadd.f32 %v319, %v1494
    %v1496 = vpop.f32.mrb[0].mxu0
    %v1497 = vadd.f32 %v323, %v1496
    %1498 = vmatprep.mubr.bf16.mxu0 %v755
    %1499 = vmatmul.mubr.bf16.gmra.mrb[0].mxu0 %v754
    %v1500 = vpop.f32.mrb[0].mxu0
    %v1501 = vadd.f32 %v319, %v1500
    %v1502 = vpop.f32.mrb[0].mxu0
    %v1503 = vadd.f32 %v323, %v1502
    %v1504 = vpop.f32.mrb[0].mxu0
    %v1505 = vadd.f32 %v319, %v1504
    %v1506 = vpop.f32.mrb[0].mxu0
    %v1507 = vadd.f32 %v323, %v1506
    %1508 = vmatprep.mubr.bf16.mxu0 %v757
    %1509 = vmatmul.mubr.bf16.gmra.mrb[0].mxu0 %v756
    %v1510 = vpop.f32.mrb[0].mxu0
    %v1511 = vadd.f32 %v319, %v1510
    %v1512 = vpop.f32.mrb[0].mxu0
    %v1513 = vadd.f32 %v323, %v1512
    %v1514 = vpop.f32.mrb[0].mxu0
    %v1515 = vadd.f32 %v319, %v1514
    %v1516 = vpop.f32.mrb[0].mxu0
    %v1517 = vadd.f32 %v323, %v1516
    %1518 = vmatprep.mubr.bf16.mxu0 %v759
    %1519 = vmatmul.mubr.bf16.gmra.mrb[0].mxu0 %v758
    %v1520 = vpop.f32.mrb[0].mxu0
    %v1521 = vadd.f32 %v319, %v1520
    %v1522 = vpop.f32.mrb[0].mxu0
    %v1523 = vadd.f32 %v323, %v1522
    %v1524 = vpop.f32.mrb[0].mxu0
    %v1525 = vadd.f32 %v319, %v1524
    %v1526 = vpop.f32.mrb[0].mxu0
    %v1527 = vadd.f32 %v323, %v1526
    %1528 = vmatprep.mubr.bf16.mxu0 %v761
    %1529 = vmatmul.mubr.bf16.gmra.mrb[0].mxu0 %v760
    %v1530 = vpop.f32.mrb[0].mxu0
    %v1531 = vadd.f32 %v319, %v1530
    %v1532 = vpop.f32.mrb[0].mxu0
    %v1533 = vadd.f32 %v323, %v1532
    %v1534 = vpop.f32.mrb[0].mxu0
    %v1535 = vadd.f32 %v319, %v1534
    %v1536 = vpop.f32.mrb[0].mxu0
    %v1537 = vadd.f32 %v323, %v1536
    %1538 = vmatprep.mubr.bf16.mxu0 %v763
    %1539 = vmatmul.mubr.bf16.gmra.mrb[0].mxu0 %v762
    %v1540 = vpop.f32.mrb[0].mxu0
    %v1541 = vadd.f32 %v319, %v1540
    %v1542 = vpop.f32.mrb[0].mxu0
    %v1543 = vadd.f32 %v323, %v1542
    %v1544 = vpop.f32.mrb[0].mxu0
    %v1545 = vadd.f32 %v319, %v1544
    %v1546 = vpop.f32.mrb[0].mxu0
    %v1547 = vadd.f32 %v323, %v1546
    %1548 = vmatprep.mubr.bf16.mxu0 %v765
    %1549 = vmatmul.mubr.bf16.gmra.mrb[0].mxu0 %v764
    %v1550 = vpop.f32.mrb[0].mxu0
    %v1551 = vadd.f32 %v319, %v1550
    %v1552 = vpop.f32.mrb[0].mxu0
    %v1553 = vadd.f32 %v323, %v1552
    %v1554 = vpop.f32.mrb[0].mxu0
    %v1555 = vadd.f32 %v319, %v1554
    %v1556 = vpop.f32.mrb[0].mxu0
    %v1557 = vadd.f32 %v323, %v1556
    %1558 = vmatprep.mubr.bf16.mxu0 %v767
    %1559 = vmatmul.mubr.bf16.gmra.mrb[0].mxu0 %v766
    %v1560 = vpop.f32.mrb[0].mxu0
    %v1561 = vadd.f32 %v319, %v1560
    %v1562 = vpop.f32.mrb[0].mxu0
    %v1563 = vadd.f32 %v323, %v1562
    %v1564 = vpop.f32.mrb[0].mxu0
    %v1565 = vadd.f32 %v319, %v1564
    %v1566 = vpop.f32.mrb[0].mxu0
    %v1567 = vadd.f32 %v323, %v1566
    %1568 = vmatprep.mubr.bf16.mxu0 %v769
    %1569 = vmatmul.mubr.bf16.gmra.mrb[0].mxu0 %v768
    %v1570 = vpop.f32.mrb[0].mxu0
    %v1571 = vadd.f32 %v319, %v1570
    %v1572 = vpop.f32.mrb[0].mxu0
    %v1573 = vadd.f32 %v323, %v1572
    %v1574 = vpop.f32.mrb[0].mxu0
    %v1575 = vadd.f32 %v319, %v1574
    %v1576 = vpop.f32.mrb[0].mxu0
    %v1577 = vadd.f32 %v323, %v1576
    %1578 = vmatprep.mubr.bf16.mxu0 %v771
    %1579 = vmatmul.mubr.bf16.gmra.mrb[0].mxu0 %v770
    %v1580 = vpop.f32.mrb[0].mxu0
    %v1581 = vadd.f32 %v319, %v1580
    %v1582 = vpop.f32.mrb[0].mxu0
    %v1583 = vadd.f32 %v323, %v1582
    %v1584 = vpop.f32.mrb[0].mxu0
    %v1585 = vadd.f32 %v319, %v1584
    %v1586 = vpop.f32.mrb[0].mxu0
    %v1587 = vadd.f32 %v323, %v1586
    %1588 = vmatprep.mubr.bf16.mxu0 %v773
    %1589 = vmatmul.mubr.bf16.gmra.mrb[0].mxu0 %v772
    %v1590 = vpop.f32.mrb[0].mxu0
    %v1591 = vadd.f32 %v319, %v1590
    %v1592 = vpop.f32.mrb[0].mxu0
    %v1593 = vadd.f32 %v323, %v1592
    %v1594 = vpop.f32.mrb[0].mxu0
    %v1595 = vadd.f32 %v319, %v1594
    %v1596 = vpop.f32.mrb[0].mxu0
    %v1597 = vadd.f32 %v323, %v1596
    %1598 = vmatprep.mubr.bf16.mxu0 %v775
    %1599 = vmatmul.mubr.bf16.gmra.mrb[0].mxu0 %v774
    %v1600 = vpop.f32.mrb[0].mxu0
    %v1601 = vadd.f32 %v319, %v1600
    %v1602 = vpop.f32.mrb[0].mxu0
    %v1603 = vadd.f32 %v323, %v1602
    %v1604 = vpop.f32.mrb[0].mxu0
    %v1605 = vadd.f32 %v319, %v1604
    %v1606 = vpop.f32.mrb[0].mxu0
    %v1607 = vadd.f32 %v323, %v1606
    %1608 = vmatprep.mubr.bf16.mxu0 %v777
    %1609 = vmatmul.mubr.bf16.gmra.mrb[0].mxu0 %v776
    %v1610 = vpop.f32.mrb[0].mxu0
    %v1611 = vadd.f32 %v319, %v1610
    %v1612 = vpop.f32.mrb[0].mxu0
    %v1613 = vadd.f32 %v323, %v1612
    %v1614 = vpop.f32.mrb[0].mxu0
    %v1615 = vadd.f32 %v319, %v1614
    %v1616 = vpop.f32.mrb[0].mxu0
    %v1617 = vadd.f32 %v323, %v1616
    %1618 = vmatprep.mubr.bf16.mxu0 %v779
    %1619 = vmatmul.mubr.bf16.gmra.mrb[0].mxu0 %v778
    %v1620 = vpop.f32.mrb[0].mxu0
    %v1621 = vadd.f32 %v319, %v1620
    %v1622 = vpop.f32.mrb[0].mxu0
    %v1623 = vadd.f32 %v323, %v1622
    %v1624 = vpop.f32.mrb[0].mxu0
    %v1625 = vadd.f32 %v319, %v1624
    %v1626 = vpop.f32.mrb[0].mxu0
    %v1627 = vadd.f32 %v323, %v1626
    %1628 = vmatprep.mubr.bf16.mxu0 %v781
    %1629 = vmatmul.mubr.bf16.gmra.mrb[0].mxu0 %v780
    %v1630 = vpop.f32.mrb[0].mxu0
    %v1631 = vadd.f32 %v319, %v1630
    %v1632 = vpop.f32.mrb[0].mxu0
    %v1633 = vadd.f32 %v323, %v1632
    %v1634 = vpop.f32.mrb[0].mxu0
    %v1635 = vadd.f32 %v319, %v1634
    %v1636 = vpop.f32.mrb[0].mxu0
    %v1637 = vadd.f32 %v323, %v1636
    %1638 = vmatprep.mubr.bf16.mxu0 %v783
    %1639 = vmatmul.mubr.bf16.gmra.mrb[0].mxu0 %v782
    %v1640 = vpop.f32.mrb[0].mxu0
    %v1641 = vadd.f32 %v319, %v1640
    %v1642 = vpop.f32.mrb[0].mxu0
    %v1643 = vadd.f32 %v323, %v1642
    %v1644 = vpop.f32.mrb[0].mxu0
    %v1645 = vadd.f32 %v319, %v1644
    %v1646 = vpop.f32.mrb[0].mxu0
    %v1647 = vadd.f32 %v323, %v1646
    %1648 = vmatprep.mubr.bf16.mxu0 %v785
    %1649 = vmatmul.mubr.bf16.gmra.mrb[0].mxu0 %v784
    %v1650 = vpop.f32.mrb[0].mxu0
    %v1651 = vadd.f32 %v319, %v1650
    %v1652 = vpop.f32.mrb[0].mxu0
    %v1653 = vadd.f32 %v323, %v1652
    %v1654 = vpop.f32.mrb[0].mxu0
    %v1655 = vadd.f32 %v319, %v1654
    %v1656 = vpop.f32.mrb[0].mxu0
    %v1657 = vadd.f32 %v323, %v1656
    %1658 = vmatprep.mubr.bf16.mxu0 %v787
    %1659 = vmatmul.mubr.bf16.gmra.mrb[0].mxu0 %v786
    %v1660 = vpop.f32.mrb[0].mxu0
    %v1661 = vadd.f32 %v319, %v1660
    %v1662 = vpop.f32.mrb[0].mxu0
    %v1663 = vadd.f32 %v323, %v1662
    %v1664 = vpop.f32.mrb[0].mxu0
    %v1665 = vadd.f32 %v319, %v1664
    %v1666 = vpop.f32.mrb[0].mxu0
    %v1667 = vadd.f32 %v323, %v1666
    %1668 = vmatprep.mubr.bf16.mxu0 %v789
    %1669 = vmatmul.mubr.bf16.gmra.mrb[0].mxu0 %v788
    %v1670 = vpop.f32.mrb[0].mxu0
    %v1671 = vadd.f32 %v319, %v1670
    %v1672 = vpop.f32.mrb[0].mxu0
    %v1673 = vadd.f32 %v323, %v1672
    %v1674 = vpop.f32.mrb[0].mxu0
    %v1675 = vadd.f32 %v319, %v1674
    %v1676 = vpop.f32.mrb[0].mxu0
    %v1677 = vadd.f32 %v323, %v1676
    %1678 = vmatprep.mubr.bf16.mxu0 %v791
    %1679 = vmatmul.mubr.bf16.gmra.mrb[0].mxu0 %v790
    %v1680 = vpop.f32.mrb[0].mxu0
    %v1681 = vadd.f32 %v319, %v1680
    %v1682 = vpop.f32.mrb[0].mxu0
    %v1683 = vadd.f32 %v323, %v1682
    %v1684 = vpop.f32.mrb[0].mxu0
    %v1685 = vadd.f32 %v319, %v1684
    %v1686 = vpop.f32.mrb[0].mxu0
    %v1687 = vadd.f32 %v323, %v1686
    %1688 = vmatprep.mubr.bf16.mxu0 %v793
    %1689 = vmatmul.mubr.bf16.gmra.mrb[0].mxu0 %v792
    %v1690 = vpop.f32.mrb[0].mxu0
    %v1691 = vadd.f32 %v319, %v1690
    %v1692 = vpop.f32.mrb[0].mxu0
    %v1693 = vadd.f32 %v323, %v1692
    %v1694 = vpop.f32.mrb[0].mxu0
    %v1695 = vadd.f32 %v319, %v1694
    %v1696 = vpop.f32.mrb[0].mxu0
    %v1697 = vadd.f32 %v323, %v1696
    %1698 = vmatprep.mubr.bf16.mxu0 %v795
    %1699 = vmatmul.mubr.bf16.gmra.mrb[0].mxu0 %v794
    %v1700 = vpop.f32.mrb[0].mxu0
    %v1701 = vadd.f32 %v319, %v1700
    %v1702 = vpop.f32.mrb[0].mxu0
    %v1703 = vadd.f32 %v323, %v1702
    %v1704 = vpop.f32.mrb[0].mxu0
    %v1705 = vadd.f32 %v319, %v1704
    %v1706 = vpop.f32.mrb[0].mxu0
    %v1707 = vadd.f32 %v323, %v1706
    %1708 = vmatprep.mubr.bf16.mxu0 %v797
    %1709 = vmatmul.mubr.bf16.gmra.mrb[0].mxu0 %v796
    %v1710 = vpop.f32.mrb[0].mxu0
    %v1711 = vadd.f32 %v319, %v1710
    %v1712 = vpop.f32.mrb[0].mxu0
    %v1713 = vadd.f32 %v323, %v1712
    %v1714 = vpop.f32.mrb[0].mxu0
    %v1715 = vadd.f32 %v319, %v1714
    %v1716 = vpop.f32.mrb[0].mxu0
    %v1717 = vadd.f32 %v323, %v1716
    %1718 = vmatprep.mubr.bf16.mxu0 %v799
    %1719 = vmatmul.mubr.bf16.gmra.mrb[0].mxu0 %v798
    %v1720 = vpop.f32.mrb[0].mxu0
    %v1721 = vadd.f32 %v319, %v1720
    %v1722 = vpop.f32.mrb[0].mxu0
    %v1723 = vadd.f32 %v323, %v1722
    %v1724 = vpop.f32.mrb[0].mxu0
    %v1725 = vadd.f32 %v319, %v1724
    %v1726 = vpop.f32.mrb[0].mxu0
    %v1727 = vadd.f32 %v323, %v1726
    %1728 = vmatprep.mubr.bf16.mxu0 %v801
    %1729 = vmatmul.mubr.bf16.gmra.mrb[0].mxu0 %v800
    %v1730 = vpop.f32.mrb[0].mxu0
    %v1731 = vadd.f32 %v319, %v1730
    %v1732 = vpop.f32.mrb[0].mxu0
    %v1733 = vadd.f32 %v323, %v1732
    %v1734 = vpop.f32.mrb[0].mxu0
    %v1735 = vadd.f32 %v319, %v1734
    %v1736 = vpop.f32.mrb[0].mxu0
    %v1737 = vadd.f32 %v323, %v1736
    %1738 = vmatprep.mubr.bf16.mxu0 %v803
    %1739 = vmatmul.mubr.bf16.gmra.mrb[0].mxu0 %v802
    %v1740 = vpop.f32.mrb[0].mxu0
    %v1741 = vadd.f32 %v319, %v1740
    %v1742 = vpop.f32.mrb[0].mxu0
    %v1743 = vadd.f32 %v323, %v1742
    %v1744 = vpop.f32.mrb[0].mxu0
    %v1745 = vadd.f32 %v319, %v1744
    %v1746 = vpop.f32.mrb[0].mxu0
    %v1747 = vadd.f32 %v323, %v1746
    %1748 = vmatprep.mubr.bf16.mxu0 %v805
    %1749 = vmatmul.mubr.bf16.gmra.mrb[0].mxu0 %v804
    %v1750 = vpop.f32.mrb[0].mxu0
    %v1751 = vadd.f32 %v319, %v1750
    %v1752 = vpop.f32.mrb[0].mxu0
    %v1753 = vadd.f32 %v323, %v1752
    %v1754 = vpop.f32.mrb[0].mxu0
    %v1755 = vadd.f32 %v319, %v1754
    %v1756 = vpop.f32.mrb[0].mxu0
    %v1757 = vadd.f32 %v323, %v1756
    %1758 = vmatprep.mubr.bf16.mxu0 %v807
    %1759 = vmatmul.mubr.bf16.gmra.mrb[0].mxu0 %v806
    %v1760 = vpop.f32.mrb[0].mxu0
    %v1761 = vadd.f32 %v319, %v1760
    %v1762 = vpop.f32.mrb[0].mxu0
    %v1763 = vadd.f32 %v323, %v1762
    %v1764 = vpop.f32.mrb[0].mxu0
    %v1765 = vadd.f32 %v319, %v1764
    %v1766 = vpop.f32.mrb[0].mxu0
    %v1767 = vadd.f32 %v323, %v1766
    %1768 = vmatprep.mubr.bf16.mxu0 %v809
    %1769 = vmatmul.mubr.bf16.gmra.mrb[0].mxu0 %v808
    %v1770 = vpop.f32.mrb[0].mxu0
    %v1771 = vadd.f32 %v319, %v1770
    %v1772 = vpop.f32.mrb[0].mxu0
    %v1773 = vadd.f32 %v323, %v1772
    %v1774 = vpop.f32.mrb[0].mxu0
    %v1775 = vadd.f32 %v319, %v1774
    %v1776 = vpop.f32.mrb[0].mxu0
    %v1777 = vadd.f32 %v323, %v1776
    %1778 = vmatprep.mubr.bf16.mxu0 %v811
    %1779 = vmatmul.mubr.bf16.gmra.mrb[0].mxu0 %v810
    %v1780 = vpop.f32.mrb[0].mxu0
    %v1781 = vadd.f32 %v319, %v1780
    %v1782 = vpop.f32.mrb[0].mxu0
    %v1783 = vadd.f32 %v323, %v1782
    %v1784 = vpop.f32.mrb[0].mxu0
    %v1785 = vadd.f32 %v319, %v1784
    %v1786 = vpop.f32.mrb[0].mxu0
    %v1787 = vadd.f32 %v323, %v1786
    %1788 = vmatprep.mubr.bf16.mxu0 %v813
    %1789 = vmatmul.mubr.bf16.gmra.mrb[0].mxu0 %v812
    %v1790 = vpop.f32.mrb[0].mxu0
    %v1791 = vadd.f32 %v319, %v1790
    %v1792 = vpop.f32.mrb[0].mxu0
    %v1793 = vadd.f32 %v323, %v1792
    %v1794 = vpop.f32.mrb[0].mxu0
    %v1795 = vadd.f32 %v319, %v1794
    %v1796 = vpop.f32.mrb[0].mxu0
    %v1797 = vadd.f32 %v323, %v1796
    %1798 = vmatprep.mubr.bf16.mxu0 %v815
    %1799 = vmatmul.mubr.bf16.gmra.mrb[0].mxu0 %v814
    %v1800 = vpop.f32.mrb[0].mxu0
    %v1801 = vadd.f32 %v319, %v1800
    %v1802 = vpop.f32.mrb[0].mxu0
    %v1803 = vadd.f32 %v323, %v1802
    %v1804 = vpop.f32.mrb[0].mxu0
    %v1805 = vadd.f32 %v319, %v1804
    %v1806 = vpop.f32.mrb[0].mxu0
    %v1807 = vadd.f32 %v323, %v1806
    %1808 = vmatprep.mubr.bf16.mxu0 %v817
    %1809 = vmatmul.mubr.bf16.gmra.mrb[0].mxu0 %v816
    %v1810 = vpop.f32.mrb[0].mxu0
    %v1811 = vadd.f32 %v319, %v1810
    %v1812 = vpop.f32.mrb[0].mxu0
    %v1813 = vadd.f32 %v323, %v1812
    %v1814 = vpop.f32.mrb[0].mxu0
    %v1815 = vadd.f32 %v319, %v1814
    %v1816 = vpop.f32.mrb[0].mxu0
    %v1817 = vadd.f32 %v323, %v1816
    %1818 = vmatprep.mubr.bf16.mxu0 %v819
    %1819 = vmatmul.mubr.bf16.gmra.mrb[0].mxu0 %v818
    %v1820 = vpop.f32.mrb[0].mxu0
    %v1821 = vadd.f32 %v319, %v1820
    %v1822 = vpop.f32.mrb[0].mxu0
    %v1823 = vadd.f32 %v323, %v1822
    %v1824 = vpop.f32.mrb[0].mxu0
    %v1825 = vadd.f32 %v319, %v1824
    %v1826 = vpop.f32.mrb[0].mxu0
    %v1827 = vadd.f32 %v323, %v1826
    %1828 = vmatprep.mubr.bf16.mxu0 %v821
    %1829 = vmatmul.mubr.bf16.gmra.mrb[0].mxu0 %v820
    %v1830 = vpop.f32.mrb[0].mxu0
    %v1831 = vadd.f32 %v319, %v1830
    %v1832 = vpop.f32.mrb[0].mxu0
    %v1833 = vadd.f32 %v323, %v1832
    %v1834 = vpop.f32.mrb[0].mxu0
    %v1835 = vadd.f32 %v319, %v1834
    %v1836 = vpop.f32.mrb[0].mxu0
    %v1837 = vadd.f32 %v323, %v1836
    %1838 = vmatprep.mubr.bf16.mxu0 %v823
    %1839 = vmatmul.mubr.bf16.gmra.mrb[0].mxu0 %v822
    %v1840 = vpop.f32.mrb[0].mxu0
    %v1841 = vadd.f32 %v319, %v1840
    %v1842 = vpop.f32.mrb[0].mxu0
    %v1843 = vadd.f32 %v323, %v1842
    %v1844 = vpop.f32.mrb[0].mxu0
    %v1845 = vadd.f32 %v319, %v1844
    %v1846 = vpop.f32.mrb[0].mxu0
    %v1847 = vadd.f32 %v323, %v1846
    %1848 = vmatprep.mubr.bf16.mxu0 %v825
    %1849 = vmatmul.mubr.bf16.gmra.mrb[0].mxu0 %v824
    %v1850 = vpop.f32.mrb[0].mxu0
    %v1851 = vadd.f32 %v319, %v1850
    %v1852 = vpop.f32.mrb[0].mxu0
    %v1853 = vadd.f32 %v323, %v1852
    %v1854 = vpop.f32.mrb[0].mxu0
    %v1855 = vadd.f32 %v319, %v1854
    %v1856 = vpop.f32.mrb[0].mxu0
    %v1857 = vadd.f32 %v323, %v1856
    %1858 = vmatprep.mubr.bf16.mxu0 %v827
    %1859 = vmatmul.mubr.bf16.gmra.mrb[0].mxu0 %v826
    %v1860 = vpop.f32.mrb[0].mxu0
    %v1861 = vadd.f32 %v319, %v1860
    %v1862 = vpop.f32.mrb[0].mxu0
    %v1863 = vadd.f32 %v323, %v1862
    %v1864 = vpop.f32.mrb[0].mxu0
    %v1865 = vadd.f32 %v319, %v1864
    %v1866 = vpop.f32.mrb[0].mxu0
    %v1867 = vadd.f32 %v323, %v1866
    %1868 = vmatprep.mubr.bf16.mxu0 %v829
    %1869 = vmatmul.mubr.bf16.gmra.mrb[0].mxu0 %v828
    %v1870 = vpop.f32.mrb[0].mxu0
    %v1871 = vadd.f32 %v319, %v1870
    %v1872 = vpop.f32.mrb[0].mxu0
    %v1873 = vadd.f32 %v323, %v1872
    %v1874 = vpop.f32.mrb[0].mxu0
    %v1875 = vadd.f32 %v319, %v1874
    %v1876 = vpop.f32.mrb[0].mxu0
    %v1877 = vadd.f32 %v323, %v1876
    %1878 = vmatprep.mubr.bf16.mxu0 %v831
    %1879 = vmatmul.mubr.bf16.gmra.mrb[0].mxu0 %v830
    %v1880 = vpop.f32.mrb[0].mxu0
    %v1881 = vadd.f32 %v319, %v1880
    %v1882 = vpop.f32.mrb[0].mxu0
    %v1883 = vadd.f32 %v323, %v1882
    %v1884 = vpop.f32.mrb[0].mxu0
    %v1885 = vadd.f32 %v319, %v1884
    %v1886 = vpop.f32.mrb[0].mxu0
    %v1887 = vadd.f32 %v323, %v1886
    %1888 = vmatprep.mubr.bf16.mxu0 %v833
    %1889 = vmatmul.mubr.bf16.gmra.mrb[0].mxu0 %v832
    %v1890 = vpop.f32.mrb[0].mxu0
    %v1891 = vadd.f32 %v319, %v1890
    %v1892 = vpop.f32.mrb[0].mxu0
    %v1893 = vadd.f32 %v323, %v1892
    %v1894 = vpop.f32.mrb[0].mxu0
    %v1895 = vadd.f32 %v319, %v1894
    %v1896 = vpop.f32.mrb[0].mxu0
    %v1897 = vadd.f32 %v323, %v1896
    %1898 = vmatprep.mubr.bf16.mxu0 %v835
    %1899 = vmatmul.mubr.bf16.gmra.mrb[0].mxu0 %v834
    %v1900 = vpop.f32.mrb[0].mxu0
    %v1901 = vadd.f32 %v319, %v1900
    %v1902 = vpop.f32.mrb[0].mxu0
    %v1903 = vadd.f32 %v323, %v1902
    %v1904 = vpop.f32.mrb[0].mxu0
    %v1905 = vadd.f32 %v319, %v1904
    %v1906 = vpop.f32.mrb[0].mxu0
    %v1907 = vadd.f32 %v323, %v1906
    %1908 = vmatprep.mubr.bf16.mxu0 %v837
    %1909 = vmatmul.mubr.bf16.gmra.mrb[0].mxu0 %v836
    %v1910 = vpop.f32.mrb[0].mxu0
    %v1911 = vadd.f32 %v319, %v1910
    %v1912 = vpop.f32.mrb[0].mxu0
    %v1913 = vadd.f32 %v323, %v1912
    %v1914 = vpop.f32.mrb[0].mxu0
    %v1915 = vadd.f32 %v319, %v1914
    %v1916 = vpop.f32.mrb[0].mxu0
    %v1917 = vadd.f32 %v323, %v1916
    %1918 = vmatprep.mubr.bf16.mxu0 %v839
    %1919 = vmatmul.mubr.bf16.gmra.mrb[0].mxu0 %v838
    %v1920 = vpop.f32.mrb[0].mxu0
    %v1921 = vadd.f32 %v319, %v1920
    %v1922 = vpop.f32.mrb[0].mxu0
    %v1923 = vadd.f32 %v323, %v1922
    %v1924 = vpop.f32.mrb[0].mxu0
    %v1925 = vadd.f32 %v319, %v1924
    %v1926 = vpop.f32.mrb[0].mxu0
    %v1927 = vadd.f32 %v323, %v1926
    %1928 = vmatprep.mubr.bf16.mxu0 %v841
    %1929 = vmatmul.mubr.bf16.gmra.mrb[0].mxu0 %v840
    %v1930 = vpop.f32.mrb[0].mxu0
    %v1931 = vadd.f32 %v319, %v1930
    %v1932 = vpop.f32.mrb[0].mxu0
    %v1933 = vadd.f32 %v323, %v1932
    %v1934 = vpop.f32.mrb[0].mxu0
    %v1935 = vadd.f32 %v319, %v1934
    %v1936 = vpop.f32.mrb[0].mxu0
    %v1937 = vadd.f32 %v323, %v1936
    %1938 = vmatprep.mubr.bf16.mxu0 %v843
    %1939 = vmatmul.mubr.bf16.gmra.mrb[0].mxu0 %v842
    %v1940 = vpop.f32.mrb[0].mxu0
    %v1941 = vadd.f32 %v319, %v1940
    %v1942 = vpop.f32.mrb[0].mxu0
    %v1943 = vadd.f32 %v323, %v1942
    %v1944 = vpop.f32.mrb[0].mxu0
    %v1945 = vadd.f32 %v319, %v1944
    %v1946 = vpop.f32.mrb[0].mxu0
    %v1947 = vadd.f32 %v323, %v1946
    %1948 = vmatprep.mubr.bf16.mxu0 %v845
    %1949 = vmatmul.mubr.bf16.gmra.mrb[0].mxu0 %v844
    %v1950 = vpop.f32.mrb[0].mxu0
    %v1951 = vadd.f32 %v319, %v1950
    %v1952 = vpop.f32.mrb[0].mxu0
    %v1953 = vadd.f32 %v323, %v1952
    %v1954 = vpop.f32.mrb[0].mxu0
    %v1955 = vadd.f32 %v319, %v1954
    %v1956 = vpop.f32.mrb[0].mxu0
    %v1957 = vadd.f32 %v323, %v1956
    %1958 = vmatprep.mubr.bf16.mxu0 %v847
    %1959 = vmatmul.mubr.bf16.gmra.mrb[0].mxu0 %v846
    %v1960 = vpop.f32.mrb[0].mxu0
    %v1961 = vadd.f32 %v319, %v1960
    %v1962 = vpop.f32.mrb[0].mxu0
    %v1963 = vadd.f32 %v323, %v1962
    %v1964 = vpop.f32.mrb[0].mxu0
    %v1965 = vadd.f32 %v319, %v1964
    %v1966 = vpop.f32.mrb[0].mxu0
    %v1967 = vadd.f32 %v323, %v1966
    %1968 = vdwg.mxu0
    %1969 = vmatprep.subr.bf16.mxu0 %v1171
    %1970 = vmatpush1.bf16.msra.mxu0 %v1170
    %1971 = vmatprep.subr.bf16.mxu0 %v1175
    %1972 = vmatpush1.bf16.msra.mxu0 %v1174
    %1973 = vmatprep.subr.bf16.mxu0 %v1179
    %1974 = vmatpush1.bf16.msra.mxu0 %v1178
    %1975 = vmatprep.subr.bf16.mxu0 %v1183
    %1976 = vmatpush1.bf16.msra.mxu0 %v1182
    %1977 = vmatprep.subr.bf16.mxu0 %v1187
    %1978 = vmatpush1.bf16.msra.mxu0 %v1186
    %1979 = vmatprep.subr.bf16.mxu0 %v1191
    %1980 = vmatpush1.bf16.msra.mxu0 %v1190
    %1981 = vmatprep.subr.bf16.mxu0 %v1195
    %1982 = vmatpush1.bf16.msra.mxu0 %v1194
    %1983 = vmatprep.subr.bf16.mxu0 %v1199
    %1984 = vmatpush1.bf16.msra.mxu0 %v1198
    %1985 = vmatprep.subr.bf16.mxu0 %v1203
    %1986 = vmatpush1.bf16.msra.mxu0 %v1202
    %1987 = vmatprep.subr.bf16.mxu0 %v1207
    %1988 = vmatpush1.bf16.msra.mxu0 %v1206
    %1989 = vmatprep.subr.bf16.mxu0 %v1211
    %1990 = vmatpush1.bf16.msra.mxu0 %v1210
    %1991 = vmatprep.subr.bf16.mxu0 %v1215
    %1992 = vmatpush1.bf16.msra.mxu0 %v1214
    %1993 = vmatprep.subr.bf16.mxu0 %v1219
    %1994 = vmatpush1.bf16.msra.mxu0 %v1218
    %1995 = vmatprep.subr.bf16.mxu0 %v1223
    %1996 = vmatpush1.bf16.msra.mxu0 %v1222
    %1997 = vmatprep.subr.bf16.mxu0 %v1227
    %1998 = vmatpush1.bf16.msra.mxu0 %v1226
    %1999 = vmatprep.subr.bf16.mxu0 %v1231
    %2000 = vmatpush1.bf16.msra.mxu0 %v1230
    %2001 = vmatprep.mubr.bf16.mxu0 %v721
    %2002 = vmatmul.mubr.bf16.gmra.mrb[0].mxu0 %v720
    %v2003 = vpop.f32.mrb[0].mxu0
    %v2004 = vadd.f32 %v327, %v2003
    %v2005 = vpop.f32.mrb[0].mxu0
    %v2006 = vadd.f32 %v331, %v2005
    %v2007 = vpop.f32.mrb[0].mxu0
    %v2008 = vadd.f32 %v327, %v2007
    %v2009 = vpop.f32.mrb[0].mxu0
    %v2010 = vadd.f32 %v331, %v2009
    %2011 = vmatprep.mubr.bf16.mxu0 %v723
    %2012 = vmatmul.mubr.bf16.gmra.mrb[0].mxu0 %v722
    %v2013 = vpop.f32.mrb[0].mxu0
    %v2014 = vadd.f32 %v327, %v2013
    %v2015 = vpop.f32.mrb[0].mxu0
    %v2016 = vadd.f32 %v331, %v2015
    %v2017 = vpop.f32.mrb[0].mxu0
    %v2018 = vadd.f32 %v327, %v2017
    %v2019 = vpop.f32.mrb[0].mxu0
    %v2020 = vadd.f32 %v331, %v2019
    %2021 = vmatprep.mubr.bf16.mxu0 %v725
    %2022 = vmatmul.mubr.bf16.gmra.mrb[0].mxu0 %v724
    %v2023 = vpop.f32.mrb[0].mxu0
    %v2024 = vadd.f32 %v327, %v2023
    %v2025 = vpop.f32.mrb[0].mxu0
    %v2026 = vadd.f32 %v331, %v2025
    %v2027 = vpop.f32.mrb[0].mxu0
    %v2028 = vadd.f32 %v327, %v2027
    %v2029 = vpop.f32.mrb[0].mxu0
    %v2030 = vadd.f32 %v331, %v2029
    %2031 = vmatprep.mubr.bf16.mxu0 %v727
    %2032 = vmatmul.mubr.bf16.gmra.mrb[0].mxu0 %v726
    %v2033 = vpop.f32.mrb[0].mxu0
    %v2034 = vadd.f32 %v327, %v2033
    %v2035 = vpop.f32.mrb[0].mxu0
    %v2036 = vadd.f32 %v331, %v2035
    %v2037 = vpop.f32.mrb[0].mxu0
    %v2038 = vadd.f32 %v327, %v2037
    %v2039 = vpop.f32.mrb[0].mxu0
    %v2040 = vadd.f32 %v331, %v2039
    %2041 = vmatprep.mubr.bf16.mxu0 %v729
    %2042 = vmatmul.mubr.bf16.gmra.mrb[0].mxu0 %v728
    %v2043 = vpop.f32.mrb[0].mxu0
    %v2044 = vadd.f32 %v327, %v2043
    %v2045 = vpop.f32.mrb[0].mxu0
    %v2046 = vadd.f32 %v331, %v2045
    %v2047 = vpop.f32.mrb[0].mxu0
    %v2048 = vadd.f32 %v327, %v2047
    %v2049 = vpop.f32.mrb[0].mxu0
    %v2050 = vadd.f32 %v331, %v2049
    %2051 = vmatprep.mubr.bf16.mxu0 %v731
    %2052 = vmatmul.mubr.bf16.gmra.mrb[0].mxu0 %v730
    %v2053 = vpop.f32.mrb[0].mxu0
    %v2054 = vadd.f32 %v327, %v2053
    %v2055 = vpop.f32.mrb[0].mxu0
    %v2056 = vadd.f32 %v331, %v2055
    %v2057 = vpop.f32.mrb[0].mxu0
    %v2058 = vadd.f32 %v327, %v2057
    %v2059 = vpop.f32.mrb[0].mxu0
    %v2060 = vadd.f32 %v331, %v2059
    %2061 = vmatprep.mubr.bf16.mxu0 %v733
    %2062 = vmatmul.mubr.bf16.gmra.mrb[0].mxu0 %v732
    %v2063 = vpop.f32.mrb[0].mxu0
    %v2064 = vadd.f32 %v327, %v2063
    %v2065 = vpop.f32.mrb[0].mxu0
    %v2066 = vadd.f32 %v331, %v2065
    %v2067 = vpop.f32.mrb[0].mxu0
    %v2068 = vadd.f32 %v327, %v2067
    %v2069 = vpop.f32.mrb[0].mxu0
    %v2070 = vadd.f32 %v331, %v2069
    %2071 = vmatprep.mubr.bf16.mxu0 %v735
    %2072 = vmatmul.mubr.bf16.gmra.mrb[0].mxu0 %v734
    %v2073 = vpop.f32.mrb[0].mxu0
    %v2074 = vadd.f32 %v327, %v2073
    %v2075 = vpop.f32.mrb[0].mxu0
    %v2076 = vadd.f32 %v331, %v2075
    %v2077 = vpop.f32.mrb[0].mxu0
    %v2078 = vadd.f32 %v327, %v2077
    %v2079 = vpop.f32.mrb[0].mxu0
    %v2080 = vadd.f32 %v331, %v2079
    %2081 = vmatprep.mubr.bf16.mxu0 %v737
    %2082 = vmatmul.mubr.bf16.gmra.mrb[0].mxu0 %v736
    %v2083 = vpop.f32.mrb[0].mxu0
    %v2084 = vadd.f32 %v327, %v2083
    %v2085 = vpop.f32.mrb[0].mxu0
    %v2086 = vadd.f32 %v331, %v2085
    %v2087 = vpop.f32.mrb[0].mxu0
    %v2088 = vadd.f32 %v327, %v2087
    %v2089 = vpop.f32.mrb[0].mxu0
    %v2090 = vadd.f32 %v331, %v2089
    %2091 = vmatprep.mubr.bf16.mxu0 %v739
    %2092 = vmatmul.mubr.bf16.gmra.mrb[0].mxu0 %v738
    %v2093 = vpop.f32.mrb[0].mxu0
    %v2094 = vadd.f32 %v327, %v2093
    %v2095 = vpop.f32.mrb[0].mxu0
    %v2096 = vadd.f32 %v331, %v2095
    %v2097 = vpop.f32.mrb[0].mxu0
    %v2098 = vadd.f32 %v327, %v2097
    %v2099 = vpop.f32.mrb[0].mxu0
    %v2100 = vadd.f32 %v331, %v2099
    %2101 = vmatprep.mubr.bf16.mxu0 %v741
    %2102 = vmatmul.mubr.bf16.gmra.mrb[0].mxu0 %v740
    %v2103 = vpop.f32.mrb[0].mxu0
    %v2104 = vadd.f32 %v327, %v2103
    %v2105 = vpop.f32.mrb[0].mxu0
    %v2106 = vadd.f32 %v331, %v2105
    %v2107 = vpop.f32.mrb[0].mxu0
    %v2108 = vadd.f32 %v327, %v2107
    %v2109 = vpop.f32.mrb[0].mxu0
    %v2110 = vadd.f32 %v331, %v2109
    %2111 = vmatprep.mubr.bf16.mxu0 %v743
    %2112 = vmatmul.mubr.bf16.gmra.mrb[0].mxu0 %v742
    %v2113 = vpop.f32.mrb[0].mxu0
    %v2114 = vadd.f32 %v327, %v2113
    %v2115 = vpop.f32.mrb[0].mxu0
    %v2116 = vadd.f32 %v331, %v2115
    %v2117 = vpop.f32.mrb[0].mxu0
    %v2118 = vadd.f32 %v327, %v2117
    %v2119 = vpop.f32.mrb[0].mxu0
    %v2120 = vadd.f32 %v331, %v2119
    %2121 = vmatprep.mubr.bf16.mxu0 %v745
    %2122 = vmatmul.mubr.bf16.gmra.mrb[0].mxu0 %v744
    %v2123 = vpop.f32.mrb[0].mxu0
    %v2124 = vadd.f32 %v327, %v2123
    %v2125 = vpop.f32.mrb[0].mxu0
    %v2126 = vadd.f32 %v331, %v2125
    %v2127 = vpop.f32.mrb[0].mxu0
    %v2128 = vadd.f32 %v327, %v2127
    %v2129 = vpop.f32.mrb[0].mxu0
    %v2130 = vadd.f32 %v331, %v2129
    %2131 = vmatprep.mubr.bf16.mxu0 %v747
    %2132 = vmatmul.mubr.bf16.gmra.mrb[0].mxu0 %v746
    %v2133 = vpop.f32.mrb[0].mxu0
    %v2134 = vadd.f32 %v327, %v2133
    %v2135 = vpop.f32.mrb[0].mxu0
    %v2136 = vadd.f32 %v331, %v2135
    %v2137 = vpop.f32.mrb[0].mxu0
    %v2138 = vadd.f32 %v327, %v2137
    %v2139 = vpop.f32.mrb[0].mxu0
    %v2140 = vadd.f32 %v331, %v2139
    %2141 = vmatprep.mubr.bf16.mxu0 %v749
    %2142 = vmatmul.mubr.bf16.gmra.mrb[0].mxu0 %v748
    %v2143 = vpop.f32.mrb[0].mxu0
    %v2144 = vadd.f32 %v327, %v2143
    %v2145 = vpop.f32.mrb[0].mxu0
    %v2146 = vadd.f32 %v331, %v2145
    %v2147 = vpop.f32.mrb[0].mxu0
    %v2148 = vadd.f32 %v327, %v2147
    %v2149 = vpop.f32.mrb[0].mxu0
    %v2150 = vadd.f32 %v331, %v2149
    %2151 = vmatprep.mubr.bf16.mxu0 %v751
    %2152 = vmatmul.mubr.bf16.gmra.mrb[0].mxu0 %v750
    %v2153 = vpop.f32.mrb[0].mxu0
    %v2154 = vadd.f32 %v327, %v2153
    %v2155 = vpop.f32.mrb[0].mxu0
    %v2156 = vadd.f32 %v331, %v2155
    %v2157 = vpop.f32.mrb[0].mxu0
    %v2158 = vadd.f32 %v327, %v2157
    %v2159 = vpop.f32.mrb[0].mxu0
    %v2160 = vadd.f32 %v331, %v2159
    %2161 = vmatprep.mubr.bf16.mxu0 %v753
    %2162 = vmatmul.mubr.bf16.gmra.mrb[0].mxu0 %v752
    %v2163 = vpop.f32.mrb[0].mxu0
    %v2164 = vadd.f32 %v327, %v2163
    %v2165 = vpop.f32.mrb[0].mxu0
    %v2166 = vadd.f32 %v331, %v2165
    %v2167 = vpop.f32.mrb[0].mxu0
    %v2168 = vadd.f32 %v327, %v2167
    %v2169 = vpop.f32.mrb[0].mxu0
    %v2170 = vadd.f32 %v331, %v2169
    %2171 = vmatprep.mubr.bf16.mxu0 %v755
    %2172 = vmatmul.mubr.bf16.gmra.mrb[0].mxu0 %v754
    %v2173 = vpop.f32.mrb[0].mxu0
    %v2174 = vadd.f32 %v327, %v2173
    %v2175 = vpop.f32.mrb[0].mxu0
    %v2176 = vadd.f32 %v331, %v2175
    %v2177 = vpop.f32.mrb[0].mxu0
    %v2178 = vadd.f32 %v327, %v2177
    %v2179 = vpop.f32.mrb[0].mxu0
    %v2180 = vadd.f32 %v331, %v2179
    %2181 = vmatprep.mubr.bf16.mxu0 %v757
    %2182 = vmatmul.mubr.bf16.gmra.mrb[0].mxu0 %v756
    %v2183 = vpop.f32.mrb[0].mxu0
    %v2184 = vadd.f32 %v327, %v2183
    %v2185 = vpop.f32.mrb[0].mxu0
    %v2186 = vadd.f32 %v331, %v2185
    %v2187 = vpop.f32.mrb[0].mxu0
    %v2188 = vadd.f32 %v327, %v2187
    %v2189 = vpop.f32.mrb[0].mxu0
    %v2190 = vadd.f32 %v331, %v2189
    %2191 = vmatprep.mubr.bf16.mxu0 %v759
    %2192 = vmatmul.mubr.bf16.gmra.mrb[0].mxu0 %v758
    %v2193 = vpop.f32.mrb[0].mxu0
    %v2194 = vadd.f32 %v327, %v2193
    %v2195 = vpop.f32.mrb[0].mxu0
    %v2196 = vadd.f32 %v331, %v2195
    %v2197 = vpop.f32.mrb[0].mxu0
    %v2198 = vadd.f32 %v327, %v2197
    %v2199 = vpop.f32.mrb[0].mxu0
    %v2200 = vadd.f32 %v331, %v2199
    %2201 = vmatprep.mubr.bf16.mxu0 %v761
    %2202 = vmatmul.mubr.bf16.gmra.mrb[0].mxu0 %v760
    %v2203 = vpop.f32.mrb[0].mxu0
    %v2204 = vadd.f32 %v327, %v2203
    %v2205 = vpop.f32.mrb[0].mxu0
    %v2206 = vadd.f32 %v331, %v2205
    %v2207 = vpop.f32.mrb[0].mxu0
    %v2208 = vadd.f32 %v327, %v2207
    %v2209 = vpop.f32.mrb[0].mxu0
    %v2210 = vadd.f32 %v331, %v2209
    %2211 = vmatprep.mubr.bf16.mxu0 %v763
    %2212 = vmatmul.mubr.bf16.gmra.mrb[0].mxu0 %v762
    %v2213 = vpop.f32.mrb[0].mxu0
    %v2214 = vadd.f32 %v327, %v2213
    %v2215 = vpop.f32.mrb[0].mxu0
    %v2216 = vadd.f32 %v331, %v2215
    %v2217 = vpop.f32.mrb[0].mxu0
    %v2218 = vadd.f32 %v327, %v2217
    %v2219 = vpop.f32.mrb[0].mxu0
    %v2220 = vadd.f32 %v331, %v2219
    %2221 = vmatprep.mubr.bf16.mxu0 %v765
    %2222 = vmatmul.mubr.bf16.gmra.mrb[0].mxu0 %v764
    %v2223 = vpop.f32.mrb[0].mxu0
    %v2224 = vadd.f32 %v327, %v2223
    %v2225 = vpop.f32.mrb[0].mxu0
    %v2226 = vadd.f32 %v331, %v2225
    %v2227 = vpop.f32.mrb[0].mxu0
    %v2228 = vadd.f32 %v327, %v2227
    %v2229 = vpop.f32.mrb[0].mxu0
    %v2230 = vadd.f32 %v331, %v2229
    %2231 = vmatprep.mubr.bf16.mxu0 %v767
    %2232 = vmatmul.mubr.bf16.gmra.mrb[0].mxu0 %v766
    %v2233 = vpop.f32.mrb[0].mxu0
    %v2234 = vadd.f32 %v327, %v2233
    %v2235 = vpop.f32.mrb[0].mxu0
    %v2236 = vadd.f32 %v331, %v2235
    %v2237 = vpop.f32.mrb[0].mxu0
    %v2238 = vadd.f32 %v327, %v2237
    %v2239 = vpop.f32.mrb[0].mxu0
    %v2240 = vadd.f32 %v331, %v2239
    %2241 = vmatprep.mubr.bf16.mxu0 %v769
    %2242 = vmatmul.mubr.bf16.gmra.mrb[0].mxu0 %v768
    %v2243 = vpop.f32.mrb[0].mxu0
    %v2244 = vadd.f32 %v327, %v2243
    %v2245 = vpop.f32.mrb[0].mxu0
    %v2246 = vadd.f32 %v331, %v2245
    %v2247 = vpop.f32.mrb[0].mxu0
    %v2248 = vadd.f32 %v327, %v2247
    %v2249 = vpop.f32.mrb[0].mxu0
    %v2250 = vadd.f32 %v331, %v2249
    %2251 = vmatprep.mubr.bf16.mxu0 %v771
    %2252 = vmatmul.mubr.bf16.gmra.mrb[0].mxu0 %v770
    %v2253 = vpop.f32.mrb[0].mxu0
    %v2254 = vadd.f32 %v327, %v2253
    %v2255 = vpop.f32.mrb[0].mxu0
    %v2256 = vadd.f32 %v331, %v2255
    %v2257 = vpop.f32.mrb[0].mxu0
    %v2258 = vadd.f32 %v327, %v2257
    %v2259 = vpop.f32.mrb[0].mxu0
    %v2260 = vadd.f32 %v331, %v2259
    %2261 = vmatprep.mubr.bf16.mxu0 %v773
    %2262 = vmatmul.mubr.bf16.gmra.mrb[0].mxu0 %v772
    %v2263 = vpop.f32.mrb[0].mxu0
    %v2264 = vadd.f32 %v327, %v2263
    %v2265 = vpop.f32.mrb[0].mxu0
    %v2266 = vadd.f32 %v331, %v2265
    %v2267 = vpop.f32.mrb[0].mxu0
    %v2268 = vadd.f32 %v327, %v2267
    %v2269 = vpop.f32.mrb[0].mxu0
    %v2270 = vadd.f32 %v331, %v2269
    %2271 = vmatprep.mubr.bf16.mxu0 %v775
    %2272 = vmatmul.mubr.bf16.gmra.mrb[0].mxu0 %v774
    %v2273 = vpop.f32.mrb[0].mxu0
    %v2274 = vadd.f32 %v327, %v2273
    %v2275 = vpop.f32.mrb[0].mxu0
    %v2276 = vadd.f32 %v331, %v2275
    %v2277 = vpop.f32.mrb[0].mxu0
    %v2278 = vadd.f32 %v327, %v2277
    %v2279 = vpop.f32.mrb[0].mxu0
    %v2280 = vadd.f32 %v331, %v2279
    %2281 = vmatprep.mubr.bf16.mxu0 %v777
    %2282 = vmatmul.mubr.bf16.gmra.mrb[0].mxu0 %v776
    %v2283 = vpop.f32.mrb[0].mxu0
    %v2284 = vadd.f32 %v327, %v2283
    %v2285 = vpop.f32.mrb[0].mxu0
    %v2286 = vadd.f32 %v331, %v2285
    %v2287 = vpop.f32.mrb[0].mxu0
    %v2288 = vadd.f32 %v327, %v2287
    %v2289 = vpop.f32.mrb[0].mxu0
    %v2290 = vadd.f32 %v331, %v2289
    %2291 = vmatprep.mubr.bf16.mxu0 %v779
    %2292 = vmatmul.mubr.bf16.gmra.mrb[0].mxu0 %v778
    %v2293 = vpop.f32.mrb[0].mxu0
    %v2294 = vadd.f32 %v327, %v2293
    %v2295 = vpop.f32.mrb[0].mxu0
    %v2296 = vadd.f32 %v331, %v2295
    %v2297 = vpop.f32.mrb[0].mxu0
    %v2298 = vadd.f32 %v327, %v2297
    %v2299 = vpop.f32.mrb[0].mxu0
    %v2300 = vadd.f32 %v331, %v2299
    %2301 = vmatprep.mubr.bf16.mxu0 %v781
    %2302 = vmatmul.mubr.bf16.gmra.mrb[0].mxu0 %v780
    %v2303 = vpop.f32.mrb[0].mxu0
    %v2304 = vadd.f32 %v327, %v2303
    %v2305 = vpop.f32.mrb[0].mxu0
    %v2306 = vadd.f32 %v331, %v2305
    %v2307 = vpop.f32.mrb[0].mxu0
    %v2308 = vadd.f32 %v327, %v2307
    %v2309 = vpop.f32.mrb[0].mxu0
    %v2310 = vadd.f32 %v331, %v2309
    %2311 = vmatprep.mubr.bf16.mxu0 %v783
    %2312 = vmatmul.mubr.bf16.gmra.mrb[0].mxu0 %v782
    %v2313 = vpop.f32.mrb[0].mxu0
    %v2314 = vadd.f32 %v327, %v2313
    %v2315 = vpop.f32.mrb[0].mxu0
    %v2316 = vadd.f32 %v331, %v2315
    %v2317 = vpop.f32.mrb[0].mxu0
    %v2318 = vadd.f32 %v327, %v2317
    %v2319 = vpop.f32.mrb[0].mxu0
    %v2320 = vadd.f32 %v331, %v2319
    %2321 = vmatprep.mubr.bf16.mxu0 %v785
    %2322 = vmatmul.mubr.bf16.gmra.mrb[0].mxu0 %v784
    %v2323 = vpop.f32.mrb[0].mxu0
    %v2324 = vadd.f32 %v327, %v2323
    %v2325 = vpop.f32.mrb[0].mxu0
    %v2326 = vadd.f32 %v331, %v2325
    %v2327 = vpop.f32.mrb[0].mxu0
    %v2328 = vadd.f32 %v327, %v2327
    %v2329 = vpop.f32.mrb[0].mxu0
    %v2330 = vadd.f32 %v331, %v2329
    %2331 = vmatprep.mubr.bf16.mxu0 %v787
    %2332 = vmatmul.mubr.bf16.gmra.mrb[0].mxu0 %v786
    %v2333 = vpop.f32.mrb[0].mxu0
    %v2334 = vadd.f32 %v327, %v2333
    %v2335 = vpop.f32.mrb[0].mxu0
    %v2336 = vadd.f32 %v331, %v2335
    %v2337 = vpop.f32.mrb[0].mxu0
    %v2338 = vadd.f32 %v327, %v2337
    %v2339 = vpop.f32.mrb[0].mxu0
    %v2340 = vadd.f32 %v331, %v2339
    %2341 = vmatprep.mubr.bf16.mxu0 %v789
    %2342 = vmatmul.mubr.bf16.gmra.mrb[0].mxu0 %v788
    %v2343 = vpop.f32.mrb[0].mxu0
    %v2344 = vadd.f32 %v327, %v2343
    %v2345 = vpop.f32.mrb[0].mxu0
    %v2346 = vadd.f32 %v331, %v2345
    %v2347 = vpop.f32.mrb[0].mxu0
    %v2348 = vadd.f32 %v327, %v2347
    %v2349 = vpop.f32.mrb[0].mxu0
    %v2350 = vadd.f32 %v331, %v2349
    %2351 = vmatprep.mubr.bf16.mxu0 %v791
    %2352 = vmatmul.mubr.bf16.gmra.mrb[0].mxu0 %v790
    %v2353 = vpop.f32.mrb[0].mxu0
    %v2354 = vadd.f32 %v327, %v2353
    %v2355 = vpop.f32.mrb[0].mxu0
    %v2356 = vadd.f32 %v331, %v2355
    %v2357 = vpop.f32.mrb[0].mxu0
    %v2358 = vadd.f32 %v327, %v2357
    %v2359 = vpop.f32.mrb[0].mxu0
    %v2360 = vadd.f32 %v331, %v2359
    %2361 = vmatprep.mubr.bf16.mxu0 %v793
    %2362 = vmatmul.mubr.bf16.gmra.mrb[0].mxu0 %v792
    %v2363 = vpop.f32.mrb[0].mxu0
    %v2364 = vadd.f32 %v327, %v2363
    %v2365 = vpop.f32.mrb[0].mxu0
    %v2366 = vadd.f32 %v331, %v2365
    %v2367 = vpop.f32.mrb[0].mxu0
    %v2368 = vadd.f32 %v327, %v2367
    %v2369 = vpop.f32.mrb[0].mxu0
    %v2370 = vadd.f32 %v331, %v2369
    %2371 = vmatprep.mubr.bf16.mxu0 %v795
    %2372 = vmatmul.mubr.bf16.gmra.mrb[0].mxu0 %v794
    %v2373 = vpop.f32.mrb[0].mxu0
    %v2374 = vadd.f32 %v327, %v2373
    %v2375 = vpop.f32.mrb[0].mxu0
    %v2376 = vadd.f32 %v331, %v2375
    %v2377 = vpop.f32.mrb[0].mxu0
    %v2378 = vadd.f32 %v327, %v2377
    %v2379 = vpop.f32.mrb[0].mxu0
    %v2380 = vadd.f32 %v331, %v2379
    %2381 = vmatprep.mubr.bf16.mxu0 %v797
    %2382 = vmatmul.mubr.bf16.gmra.mrb[0].mxu0 %v796
    %v2383 = vpop.f32.mrb[0].mxu0
    %v2384 = vadd.f32 %v327, %v2383
    %v2385 = vpop.f32.mrb[0].mxu0
    %v2386 = vadd.f32 %v331, %v2385
    %v2387 = vpop.f32.mrb[0].mxu0
    %v2388 = vadd.f32 %v327, %v2387
    %v2389 = vpop.f32.mrb[0].mxu0
    %v2390 = vadd.f32 %v331, %v2389
    %2391 = vmatprep.mubr.bf16.mxu0 %v799
    %2392 = vmatmul.mubr.bf16.gmra.mrb[0].mxu0 %v798
    %v2393 = vpop.f32.mrb[0].mxu0
    %v2394 = vadd.f32 %v327, %v2393
    %v2395 = vpop.f32.mrb[0].mxu0
    %v2396 = vadd.f32 %v331, %v2395
    %v2397 = vpop.f32.mrb[0].mxu0
    %v2398 = vadd.f32 %v327, %v2397
    %v2399 = vpop.f32.mrb[0].mxu0
    %v2400 = vadd.f32 %v331, %v2399
    %2401 = vmatprep.mubr.bf16.mxu0 %v801
    %2402 = vmatmul.mubr.bf16.gmra.mrb[0].mxu0 %v800
    %v2403 = vpop.f32.mrb[0].mxu0
    %v2404 = vadd.f32 %v327, %v2403
    %v2405 = vpop.f32.mrb[0].mxu0
    %v2406 = vadd.f32 %v331, %v2405
    %v2407 = vpop.f32.mrb[0].mxu0
    %v2408 = vadd.f32 %v327, %v2407
    %v2409 = vpop.f32.mrb[0].mxu0
    %v2410 = vadd.f32 %v331, %v2409
    %2411 = vmatprep.mubr.bf16.mxu0 %v803
    %2412 = vmatmul.mubr.bf16.gmra.mrb[0].mxu0 %v802
    %v2413 = vpop.f32.mrb[0].mxu0
    %v2414 = vadd.f32 %v327, %v2413
    %v2415 = vpop.f32.mrb[0].mxu0
    %v2416 = vadd.f32 %v331, %v2415
    %v2417 = vpop.f32.mrb[0].mxu0
    %v2418 = vadd.f32 %v327, %v2417
    %v2419 = vpop.f32.mrb[0].mxu0
    %v2420 = vadd.f32 %v331, %v2419
    %2421 = vmatprep.mubr.bf16.mxu0 %v805
    %2422 = vmatmul.mubr.bf16.gmra.mrb[0].mxu0 %v804
    %v2423 = vpop.f32.mrb[0].mxu0
    %v2424 = vadd.f32 %v327, %v2423
    %v2425 = vpop.f32.mrb[0].mxu0
    %v2426 = vadd.f32 %v331, %v2425
    %v2427 = vpop.f32.mrb[0].mxu0
    %v2428 = vadd.f32 %v327, %v2427
    %v2429 = vpop.f32.mrb[0].mxu0
    %v2430 = vadd.f32 %v331, %v2429
    %2431 = vmatprep.mubr.bf16.mxu0 %v807
    %2432 = vmatmul.mubr.bf16.gmra.mrb[0].mxu0 %v806
    %v2433 = vpop.f32.mrb[0].mxu0
    %v2434 = vadd.f32 %v327, %v2433
    %v2435 = vpop.f32.mrb[0].mxu0
    %v2436 = vadd.f32 %v331, %v2435
    %v2437 = vpop.f32.mrb[0].mxu0
    %v2438 = vadd.f32 %v327, %v2437
    %v2439 = vpop.f32.mrb[0].mxu0
    %v2440 = vadd.f32 %v331, %v2439
    %2441 = vmatprep.mubr.bf16.mxu0 %v809
    %2442 = vmatmul.mubr.bf16.gmra.mrb[0].mxu0 %v808
    %v2443 = vpop.f32.mrb[0].mxu0
    %v2444 = vadd.f32 %v327, %v2443
    %v2445 = vpop.f32.mrb[0].mxu0
    %v2446 = vadd.f32 %v331, %v2445
    %v2447 = vpop.f32.mrb[0].mxu0
    %v2448 = vadd.f32 %v327, %v2447
    %v2449 = vpop.f32.mrb[0].mxu0
    %v2450 = vadd.f32 %v331, %v2449
    %2451 = vmatprep.mubr.bf16.mxu0 %v811
    %2452 = vmatmul.mubr.bf16.gmra.mrb[0].mxu0 %v810
    %v2453 = vpop.f32.mrb[0].mxu0
    %v2454 = vadd.f32 %v327, %v2453
    %v2455 = vpop.f32.mrb[0].mxu0
    %v2456 = vadd.f32 %v331, %v2455
    %v2457 = vpop.f32.mrb[0].mxu0
    %v2458 = vadd.f32 %v327, %v2457
    %v2459 = vpop.f32.mrb[0].mxu0
    %v2460 = vadd.f32 %v331, %v2459
    %2461 = vmatprep.mubr.bf16.mxu0 %v813
    %2462 = vmatmul.mubr.bf16.gmra.mrb[0].mxu0 %v812
    %v2463 = vpop.f32.mrb[0].mxu0
    %v2464 = vadd.f32 %v327, %v2463
    %v2465 = vpop.f32.mrb[0].mxu0
    %v2466 = vadd.f32 %v331, %v2465
    %v2467 = vpop.f32.mrb[0].mxu0
    %v2468 = vadd.f32 %v327, %v2467
    %v2469 = vpop.f32.mrb[0].mxu0
    %v2470 = vadd.f32 %v331, %v2469
    %2471 = vmatprep.mubr.bf16.mxu0 %v815
    %2472 = vmatmul.mubr.bf16.gmra.mrb[0].mxu0 %v814
    %v2473 = vpop.f32.mrb[0].mxu0
    %v2474 = vadd.f32 %v327, %v2473
    %v2475 = vpop.f32.mrb[0].mxu0
    %v2476 = vadd.f32 %v331, %v2475
    %v2477 = vpop.f32.mrb[0].mxu0
    %v2478 = vadd.f32 %v327, %v2477
    %v2479 = vpop.f32.mrb[0].mxu0
    %v2480 = vadd.f32 %v331, %v2479
    %2481 = vmatprep.mubr.bf16.mxu0 %v817
    %2482 = vmatmul.mubr.bf16.gmra.mrb[0].mxu0 %v816
    %v2483 = vpop.f32.mrb[0].mxu0
    %v2484 = vadd.f32 %v327, %v2483
    %v2485 = vpop.f32.mrb[0].mxu0
    %v2486 = vadd.f32 %v331, %v2485
    %v2487 = vpop.f32.mrb[0].mxu0
    %v2488 = vadd.f32 %v327, %v2487
    %v2489 = vpop.f32.mrb[0].mxu0
    %v2490 = vadd.f32 %v331, %v2489
    %2491 = vmatprep.mubr.bf16.mxu0 %v819
    %2492 = vmatmul.mubr.bf16.gmra.mrb[0].mxu0 %v818
    %v2493 = vpop.f32.mrb[0].mxu0
    %v2494 = vadd.f32 %v327, %v2493
    %v2495 = vpop.f32.mrb[0].mxu0
    %v2496 = vadd.f32 %v331, %v2495
    %v2497 = vpop.f32.mrb[0].mxu0
    %v2498 = vadd.f32 %v327, %v2497
    %v2499 = vpop.f32.mrb[0].mxu0
    %v2500 = vadd.f32 %v331, %v2499
    %2501 = vmatprep.mubr.bf16.mxu0 %v821
    %2502 = vmatmul.mubr.bf16.gmra.mrb[0].mxu0 %v820
    %v2503 = vpop.f32.mrb[0].mxu0
    %v2504 = vadd.f32 %v327, %v2503
    %v2505 = vpop.f32.mrb[0].mxu0
    %v2506 = vadd.f32 %v331, %v2505
    %v2507 = vpop.f32.mrb[0].mxu0
    %v2508 = vadd.f32 %v327, %v2507
    %v2509 = vpop.f32.mrb[0].mxu0
    %v2510 = vadd.f32 %v331, %v2509
    %2511 = vmatprep.mubr.bf16.mxu0 %v823
    %2512 = vmatmul.mubr.bf16.gmra.mrb[0].mxu0 %v822
    %v2513 = vpop.f32.mrb[0].mxu0
    %v2514 = vadd.f32 %v327, %v2513
    %v2515 = vpop.f32.mrb[0].mxu0
    %v2516 = vadd.f32 %v331, %v2515
    %v2517 = vpop.f32.mrb[0].mxu0
    %v2518 = vadd.f32 %v327, %v2517
    %v2519 = vpop.f32.mrb[0].mxu0
    %v2520 = vadd.f32 %v331, %v2519
    %2521 = vmatprep.mubr.bf16.mxu0 %v825
    %2522 = vmatmul.mubr.bf16.gmra.mrb[0].mxu0 %v824
    %v2523 = vpop.f32.mrb[0].mxu0
    %v2524 = vadd.f32 %v327, %v2523
    %v2525 = vpop.f32.mrb[0].mxu0
    %v2526 = vadd.f32 %v331, %v2525
    %v2527 = vpop.f32.mrb[0].mxu0
    %v2528 = vadd.f32 %v327, %v2527
    %v2529 = vpop.f32.mrb[0].mxu0
    %v2530 = vadd.f32 %v331, %v2529
    %2531 = vmatprep.mubr.bf16.mxu0 %v827
    %2532 = vmatmul.mubr.bf16.gmra.mrb[0].mxu0 %v826
    %v2533 = vpop.f32.mrb[0].mxu0
    %v2534 = vadd.f32 %v327, %v2533
    %v2535 = vpop.f32.mrb[0].mxu0
    %v2536 = vadd.f32 %v331, %v2535
    %v2537 = vpop.f32.mrb[0].mxu0
    %v2538 = vadd.f32 %v327, %v2537
    %v2539 = vpop.f32.mrb[0].mxu0
    %v2540 = vadd.f32 %v331, %v2539
    %2541 = vmatprep.mubr.bf16.mxu0 %v829
    %2542 = vmatmul.mubr.bf16.gmra.mrb[0].mxu0 %v828
    %v2543 = vpop.f32.mrb[0].mxu0
    %v2544 = vadd.f32 %v327, %v2543
    %v2545 = vpop.f32.mrb[0].mxu0
    %v2546 = vadd.f32 %v331, %v2545
    %v2547 = vpop.f32.mrb[0].mxu0
    %v2548 = vadd.f32 %v327, %v2547
    %v2549 = vpop.f32.mrb[0].mxu0
    %v2550 = vadd.f32 %v331, %v2549
    %2551 = vmatprep.mubr.bf16.mxu0 %v831
    %2552 = vmatmul.mubr.bf16.gmra.mrb[0].mxu0 %v830
    %v2553 = vpop.f32.mrb[0].mxu0
    %v2554 = vadd.f32 %v327, %v2553
    %v2555 = vpop.f32.mrb[0].mxu0
    %v2556 = vadd.f32 %v331, %v2555
    %v2557 = vpop.f32.mrb[0].mxu0
    %v2558 = vadd.f32 %v327, %v2557
    %v2559 = vpop.f32.mrb[0].mxu0
    %v2560 = vadd.f32 %v331, %v2559
    %2561 = vmatprep.mubr.bf16.mxu0 %v833
    %2562 = vmatmul.mubr.bf16.gmra.mrb[0].mxu0 %v832
    %v2563 = vpop.f32.mrb[0].mxu0
    %v2564 = vadd.f32 %v327, %v2563
    %v2565 = vpop.f32.mrb[0].mxu0
    %v2566 = vadd.f32 %v331, %v2565
    %v2567 = vpop.f32.mrb[0].mxu0
    %v2568 = vadd.f32 %v327, %v2567
    %v2569 = vpop.f32.mrb[0].mxu0
    %v2570 = vadd.f32 %v331, %v2569
    %2571 = vmatprep.mubr.bf16.mxu0 %v835
    %2572 = vmatmul.mubr.bf16.gmra.mrb[0].mxu0 %v834
    %v2573 = vpop.f32.mrb[0].mxu0
    %v2574 = vadd.f32 %v327, %v2573
    %v2575 = vpop.f32.mrb[0].mxu0
    %v2576 = vadd.f32 %v331, %v2575
    %v2577 = vpop.f32.mrb[0].mxu0
    %v2578 = vadd.f32 %v327, %v2577
    %v2579 = vpop.f32.mrb[0].mxu0
    %v2580 = vadd.f32 %v331, %v2579
    %2581 = vmatprep.mubr.bf16.mxu0 %v837
    %2582 = vmatmul.mubr.bf16.gmra.mrb[0].mxu0 %v836
    %v2583 = vpop.f32.mrb[0].mxu0
    %v2584 = vadd.f32 %v327, %v2583
    %v2585 = vpop.f32.mrb[0].mxu0
    %v2586 = vadd.f32 %v331, %v2585
    %v2587 = vpop.f32.mrb[0].mxu0
    %v2588 = vadd.f32 %v327, %v2587
    %v2589 = vpop.f32.mrb[0].mxu0
    %v2590 = vadd.f32 %v331, %v2589
    %2591 = vmatprep.mubr.bf16.mxu0 %v839
    %2592 = vmatmul.mubr.bf16.gmra.mrb[0].mxu0 %v838
    %v2593 = vpop.f32.mrb[0].mxu0
    %v2594 = vadd.f32 %v327, %v2593
    %v2595 = vpop.f32.mrb[0].mxu0
    %v2596 = vadd.f32 %v331, %v2595
    %v2597 = vpop.f32.mrb[0].mxu0
    %v2598 = vadd.f32 %v327, %v2597
    %v2599 = vpop.f32.mrb[0].mxu0
    %v2600 = vadd.f32 %v331, %v2599
    %2601 = vmatprep.mubr.bf16.mxu0 %v841
    %2602 = vmatmul.mubr.bf16.gmra.mrb[0].mxu0 %v840
    %v2603 = vpop.f32.mrb[0].mxu0
    %v2604 = vadd.f32 %v327, %v2603
    %v2605 = vpop.f32.mrb[0].mxu0
    %v2606 = vadd.f32 %v331, %v2605
    %v2607 = vpop.f32.mrb[0].mxu0
    %v2608 = vadd.f32 %v327, %v2607
    %v2609 = vpop.f32.mrb[0].mxu0
    %v2610 = vadd.f32 %v331, %v2609
    %2611 = vmatprep.mubr.bf16.mxu0 %v843
    %2612 = vmatmul.mubr.bf16.gmra.mrb[0].mxu0 %v842
    %v2613 = vpop.f32.mrb[0].mxu0
    %v2614 = vadd.f32 %v327, %v2613
    %v2615 = vpop.f32.mrb[0].mxu0
    %v2616 = vadd.f32 %v331, %v2615
    %v2617 = vpop.f32.mrb[0].mxu0
    %v2618 = vadd.f32 %v327, %v2617
    %v2619 = vpop.f32.mrb[0].mxu0
    %v2620 = vadd.f32 %v331, %v2619
    %2621 = vmatprep.mubr.bf16.mxu0 %v845
    %2622 = vmatmul.mubr.bf16.gmra.mrb[0].mxu0 %v844
    %v2623 = vpop.f32.mrb[0].mxu0
    %v2624 = vadd.f32 %v327, %v2623
    %v2625 = vpop.f32.mrb[0].mxu0
    %v2626 = vadd.f32 %v331, %v2625
    %v2627 = vpop.f32.mrb[0].mxu0
    %v2628 = vadd.f32 %v327, %v2627
    %v2629 = vpop.f32.mrb[0].mxu0
    %v2630 = vadd.f32 %v331, %v2629
    %2631 = vmatprep.mubr.bf16.mxu0 %v847
    %2632 = vmatmul.mubr.bf16.gmra.mrb[0].mxu0 %v846
    %v2633 = vpop.f32.mrb[0].mxu0
    %v2634 = vadd.f32 %v327, %v2633
    %v2635 = vpop.f32.mrb[0].mxu0
    %v2636 = vadd.f32 %v331, %v2635
    %v2637 = vpop.f32.mrb[0].mxu0
    %v2638 = vadd.f32 %v327, %v2637
    %v2639 = vpop.f32.mrb[0].mxu0
    %v2640 = vadd.f32 %v331, %v2639
    %2641 = vdwg.mxu0
    %v2642 = vmax.f32 %v1331, 0.0
    %v2643 = vmax.f32 %v1333, 0.0
    %v2644 = vmax.f32 %v2004, 0.0
    %v2645 = vmax.f32 %v2006, 0.0
    %v2646 = vmax.f32 %v1335, 0.0
    %v2647 = vmax.f32 %v1337, 0.0
    %v2648 = vmax.f32 %v2008, 0.0
    %v2649 = vmax.f32 %v2010, 0.0
    %v2650 = vmax.f32 %v1341, 0.0
    %v2651 = vmax.f32 %v1343, 0.0
    %v2652 = vmax.f32 %v2014, 0.0
    %v2653 = vmax.f32 %v2016, 0.0
    %v2654 = vmax.f32 %v1345, 0.0
    %v2655 = vmax.f32 %v1347, 0.0
    %v2656 = vmax.f32 %v2018, 0.0
    %v2657 = vmax.f32 %v2020, 0.0
    %v2658 = vmax.f32 %v1351, 0.0
    %v2659 = vmax.f32 %v1353, 0.0
    %v2660 = vmax.f32 %v2024, 0.0
    %v2661 = vmax.f32 %v2026, 0.0
    %v2662 = vmax.f32 %v1355, 0.0
    %v2663 = vmax.f32 %v1357, 0.0
    %v2664 = vmax.f32 %v2028, 0.0
    %v2665 = vmax.f32 %v2030, 0.0
    %v2666 = vmax.f32 %v1361, 0.0
    %v2667 = vmax.f32 %v1363, 0.0
    %v2668 = vmax.f32 %v2034, 0.0
    %v2669 = vmax.f32 %v2036, 0.0
    %v2670 = vmax.f32 %v1365, 0.0
    %v2671 = vmax.f32 %v1367, 0.0
    %v2672 = vmax.f32 %v2038, 0.0
    %v2673 = vmax.f32 %v2040, 0.0
    %v2674 = vmax.f32 %v1371, 0.0
    %v2675 = vmax.f32 %v1373, 0.0
    %v2676 = vmax.f32 %v2044, 0.0
    %v2677 = vmax.f32 %v2046, 0.0
    %v2678 = vmax.f32 %v1375, 0.0
    %v2679 = vmax.f32 %v1377, 0.0
    %v2680 = vmax.f32 %v2048, 0.0
    %v2681 = vmax.f32 %v2050, 0.0
    %v2682 = vmax.f32 %v1381, 0.0
    %v2683 = vmax.f32 %v1383, 0.0
    %v2684 = vmax.f32 %v2054, 0.0
    %v2685 = vmax.f32 %v2056, 0.0
    %v2686 = vmax.f32 %v1385, 0.0
    %v2687 = vmax.f32 %v1387, 0.0
    %v2688 = vmax.f32 %v2058, 0.0
    %v2689 = vmax.f32 %v2060, 0.0
    %v2690 = vmax.f32 %v1391, 0.0
    %v2691 = vmax.f32 %v1393, 0.0
    %v2692 = vmax.f32 %v2064, 0.0
    %v2693 = vmax.f32 %v2066, 0.0
    %v2694 = vmax.f32 %v1395, 0.0
    %v2695 = vmax.f32 %v1397, 0.0
    %v2696 = vmax.f32 %v2068, 0.0
    %v2697 = vmax.f32 %v2070, 0.0
    %v2698 = vmax.f32 %v1401, 0.0
    %v2699 = vmax.f32 %v1403, 0.0
    %v2700 = vmax.f32 %v2074, 0.0
    %v2701 = vmax.f32 %v2076, 0.0
    %v2702 = vmax.f32 %v1405, 0.0
    %v2703 = vmax.f32 %v1407, 0.0
    %v2704 = vmax.f32 %v2078, 0.0
    %v2705 = vmax.f32 %v2080, 0.0
    %v2706 = vmax.f32 %v1411, 0.0
    %v2707 = vmax.f32 %v1413, 0.0
    %v2708 = vmax.f32 %v2084, 0.0
    %v2709 = vmax.f32 %v2086, 0.0
    %v2710 = vmax.f32 %v1415, 0.0
    %v2711 = vmax.f32 %v1417, 0.0
    %v2712 = vmax.f32 %v2088, 0.0
    %v2713 = vmax.f32 %v2090, 0.0
    %v2714 = vmax.f32 %v1421, 0.0
    %v2715 = vmax.f32 %v1423, 0.0
    %v2716 = vmax.f32 %v2094, 0.0
    %v2717 = vmax.f32 %v2096, 0.0
    %v2718 = vmax.f32 %v1425, 0.0
    %v2719 = vmax.f32 %v1427, 0.0
    %v2720 = vmax.f32 %v2098, 0.0
    %v2721 = vmax.f32 %v2100, 0.0
    %v2722 = vmax.f32 %v1431, 0.0
    %v2723 = vmax.f32 %v1433, 0.0
    %v2724 = vmax.f32 %v2104, 0.0
    %v2725 = vmax.f32 %v2106, 0.0
    %v2726 = vmax.f32 %v1435, 0.0
    %v2727 = vmax.f32 %v1437, 0.0
    %v2728 = vmax.f32 %v2108, 0.0
    %v2729 = vmax.f32 %v2110, 0.0
    %v2730 = vmax.f32 %v1441, 0.0
    %v2731 = vmax.f32 %v1443, 0.0
    %v2732 = vmax.f32 %v2114, 0.0
    %v2733 = vmax.f32 %v2116, 0.0
    %v2734 = vmax.f32 %v1445, 0.0
    %v2735 = vmax.f32 %v1447, 0.0
    %v2736 = vmax.f32 %v2118, 0.0
    %v2737 = vmax.f32 %v2120, 0.0
    %v2738 = vmax.f32 %v1451, 0.0
    %v2739 = vmax.f32 %v1453, 0.0
    %v2740 = vmax.f32 %v2124, 0.0
    %v2741 = vmax.f32 %v2126, 0.0
    %v2742 = vmax.f32 %v1455, 0.0
    %v2743 = vmax.f32 %v1457, 0.0
    %v2744 = vmax.f32 %v2128, 0.0
    %v2745 = vmax.f32 %v2130, 0.0
    %v2746 = vmax.f32 %v1461, 0.0
    %v2747 = vmax.f32 %v1463, 0.0
    %v2748 = vmax.f32 %v2134, 0.0
    %v2749 = vmax.f32 %v2136, 0.0
    %v2750 = vmax.f32 %v1465, 0.0
    %v2751 = vmax.f32 %v1467, 0.0
    %v2752 = vmax.f32 %v2138, 0.0
    %v2753 = vmax.f32 %v2140, 0.0
    %v2754 = vmax.f32 %v1471, 0.0
    %v2755 = vmax.f32 %v1473, 0.0
    %v2756 = vmax.f32 %v2144, 0.0
    %v2757 = vmax.f32 %v2146, 0.0
    %v2758 = vmax.f32 %v1475, 0.0
    %v2759 = vmax.f32 %v1477, 0.0
    %v2760 = vmax.f32 %v2148, 0.0
    %v2761 = vmax.f32 %v2150, 0.0
    %v2762 = vmax.f32 %v1481, 0.0
    %v2763 = vmax.f32 %v1483, 0.0
    %v2764 = vmax.f32 %v2154, 0.0
    %v2765 = vmax.f32 %v2156, 0.0
    %v2766 = vmax.f32 %v1485, 0.0
    %v2767 = vmax.f32 %v1487, 0.0
    %v2768 = vmax.f32 %v2158, 0.0
    %v2769 = vmax.f32 %v2160, 0.0
    %v2770 = vmax.f32 %v1491, 0.0
    %v2771 = vmax.f32 %v1493, 0.0
    %v2772 = vmax.f32 %v2164, 0.0
    %v2773 = vmax.f32 %v2166, 0.0
    %v2774 = vmax.f32 %v1495, 0.0
    %v2775 = vmax.f32 %v1497, 0.0
    %v2776 = vmax.f32 %v2168, 0.0
    %v2777 = vmax.f32 %v2170, 0.0
    %v2778 = vmax.f32 %v1501, 0.0
    %v2779 = vmax.f32 %v1503, 0.0
    %v2780 = vmax.f32 %v2174, 0.0
    %v2781 = vmax.f32 %v2176, 0.0
    %v2782 = vmax.f32 %v1505, 0.0
    %v2783 = vmax.f32 %v1507, 0.0
    %v2784 = vmax.f32 %v2178, 0.0
    %v2785 = vmax.f32 %v2180, 0.0
    %v2786 = vmax.f32 %v1511, 0.0
    %v2787 = vmax.f32 %v1513, 0.0
    %v2788 = vmax.f32 %v2184, 0.0
    %v2789 = vmax.f32 %v2186, 0.0
    %v2790 = vmax.f32 %v1515, 0.0
    %v2791 = vmax.f32 %v1517, 0.0
    %v2792 = vmax.f32 %v2188, 0.0
    %v2793 = vmax.f32 %v2190, 0.0
    %v2794 = vmax.f32 %v1521, 0.0
    %v2795 = vmax.f32 %v1523, 0.0
    %v2796 = vmax.f32 %v2194, 0.0
    %v2797 = vmax.f32 %v2196, 0.0
    %v2798 = vmax.f32 %v1525, 0.0
    %v2799 = vmax.f32 %v1527, 0.0
    %v2800 = vmax.f32 %v2198, 0.0
    %v2801 = vmax.f32 %v2200, 0.0
    %v2802 = vmax.f32 %v1531, 0.0
    %v2803 = vmax.f32 %v1533, 0.0
    %v2804 = vmax.f32 %v2204, 0.0
    %v2805 = vmax.f32 %v2206, 0.0
    %v2806 = vmax.f32 %v1535, 0.0
    %v2807 = vmax.f32 %v1537, 0.0
    %v2808 = vmax.f32 %v2208, 0.0
    %v2809 = vmax.f32 %v2210, 0.0
    %v2810 = vmax.f32 %v1541, 0.0
    %v2811 = vmax.f32 %v1543, 0.0
    %v2812 = vmax.f32 %v2214, 0.0
    %v2813 = vmax.f32 %v2216, 0.0
    %v2814 = vmax.f32 %v1545, 0.0
    %v2815 = vmax.f32 %v1547, 0.0
    %v2816 = vmax.f32 %v2218, 0.0
    %v2817 = vmax.f32 %v2220, 0.0
    %v2818 = vmax.f32 %v1551, 0.0
    %v2819 = vmax.f32 %v1553, 0.0
    %v2820 = vmax.f32 %v2224, 0.0
    %v2821 = vmax.f32 %v2226, 0.0
    %v2822 = vmax.f32 %v1555, 0.0
    %v2823 = vmax.f32 %v1557, 0.0
    %v2824 = vmax.f32 %v2228, 0.0
    %v2825 = vmax.f32 %v2230, 0.0
    %v2826 = vmax.f32 %v1561, 0.0
    %v2827 = vmax.f32 %v1563, 0.0
    %v2828 = vmax.f32 %v2234, 0.0
    %v2829 = vmax.f32 %v2236, 0.0
    %v2830 = vmax.f32 %v1565, 0.0
    %v2831 = vmax.f32 %v1567, 0.0
    %v2832 = vmax.f32 %v2238, 0.0
    %v2833 = vmax.f32 %v2240, 0.0
    %v2834 = vmax.f32 %v1571, 0.0
    %v2835 = vmax.f32 %v1573, 0.0
    %v2836 = vmax.f32 %v2244, 0.0
    %v2837 = vmax.f32 %v2246, 0.0
    %v2838 = vmax.f32 %v1575, 0.0
    %v2839 = vmax.f32 %v1577, 0.0
    %v2840 = vmax.f32 %v2248, 0.0
    %v2841 = vmax.f32 %v2250, 0.0
    %v2842 = vmax.f32 %v1581, 0.0
    %v2843 = vmax.f32 %v1583, 0.0
    %v2844 = vmax.f32 %v2254, 0.0
    %v2845 = vmax.f32 %v2256, 0.0
    %v2846 = vmax.f32 %v1585, 0.0
    %v2847 = vmax.f32 %v1587, 0.0
    %v2848 = vmax.f32 %v2258, 0.0
    %v2849 = vmax.f32 %v2260, 0.0
    %v2850 = vmax.f32 %v1591, 0.0
    %v2851 = vmax.f32 %v1593, 0.0
    %v2852 = vmax.f32 %v2264, 0.0
    %v2853 = vmax.f32 %v2266, 0.0
    %v2854 = vmax.f32 %v1595, 0.0
    %v2855 = vmax.f32 %v1597, 0.0
    %v2856 = vmax.f32 %v2268, 0.0
    %v2857 = vmax.f32 %v2270, 0.0
    %v2858 = vmax.f32 %v1601, 0.0
    %v2859 = vmax.f32 %v1603, 0.0
    %v2860 = vmax.f32 %v2274, 0.0
    %v2861 = vmax.f32 %v2276, 0.0
    %v2862 = vmax.f32 %v1605, 0.0
    %v2863 = vmax.f32 %v1607, 0.0
    %v2864 = vmax.f32 %v2278, 0.0
    %v2865 = vmax.f32 %v2280, 0.0
    %v2866 = vmax.f32 %v1611, 0.0
    %v2867 = vmax.f32 %v1613, 0.0
    %v2868 = vmax.f32 %v2284, 0.0
    %v2869 = vmax.f32 %v2286, 0.0
    %v2870 = vmax.f32 %v1615, 0.0
    %v2871 = vmax.f32 %v1617, 0.0
    %v2872 = vmax.f32 %v2288, 0.0
    %v2873 = vmax.f32 %v2290, 0.0
    %v2874 = vmax.f32 %v1621, 0.0
    %v2875 = vmax.f32 %v1623, 0.0
    %v2876 = vmax.f32 %v2294, 0.0
    %v2877 = vmax.f32 %v2296, 0.0
    %v2878 = vmax.f32 %v1625, 0.0
    %v2879 = vmax.f32 %v1627, 0.0
    %v2880 = vmax.f32 %v2298, 0.0
    %v2881 = vmax.f32 %v2300, 0.0
    %v2882 = vmax.f32 %v1631, 0.0
    %v2883 = vmax.f32 %v1633, 0.0
    %v2884 = vmax.f32 %v2304, 0.0
    %v2885 = vmax.f32 %v2306, 0.0
    %v2886 = vmax.f32 %v1635, 0.0
    %v2887 = vmax.f32 %v1637, 0.0
    %v2888 = vmax.f32 %v2308, 0.0
    %v2889 = vmax.f32 %v2310, 0.0
    %v2890 = vmax.f32 %v1641, 0.0
    %v2891 = vmax.f32 %v1643, 0.0
    %v2892 = vmax.f32 %v2314, 0.0
    %v2893 = vmax.f32 %v2316, 0.0
    %v2894 = vmax.f32 %v1645, 0.0
    %v2895 = vmax.f32 %v1647, 0.0
    %v2896 = vmax.f32 %v2318, 0.0
    %v2897 = vmax.f32 %v2320, 0.0
    %v2898 = vmax.f32 %v1651, 0.0
    %v2899 = vmax.f32 %v1653, 0.0
    %v2900 = vmax.f32 %v2324, 0.0
    %v2901 = vmax.f32 %v2326, 0.0
    %v2902 = vmax.f32 %v1655, 0.0
    %v2903 = vmax.f32 %v1657, 0.0
    %v2904 = vmax.f32 %v2328, 0.0
    %v2905 = vmax.f32 %v2330, 0.0
    %v2906 = vmax.f32 %v1661, 0.0
    %v2907 = vmax.f32 %v1663, 0.0
    %v2908 = vmax.f32 %v2334, 0.0
    %v2909 = vmax.f32 %v2336, 0.0
    %v2910 = vmax.f32 %v1665, 0.0
    %v2911 = vmax.f32 %v1667, 0.0
    %v2912 = vmax.f32 %v2338, 0.0
    %v2913 = vmax.f32 %v2340, 0.0
    %v2914 = vmax.f32 %v1671, 0.0
    %v2915 = vmax.f32 %v1673, 0.0
    %v2916 = vmax.f32 %v2344, 0.0
    %v2917 = vmax.f32 %v2346, 0.0
    %v2918 = vmax.f32 %v1675, 0.0
    %v2919 = vmax.f32 %v1677, 0.0
    %v2920 = vmax.f32 %v2348, 0.0
    %v2921 = vmax.f32 %v2350, 0.0
    %v2922 = vmax.f32 %v1681, 0.0
    %v2923 = vmax.f32 %v1683, 0.0
    %v2924 = vmax.f32 %v2354, 0.0
    %v2925 = vmax.f32 %v2356, 0.0
    %v2926 = vmax.f32 %v1685, 0.0
    %v2927 = vmax.f32 %v1687, 0.0
    %v2928 = vmax.f32 %v2358, 0.0
    %v2929 = vmax.f32 %v2360, 0.0
    %v2930 = vmax.f32 %v1691, 0.0
    %v2931 = vmax.f32 %v1693, 0.0
    %v2932 = vmax.f32 %v2364, 0.0
    %v2933 = vmax.f32 %v2366, 0.0
    %v2934 = vmax.f32 %v1695, 0.0
    %v2935 = vmax.f32 %v1697, 0.0
    %v2936 = vmax.f32 %v2368, 0.0
    %v2937 = vmax.f32 %v2370, 0.0
    %v2938 = vmax.f32 %v1701, 0.0
    %v2939 = vmax.f32 %v1703, 0.0
    %v2940 = vmax.f32 %v2374, 0.0
    %v2941 = vmax.f32 %v2376, 0.0
    %v2942 = vmax.f32 %v1705, 0.0
    %v2943 = vmax.f32 %v1707, 0.0
    %v2944 = vmax.f32 %v2378, 0.0
    %v2945 = vmax.f32 %v2380, 0.0
    %v2946 = vmax.f32 %v1711, 0.0
    %v2947 = vmax.f32 %v1713, 0.0
    %v2948 = vmax.f32 %v2384, 0.0
    %v2949 = vmax.f32 %v2386, 0.0
    %v2950 = vmax.f32 %v1715, 0.0
    %v2951 = vmax.f32 %v1717, 0.0
    %v2952 = vmax.f32 %v2388, 0.0
    %v2953 = vmax.f32 %v2390, 0.0
    %v2954 = vmax.f32 %v1721, 0.0
    %v2955 = vmax.f32 %v1723, 0.0
    %v2956 = vmax.f32 %v2394, 0.0
    %v2957 = vmax.f32 %v2396, 0.0
    %v2958 = vmax.f32 %v1725, 0.0
    %v2959 = vmax.f32 %v1727, 0.0
    %v2960 = vmax.f32 %v2398, 0.0
    %v2961 = vmax.f32 %v2400, 0.0
    %v2962 = vmax.f32 %v1731, 0.0
    %v2963 = vmax.f32 %v1733, 0.0
    %v2964 = vmax.f32 %v2404, 0.0
    %v2965 = vmax.f32 %v2406, 0.0
    %v2966 = vmax.f32 %v1735, 0.0
    %v2967 = vmax.f32 %v1737, 0.0
    %v2968 = vmax.f32 %v2408, 0.0
    %v2969 = vmax.f32 %v2410, 0.0
    %v2970 = vmax.f32 %v1741, 0.0
    %v2971 = vmax.f32 %v1743, 0.0
    %v2972 = vmax.f32 %v2414, 0.0
    %v2973 = vmax.f32 %v2416, 0.0
    %v2974 = vmax.f32 %v1745, 0.0
    %v2975 = vmax.f32 %v1747, 0.0
    %v2976 = vmax.f32 %v2418, 0.0
    %v2977 = vmax.f32 %v2420, 0.0
    %v2978 = vmax.f32 %v1751, 0.0
    %v2979 = vmax.f32 %v1753, 0.0
    %v2980 = vmax.f32 %v2424, 0.0
    %v2981 = vmax.f32 %v2426, 0.0
    %v2982 = vmax.f32 %v1755, 0.0
    %v2983 = vmax.f32 %v1757, 0.0
    %v2984 = vmax.f32 %v2428, 0.0
    %v2985 = vmax.f32 %v2430, 0.0
    %v2986 = vmax.f32 %v1761, 0.0
    %v2987 = vmax.f32 %v1763, 0.0
    %v2988 = vmax.f32 %v2434, 0.0
    %v2989 = vmax.f32 %v2436, 0.0
    %v2990 = vmax.f32 %v1765, 0.0
    %v2991 = vmax.f32 %v1767, 0.0
    %v2992 = vmax.f32 %v2438, 0.0
    %v2993 = vmax.f32 %v2440, 0.0
    %v2994 = vmax.f32 %v1771, 0.0
    %v2995 = vmax.f32 %v1773, 0.0
    %v2996 = vmax.f32 %v2444, 0.0
    %v2997 = vmax.f32 %v2446, 0.0
    %v2998 = vmax.f32 %v1775, 0.0
    %v2999 = vmax.f32 %v1777, 0.0
    %v3000 = vmax.f32 %v2448, 0.0
    %v3001 = vmax.f32 %v2450, 0.0
    %v3002 = vmax.f32 %v1781, 0.0
    %v3003 = vmax.f32 %v1783, 0.0
    %v3004 = vmax.f32 %v2454, 0.0
    %v3005 = vmax.f32 %v2456, 0.0
    %v3006 = vmax.f32 %v1785, 0.0
    %v3007 = vmax.f32 %v1787, 0.0
    %v3008 = vmax.f32 %v2458, 0.0
    %v3009 = vmax.f32 %v2460, 0.0
    %v3010 = vmax.f32 %v1791, 0.0
    %v3011 = vmax.f32 %v1793, 0.0
    %v3012 = vmax.f32 %v2464, 0.0
    %v3013 = vmax.f32 %v2466, 0.0
    %v3014 = vmax.f32 %v1795, 0.0
    %v3015 = vmax.f32 %v1797, 0.0
    %v3016 = vmax.f32 %v2468, 0.0
    %v3017 = vmax.f32 %v2470, 0.0
    %v3018 = vmax.f32 %v1801, 0.0
    %v3019 = vmax.f32 %v1803, 0.0
    %v3020 = vmax.f32 %v2474, 0.0
    %v3021 = vmax.f32 %v2476, 0.0
    %v3022 = vmax.f32 %v1805, 0.0
    %v3023 = vmax.f32 %v1807, 0.0
    %v3024 = vmax.f32 %v2478, 0.0
    %v3025 = vmax.f32 %v2480, 0.0
    %v3026 = vmax.f32 %v1811, 0.0
    %v3027 = vmax.f32 %v1813, 0.0
    %v3028 = vmax.f32 %v2484, 0.0
    %v3029 = vmax.f32 %v2486, 0.0
    %v3030 = vmax.f32 %v1815, 0.0
    %v3031 = vmax.f32 %v1817, 0.0
    %v3032 = vmax.f32 %v2488, 0.0
    %v3033 = vmax.f32 %v2490, 0.0
    %v3034 = vmax.f32 %v1821, 0.0
    %v3035 = vmax.f32 %v1823, 0.0
    %v3036 = vmax.f32 %v2494, 0.0
    %v3037 = vmax.f32 %v2496, 0.0
    %v3038 = vmax.f32 %v1825, 0.0
    %v3039 = vmax.f32 %v1827, 0.0
    %v3040 = vmax.f32 %v2498, 0.0
    %v3041 = vmax.f32 %v2500, 0.0
    %v3042 = vmax.f32 %v1831, 0.0
    %v3043 = vmax.f32 %v1833, 0.0
    %v3044 = vmax.f32 %v2504, 0.0
    %v3045 = vmax.f32 %v2506, 0.0
    %v3046 = vmax.f32 %v1835, 0.0
    %v3047 = vmax.f32 %v1837, 0.0
    %v3048 = vmax.f32 %v2508, 0.0
    %v3049 = vmax.f32 %v2510, 0.0
    %v3050 = vmax.f32 %v1841, 0.0
    %v3051 = vmax.f32 %v1843, 0.0
    %v3052 = vmax.f32 %v2514, 0.0
    %v3053 = vmax.f32 %v2516, 0.0
    %v3054 = vmax.f32 %v1845, 0.0
    %v3055 = vmax.f32 %v1847, 0.0
    %v3056 = vmax.f32 %v2518, 0.0
    %v3057 = vmax.f32 %v2520, 0.0
    %v3058 = vmax.f32 %v1851, 0.0
    %v3059 = vmax.f32 %v1853, 0.0
    %v3060 = vmax.f32 %v2524, 0.0
    %v3061 = vmax.f32 %v2526, 0.0
    %v3062 = vmax.f32 %v1855, 0.0
    %v3063 = vmax.f32 %v1857, 0.0
    %v3064 = vmax.f32 %v2528, 0.0
    %v3065 = vmax.f32 %v2530, 0.0
    %v3066 = vmax.f32 %v1861, 0.0
    %v3067 = vmax.f32 %v1863, 0.0
    %v3068 = vmax.f32 %v2534, 0.0
    %v3069 = vmax.f32 %v2536, 0.0
    %v3070 = vmax.f32 %v1865, 0.0
    %v3071 = vmax.f32 %v1867, 0.0
    %v3072 = vmax.f32 %v2538, 0.0
    %v3073 = vmax.f32 %v2540, 0.0
    %v3074 = vmax.f32 %v1871, 0.0
    %v3075 = vmax.f32 %v1873, 0.0
    %v3076 = vmax.f32 %v2544, 0.0
    %v3077 = vmax.f32 %v2546, 0.0
    %v3078 = vmax.f32 %v1875, 0.0
    %v3079 = vmax.f32 %v1877, 0.0
    %v3080 = vmax.f32 %v2548, 0.0
    %v3081 = vmax.f32 %v2550, 0.0
    %v3082 = vmax.f32 %v1881, 0.0
    %v3083 = vmax.f32 %v1883, 0.0
    %v3084 = vmax.f32 %v2554, 0.0
    %v3085 = vmax.f32 %v2556, 0.0
    %v3086 = vmax.f32 %v1885, 0.0
    %v3087 = vmax.f32 %v1887, 0.0
    %v3088 = vmax.f32 %v2558, 0.0
    %v3089 = vmax.f32 %v2560, 0.0
    %v3090 = vmax.f32 %v1891, 0.0
    %v3091 = vmax.f32 %v1893, 0.0
    %v3092 = vmax.f32 %v2564, 0.0
    %v3093 = vmax.f32 %v2566, 0.0
    %v3094 = vmax.f32 %v1895, 0.0
    %v3095 = vmax.f32 %v1897, 0.0
    %v3096 = vmax.f32 %v2568, 0.0
    %v3097 = vmax.f32 %v2570, 0.0
    %v3098 = vmax.f32 %v1901, 0.0
    %v3099 = vmax.f32 %v1903, 0.0
    %v3100 = vmax.f32 %v2574, 0.0
    %v3101 = vmax.f32 %v2576, 0.0
    %v3102 = vmax.f32 %v1905, 0.0
    %v3103 = vmax.f32 %v1907, 0.0
    %v3104 = vmax.f32 %v2578, 0.0
    %v3105 = vmax.f32 %v2580, 0.0
    %v3106 = vmax.f32 %v1911, 0.0
    %v3107 = vmax.f32 %v1913, 0.0
    %v3108 = vmax.f32 %v2584, 0.0
    %v3109 = vmax.f32 %v2586, 0.0
    %v3110 = vmax.f32 %v1915, 0.0
    %v3111 = vmax.f32 %v1917, 0.0
    %v3112 = vmax.f32 %v2588, 0.0
    %v3113 = vmax.f32 %v2590, 0.0
    %v3114 = vmax.f32 %v1921, 0.0
    %v3115 = vmax.f32 %v1923, 0.0
    %v3116 = vmax.f32 %v2594, 0.0
    %v3117 = vmax.f32 %v2596, 0.0
    %v3118 = vmax.f32 %v1925, 0.0
    %v3119 = vmax.f32 %v1927, 0.0
    %v3120 = vmax.f32 %v2598, 0.0
    %v3121 = vmax.f32 %v2600, 0.0
    %v3122 = vmax.f32 %v1931, 0.0
    %v3123 = vmax.f32 %v1933, 0.0
    %v3124 = vmax.f32 %v2604, 0.0
    %v3125 = vmax.f32 %v2606, 0.0
    %v3126 = vmax.f32 %v1935, 0.0
    %v3127 = vmax.f32 %v1937, 0.0
    %v3128 = vmax.f32 %v2608, 0.0
    %v3129 = vmax.f32 %v2610, 0.0
    %v3130 = vmax.f32 %v1941, 0.0
    %v3131 = vmax.f32 %v1943, 0.0
    %v3132 = vmax.f32 %v2614, 0.0
    %v3133 = vmax.f32 %v2616, 0.0
    %v3134 = vmax.f32 %v1945, 0.0
    %v3135 = vmax.f32 %v1947, 0.0
    %v3136 = vmax.f32 %v2618, 0.0
    %v3137 = vmax.f32 %v2620, 0.0
    %v3138 = vmax.f32 %v1951, 0.0
    %v3139 = vmax.f32 %v1953, 0.0
    %v3140 = vmax.f32 %v2624, 0.0
    %v3141 = vmax.f32 %v2626, 0.0
    %v3142 = vmax.f32 %v1955, 0.0
    %v3143 = vmax.f32 %v1957, 0.0
    %v3144 = vmax.f32 %v2628, 0.0
    %v3145 = vmax.f32 %v2630, 0.0
    %v3146 = vmax.f32 %v1961, 0.0
    %v3147 = vmax.f32 %v1963, 0.0
    %v3148 = vmax.f32 %v2634, 0.0
    %v3149 = vmax.f32 %v2636, 0.0
    %v3150 = vmax.f32 %v1965, 0.0
    %v3151 = vmax.f32 %v1967, 0.0
    %v3152 = vmax.f32 %v2638, 0.0
    %v3153 = vmax.f32 %v2640, 0.0
    %v3154 = vpack.c.bf16 %v2646, %v2642
    %v3155 = vpack.c.bf16 %v2647, %v2643
    %v3156 = vpack.c.bf16 %v2648, %v2644
    %v3157 = vpack.c.bf16 %v2649, %v2645
    %v3158 = vpack.c.bf16 %v2654, %v2650
    %v3159 = vpack.c.bf16 %v2655, %v2651
    %v3160 = vpack.c.bf16 %v2656, %v2652
    %v3161 = vpack.c.bf16 %v2657, %v2653
    %v3162 = vpack.c.bf16 %v2662, %v2658
    %v3163 = vpack.c.bf16 %v2663, %v2659
    %v3164 = vpack.c.bf16 %v2664, %v2660
    %v3165 = vpack.c.bf16 %v2665, %v2661
    %v3166 = vpack.c.bf16 %v2670, %v2666
    %v3167 = vpack.c.bf16 %v2671, %v2667
    %v3168 = vpack.c.bf16 %v2672, %v2668
    %v3169 = vpack.c.bf16 %v2673, %v2669
    %v3170 = vpack.c.bf16 %v2678, %v2674
    %v3171 = vpack.c.bf16 %v2679, %v2675
    %v3172 = vpack.c.bf16 %v2680, %v2676
    %v3173 = vpack.c.bf16 %v2681, %v2677
    %v3174 = vpack.c.bf16 %v2686, %v2682
    %v3175 = vpack.c.bf16 %v2687, %v2683
    %v3176 = vpack.c.bf16 %v2688, %v2684
    %v3177 = vpack.c.bf16 %v2689, %v2685
    %v3178 = vpack.c.bf16 %v2694, %v2690
    %v3179 = vpack.c.bf16 %v2695, %v2691
    %v3180 = vpack.c.bf16 %v2696, %v2692
    %v3181 = vpack.c.bf16 %v2697, %v2693
    %v3182 = vpack.c.bf16 %v2702, %v2698
    %v3183 = vpack.c.bf16 %v2703, %v2699
    %v3184 = vpack.c.bf16 %v2704, %v2700
    %v3185 = vpack.c.bf16 %v2705, %v2701
    %v3186 = vpack.c.bf16 %v2710, %v2706
    %v3187 = vpack.c.bf16 %v2711, %v2707
    %v3188 = vpack.c.bf16 %v2712, %v2708
    %v3189 = vpack.c.bf16 %v2713, %v2709
    %v3190 = vpack.c.bf16 %v2718, %v2714
    %v3191 = vpack.c.bf16 %v2719, %v2715
    %v3192 = vpack.c.bf16 %v2720, %v2716
    %v3193 = vpack.c.bf16 %v2721, %v2717
    %v3194 = vpack.c.bf16 %v2726, %v2722
    %v3195 = vpack.c.bf16 %v2727, %v2723
    %v3196 = vpack.c.bf16 %v2728, %v2724
    %v3197 = vpack.c.bf16 %v2729, %v2725
    %v3198 = vpack.c.bf16 %v2734, %v2730
    %v3199 = vpack.c.bf16 %v2735, %v2731
    %v3200 = vpack.c.bf16 %v2736, %v2732
    %v3201 = vpack.c.bf16 %v2737, %v2733
    %v3202 = vpack.c.bf16 %v2742, %v2738
    %v3203 = vpack.c.bf16 %v2743, %v2739
    %v3204 = vpack.c.bf16 %v2744, %v2740
    %v3205 = vpack.c.bf16 %v2745, %v2741
    %v3206 = vpack.c.bf16 %v2750, %v2746
    %v3207 = vpack.c.bf16 %v2751, %v2747
    %v3208 = vpack.c.bf16 %v2752, %v2748
    %v3209 = vpack.c.bf16 %v2753, %v2749
    %v3210 = vpack.c.bf16 %v2758, %v2754
    %v3211 = vpack.c.bf16 %v2759, %v2755
    %v3212 = vpack.c.bf16 %v2760, %v2756
    %v3213 = vpack.c.bf16 %v2761, %v2757
    %v3214 = vpack.c.bf16 %v2766, %v2762
    %v3215 = vpack.c.bf16 %v2767, %v2763
    %v3216 = vpack.c.bf16 %v2768, %v2764
    %v3217 = vpack.c.bf16 %v2769, %v2765
    %v3218 = vpack.c.bf16 %v2774, %v2770
    %v3219 = vpack.c.bf16 %v2775, %v2771
    %v3220 = vpack.c.bf16 %v2776, %v2772
    %v3221 = vpack.c.bf16 %v2777, %v2773
    %v3222 = vpack.c.bf16 %v2782, %v2778
    %v3223 = vpack.c.bf16 %v2783, %v2779
    %v3224 = vpack.c.bf16 %v2784, %v2780
    %v3225 = vpack.c.bf16 %v2785, %v2781
    %v3226 = vpack.c.bf16 %v2790, %v2786
    %v3227 = vpack.c.bf16 %v2791, %v2787
    %v3228 = vpack.c.bf16 %v2792, %v2788
    %v3229 = vpack.c.bf16 %v2793, %v2789
    %v3230 = vpack.c.bf16 %v2798, %v2794
    %v3231 = vpack.c.bf16 %v2799, %v2795
    %v3232 = vpack.c.bf16 %v2800, %v2796
    %v3233 = vpack.c.bf16 %v2801, %v2797
    %v3234 = vpack.c.bf16 %v2806, %v2802
    %v3235 = vpack.c.bf16 %v2807, %v2803
    %v3236 = vpack.c.bf16 %v2808, %v2804
    %v3237 = vpack.c.bf16 %v2809, %v2805
    %v3238 = vpack.c.bf16 %v2814, %v2810
    %v3239 = vpack.c.bf16 %v2815, %v2811
    %v3240 = vpack.c.bf16 %v2816, %v2812
    %v3241 = vpack.c.bf16 %v2817, %v2813
    %v3242 = vpack.c.bf16 %v2822, %v2818
    %v3243 = vpack.c.bf16 %v2823, %v2819
    %v3244 = vpack.c.bf16 %v2824, %v2820
    %v3245 = vpack.c.bf16 %v2825, %v2821
    %v3246 = vpack.c.bf16 %v2830, %v2826
    %v3247 = vpack.c.bf16 %v2831, %v2827
    %v3248 = vpack.c.bf16 %v2832, %v2828
    %v3249 = vpack.c.bf16 %v2833, %v2829
    %v3250 = vpack.c.bf16 %v2838, %v2834
    %v3251 = vpack.c.bf16 %v2839, %v2835
    %v3252 = vpack.c.bf16 %v2840, %v2836
    %v3253 = vpack.c.bf16 %v2841, %v2837
    %v3254 = vpack.c.bf16 %v2846, %v2842
    %v3255 = vpack.c.bf16 %v2847, %v2843
    %v3256 = vpack.c.bf16 %v2848, %v2844
    %v3257 = vpack.c.bf16 %v2849, %v2845
    %v3258 = vpack.c.bf16 %v2854, %v2850
    %v3259 = vpack.c.bf16 %v2855, %v2851
    %v3260 = vpack.c.bf16 %v2856, %v2852
    %v3261 = vpack.c.bf16 %v2857, %v2853
    %v3262 = vpack.c.bf16 %v2862, %v2858
    %v3263 = vpack.c.bf16 %v2863, %v2859
    %v3264 = vpack.c.bf16 %v2864, %v2860
    %v3265 = vpack.c.bf16 %v2865, %v2861
    %v3266 = vpack.c.bf16 %v2870, %v2866
    %v3267 = vpack.c.bf16 %v2871, %v2867
    %v3268 = vpack.c.bf16 %v2872, %v2868
    %v3269 = vpack.c.bf16 %v2873, %v2869
    %v3270 = vpack.c.bf16 %v2878, %v2874
    %v3271 = vpack.c.bf16 %v2879, %v2875
    %v3272 = vpack.c.bf16 %v2880, %v2876
    %v3273 = vpack.c.bf16 %v2881, %v2877
    %v3274 = vpack.c.bf16 %v2886, %v2882
    %v3275 = vpack.c.bf16 %v2887, %v2883
    %v3276 = vpack.c.bf16 %v2888, %v2884
    %v3277 = vpack.c.bf16 %v2889, %v2885
    %v3278 = vpack.c.bf16 %v2894, %v2890
    %v3279 = vpack.c.bf16 %v2895, %v2891
    %v3280 = vpack.c.bf16 %v2896, %v2892
    %v3281 = vpack.c.bf16 %v2897, %v2893
    %v3282 = vpack.c.bf16 %v2902, %v2898
    %v3283 = vpack.c.bf16 %v2903, %v2899
    %v3284 = vpack.c.bf16 %v2904, %v2900
    %v3285 = vpack.c.bf16 %v2905, %v2901
    %v3286 = vpack.c.bf16 %v2910, %v2906
    %v3287 = vpack.c.bf16 %v2911, %v2907
    %v3288 = vpack.c.bf16 %v2912, %v2908
    %v3289 = vpack.c.bf16 %v2913, %v2909
    %v3290 = vpack.c.bf16 %v2918, %v2914
    %v3291 = vpack.c.bf16 %v2919, %v2915
    %v3292 = vpack.c.bf16 %v2920, %v2916
    %v3293 = vpack.c.bf16 %v2921, %v2917
    %v3294 = vpack.c.bf16 %v2926, %v2922
    %v3295 = vpack.c.bf16 %v2927, %v2923
    %v3296 = vpack.c.bf16 %v2928, %v2924
    %v3297 = vpack.c.bf16 %v2929, %v2925
    %v3298 = vpack.c.bf16 %v2934, %v2930
    %v3299 = vpack.c.bf16 %v2935, %v2931
    %v3300 = vpack.c.bf16 %v2936, %v2932
    %v3301 = vpack.c.bf16 %v2937, %v2933
    %v3302 = vpack.c.bf16 %v2942, %v2938
    %v3303 = vpack.c.bf16 %v2943, %v2939
    %v3304 = vpack.c.bf16 %v2944, %v2940
    %v3305 = vpack.c.bf16 %v2945, %v2941
    %v3306 = vpack.c.bf16 %v2950, %v2946
    %v3307 = vpack.c.bf16 %v2951, %v2947
    %v3308 = vpack.c.bf16 %v2952, %v2948
    %v3309 = vpack.c.bf16 %v2953, %v2949
    %v3310 = vpack.c.bf16 %v2958, %v2954
    %v3311 = vpack.c.bf16 %v2959, %v2955
    %v3312 = vpack.c.bf16 %v2960, %v2956
    %v3313 = vpack.c.bf16 %v2961, %v2957
    %v3314 = vpack.c.bf16 %v2966, %v2962
    %v3315 = vpack.c.bf16 %v2967, %v2963
    %v3316 = vpack.c.bf16 %v2968, %v2964
    %v3317 = vpack.c.bf16 %v2969, %v2965
    %v3318 = vpack.c.bf16 %v2974, %v2970
    %v3319 = vpack.c.bf16 %v2975, %v2971
    %v3320 = vpack.c.bf16 %v2976, %v2972
    %v3321 = vpack.c.bf16 %v2977, %v2973
    %v3322 = vpack.c.bf16 %v2982, %v2978
    %v3323 = vpack.c.bf16 %v2983, %v2979
    %v3324 = vpack.c.bf16 %v2984, %v2980
    %v3325 = vpack.c.bf16 %v2985, %v2981
    %v3326 = vpack.c.bf16 %v2990, %v2986
    %v3327 = vpack.c.bf16 %v2991, %v2987
    %v3328 = vpack.c.bf16 %v2992, %v2988
    %v3329 = vpack.c.bf16 %v2993, %v2989
    %v3330 = vpack.c.bf16 %v2998, %v2994
    %v3331 = vpack.c.bf16 %v2999, %v2995
    %v3332 = vpack.c.bf16 %v3000, %v2996
    %v3333 = vpack.c.bf16 %v3001, %v2997
    %v3334 = vpack.c.bf16 %v3006, %v3002
    %v3335 = vpack.c.bf16 %v3007, %v3003
    %v3336 = vpack.c.bf16 %v3008, %v3004
    %v3337 = vpack.c.bf16 %v3009, %v3005
    %v3338 = vpack.c.bf16 %v3014, %v3010
    %v3339 = vpack.c.bf16 %v3015, %v3011
    %v3340 = vpack.c.bf16 %v3016, %v3012
    %v3341 = vpack.c.bf16 %v3017, %v3013
    %v3342 = vpack.c.bf16 %v3022, %v3018
    %v3343 = vpack.c.bf16 %v3023, %v3019
    %v3344 = vpack.c.bf16 %v3024, %v3020
    %v3345 = vpack.c.bf16 %v3025, %v3021
    %v3346 = vpack.c.bf16 %v3030, %v3026
    %v3347 = vpack.c.bf16 %v3031, %v3027
    %v3348 = vpack.c.bf16 %v3032, %v3028
    %v3349 = vpack.c.bf16 %v3033, %v3029
    %v3350 = vpack.c.bf16 %v3038, %v3034
    %v3351 = vpack.c.bf16 %v3039, %v3035
    %v3352 = vpack.c.bf16 %v3040, %v3036
    %v3353 = vpack.c.bf16 %v3041, %v3037
    %v3354 = vpack.c.bf16 %v3046, %v3042
    %v3355 = vpack.c.bf16 %v3047, %v3043
    %v3356 = vpack.c.bf16 %v3048, %v3044
    %v3357 = vpack.c.bf16 %v3049, %v3045
    %v3358 = vpack.c.bf16 %v3054, %v3050
    %v3359 = vpack.c.bf16 %v3055, %v3051
    %v3360 = vpack.c.bf16 %v3056, %v3052
    %v3361 = vpack.c.bf16 %v3057, %v3053
    %v3362 = vpack.c.bf16 %v3062, %v3058
    %v3363 = vpack.c.bf16 %v3063, %v3059
    %v3364 = vpack.c.bf16 %v3064, %v3060
    %v3365 = vpack.c.bf16 %v3065, %v3061
    %v3366 = vpack.c.bf16 %v3070, %v3066
    %v3367 = vpack.c.bf16 %v3071, %v3067
    %v3368 = vpack.c.bf16 %v3072, %v3068
    %v3369 = vpack.c.bf16 %v3073, %v3069
    %v3370 = vpack.c.bf16 %v3078, %v3074
    %v3371 = vpack.c.bf16 %v3079, %v3075
    %v3372 = vpack.c.bf16 %v3080, %v3076
    %v3373 = vpack.c.bf16 %v3081, %v3077
    %v3374 = vpack.c.bf16 %v3086, %v3082
    %v3375 = vpack.c.bf16 %v3087, %v3083
    %v3376 = vpack.c.bf16 %v3088, %v3084
    %v3377 = vpack.c.bf16 %v3089, %v3085
    %v3378 = vpack.c.bf16 %v3094, %v3090
    %v3379 = vpack.c.bf16 %v3095, %v3091
    %v3380 = vpack.c.bf16 %v3096, %v3092
    %v3381 = vpack.c.bf16 %v3097, %v3093
    %v3382 = vpack.c.bf16 %v3102, %v3098
    %v3383 = vpack.c.bf16 %v3103, %v3099
    %v3384 = vpack.c.bf16 %v3104, %v3100
    %v3385 = vpack.c.bf16 %v3105, %v3101
    %v3386 = vpack.c.bf16 %v3110, %v3106
    %v3387 = vpack.c.bf16 %v3111, %v3107
    %v3388 = vpack.c.bf16 %v3112, %v3108
    %v3389 = vpack.c.bf16 %v3113, %v3109
    %v3390 = vpack.c.bf16 %v3118, %v3114
    %v3391 = vpack.c.bf16 %v3119, %v3115
    %v3392 = vpack.c.bf16 %v3120, %v3116
    %v3393 = vpack.c.bf16 %v3121, %v3117
    %v3394 = vpack.c.bf16 %v3126, %v3122
    %v3395 = vpack.c.bf16 %v3127, %v3123
    %v3396 = vpack.c.bf16 %v3128, %v3124
    %v3397 = vpack.c.bf16 %v3129, %v3125
    %v3398 = vpack.c.bf16 %v3134, %v3130
    %v3399 = vpack.c.bf16 %v3135, %v3131
    %v3400 = vpack.c.bf16 %v3136, %v3132
    %v3401 = vpack.c.bf16 %v3137, %v3133
    %v3402 = vpack.c.bf16 %v3142, %v3138
    %v3403 = vpack.c.bf16 %v3143, %v3139
    %v3404 = vpack.c.bf16 %v3144, %v3140
    %v3405 = vpack.c.bf16 %v3145, %v3141
    %v3406 = vpack.c.bf16 %v3150, %v3146
    %v3407 = vpack.c.bf16 %v3151, %v3147
    %v3408 = vpack.c.bf16 %v3152, %v3148
    %v3409 = vpack.c.bf16 %v3153, %v3149
    %v3410 = vld [vmem:[#allocation7] sm:$0xff]
    %v3411 = vld [vmem:[#allocation7 + $0x8] sm:$0xff]
    %v3412 = vld [vmem:[#allocation7 + $0x10] sm:$0xff]
    %v3413 = vld [vmem:[#allocation7 + $0x18] sm:$0xff]
    %v3414 = vld [vmem:[#allocation7 + $0x20] sm:$0xff]
    %v3415 = vld [vmem:[#allocation7 + $0x28] sm:$0xff]
    %v3416 = vld [vmem:[#allocation7 + $0x30] sm:$0xff]
    %v3417 = vld [vmem:[#allocation7 + $0x38] sm:$0xff]
    %v3418 = vld [vmem:[#allocation7 + $0x40] sm:$0xff]
    %v3419 = vld [vmem:[#allocation7 + $0x48] sm:$0xff]
    %v3420 = vld [vmem:[#allocation7 + $0x50] sm:$0xff]
    %v3421 = vld [vmem:[#allocation7 + $0x58] sm:$0xff]
    %v3422 = vld [vmem:[#allocation7 + $0x60] sm:$0xff]
    %v3423 = vld [vmem:[#allocation7 + $0x68] sm:$0xff]
    %v3424 = vld [vmem:[#allocation7 + $0x70] sm:$0xff]
    %v3425 = vld [vmem:[#allocation7 + $0x78] sm:$0xff]
    %v3426 = vld [vmem:[#allocation7 + $0x80] sm:$0xff]
    %v3427 = vld [vmem:[#allocation7 + $0x88] sm:$0xff]
    %v3428 = vld [vmem:[#allocation7 + $0x90] sm:$0xff]
    %v3429 = vld [vmem:[#allocation7 + $0x98] sm:$0xff]
    %v3430 = vld [vmem:[#allocation7 + $0xa0] sm:$0xff]
    %v3431 = vld [vmem:[#allocation7 + $0xa8] sm:$0xff]
    %v3432 = vld [vmem:[#allocation7 + $0xb0] sm:$0xff]
    %v3433 = vld [vmem:[#allocation7 + $0xb8] sm:$0xff]
    %v3434 = vld [vmem:[#allocation7 + $0xc0] sm:$0xff]
    %v3435 = vld [vmem:[#allocation7 + $0xc8] sm:$0xff]
    %v3436 = vld [vmem:[#allocation7 + $0xd0] sm:$0xff]
    %v3437 = vld [vmem:[#allocation7 + $0xd8] sm:$0xff]
    %v3438 = vld [vmem:[#allocation7 + $0xe0] sm:$0xff]
    %v3439 = vld [vmem:[#allocation7 + $0xe8] sm:$0xff]
    %v3440 = vld [vmem:[#allocation7 + $0xf0] sm:$0xff]
    %v3441 = vld [vmem:[#allocation7 + $0xf8] sm:$0xff]
    %v3442 = vld [vmem:[#allocation7 + $0x100] sm:$0xff]
    %v3443 = vld [vmem:[#allocation7 + $0x108] sm:$0xff]
    %v3444 = vld [vmem:[#allocation7 + $0x110] sm:$0xff]
    %v3445 = vld [vmem:[#allocation7 + $0x118] sm:$0xff]
    %v3446 = vld [vmem:[#allocation7 + $0x120] sm:$0xff]
    %v3447 = vld [vmem:[#allocation7 + $0x128] sm:$0xff]
    %v3448 = vld [vmem:[#allocation7 + $0x130] sm:$0xff]
    %v3449 = vld [vmem:[#allocation7 + $0x138] sm:$0xff]
    %v3450 = vld [vmem:[#allocation7 + $0x140] sm:$0xff]
    %v3451 = vld [vmem:[#allocation7 + $0x148] sm:$0xff]
    %v3452 = vld [vmem:[#allocation7 + $0x150] sm:$0xff]
    %v3453 = vld [vmem:[#allocation7 + $0x158] sm:$0xff]
    %v3454 = vld [vmem:[#allocation7 + $0x160] sm:$0xff]
    %v3455 = vld [vmem:[#allocation7 + $0x168] sm:$0xff]
    %v3456 = vld [vmem:[#allocation7 + $0x170] sm:$0xff]
    %v3457 = vld [vmem:[#allocation7 + $0x178] sm:$0xff]
    %v3458 = vld [vmem:[#allocation7 + $0x180] sm:$0xff]
    %v3459 = vld [vmem:[#allocation7 + $0x188] sm:$0xff]
    %v3460 = vld [vmem:[#allocation7 + $0x190] sm:$0xff]
    %v3461 = vld [vmem:[#allocation7 + $0x198] sm:$0xff]
    %v3462 = vld [vmem:[#allocation7 + $0x1a0] sm:$0xff]
    %v3463 = vld [vmem:[#allocation7 + $0x1a8] sm:$0xff]
    %v3464 = vld [vmem:[#allocation7 + $0x1b0] sm:$0xff]
    %v3465 = vld [vmem:[#allocation7 + $0x1b8] sm:$0xff]
    %v3466 = vld [vmem:[#allocation7 + $0x1c0] sm:$0xff]
    %v3467 = vld [vmem:[#allocation7 + $0x1c8] sm:$0xff]
    %v3468 = vld [vmem:[#allocation7 + $0x1d0] sm:$0xff]
    %v3469 = vld [vmem:[#allocation7 + $0x1d8] sm:$0xff]
    %v3470 = vld [vmem:[#allocation7 + $0x1e0] sm:$0xff]
    %v3471 = vld [vmem:[#allocation7 + $0x1e8] sm:$0xff]
    %v3472 = vld [vmem:[#allocation7 + $0x1f0] sm:$0xff]
    %v3473 = vld [vmem:[#allocation7 + $0x1f8] sm:$0xff]
    %v3474 = vld [vmem:[%s4] sm:$0x3]
    %v3476 = vlaneseq
    %v3477 = vshrl.u32 %v3476, 7
    %v3478 = vsub.s32 0, %v3477
    %v3479 = vrot.slane %v3474, %v3478
    %v3480 = vlaneseq
    %v3481 = vshrl.u32 %v3480, 7
    %v3482 = vsub.s32 1, %v3481
    %v3483 = vrot.slane %v3474, %v3482
    %v3550 = vunpack.c.l.b16 %v3410
    %v3551 = vunpack.c.h.b16 %v3410
    %v3552 = vunpack.c.l.b16 %v3411
    %v3553 = vunpack.c.h.b16 %v3411
    %v3554 = vunpack.c.l.b16 %v3412
    %v3555 = vunpack.c.h.b16 %v3412
    %v3556 = vunpack.c.l.b16 %v3413
    %v3557 = vunpack.c.h.b16 %v3413
    %v3558 = vunpack.c.l.b16 %v3414
    %v3559 = vunpack.c.h.b16 %v3414
    %v3560 = vunpack.c.l.b16 %v3415
    %v3561 = vunpack.c.h.b16 %v3415
    %v3562 = vunpack.c.l.b16 %v3416
    %v3563 = vunpack.c.h.b16 %v3416
    %v3564 = vunpack.c.l.b16 %v3417
    %v3565 = vunpack.c.h.b16 %v3417
    %v3566 = vunpack.c.l.b16 %v3418
    %v3567 = vunpack.c.h.b16 %v3418
    %v3568 = vunpack.c.l.b16 %v3419
    %v3569 = vunpack.c.h.b16 %v3419
    %v3570 = vunpack.c.l.b16 %v3420
    %v3571 = vunpack.c.h.b16 %v3420
    %v3572 = vunpack.c.l.b16 %v3421
    %v3573 = vunpack.c.h.b16 %v3421
    %v3574 = vunpack.c.l.b16 %v3422
    %v3575 = vunpack.c.h.b16 %v3422
    %v3576 = vunpack.c.l.b16 %v3423
    %v3577 = vunpack.c.h.b16 %v3423
    %v3578 = vunpack.c.l.b16 %v3424
    %v3579 = vunpack.c.h.b16 %v3424
    %v3580 = vunpack.c.l.b16 %v3425
    %v3581 = vunpack.c.h.b16 %v3425
    %v3582 = vunpack.c.l.b16 %v3426
    %v3583 = vunpack.c.h.b16 %v3426
    %v3584 = vunpack.c.l.b16 %v3427
    %v3585 = vunpack.c.h.b16 %v3427
    %v3586 = vunpack.c.l.b16 %v3428
    %v3587 = vunpack.c.h.b16 %v3428
    %v3588 = vunpack.c.l.b16 %v3429
    %v3589 = vunpack.c.h.b16 %v3429
    %v3590 = vunpack.c.l.b16 %v3430
    %v3591 = vunpack.c.h.b16 %v3430
    %v3592 = vunpack.c.l.b16 %v3431
    %v3593 = vunpack.c.h.b16 %v3431
    %v3594 = vunpack.c.l.b16 %v3432
    %v3595 = vunpack.c.h.b16 %v3432
    %v3596 = vunpack.c.l.b16 %v3433
    %v3597 = vunpack.c.h.b16 %v3433
    %v3598 = vunpack.c.l.b16 %v3434
    %v3599 = vunpack.c.h.b16 %v3434
    %v3600 = vunpack.c.l.b16 %v3435
    %v3601 = vunpack.c.h.b16 %v3435
    %v3602 = vunpack.c.l.b16 %v3436
    %v3603 = vunpack.c.h.b16 %v3436
    %v3604 = vunpack.c.l.b16 %v3437
    %v3605 = vunpack.c.h.b16 %v3437
    %v3606 = vunpack.c.l.b16 %v3438
    %v3607 = vunpack.c.h.b16 %v3438
    %v3608 = vunpack.c.l.b16 %v3439
    %v3609 = vunpack.c.h.b16 %v3439
    %v3610 = vunpack.c.l.b16 %v3440
    %v3611 = vunpack.c.h.b16 %v3440
    %v3612 = vunpack.c.l.b16 %v3441
    %v3613 = vunpack.c.h.b16 %v3441
    %v3614 = vunpack.c.l.b16 %v3442
    %v3615 = vunpack.c.h.b16 %v3442
    %v3616 = vunpack.c.l.b16 %v3443
    %v3617 = vunpack.c.h.b16 %v3443
    %v3618 = vunpack.c.l.b16 %v3444
    %v3619 = vunpack.c.h.b16 %v3444
    %v3620 = vunpack.c.l.b16 %v3445
    %v3621 = vunpack.c.h.b16 %v3445
    %v3622 = vunpack.c.l.b16 %v3446
    %v3623 = vunpack.c.h.b16 %v3446
    %v3624 = vunpack.c.l.b16 %v3447
    %v3625 = vunpack.c.h.b16 %v3447
    %v3626 = vunpack.c.l.b16 %v3448
    %v3627 = vunpack.c.h.b16 %v3448
    %v3628 = vunpack.c.l.b16 %v3449
    %v3629 = vunpack.c.h.b16 %v3449
    %v3630 = vunpack.c.l.b16 %v3450
    %v3631 = vunpack.c.h.b16 %v3450
    %v3632 = vunpack.c.l.b16 %v3451
    %v3633 = vunpack.c.h.b16 %v3451
    %v3634 = vunpack.c.l.b16 %v3452
    %v3635 = vunpack.c.h.b16 %v3452
    %v3636 = vunpack.c.l.b16 %v3453
    %v3637 = vunpack.c.h.b16 %v3453
    %v3638 = vunpack.c.l.b16 %v3454
    %v3639 = vunpack.c.h.b16 %v3454
    %v3640 = vunpack.c.l.b16 %v3455
    %v3641 = vunpack.c.h.b16 %v3455
    %v3642 = vunpack.c.l.b16 %v3456
    %v3643 = vunpack.c.h.b16 %v3456
    %v3644 = vunpack.c.l.b16 %v3457
    %v3645 = vunpack.c.h.b16 %v3457
    %v3646 = vunpack.c.l.b16 %v3458
    %v3647 = vunpack.c.h.b16 %v3458
    %v3648 = vunpack.c.l.b16 %v3459
    %v3649 = vunpack.c.h.b16 %v3459
    %v3650 = vunpack.c.l.b16 %v3460
    %v3651 = vunpack.c.h.b16 %v3460
    %v3652 = vunpack.c.l.b16 %v3461
    %v3653 = vunpack.c.h.b16 %v3461
    %v3654 = vunpack.c.l.b16 %v3462
    %v3655 = vunpack.c.h.b16 %v3462
    %v3656 = vunpack.c.l.b16 %v3463
    %v3657 = vunpack.c.h.b16 %v3463
    %v3658 = vunpack.c.l.b16 %v3464
    %v3659 = vunpack.c.h.b16 %v3464
    %v3660 = vunpack.c.l.b16 %v3465
    %v3661 = vunpack.c.h.b16 %v3465
    %v3662 = vunpack.c.l.b16 %v3466
    %v3663 = vunpack.c.h.b16 %v3466
    %v3664 = vunpack.c.l.b16 %v3467
    %v3665 = vunpack.c.h.b16 %v3467
    %v3666 = vunpack.c.l.b16 %v3468
    %v3667 = vunpack.c.h.b16 %v3468
    %v3668 = vunpack.c.l.b16 %v3469
    %v3669 = vunpack.c.h.b16 %v3469
    %v3670 = vunpack.c.l.b16 %v3470
    %v3671 = vunpack.c.h.b16 %v3470
    %v3672 = vunpack.c.l.b16 %v3471
    %v3673 = vunpack.c.h.b16 %v3471
    %v3674 = vunpack.c.l.b16 %v3472
    %v3675 = vunpack.c.h.b16 %v3472
    %v3676 = vunpack.c.l.b16 %v3473
    %v3677 = vunpack.c.h.b16 %v3473
    %v3678 = vpack.c.b16 %v3552, %v3550
    %v3679 = vpack.c.b16 %v3553, %v3551
    %v3680 = vpack.c.b16 %v3556, %v3554
    %v3681 = vpack.c.b16 %v3557, %v3555
    %v3682 = vpack.c.b16 %v3560, %v3558
    %v3683 = vpack.c.b16 %v3561, %v3559
    %v3684 = vpack.c.b16 %v3564, %v3562
    %v3685 = vpack.c.b16 %v3565, %v3563
    %v3686 = vpack.c.b16 %v3568, %v3566
    %v3687 = vpack.c.b16 %v3569, %v3567
    %v3688 = vpack.c.b16 %v3572, %v3570
    %v3689 = vpack.c.b16 %v3573, %v3571
    %v3690 = vpack.c.b16 %v3576, %v3574
    %v3691 = vpack.c.b16 %v3577, %v3575
    %v3692 = vpack.c.b16 %v3580, %v3578
    %v3693 = vpack.c.b16 %v3581, %v3579
    %v3694 = vpack.c.b16 %v3584, %v3582
    %v3695 = vpack.c.b16 %v3585, %v3583
    %v3696 = vpack.c.b16 %v3588, %v3586
    %v3697 = vpack.c.b16 %v3589, %v3587
    %v3698 = vpack.c.b16 %v3592, %v3590
    %v3699 = vpack.c.b16 %v3593, %v3591
    %v3700 = vpack.c.b16 %v3596, %v3594
    %v3701 = vpack.c.b16 %v3597, %v3595
    %v3702 = vpack.c.b16 %v3600, %v3598
    %v3703 = vpack.c.b16 %v3601, %v3599
    %v3704 = vpack.c.b16 %v3604, %v3602
    %v3705 = vpack.c.b16 %v3605, %v3603
    %v3706 = vpack.c.b16 %v3608, %v3606
    %v3707 = vpack.c.b16 %v3609, %v3607
    %v3708 = vpack.c.b16 %v3612, %v3610
    %v3709 = vpack.c.b16 %v3613, %v3611
    %v3710 = vpack.c.b16 %v3616, %v3614
    %v3711 = vpack.c.b16 %v3617, %v3615
    %v3712 = vpack.c.b16 %v3620, %v3618
    %v3713 = vpack.c.b16 %v3621, %v3619
    %v3714 = vpack.c.b16 %v3624, %v3622
    %v3715 = vpack.c.b16 %v3625, %v3623
    %v3716 = vpack.c.b16 %v3628, %v3626
    %v3717 = vpack.c.b16 %v3629, %v3627
    %v3718 = vpack.c.b16 %v3632, %v3630
    %v3719 = vpack.c.b16 %v3633, %v3631
    %v3720 = vpack.c.b16 %v3636, %v3634
    %v3721 = vpack.c.b16 %v3637, %v3635
    %v3722 = vpack.c.b16 %v3640, %v3638
    %v3723 = vpack.c.b16 %v3641, %v3639
    %v3724 = vpack.c.b16 %v3644, %v3642
    %v3725 = vpack.c.b16 %v3645, %v3643
    %v3726 = vpack.c.b16 %v3648, %v3646
    %v3727 = vpack.c.b16 %v3649, %v3647
    %v3728 = vpack.c.b16 %v3652, %v3650
    %v3729 = vpack.c.b16 %v3653, %v3651
    %v3730 = vpack.c.b16 %v3656, %v3654
    %v3731 = vpack.c.b16 %v3657, %v3655
    %v3732 = vpack.c.b16 %v3660, %v3658
    %v3733 = vpack.c.b16 %v3661, %v3659
    %v3734 = vpack.c.b16 %v3664, %v3662
    %v3735 = vpack.c.b16 %v3665, %v3663
    %v3736 = vpack.c.b16 %v3668, %v3666
    %v3737 = vpack.c.b16 %v3669, %v3667
    %v3738 = vpack.c.b16 %v3672, %v3670
    %v3739 = vpack.c.b16 %v3673, %v3671
    %v3740 = vpack.c.b16 %v3676, %v3674
    %v3741 = vpack.c.b16 %v3677, %v3675
    %3806 = vmatprep.subr.bf16.mxu0 %v3679
    %3807 = vmatpush1.bf16.msra.mxu0 %v3678
    %3808 = vmatprep.subr.bf16.mxu0 %v3681
    %3809 = vmatpush1.bf16.msra.mxu0 %v3680
    %3810 = vmatprep.subr.bf16.mxu0 %v3683
    %3811 = vmatpush1.bf16.msra.mxu0 %v3682
    %3812 = vmatprep.subr.bf16.mxu0 %v3685
    %3813 = vmatpush1.bf16.msra.mxu0 %v3684
    %3814 = vmatprep.subr.bf16.mxu0 %v3687
    %3815 = vmatpush1.bf16.msra.mxu0 %v3686
    %3816 = vmatprep.subr.bf16.mxu0 %v3689
    %3817 = vmatpush1.bf16.msra.mxu0 %v3688
    %3818 = vmatprep.subr.bf16.mxu0 %v3691
    %3819 = vmatpush1.bf16.msra.mxu0 %v3690
    %3820 = vmatprep.subr.bf16.mxu0 %v3693
    %3821 = vmatpush1.bf16.msra.mxu0 %v3692
    %3822 = vmatprep.subr.bf16.mxu0 %v3695
    %3823 = vmatpush1.bf16.msra.mxu0 %v3694
    %3824 = vmatprep.subr.bf16.mxu0 %v3697
    %3825 = vmatpush1.bf16.msra.mxu0 %v3696
    %3826 = vmatprep.subr.bf16.mxu0 %v3699
    %3827 = vmatpush1.bf16.msra.mxu0 %v3698
    %3828 = vmatprep.subr.bf16.mxu0 %v3701
    %3829 = vmatpush1.bf16.msra.mxu0 %v3700
    %3830 = vmatprep.subr.bf16.mxu0 %v3703
    %3831 = vmatpush1.bf16.msra.mxu0 %v3702
    %3832 = vmatprep.subr.bf16.mxu0 %v3705
    %3833 = vmatpush1.bf16.msra.mxu0 %v3704
    %3834 = vmatprep.subr.bf16.mxu0 %v3707
    %3835 = vmatpush1.bf16.msra.mxu0 %v3706
    %3836 = vmatprep.subr.bf16.mxu0 %v3709
    %3837 = vmatpush1.bf16.msra.mxu0 %v3708
    %3838 = vmatprep.mubr.bf16.mxu0 %v3155
    %3839 = vmatmul.mubr.bf16.gmra.mrb[0].mxu0 %v3154
    %v3840 = vpop.f32.mrb[0].mxu0
    %v3841 = vadd.f32 %v3479, %v3840
    %v3842 = vpop.f32.mrb[0].mxu0
    %v3843 = vadd.f32 %v3483, %v3842
    %v3844 = vpop.f32.mrb[0].mxu0
    %v3845 = vadd.f32 %v3479, %v3844
    %v3846 = vpop.f32.mrb[0].mxu0
    %v3847 = vadd.f32 %v3483, %v3846
    %3848 = vmatprep.mubr.bf16.mxu0 %v3159
    %3849 = vmatmul.mubr.bf16.gmra.mrb[0].mxu0 %v3158
    %v3850 = vpop.f32.mrb[0].mxu0
    %v3851 = vadd.f32 %v3479, %v3850
    %v3852 = vpop.f32.mrb[0].mxu0
    %v3853 = vadd.f32 %v3483, %v3852
    %v3854 = vpop.f32.mrb[0].mxu0
    %v3855 = vadd.f32 %v3479, %v3854
    %v3856 = vpop.f32.mrb[0].mxu0
    %v3857 = vadd.f32 %v3483, %v3856
    %3858 = vmatprep.mubr.bf16.mxu0 %v3163
    %3859 = vmatmul.mubr.bf16.gmra.mrb[0].mxu0 %v3162
    %v3860 = vpop.f32.mrb[0].mxu0
    %v3861 = vadd.f32 %v3479, %v3860
    %v3862 = vpop.f32.mrb[0].mxu0
    %v3863 = vadd.f32 %v3483, %v3862
    %v3864 = vpop.f32.mrb[0].mxu0
    %v3865 = vadd.f32 %v3479, %v3864
    %v3866 = vpop.f32.mrb[0].mxu0
    %v3867 = vadd.f32 %v3483, %v3866
    %3868 = vmatprep.mubr.bf16.mxu0 %v3167
    %3869 = vmatmul.mubr.bf16.gmra.mrb[0].mxu0 %v3166
    %v3870 = vpop.f32.mrb[0].mxu0
    %v3871 = vadd.f32 %v3479, %v3870
    %v3872 = vpop.f32.mrb[0].mxu0
    %v3873 = vadd.f32 %v3483, %v3872
    %v3874 = vpop.f32.mrb[0].mxu0
    %v3875 = vadd.f32 %v3479, %v3874
    %v3876 = vpop.f32.mrb[0].mxu0
    %v3877 = vadd.f32 %v3483, %v3876
    %3878 = vmatprep.mubr.bf16.mxu0 %v3171
    %3879 = vmatmul.mubr.bf16.gmra.mrb[0].mxu0 %v3170
    %v3880 = vpop.f32.mrb[0].mxu0
    %v3881 = vadd.f32 %v3479, %v3880
    %v3882 = vpop.f32.mrb[0].mxu0
    %v3883 = vadd.f32 %v3483, %v3882
    %v3884 = vpop.f32.mrb[0].mxu0
    %v3885 = vadd.f32 %v3479, %v3884
    %v3886 = vpop.f32.mrb[0].mxu0
    %v3887 = vadd.f32 %v3483, %v3886
    %3888 = vmatprep.mubr.bf16.mxu0 %v3175
    %3889 = vmatmul.mubr.bf16.gmra.mrb[0].mxu0 %v3174
    %v3890 = vpop.f32.mrb[0].mxu0
    %v3891 = vadd.f32 %v3479, %v3890
    %v3892 = vpop.f32.mrb[0].mxu0
    %v3893 = vadd.f32 %v3483, %v3892
    %v3894 = vpop.f32.mrb[0].mxu0
    %v3895 = vadd.f32 %v3479, %v3894
    %v3896 = vpop.f32.mrb[0].mxu0
    %v3897 = vadd.f32 %v3483, %v3896
    %3898 = vmatprep.mubr.bf16.mxu0 %v3179
    %3899 = vmatmul.mubr.bf16.gmra.mrb[0].mxu0 %v3178
    %v3900 = vpop.f32.mrb[0].mxu0
    %v3901 = vadd.f32 %v3479, %v3900
    %v3902 = vpop.f32.mrb[0].mxu0
    %v3903 = vadd.f32 %v3483, %v3902
    %v3904 = vpop.f32.mrb[0].mxu0
    %v3905 = vadd.f32 %v3479, %v3904
    %v3906 = vpop.f32.mrb[0].mxu0
    %v3907 = vadd.f32 %v3483, %v3906
    %3908 = vmatprep.mubr.bf16.mxu0 %v3183
    %3909 = vmatmul.mubr.bf16.gmra.mrb[0].mxu0 %v3182
    %v3910 = vpop.f32.mrb[0].mxu0
    %v3911 = vadd.f32 %v3479, %v3910
    %v3912 = vpop.f32.mrb[0].mxu0
    %v3913 = vadd.f32 %v3483, %v3912
    %v3914 = vpop.f32.mrb[0].mxu0
    %v3915 = vadd.f32 %v3479, %v3914
    %v3916 = vpop.f32.mrb[0].mxu0
    %v3917 = vadd.f32 %v3483, %v3916
    %3918 = vmatprep.mubr.bf16.mxu0 %v3187
    %3919 = vmatmul.mubr.bf16.gmra.mrb[0].mxu0 %v3186
    %v3920 = vpop.f32.mrb[0].mxu0
    %v3921 = vadd.f32 %v3479, %v3920
    %v3922 = vpop.f32.mrb[0].mxu0
    %v3923 = vadd.f32 %v3483, %v3922
    %v3924 = vpop.f32.mrb[0].mxu0
    %v3925 = vadd.f32 %v3479, %v3924
    %v3926 = vpop.f32.mrb[0].mxu0
    %v3927 = vadd.f32 %v3483, %v3926
    %3928 = vmatprep.mubr.bf16.mxu0 %v3191
    %3929 = vmatmul.mubr.bf16.gmra.mrb[0].mxu0 %v3190
    %v3930 = vpop.f32.mrb[0].mxu0
    %v3931 = vadd.f32 %v3479, %v3930
    %v3932 = vpop.f32.mrb[0].mxu0
    %v3933 = vadd.f32 %v3483, %v3932
    %v3934 = vpop.f32.mrb[0].mxu0
    %v3935 = vadd.f32 %v3479, %v3934
    %v3936 = vpop.f32.mrb[0].mxu0
    %v3937 = vadd.f32 %v3483, %v3936
    %3938 = vmatprep.mubr.bf16.mxu0 %v3195
    %3939 = vmatmul.mubr.bf16.gmra.mrb[0].mxu0 %v3194
    %v3940 = vpop.f32.mrb[0].mxu0
    %v3941 = vadd.f32 %v3479, %v3940
    %v3942 = vpop.f32.mrb[0].mxu0
    %v3943 = vadd.f32 %v3483, %v3942
    %v3944 = vpop.f32.mrb[0].mxu0
    %v3945 = vadd.f32 %v3479, %v3944
    %v3946 = vpop.f32.mrb[0].mxu0
    %v3947 = vadd.f32 %v3483, %v3946
    %3948 = vmatprep.mubr.bf16.mxu0 %v3199
    %3949 = vmatmul.mubr.bf16.gmra.mrb[0].mxu0 %v3198
    %v3950 = vpop.f32.mrb[0].mxu0
    %v3951 = vadd.f32 %v3479, %v3950
    %v3952 = vpop.f32.mrb[0].mxu0
    %v3953 = vadd.f32 %v3483, %v3952
    %v3954 = vpop.f32.mrb[0].mxu0
    %v3955 = vadd.f32 %v3479, %v3954
    %v3956 = vpop.f32.mrb[0].mxu0
    %v3957 = vadd.f32 %v3483, %v3956
    %3958 = vmatprep.mubr.bf16.mxu0 %v3203
    %3959 = vmatmul.mubr.bf16.gmra.mrb[0].mxu0 %v3202
    %v3960 = vpop.f32.mrb[0].mxu0
    %v3961 = vadd.f32 %v3479, %v3960
    %v3962 = vpop.f32.mrb[0].mxu0
    %v3963 = vadd.f32 %v3483, %v3962
    %v3964 = vpop.f32.mrb[0].mxu0
    %v3965 = vadd.f32 %v3479, %v3964
    %v3966 = vpop.f32.mrb[0].mxu0
    %v3967 = vadd.f32 %v3483, %v3966
    %3968 = vmatprep.mubr.bf16.mxu0 %v3207
    %3969 = vmatmul.mubr.bf16.gmra.mrb[0].mxu0 %v3206
    %v3970 = vpop.f32.mrb[0].mxu0
    %v3971 = vadd.f32 %v3479, %v3970
    %v3972 = vpop.f32.mrb[0].mxu0
    %v3973 = vadd.f32 %v3483, %v3972
    %v3974 = vpop.f32.mrb[0].mxu0
    %v3975 = vadd.f32 %v3479, %v3974
    %v3976 = vpop.f32.mrb[0].mxu0
    %v3977 = vadd.f32 %v3483, %v3976
    %3978 = vmatprep.mubr.bf16.mxu0 %v3211
    %3979 = vmatmul.mubr.bf16.gmra.mrb[0].mxu0 %v3210
    %v3980 = vpop.f32.mrb[0].mxu0
    %v3981 = vadd.f32 %v3479, %v3980
    %v3982 = vpop.f32.mrb[0].mxu0
    %v3983 = vadd.f32 %v3483, %v3982
    %v3984 = vpop.f32.mrb[0].mxu0
    %v3985 = vadd.f32 %v3479, %v3984
    %v3986 = vpop.f32.mrb[0].mxu0
    %v3987 = vadd.f32 %v3483, %v3986
    %3988 = vmatprep.mubr.bf16.mxu0 %v3215
    %3989 = vmatmul.mubr.bf16.gmra.mrb[0].mxu0 %v3214
    %v3990 = vpop.f32.mrb[0].mxu0
    %v3991 = vadd.f32 %v3479, %v3990
    %v3992 = vpop.f32.mrb[0].mxu0
    %v3993 = vadd.f32 %v3483, %v3992
    %v3994 = vpop.f32.mrb[0].mxu0
    %v3995 = vadd.f32 %v3479, %v3994
    %v3996 = vpop.f32.mrb[0].mxu0
    %v3997 = vadd.f32 %v3483, %v3996
    %3998 = vmatprep.mubr.bf16.mxu0 %v3219
    %3999 = vmatmul.mubr.bf16.gmra.mrb[0].mxu0 %v3218
    %v4000 = vpop.f32.mrb[0].mxu0
    %v4001 = vadd.f32 %v3479, %v4000
    %v4002 = vpop.f32.mrb[0].mxu0
    %v4003 = vadd.f32 %v3483, %v4002
    %v4004 = vpop.f32.mrb[0].mxu0
    %v4005 = vadd.f32 %v3479, %v4004
    %v4006 = vpop.f32.mrb[0].mxu0
    %v4007 = vadd.f32 %v3483, %v4006
    %4008 = vmatprep.mubr.bf16.mxu0 %v3223
    %4009 = vmatmul.mubr.bf16.gmra.mrb[0].mxu0 %v3222
    %v4010 = vpop.f32.mrb[0].mxu0
    %v4011 = vadd.f32 %v3479, %v4010
    %v4012 = vpop.f32.mrb[0].mxu0
    %v4013 = vadd.f32 %v3483, %v4012
    %v4014 = vpop.f32.mrb[0].mxu0
    %v4015 = vadd.f32 %v3479, %v4014
    %v4016 = vpop.f32.mrb[0].mxu0
    %v4017 = vadd.f32 %v3483, %v4016
    %4018 = vmatprep.mubr.bf16.mxu0 %v3227
    %4019 = vmatmul.mubr.bf16.gmra.mrb[0].mxu0 %v3226
    %v4020 = vpop.f32.mrb[0].mxu0
    %v4021 = vadd.f32 %v3479, %v4020
    %v4022 = vpop.f32.mrb[0].mxu0
    %v4023 = vadd.f32 %v3483, %v4022
    %v4024 = vpop.f32.mrb[0].mxu0
    %v4025 = vadd.f32 %v3479, %v4024
    %v4026 = vpop.f32.mrb[0].mxu0
    %v4027 = vadd.f32 %v3483, %v4026
    %4028 = vmatprep.mubr.bf16.mxu0 %v3231
    %4029 = vmatmul.mubr.bf16.gmra.mrb[0].mxu0 %v3230
    %v4030 = vpop.f32.mrb[0].mxu0
    %v4031 = vadd.f32 %v3479, %v4030
    %v4032 = vpop.f32.mrb[0].mxu0
    %v4033 = vadd.f32 %v3483, %v4032
    %v4034 = vpop.f32.mrb[0].mxu0
    %v4035 = vadd.f32 %v3479, %v4034
    %v4036 = vpop.f32.mrb[0].mxu0
    %v4037 = vadd.f32 %v3483, %v4036
    %4038 = vmatprep.mubr.bf16.mxu0 %v3235
    %4039 = vmatmul.mubr.bf16.gmra.mrb[0].mxu0 %v3234
    %v4040 = vpop.f32.mrb[0].mxu0
    %v4041 = vadd.f32 %v3479, %v4040
    %v4042 = vpop.f32.mrb[0].mxu0
    %v4043 = vadd.f32 %v3483, %v4042
    %v4044 = vpop.f32.mrb[0].mxu0
    %v4045 = vadd.f32 %v3479, %v4044
    %v4046 = vpop.f32.mrb[0].mxu0
    %v4047 = vadd.f32 %v3483, %v4046
    %4048 = vmatprep.mubr.bf16.mxu0 %v3239
    %4049 = vmatmul.mubr.bf16.gmra.mrb[0].mxu0 %v3238
    %v4050 = vpop.f32.mrb[0].mxu0
    %v4051 = vadd.f32 %v3479, %v4050
    %v4052 = vpop.f32.mrb[0].mxu0
    %v4053 = vadd.f32 %v3483, %v4052
    %v4054 = vpop.f32.mrb[0].mxu0
    %v4055 = vadd.f32 %v3479, %v4054
    %v4056 = vpop.f32.mrb[0].mxu0
    %v4057 = vadd.f32 %v3483, %v4056
    %4058 = vmatprep.mubr.bf16.mxu0 %v3243
    %4059 = vmatmul.mubr.bf16.gmra.mrb[0].mxu0 %v3242
    %v4060 = vpop.f32.mrb[0].mxu0
    %v4061 = vadd.f32 %v3479, %v4060
    %v4062 = vpop.f32.mrb[0].mxu0
    %v4063 = vadd.f32 %v3483, %v4062
    %v4064 = vpop.f32.mrb[0].mxu0
    %v4065 = vadd.f32 %v3479, %v4064
    %v4066 = vpop.f32.mrb[0].mxu0
    %v4067 = vadd.f32 %v3483, %v4066
    %4068 = vmatprep.mubr.bf16.mxu0 %v3247
    %4069 = vmatmul.mubr.bf16.gmra.mrb[0].mxu0 %v3246
    %v4070 = vpop.f32.mrb[0].mxu0
    %v4071 = vadd.f32 %v3479, %v4070
    %v4072 = vpop.f32.mrb[0].mxu0
    %v4073 = vadd.f32 %v3483, %v4072
    %v4074 = vpop.f32.mrb[0].mxu0
    %v4075 = vadd.f32 %v3479, %v4074
    %v4076 = vpop.f32.mrb[0].mxu0
    %v4077 = vadd.f32 %v3483, %v4076
    %4078 = vmatprep.mubr.bf16.mxu0 %v3251
    %4079 = vmatmul.mubr.bf16.gmra.mrb[0].mxu0 %v3250
    %v4080 = vpop.f32.mrb[0].mxu0
    %v4081 = vadd.f32 %v3479, %v4080
    %v4082 = vpop.f32.mrb[0].mxu0
    %v4083 = vadd.f32 %v3483, %v4082
    %v4084 = vpop.f32.mrb[0].mxu0
    %v4085 = vadd.f32 %v3479, %v4084
    %v4086 = vpop.f32.mrb[0].mxu0
    %v4087 = vadd.f32 %v3483, %v4086
    %4088 = vmatprep.mubr.bf16.mxu0 %v3255
    %4089 = vmatmul.mubr.bf16.gmra.mrb[0].mxu0 %v3254
    %v4090 = vpop.f32.mrb[0].mxu0
    %v4091 = vadd.f32 %v3479, %v4090
    %v4092 = vpop.f32.mrb[0].mxu0
    %v4093 = vadd.f32 %v3483, %v4092
    %v4094 = vpop.f32.mrb[0].mxu0
    %v4095 = vadd.f32 %v3479, %v4094
    %v4096 = vpop.f32.mrb[0].mxu0
    %v4097 = vadd.f32 %v3483, %v4096
    %4098 = vmatprep.mubr.bf16.mxu0 %v3259
    %4099 = vmatmul.mubr.bf16.gmra.mrb[0].mxu0 %v3258
    %v4100 = vpop.f32.mrb[0].mxu0
    %v4101 = vadd.f32 %v3479, %v4100
    %v4102 = vpop.f32.mrb[0].mxu0
    %v4103 = vadd.f32 %v3483, %v4102
    %v4104 = vpop.f32.mrb[0].mxu0
    %v4105 = vadd.f32 %v3479, %v4104
    %v4106 = vpop.f32.mrb[0].mxu0
    %v4107 = vadd.f32 %v3483, %v4106
    %4108 = vmatprep.mubr.bf16.mxu0 %v3263
    %4109 = vmatmul.mubr.bf16.gmra.mrb[0].mxu0 %v3262
    %v4110 = vpop.f32.mrb[0].mxu0
    %v4111 = vadd.f32 %v3479, %v4110
    %v4112 = vpop.f32.mrb[0].mxu0
    %v4113 = vadd.f32 %v3483, %v4112
    %v4114 = vpop.f32.mrb[0].mxu0
    %v4115 = vadd.f32 %v3479, %v4114
    %v4116 = vpop.f32.mrb[0].mxu0
    %v4117 = vadd.f32 %v3483, %v4116
    %4118 = vmatprep.mubr.bf16.mxu0 %v3267
    %4119 = vmatmul.mubr.bf16.gmra.mrb[0].mxu0 %v3266
    %v4120 = vpop.f32.mrb[0].mxu0
    %v4121 = vadd.f32 %v3479, %v4120
    %v4122 = vpop.f32.mrb[0].mxu0
    %v4123 = vadd.f32 %v3483, %v4122
    %v4124 = vpop.f32.mrb[0].mxu0
    %v4125 = vadd.f32 %v3479, %v4124
    %v4126 = vpop.f32.mrb[0].mxu0
    %v4127 = vadd.f32 %v3483, %v4126
    %4128 = vmatprep.mubr.bf16.mxu0 %v3271
    %4129 = vmatmul.mubr.bf16.gmra.mrb[0].mxu0 %v3270
    %v4130 = vpop.f32.mrb[0].mxu0
    %v4131 = vadd.f32 %v3479, %v4130
    %v4132 = vpop.f32.mrb[0].mxu0
    %v4133 = vadd.f32 %v3483, %v4132
    %v4134 = vpop.f32.mrb[0].mxu0
    %v4135 = vadd.f32 %v3479, %v4134
    %v4136 = vpop.f32.mrb[0].mxu0
    %v4137 = vadd.f32 %v3483, %v4136
    %4138 = vmatprep.mubr.bf16.mxu0 %v3275
    %4139 = vmatmul.mubr.bf16.gmra.mrb[0].mxu0 %v3274
    %v4140 = vpop.f32.mrb[0].mxu0
    %v4141 = vadd.f32 %v3479, %v4140
    %v4142 = vpop.f32.mrb[0].mxu0
    %v4143 = vadd.f32 %v3483, %v4142
    %v4144 = vpop.f32.mrb[0].mxu0
    %v4145 = vadd.f32 %v3479, %v4144
    %v4146 = vpop.f32.mrb[0].mxu0
    %v4147 = vadd.f32 %v3483, %v4146
    %4148 = vmatprep.mubr.bf16.mxu0 %v3279
    %4149 = vmatmul.mubr.bf16.gmra.mrb[0].mxu0 %v3278
    %v4150 = vpop.f32.mrb[0].mxu0
    %v4151 = vadd.f32 %v3479, %v4150
    %v4152 = vpop.f32.mrb[0].mxu0
    %v4153 = vadd.f32 %v3483, %v4152
    %v4154 = vpop.f32.mrb[0].mxu0
    %v4155 = vadd.f32 %v3479, %v4154
    %v4156 = vpop.f32.mrb[0].mxu0
    %v4157 = vadd.f32 %v3483, %v4156
    %4158 = vmatprep.mubr.bf16.mxu0 %v3283
    %4159 = vmatmul.mubr.bf16.gmra.mrb[0].mxu0 %v3282
    %v4160 = vpop.f32.mrb[0].mxu0
    %v4161 = vadd.f32 %v3479, %v4160
    %v4162 = vpop.f32.mrb[0].mxu0
    %v4163 = vadd.f32 %v3483, %v4162
    %v4164 = vpop.f32.mrb[0].mxu0
    %v4165 = vadd.f32 %v3479, %v4164
    %v4166 = vpop.f32.mrb[0].mxu0
    %v4167 = vadd.f32 %v3483, %v4166
    %4168 = vmatprep.mubr.bf16.mxu0 %v3287
    %4169 = vmatmul.mubr.bf16.gmra.mrb[0].mxu0 %v3286
    %v4170 = vpop.f32.mrb[0].mxu0
    %v4171 = vadd.f32 %v3479, %v4170
    %v4172 = vpop.f32.mrb[0].mxu0
    %v4173 = vadd.f32 %v3483, %v4172
    %v4174 = vpop.f32.mrb[0].mxu0
    %v4175 = vadd.f32 %v3479, %v4174
    %v4176 = vpop.f32.mrb[0].mxu0
    %v4177 = vadd.f32 %v3483, %v4176
    %4178 = vmatprep.mubr.bf16.mxu0 %v3291
    %4179 = vmatmul.mubr.bf16.gmra.mrb[0].mxu0 %v3290
    %v4180 = vpop.f32.mrb[0].mxu0
    %v4181 = vadd.f32 %v3479, %v4180
    %v4182 = vpop.f32.mrb[0].mxu0
    %v4183 = vadd.f32 %v3483, %v4182
    %v4184 = vpop.f32.mrb[0].mxu0
    %v4185 = vadd.f32 %v3479, %v4184
    %v4186 = vpop.f32.mrb[0].mxu0
    %v4187 = vadd.f32 %v3483, %v4186
    %4188 = vmatprep.mubr.bf16.mxu0 %v3295
    %4189 = vmatmul.mubr.bf16.gmra.mrb[0].mxu0 %v3294
    %v4190 = vpop.f32.mrb[0].mxu0
    %v4191 = vadd.f32 %v3479, %v4190
    %v4192 = vpop.f32.mrb[0].mxu0
    %v4193 = vadd.f32 %v3483, %v4192
    %v4194 = vpop.f32.mrb[0].mxu0
    %v4195 = vadd.f32 %v3479, %v4194
    %v4196 = vpop.f32.mrb[0].mxu0
    %v4197 = vadd.f32 %v3483, %v4196
    %4198 = vmatprep.mubr.bf16.mxu0 %v3299
    %4199 = vmatmul.mubr.bf16.gmra.mrb[0].mxu0 %v3298
    %v4200 = vpop.f32.mrb[0].mxu0
    %v4201 = vadd.f32 %v3479, %v4200
    %v4202 = vpop.f32.mrb[0].mxu0
    %v4203 = vadd.f32 %v3483, %v4202
    %v4204 = vpop.f32.mrb[0].mxu0
    %v4205 = vadd.f32 %v3479, %v4204
    %v4206 = vpop.f32.mrb[0].mxu0
    %v4207 = vadd.f32 %v3483, %v4206
    %4208 = vmatprep.mubr.bf16.mxu0 %v3303
    %4209 = vmatmul.mubr.bf16.gmra.mrb[0].mxu0 %v3302
    %v4210 = vpop.f32.mrb[0].mxu0
    %v4211 = vadd.f32 %v3479, %v4210
    %v4212 = vpop.f32.mrb[0].mxu0
    %v4213 = vadd.f32 %v3483, %v4212
    %v4214 = vpop.f32.mrb[0].mxu0
    %v4215 = vadd.f32 %v3479, %v4214
    %v4216 = vpop.f32.mrb[0].mxu0
    %v4217 = vadd.f32 %v3483, %v4216
    %4218 = vmatprep.mubr.bf16.mxu0 %v3307
    %4219 = vmatmul.mubr.bf16.gmra.mrb[0].mxu0 %v3306
    %v4220 = vpop.f32.mrb[0].mxu0
    %v4221 = vadd.f32 %v3479, %v4220
    %v4222 = vpop.f32.mrb[0].mxu0
    %v4223 = vadd.f32 %v3483, %v4222
    %v4224 = vpop.f32.mrb[0].mxu0
    %v4225 = vadd.f32 %v3479, %v4224
    %v4226 = vpop.f32.mrb[0].mxu0
    %v4227 = vadd.f32 %v3483, %v4226
    %4228 = vmatprep.mubr.bf16.mxu0 %v3311
    %4229 = vmatmul.mubr.bf16.gmra.mrb[0].mxu0 %v3310
    %v4230 = vpop.f32.mrb[0].mxu0
    %v4231 = vadd.f32 %v3479, %v4230
    %v4232 = vpop.f32.mrb[0].mxu0
    %v4233 = vadd.f32 %v3483, %v4232
    %v4234 = vpop.f32.mrb[0].mxu0
    %v4235 = vadd.f32 %v3479, %v4234
    %v4236 = vpop.f32.mrb[0].mxu0
    %v4237 = vadd.f32 %v3483, %v4236
    %4238 = vmatprep.mubr.bf16.mxu0 %v3315
    %4239 = vmatmul.mubr.bf16.gmra.mrb[0].mxu0 %v3314
    %v4240 = vpop.f32.mrb[0].mxu0
    %v4241 = vadd.f32 %v3479, %v4240
    %v4242 = vpop.f32.mrb[0].mxu0
    %v4243 = vadd.f32 %v3483, %v4242
    %v4244 = vpop.f32.mrb[0].mxu0
    %v4245 = vadd.f32 %v3479, %v4244
    %v4246 = vpop.f32.mrb[0].mxu0
    %v4247 = vadd.f32 %v3483, %v4246
    %4248 = vmatprep.mubr.bf16.mxu0 %v3319
    %4249 = vmatmul.mubr.bf16.gmra.mrb[0].mxu0 %v3318
    %v4250 = vpop.f32.mrb[0].mxu0
    %v4251 = vadd.f32 %v3479, %v4250
    %v4252 = vpop.f32.mrb[0].mxu0
    %v4253 = vadd.f32 %v3483, %v4252
    %v4254 = vpop.f32.mrb[0].mxu0
    %v4255 = vadd.f32 %v3479, %v4254
    %v4256 = vpop.f32.mrb[0].mxu0
    %v4257 = vadd.f32 %v3483, %v4256
    %4258 = vmatprep.mubr.bf16.mxu0 %v3323
    %4259 = vmatmul.mubr.bf16.gmra.mrb[0].mxu0 %v3322
    %v4260 = vpop.f32.mrb[0].mxu0
    %v4261 = vadd.f32 %v3479, %v4260
    %v4262 = vpop.f32.mrb[0].mxu0
    %v4263 = vadd.f32 %v3483, %v4262
    %v4264 = vpop.f32.mrb[0].mxu0
    %v4265 = vadd.f32 %v3479, %v4264
    %v4266 = vpop.f32.mrb[0].mxu0
    %v4267 = vadd.f32 %v3483, %v4266
    %4268 = vmatprep.mubr.bf16.mxu0 %v3327
    %4269 = vmatmul.mubr.bf16.gmra.mrb[0].mxu0 %v3326
    %v4270 = vpop.f32.mrb[0].mxu0
    %v4271 = vadd.f32 %v3479, %v4270
    %v4272 = vpop.f32.mrb[0].mxu0
    %v4273 = vadd.f32 %v3483, %v4272
    %v4274 = vpop.f32.mrb[0].mxu0
    %v4275 = vadd.f32 %v3479, %v4274
    %v4276 = vpop.f32.mrb[0].mxu0
    %v4277 = vadd.f32 %v3483, %v4276
    %4278 = vmatprep.mubr.bf16.mxu0 %v3331
    %4279 = vmatmul.mubr.bf16.gmra.mrb[0].mxu0 %v3330
    %v4280 = vpop.f32.mrb[0].mxu0
    %v4281 = vadd.f32 %v3479, %v4280
    %v4282 = vpop.f32.mrb[0].mxu0
    %v4283 = vadd.f32 %v3483, %v4282
    %v4284 = vpop.f32.mrb[0].mxu0
    %v4285 = vadd.f32 %v3479, %v4284
    %v4286 = vpop.f32.mrb[0].mxu0
    %v4287 = vadd.f32 %v3483, %v4286
    %4288 = vmatprep.mubr.bf16.mxu0 %v3335
    %4289 = vmatmul.mubr.bf16.gmra.mrb[0].mxu0 %v3334
    %v4290 = vpop.f32.mrb[0].mxu0
    %v4291 = vadd.f32 %v3479, %v4290
    %v4292 = vpop.f32.mrb[0].mxu0
    %v4293 = vadd.f32 %v3483, %v4292
    %v4294 = vpop.f32.mrb[0].mxu0
    %v4295 = vadd.f32 %v3479, %v4294
    %v4296 = vpop.f32.mrb[0].mxu0
    %v4297 = vadd.f32 %v3483, %v4296
    %4298 = vmatprep.mubr.bf16.mxu0 %v3339
    %4299 = vmatmul.mubr.bf16.gmra.mrb[0].mxu0 %v3338
    %v4300 = vpop.f32.mrb[0].mxu0
    %v4301 = vadd.f32 %v3479, %v4300
    %v4302 = vpop.f32.mrb[0].mxu0
    %v4303 = vadd.f32 %v3483, %v4302
    %v4304 = vpop.f32.mrb[0].mxu0
    %v4305 = vadd.f32 %v3479, %v4304
    %v4306 = vpop.f32.mrb[0].mxu0
    %v4307 = vadd.f32 %v3483, %v4306
    %4308 = vmatprep.mubr.bf16.mxu0 %v3343
    %4309 = vmatmul.mubr.bf16.gmra.mrb[0].mxu0 %v3342
    %v4310 = vpop.f32.mrb[0].mxu0
    %v4311 = vadd.f32 %v3479, %v4310
    %v4312 = vpop.f32.mrb[0].mxu0
    %v4313 = vadd.f32 %v3483, %v4312
    %v4314 = vpop.f32.mrb[0].mxu0
    %v4315 = vadd.f32 %v3479, %v4314
    %v4316 = vpop.f32.mrb[0].mxu0
    %v4317 = vadd.f32 %v3483, %v4316
    %4318 = vmatprep.mubr.bf16.mxu0 %v3347
    %4319 = vmatmul.mubr.bf16.gmra.mrb[0].mxu0 %v3346
    %v4320 = vpop.f32.mrb[0].mxu0
    %v4321 = vadd.f32 %v3479, %v4320
    %v4322 = vpop.f32.mrb[0].mxu0
    %v4323 = vadd.f32 %v3483, %v4322
    %v4324 = vpop.f32.mrb[0].mxu0
    %v4325 = vadd.f32 %v3479, %v4324
    %v4326 = vpop.f32.mrb[0].mxu0
    %v4327 = vadd.f32 %v3483, %v4326
    %4328 = vmatprep.mubr.bf16.mxu0 %v3351
    %4329 = vmatmul.mubr.bf16.gmra.mrb[0].mxu0 %v3350
    %v4330 = vpop.f32.mrb[0].mxu0
    %v4331 = vadd.f32 %v3479, %v4330
    %v4332 = vpop.f32.mrb[0].mxu0
    %v4333 = vadd.f32 %v3483, %v4332
    %v4334 = vpop.f32.mrb[0].mxu0
    %v4335 = vadd.f32 %v3479, %v4334
    %v4336 = vpop.f32.mrb[0].mxu0
    %v4337 = vadd.f32 %v3483, %v4336
    %4338 = vmatprep.mubr.bf16.mxu0 %v3355
    %4339 = vmatmul.mubr.bf16.gmra.mrb[0].mxu0 %v3354
    %v4340 = vpop.f32.mrb[0].mxu0
    %v4341 = vadd.f32 %v3479, %v4340
    %v4342 = vpop.f32.mrb[0].mxu0
    %v4343 = vadd.f32 %v3483, %v4342
    %v4344 = vpop.f32.mrb[0].mxu0
    %v4345 = vadd.f32 %v3479, %v4344
    %v4346 = vpop.f32.mrb[0].mxu0
    %v4347 = vadd.f32 %v3483, %v4346
    %4348 = vmatprep.mubr.bf16.mxu0 %v3359
    %4349 = vmatmul.mubr.bf16.gmra.mrb[0].mxu0 %v3358
    %v4350 = vpop.f32.mrb[0].mxu0
    %v4351 = vadd.f32 %v3479, %v4350
    %v4352 = vpop.f32.mrb[0].mxu0
    %v4353 = vadd.f32 %v3483, %v4352
    %v4354 = vpop.f32.mrb[0].mxu0
    %v4355 = vadd.f32 %v3479, %v4354
    %v4356 = vpop.f32.mrb[0].mxu0
    %v4357 = vadd.f32 %v3483, %v4356
    %4358 = vmatprep.mubr.bf16.mxu0 %v3363
    %4359 = vmatmul.mubr.bf16.gmra.mrb[0].mxu0 %v3362
    %v4360 = vpop.f32.mrb[0].mxu0
    %v4361 = vadd.f32 %v3479, %v4360
    %v4362 = vpop.f32.mrb[0].mxu0
    %v4363 = vadd.f32 %v3483, %v4362
    %v4364 = vpop.f32.mrb[0].mxu0
    %v4365 = vadd.f32 %v3479, %v4364
    %v4366 = vpop.f32.mrb[0].mxu0
    %v4367 = vadd.f32 %v3483, %v4366
    %4368 = vmatprep.mubr.bf16.mxu0 %v3367
    %4369 = vmatmul.mubr.bf16.gmra.mrb[0].mxu0 %v3366
    %v4370 = vpop.f32.mrb[0].mxu0
    %v4371 = vadd.f32 %v3479, %v4370
    %v4372 = vpop.f32.mrb[0].mxu0
    %v4373 = vadd.f32 %v3483, %v4372
    %v4374 = vpop.f32.mrb[0].mxu0
    %v4375 = vadd.f32 %v3479, %v4374
    %v4376 = vpop.f32.mrb[0].mxu0
    %v4377 = vadd.f32 %v3483, %v4376
    %4378 = vmatprep.mubr.bf16.mxu0 %v3371
    %4379 = vmatmul.mubr.bf16.gmra.mrb[0].mxu0 %v3370
    %v4380 = vpop.f32.mrb[0].mxu0
    %v4381 = vadd.f32 %v3479, %v4380
    %v4382 = vpop.f32.mrb[0].mxu0
    %v4383 = vadd.f32 %v3483, %v4382
    %v4384 = vpop.f32.mrb[0].mxu0
    %v4385 = vadd.f32 %v3479, %v4384
    %v4386 = vpop.f32.mrb[0].mxu0
    %v4387 = vadd.f32 %v3483, %v4386
    %4388 = vmatprep.mubr.bf16.mxu0 %v3375
    %4389 = vmatmul.mubr.bf16.gmra.mrb[0].mxu0 %v3374
    %v4390 = vpop.f32.mrb[0].mxu0
    %v4391 = vadd.f32 %v3479, %v4390
    %v4392 = vpop.f32.mrb[0].mxu0
    %v4393 = vadd.f32 %v3483, %v4392
    %v4394 = vpop.f32.mrb[0].mxu0
    %v4395 = vadd.f32 %v3479, %v4394
    %v4396 = vpop.f32.mrb[0].mxu0
    %v4397 = vadd.f32 %v3483, %v4396
    %4398 = vmatprep.mubr.bf16.mxu0 %v3379
    %4399 = vmatmul.mubr.bf16.gmra.mrb[0].mxu0 %v3378
    %v4400 = vpop.f32.mrb[0].mxu0
    %v4401 = vadd.f32 %v3479, %v4400
    %v4402 = vpop.f32.mrb[0].mxu0
    %v4403 = vadd.f32 %v3483, %v4402
    %v4404 = vpop.f32.mrb[0].mxu0
    %v4405 = vadd.f32 %v3479, %v4404
    %v4406 = vpop.f32.mrb[0].mxu0
    %v4407 = vadd.f32 %v3483, %v4406
    %4408 = vmatprep.mubr.bf16.mxu0 %v3383
    %4409 = vmatmul.mubr.bf16.gmra.mrb[0].mxu0 %v3382
    %v4410 = vpop.f32.mrb[0].mxu0
    %v4411 = vadd.f32 %v3479, %v4410
    %v4412 = vpop.f32.mrb[0].mxu0
    %v4413 = vadd.f32 %v3483, %v4412
    %v4414 = vpop.f32.mrb[0].mxu0
    %v4415 = vadd.f32 %v3479, %v4414
    %v4416 = vpop.f32.mrb[0].mxu0
    %v4417 = vadd.f32 %v3483, %v4416
    %4418 = vmatprep.mubr.bf16.mxu0 %v3387
    %4419 = vmatmul.mubr.bf16.gmra.mrb[0].mxu0 %v3386
    %v4420 = vpop.f32.mrb[0].mxu0
    %v4421 = vadd.f32 %v3479, %v4420
    %v4422 = vpop.f32.mrb[0].mxu0
    %v4423 = vadd.f32 %v3483, %v4422
    %v4424 = vpop.f32.mrb[0].mxu0
    %v4425 = vadd.f32 %v3479, %v4424
    %v4426 = vpop.f32.mrb[0].mxu0
    %v4427 = vadd.f32 %v3483, %v4426
    %4428 = vmatprep.mubr.bf16.mxu0 %v3391
    %4429 = vmatmul.mubr.bf16.gmra.mrb[0].mxu0 %v3390
    %v4430 = vpop.f32.mrb[0].mxu0
    %v4431 = vadd.f32 %v3479, %v4430
    %v4432 = vpop.f32.mrb[0].mxu0
    %v4433 = vadd.f32 %v3483, %v4432
    %v4434 = vpop.f32.mrb[0].mxu0
    %v4435 = vadd.f32 %v3479, %v4434
    %v4436 = vpop.f32.mrb[0].mxu0
    %v4437 = vadd.f32 %v3483, %v4436
    %4438 = vmatprep.mubr.bf16.mxu0 %v3395
    %4439 = vmatmul.mubr.bf16.gmra.mrb[0].mxu0 %v3394
    %v4440 = vpop.f32.mrb[0].mxu0
    %v4441 = vadd.f32 %v3479, %v4440
    %v4442 = vpop.f32.mrb[0].mxu0
    %v4443 = vadd.f32 %v3483, %v4442
    %v4444 = vpop.f32.mrb[0].mxu0
    %v4445 = vadd.f32 %v3479, %v4444
    %v4446 = vpop.f32.mrb[0].mxu0
    %v4447 = vadd.f32 %v3483, %v4446
    %4448 = vmatprep.mubr.bf16.mxu0 %v3399
    %4449 = vmatmul.mubr.bf16.gmra.mrb[0].mxu0 %v3398
    %v4450 = vpop.f32.mrb[0].mxu0
    %v4451 = vadd.f32 %v3479, %v4450
    %v4452 = vpop.f32.mrb[0].mxu0
    %v4453 = vadd.f32 %v3483, %v4452
    %v4454 = vpop.f32.mrb[0].mxu0
    %v4455 = vadd.f32 %v3479, %v4454
    %v4456 = vpop.f32.mrb[0].mxu0
    %v4457 = vadd.f32 %v3483, %v4456
    %4458 = vmatprep.mubr.bf16.mxu0 %v3403
    %4459 = vmatmul.mubr.bf16.gmra.mrb[0].mxu0 %v3402
    %v4460 = vpop.f32.mrb[0].mxu0
    %v4461 = vadd.f32 %v3479, %v4460
    %v4462 = vpop.f32.mrb[0].mxu0
    %v4463 = vadd.f32 %v3483, %v4462
    %v4464 = vpop.f32.mrb[0].mxu0
    %v4465 = vadd.f32 %v3479, %v4464
    %v4466 = vpop.f32.mrb[0].mxu0
    %v4467 = vadd.f32 %v3483, %v4466
    %4468 = vmatprep.mubr.bf16.mxu0 %v3407
    %4469 = vmatmul.mubr.bf16.gmra.mrb[0].mxu0 %v3406
    %v4470 = vpop.f32.mrb[0].mxu0
    %v4471 = vadd.f32 %v3479, %v4470
    %v4472 = vpop.f32.mrb[0].mxu0
    %v4473 = vadd.f32 %v3483, %v4472
    %v4474 = vpop.f32.mrb[0].mxu0
    %v4475 = vadd.f32 %v3479, %v4474
    %v4476 = vpop.f32.mrb[0].mxu0
    %v4477 = vadd.f32 %v3483, %v4476
    %4478 = vdwg.mxu0
    %4479 = vmatprep.subr.bf16.mxu0 %v3711
    %4480 = vmatpush1.bf16.msra.mxu0 %v3710
    %4481 = vmatprep.subr.bf16.mxu0 %v3713
    %4482 = vmatpush1.bf16.msra.mxu0 %v3712
    %4483 = vmatprep.subr.bf16.mxu0 %v3715
    %4484 = vmatpush1.bf16.msra.mxu0 %v3714
    %4485 = vmatprep.subr.bf16.mxu0 %v3717
    %4486 = vmatpush1.bf16.msra.mxu0 %v3716
    %4487 = vmatprep.subr.bf16.mxu0 %v3719
    %4488 = vmatpush1.bf16.msra.mxu0 %v3718
    %4489 = vmatprep.subr.bf16.mxu0 %v3721
    %4490 = vmatpush1.bf16.msra.mxu0 %v3720
    %4491 = vmatprep.subr.bf16.mxu0 %v3723
    %4492 = vmatpush1.bf16.msra.mxu0 %v3722
    %4493 = vmatprep.subr.bf16.mxu0 %v3725
    %4494 = vmatpush1.bf16.msra.mxu0 %v3724
    %4495 = vmatprep.subr.bf16.mxu0 %v3727
    %4496 = vmatpush1.bf16.msra.mxu0 %v3726
    %4497 = vmatprep.subr.bf16.mxu0 %v3729
    %4498 = vmatpush1.bf16.msra.mxu0 %v3728
    %4499 = vmatprep.subr.bf16.mxu0 %v3731
    %4500 = vmatpush1.bf16.msra.mxu0 %v3730
    %4501 = vmatprep.subr.bf16.mxu0 %v3733
    %4502 = vmatpush1.bf16.msra.mxu0 %v3732
    %4503 = vmatprep.subr.bf16.mxu0 %v3735
    %4504 = vmatpush1.bf16.msra.mxu0 %v3734
    %4505 = vmatprep.subr.bf16.mxu0 %v3737
    %4506 = vmatpush1.bf16.msra.mxu0 %v3736
    %4507 = vmatprep.subr.bf16.mxu0 %v3739
    %4508 = vmatpush1.bf16.msra.mxu0 %v3738
    %4509 = vmatprep.subr.bf16.mxu0 %v3741
    %4510 = vmatpush1.bf16.msra.mxu0 %v3740
    %4511 = vmatprep.mubr.bf16.mxu0 %v3157
    %4512 = vmatmul.mubr.bf16.gmra.mrb[0].mxu0 %v3156
    %v4513 = vpop.f32.mrb[0].mxu0
    %v4514 = vadd.f32 %v3841, %v4513
    %v4515 = vpop.f32.mrb[0].mxu0
    %v4516 = vadd.f32 %v3843, %v4515
    %v4517 = vpop.f32.mrb[0].mxu0
    %v4518 = vadd.f32 %v3845, %v4517
    %v4519 = vpop.f32.mrb[0].mxu0
    %v4520 = vadd.f32 %v3847, %v4519
    %4521 = vmatprep.mubr.bf16.mxu0 %v3161
    %4522 = vmatmul.mubr.bf16.gmra.mrb[0].mxu0 %v3160
    %v4523 = vpop.f32.mrb[0].mxu0
    %v4524 = vadd.f32 %v3851, %v4523
    %v4525 = vpop.f32.mrb[0].mxu0
    %v4526 = vadd.f32 %v3853, %v4525
    %v4527 = vpop.f32.mrb[0].mxu0
    %v4528 = vadd.f32 %v3855, %v4527
    %v4529 = vpop.f32.mrb[0].mxu0
    %v4530 = vadd.f32 %v3857, %v4529
    %4531 = vmatprep.mubr.bf16.mxu0 %v3165
    %4532 = vmatmul.mubr.bf16.gmra.mrb[0].mxu0 %v3164
    %v4533 = vpop.f32.mrb[0].mxu0
    %v4534 = vadd.f32 %v3861, %v4533
    %v4535 = vpop.f32.mrb[0].mxu0
    %v4536 = vadd.f32 %v3863, %v4535
    %v4537 = vpop.f32.mrb[0].mxu0
    %v4538 = vadd.f32 %v3865, %v4537
    %v4539 = vpop.f32.mrb[0].mxu0
    %v4540 = vadd.f32 %v3867, %v4539
    %4541 = vmatprep.mubr.bf16.mxu0 %v3169
    %4542 = vmatmul.mubr.bf16.gmra.mrb[0].mxu0 %v3168
    %v4543 = vpop.f32.mrb[0].mxu0
    %v4544 = vadd.f32 %v3871, %v4543
    %v4545 = vpop.f32.mrb[0].mxu0
    %v4546 = vadd.f32 %v3873, %v4545
    %v4547 = vpop.f32.mrb[0].mxu0
    %v4548 = vadd.f32 %v3875, %v4547
    %v4549 = vpop.f32.mrb[0].mxu0
    %v4550 = vadd.f32 %v3877, %v4549
    %4551 = vmatprep.mubr.bf16.mxu0 %v3173
    %4552 = vmatmul.mubr.bf16.gmra.mrb[0].mxu0 %v3172
    %v4553 = vpop.f32.mrb[0].mxu0
    %v4554 = vadd.f32 %v3881, %v4553
    %v4555 = vpop.f32.mrb[0].mxu0
    %v4556 = vadd.f32 %v3883, %v4555
    %v4557 = vpop.f32.mrb[0].mxu0
    %v4558 = vadd.f32 %v3885, %v4557
    %v4559 = vpop.f32.mrb[0].mxu0
    %v4560 = vadd.f32 %v3887, %v4559
    %4561 = vmatprep.mubr.bf16.mxu0 %v3177
    %4562 = vmatmul.mubr.bf16.gmra.mrb[0].mxu0 %v3176
    %v4563 = vpop.f32.mrb[0].mxu0
    %v4564 = vadd.f32 %v3891, %v4563
    %v4565 = vpop.f32.mrb[0].mxu0
    %v4566 = vadd.f32 %v3893, %v4565
    %v4567 = vpop.f32.mrb[0].mxu0
    %v4568 = vadd.f32 %v3895, %v4567
    %v4569 = vpop.f32.mrb[0].mxu0
    %v4570 = vadd.f32 %v3897, %v4569
    %4571 = vmatprep.mubr.bf16.mxu0 %v3181
    %4572 = vmatmul.mubr.bf16.gmra.mrb[0].mxu0 %v3180
    %v4573 = vpop.f32.mrb[0].mxu0
    %v4574 = vadd.f32 %v3901, %v4573
    %v4575 = vpop.f32.mrb[0].mxu0
    %v4576 = vadd.f32 %v3903, %v4575
    %v4577 = vpop.f32.mrb[0].mxu0
    %v4578 = vadd.f32 %v3905, %v4577
    %v4579 = vpop.f32.mrb[0].mxu0
    %v4580 = vadd.f32 %v3907, %v4579
    %4581 = vmatprep.mubr.bf16.mxu0 %v3185
    %4582 = vmatmul.mubr.bf16.gmra.mrb[0].mxu0 %v3184
    %v4583 = vpop.f32.mrb[0].mxu0
    %v4584 = vadd.f32 %v3911, %v4583
    %v4585 = vpop.f32.mrb[0].mxu0
    %v4586 = vadd.f32 %v3913, %v4585
    %v4587 = vpop.f32.mrb[0].mxu0
    %v4588 = vadd.f32 %v3915, %v4587
    %v4589 = vpop.f32.mrb[0].mxu0
    %v4590 = vadd.f32 %v3917, %v4589
    %4591 = vmatprep.mubr.bf16.mxu0 %v3189
    %4592 = vmatmul.mubr.bf16.gmra.mrb[0].mxu0 %v3188
    %v4593 = vpop.f32.mrb[0].mxu0
    %v4594 = vadd.f32 %v3921, %v4593
    %v4595 = vpop.f32.mrb[0].mxu0
    %v4596 = vadd.f32 %v3923, %v4595
    %v4597 = vpop.f32.mrb[0].mxu0
    %v4598 = vadd.f32 %v3925, %v4597
    %v4599 = vpop.f32.mrb[0].mxu0
    %v4600 = vadd.f32 %v3927, %v4599
    %4601 = vmatprep.mubr.bf16.mxu0 %v3193
    %4602 = vmatmul.mubr.bf16.gmra.mrb[0].mxu0 %v3192
    %v4603 = vpop.f32.mrb[0].mxu0
    %v4604 = vadd.f32 %v3931, %v4603
    %v4605 = vpop.f32.mrb[0].mxu0
    %v4606 = vadd.f32 %v3933, %v4605
    %v4607 = vpop.f32.mrb[0].mxu0
    %v4608 = vadd.f32 %v3935, %v4607
    %v4609 = vpop.f32.mrb[0].mxu0
    %v4610 = vadd.f32 %v3937, %v4609
    %4611 = vmatprep.mubr.bf16.mxu0 %v3197
    %4612 = vmatmul.mubr.bf16.gmra.mrb[0].mxu0 %v3196
    %v4613 = vpop.f32.mrb[0].mxu0
    %v4614 = vadd.f32 %v3941, %v4613
    %v4615 = vpop.f32.mrb[0].mxu0
    %v4616 = vadd.f32 %v3943, %v4615
    %v4617 = vpop.f32.mrb[0].mxu0
    %v4618 = vadd.f32 %v3945, %v4617
    %v4619 = vpop.f32.mrb[0].mxu0
    %v4620 = vadd.f32 %v3947, %v4619
    %4621 = vmatprep.mubr.bf16.mxu0 %v3201
    %4622 = vmatmul.mubr.bf16.gmra.mrb[0].mxu0 %v3200
    %v4623 = vpop.f32.mrb[0].mxu0
    %v4624 = vadd.f32 %v3951, %v4623
    %v4625 = vpop.f32.mrb[0].mxu0
    %v4626 = vadd.f32 %v3953, %v4625
    %v4627 = vpop.f32.mrb[0].mxu0
    %v4628 = vadd.f32 %v3955, %v4627
    %v4629 = vpop.f32.mrb[0].mxu0
    %v4630 = vadd.f32 %v3957, %v4629
    %4631 = vmatprep.mubr.bf16.mxu0 %v3205
    %4632 = vmatmul.mubr.bf16.gmra.mrb[0].mxu0 %v3204
    %v4633 = vpop.f32.mrb[0].mxu0
    %v4634 = vadd.f32 %v3961, %v4633
    %v4635 = vpop.f32.mrb[0].mxu0
    %v4636 = vadd.f32 %v3963, %v4635
    %v4637 = vpop.f32.mrb[0].mxu0
    %v4638 = vadd.f32 %v3965, %v4637
    %v4639 = vpop.f32.mrb[0].mxu0
    %v4640 = vadd.f32 %v3967, %v4639
    %4641 = vmatprep.mubr.bf16.mxu0 %v3209
    %4642 = vmatmul.mubr.bf16.gmra.mrb[0].mxu0 %v3208
    %v4643 = vpop.f32.mrb[0].mxu0
    %v4644 = vadd.f32 %v3971, %v4643
    %v4645 = vpop.f32.mrb[0].mxu0
    %v4646 = vadd.f32 %v3973, %v4645
    %v4647 = vpop.f32.mrb[0].mxu0
    %v4648 = vadd.f32 %v3975, %v4647
    %v4649 = vpop.f32.mrb[0].mxu0
    %v4650 = vadd.f32 %v3977, %v4649
    %4651 = vmatprep.mubr.bf16.mxu0 %v3213
    %4652 = vmatmul.mubr.bf16.gmra.mrb[0].mxu0 %v3212
    %v4653 = vpop.f32.mrb[0].mxu0
    %v4654 = vadd.f32 %v3981, %v4653
    %v4655 = vpop.f32.mrb[0].mxu0
    %v4656 = vadd.f32 %v3983, %v4655
    %v4657 = vpop.f32.mrb[0].mxu0
    %v4658 = vadd.f32 %v3985, %v4657
    %v4659 = vpop.f32.mrb[0].mxu0
    %v4660 = vadd.f32 %v3987, %v4659
    %4661 = vmatprep.mubr.bf16.mxu0 %v3217
    %4662 = vmatmul.mubr.bf16.gmra.mrb[0].mxu0 %v3216
    %v4663 = vpop.f32.mrb[0].mxu0
    %v4664 = vadd.f32 %v3991, %v4663
    %v4665 = vpop.f32.mrb[0].mxu0
    %v4666 = vadd.f32 %v3993, %v4665
    %v4667 = vpop.f32.mrb[0].mxu0
    %v4668 = vadd.f32 %v3995, %v4667
    %v4669 = vpop.f32.mrb[0].mxu0
    %v4670 = vadd.f32 %v3997, %v4669
    %4671 = vmatprep.mubr.bf16.mxu0 %v3221
    %4672 = vmatmul.mubr.bf16.gmra.mrb[0].mxu0 %v3220
    %v4673 = vpop.f32.mrb[0].mxu0
    %v4674 = vadd.f32 %v4001, %v4673
    %v4675 = vpop.f32.mrb[0].mxu0
    %v4676 = vadd.f32 %v4003, %v4675
    %v4677 = vpop.f32.mrb[0].mxu0
    %v4678 = vadd.f32 %v4005, %v4677
    %v4679 = vpop.f32.mrb[0].mxu0
    %v4680 = vadd.f32 %v4007, %v4679
    %4681 = vmatprep.mubr.bf16.mxu0 %v3225
    %4682 = vmatmul.mubr.bf16.gmra.mrb[0].mxu0 %v3224
    %v4683 = vpop.f32.mrb[0].mxu0
    %v4684 = vadd.f32 %v4011, %v4683
    %v4685 = vpop.f32.mrb[0].mxu0
    %v4686 = vadd.f32 %v4013, %v4685
    %v4687 = vpop.f32.mrb[0].mxu0
    %v4688 = vadd.f32 %v4015, %v4687
    %v4689 = vpop.f32.mrb[0].mxu0
    %v4690 = vadd.f32 %v4017, %v4689
    %4691 = vmatprep.mubr.bf16.mxu0 %v3229
    %4692 = vmatmul.mubr.bf16.gmra.mrb[0].mxu0 %v3228
    %v4693 = vpop.f32.mrb[0].mxu0
    %v4694 = vadd.f32 %v4021, %v4693
    %v4695 = vpop.f32.mrb[0].mxu0
    %v4696 = vadd.f32 %v4023, %v4695
    %v4697 = vpop.f32.mrb[0].mxu0
    %v4698 = vadd.f32 %v4025, %v4697
    %v4699 = vpop.f32.mrb[0].mxu0
    %v4700 = vadd.f32 %v4027, %v4699
    %4701 = vmatprep.mubr.bf16.mxu0 %v3233
    %4702 = vmatmul.mubr.bf16.gmra.mrb[0].mxu0 %v3232
    %v4703 = vpop.f32.mrb[0].mxu0
    %v4704 = vadd.f32 %v4031, %v4703
    %v4705 = vpop.f32.mrb[0].mxu0
    %v4706 = vadd.f32 %v4033, %v4705
    %v4707 = vpop.f32.mrb[0].mxu0
    %v4708 = vadd.f32 %v4035, %v4707
    %v4709 = vpop.f32.mrb[0].mxu0
    %v4710 = vadd.f32 %v4037, %v4709
    %4711 = vmatprep.mubr.bf16.mxu0 %v3237
    %4712 = vmatmul.mubr.bf16.gmra.mrb[0].mxu0 %v3236
    %v4713 = vpop.f32.mrb[0].mxu0
    %v4714 = vadd.f32 %v4041, %v4713
    %v4715 = vpop.f32.mrb[0].mxu0
    %v4716 = vadd.f32 %v4043, %v4715
    %v4717 = vpop.f32.mrb[0].mxu0
    %v4718 = vadd.f32 %v4045, %v4717
    %v4719 = vpop.f32.mrb[0].mxu0
    %v4720 = vadd.f32 %v4047, %v4719
    %4721 = vmatprep.mubr.bf16.mxu0 %v3241
    %4722 = vmatmul.mubr.bf16.gmra.mrb[0].mxu0 %v3240
    %v4723 = vpop.f32.mrb[0].mxu0
    %v4724 = vadd.f32 %v4051, %v4723
    %v4725 = vpop.f32.mrb[0].mxu0
    %v4726 = vadd.f32 %v4053, %v4725
    %v4727 = vpop.f32.mrb[0].mxu0
    %v4728 = vadd.f32 %v4055, %v4727
    %v4729 = vpop.f32.mrb[0].mxu0
    %v4730 = vadd.f32 %v4057, %v4729
    %4731 = vmatprep.mubr.bf16.mxu0 %v3245
    %4732 = vmatmul.mubr.bf16.gmra.mrb[0].mxu0 %v3244
    %v4733 = vpop.f32.mrb[0].mxu0
    %v4734 = vadd.f32 %v4061, %v4733
    %v4735 = vpop.f32.mrb[0].mxu0
    %v4736 = vadd.f32 %v4063, %v4735
    %v4737 = vpop.f32.mrb[0].mxu0
    %v4738 = vadd.f32 %v4065, %v4737
    %v4739 = vpop.f32.mrb[0].mxu0
    %v4740 = vadd.f32 %v4067, %v4739
    %4741 = vmatprep.mubr.bf16.mxu0 %v3249
    %4742 = vmatmul.mubr.bf16.gmra.mrb[0].mxu0 %v3248
    %v4743 = vpop.f32.mrb[0].mxu0
    %v4744 = vadd.f32 %v4071, %v4743
    %v4745 = vpop.f32.mrb[0].mxu0
    %v4746 = vadd.f32 %v4073, %v4745
    %v4747 = vpop.f32.mrb[0].mxu0
    %v4748 = vadd.f32 %v4075, %v4747
    %v4749 = vpop.f32.mrb[0].mxu0
    %v4750 = vadd.f32 %v4077, %v4749
    %4751 = vmatprep.mubr.bf16.mxu0 %v3253
    %4752 = vmatmul.mubr.bf16.gmra.mrb[0].mxu0 %v3252
    %v4753 = vpop.f32.mrb[0].mxu0
    %v4754 = vadd.f32 %v4081, %v4753
    %v4755 = vpop.f32.mrb[0].mxu0
    %v4756 = vadd.f32 %v4083, %v4755
    %v4757 = vpop.f32.mrb[0].mxu0
    %v4758 = vadd.f32 %v4085, %v4757
    %v4759 = vpop.f32.mrb[0].mxu0
    %v4760 = vadd.f32 %v4087, %v4759
    %4761 = vmatprep.mubr.bf16.mxu0 %v3257
    %4762 = vmatmul.mubr.bf16.gmra.mrb[0].mxu0 %v3256
    %v4763 = vpop.f32.mrb[0].mxu0
    %v4764 = vadd.f32 %v4091, %v4763
    %v4765 = vpop.f32.mrb[0].mxu0
    %v4766 = vadd.f32 %v4093, %v4765
    %v4767 = vpop.f32.mrb[0].mxu0
    %v4768 = vadd.f32 %v4095, %v4767
    %v4769 = vpop.f32.mrb[0].mxu0
    %v4770 = vadd.f32 %v4097, %v4769
    %4771 = vmatprep.mubr.bf16.mxu0 %v3261
    %4772 = vmatmul.mubr.bf16.gmra.mrb[0].mxu0 %v3260
    %v4773 = vpop.f32.mrb[0].mxu0
    %v4774 = vadd.f32 %v4101, %v4773
    %v4775 = vpop.f32.mrb[0].mxu0
    %v4776 = vadd.f32 %v4103, %v4775
    %v4777 = vpop.f32.mrb[0].mxu0
    %v4778 = vadd.f32 %v4105, %v4777
    %v4779 = vpop.f32.mrb[0].mxu0
    %v4780 = vadd.f32 %v4107, %v4779
    %4781 = vmatprep.mubr.bf16.mxu0 %v3265
    %4782 = vmatmul.mubr.bf16.gmra.mrb[0].mxu0 %v3264
    %v4783 = vpop.f32.mrb[0].mxu0
    %v4784 = vadd.f32 %v4111, %v4783
    %v4785 = vpop.f32.mrb[0].mxu0
    %v4786 = vadd.f32 %v4113, %v4785
    %v4787 = vpop.f32.mrb[0].mxu0
    %v4788 = vadd.f32 %v4115, %v4787
    %v4789 = vpop.f32.mrb[0].mxu0
    %v4790 = vadd.f32 %v4117, %v4789
    %4791 = vmatprep.mubr.bf16.mxu0 %v3269
    %4792 = vmatmul.mubr.bf16.gmra.mrb[0].mxu0 %v3268
    %v4793 = vpop.f32.mrb[0].mxu0
    %v4794 = vadd.f32 %v4121, %v4793
    %v4795 = vpop.f32.mrb[0].mxu0
    %v4796 = vadd.f32 %v4123, %v4795
    %v4797 = vpop.f32.mrb[0].mxu0
    %v4798 = vadd.f32 %v4125, %v4797
    %v4799 = vpop.f32.mrb[0].mxu0
    %v4800 = vadd.f32 %v4127, %v4799
    %4801 = vmatprep.mubr.bf16.mxu0 %v3273
    %4802 = vmatmul.mubr.bf16.gmra.mrb[0].mxu0 %v3272
    %v4803 = vpop.f32.mrb[0].mxu0
    %v4804 = vadd.f32 %v4131, %v4803
    %v4805 = vpop.f32.mrb[0].mxu0
    %v4806 = vadd.f32 %v4133, %v4805
    %v4807 = vpop.f32.mrb[0].mxu0
    %v4808 = vadd.f32 %v4135, %v4807
    %v4809 = vpop.f32.mrb[0].mxu0
    %v4810 = vadd.f32 %v4137, %v4809
    %4811 = vmatprep.mubr.bf16.mxu0 %v3277
    %4812 = vmatmul.mubr.bf16.gmra.mrb[0].mxu0 %v3276
    %v4813 = vpop.f32.mrb[0].mxu0
    %v4814 = vadd.f32 %v4141, %v4813
    %v4815 = vpop.f32.mrb[0].mxu0
    %v4816 = vadd.f32 %v4143, %v4815
    %v4817 = vpop.f32.mrb[0].mxu0
    %v4818 = vadd.f32 %v4145, %v4817
    %v4819 = vpop.f32.mrb[0].mxu0
    %v4820 = vadd.f32 %v4147, %v4819
    %4821 = vmatprep.mubr.bf16.mxu0 %v3281
    %4822 = vmatmul.mubr.bf16.gmra.mrb[0].mxu0 %v3280
    %v4823 = vpop.f32.mrb[0].mxu0
    %v4824 = vadd.f32 %v4151, %v4823
    %v4825 = vpop.f32.mrb[0].mxu0
    %v4826 = vadd.f32 %v4153, %v4825
    %v4827 = vpop.f32.mrb[0].mxu0
    %v4828 = vadd.f32 %v4155, %v4827
    %v4829 = vpop.f32.mrb[0].mxu0
    %v4830 = vadd.f32 %v4157, %v4829
    %4831 = vmatprep.mubr.bf16.mxu0 %v3285
    %4832 = vmatmul.mubr.bf16.gmra.mrb[0].mxu0 %v3284
    %v4833 = vpop.f32.mrb[0].mxu0
    %v4834 = vadd.f32 %v4161, %v4833
    %v4835 = vpop.f32.mrb[0].mxu0
    %v4836 = vadd.f32 %v4163, %v4835
    %v4837 = vpop.f32.mrb[0].mxu0
    %v4838 = vadd.f32 %v4165, %v4837
    %v4839 = vpop.f32.mrb[0].mxu0
    %v4840 = vadd.f32 %v4167, %v4839
    %4841 = vmatprep.mubr.bf16.mxu0 %v3289
    %4842 = vmatmul.mubr.bf16.gmra.mrb[0].mxu0 %v3288
    %v4843 = vpop.f32.mrb[0].mxu0
    %v4844 = vadd.f32 %v4171, %v4843
    %v4845 = vpop.f32.mrb[0].mxu0
    %v4846 = vadd.f32 %v4173, %v4845
    %v4847 = vpop.f32.mrb[0].mxu0
    %v4848 = vadd.f32 %v4175, %v4847
    %v4849 = vpop.f32.mrb[0].mxu0
    %v4850 = vadd.f32 %v4177, %v4849
    %4851 = vmatprep.mubr.bf16.mxu0 %v3293
    %4852 = vmatmul.mubr.bf16.gmra.mrb[0].mxu0 %v3292
    %v4853 = vpop.f32.mrb[0].mxu0
    %v4854 = vadd.f32 %v4181, %v4853
    %v4855 = vpop.f32.mrb[0].mxu0
    %v4856 = vadd.f32 %v4183, %v4855
    %v4857 = vpop.f32.mrb[0].mxu0
    %v4858 = vadd.f32 %v4185, %v4857
    %v4859 = vpop.f32.mrb[0].mxu0
    %v4860 = vadd.f32 %v4187, %v4859
    %4861 = vmatprep.mubr.bf16.mxu0 %v3297
    %4862 = vmatmul.mubr.bf16.gmra.mrb[0].mxu0 %v3296
    %v4863 = vpop.f32.mrb[0].mxu0
    %v4864 = vadd.f32 %v4191, %v4863
    %v4865 = vpop.f32.mrb[0].mxu0
    %v4866 = vadd.f32 %v4193, %v4865
    %v4867 = vpop.f32.mrb[0].mxu0
    %v4868 = vadd.f32 %v4195, %v4867
    %v4869 = vpop.f32.mrb[0].mxu0
    %v4870 = vadd.f32 %v4197, %v4869
    %4871 = vmatprep.mubr.bf16.mxu0 %v3301
    %4872 = vmatmul.mubr.bf16.gmra.mrb[0].mxu0 %v3300
    %v4873 = vpop.f32.mrb[0].mxu0
    %v4874 = vadd.f32 %v4201, %v4873
    %v4875 = vpop.f32.mrb[0].mxu0
    %v4876 = vadd.f32 %v4203, %v4875
    %v4877 = vpop.f32.mrb[0].mxu0
    %v4878 = vadd.f32 %v4205, %v4877
    %v4879 = vpop.f32.mrb[0].mxu0
    %v4880 = vadd.f32 %v4207, %v4879
    %4881 = vmatprep.mubr.bf16.mxu0 %v3305
    %4882 = vmatmul.mubr.bf16.gmra.mrb[0].mxu0 %v3304
    %v4883 = vpop.f32.mrb[0].mxu0
    %v4884 = vadd.f32 %v4211, %v4883
    %v4885 = vpop.f32.mrb[0].mxu0
    %v4886 = vadd.f32 %v4213, %v4885
    %v4887 = vpop.f32.mrb[0].mxu0
    %v4888 = vadd.f32 %v4215, %v4887
    %v4889 = vpop.f32.mrb[0].mxu0
    %v4890 = vadd.f32 %v4217, %v4889
    %4891 = vmatprep.mubr.bf16.mxu0 %v3309
    %4892 = vmatmul.mubr.bf16.gmra.mrb[0].mxu0 %v3308
    %v4893 = vpop.f32.mrb[0].mxu0
    %v4894 = vadd.f32 %v4221, %v4893
    %v4895 = vpop.f32.mrb[0].mxu0
    %v4896 = vadd.f32 %v4223, %v4895
    %v4897 = vpop.f32.mrb[0].mxu0
    %v4898 = vadd.f32 %v4225, %v4897
    %v4899 = vpop.f32.mrb[0].mxu0
    %v4900 = vadd.f32 %v4227, %v4899
    %4901 = vmatprep.mubr.bf16.mxu0 %v3313
    %4902 = vmatmul.mubr.bf16.gmra.mrb[0].mxu0 %v3312
    %v4903 = vpop.f32.mrb[0].mxu0
    %v4904 = vadd.f32 %v4231, %v4903
    %v4905 = vpop.f32.mrb[0].mxu0
    %v4906 = vadd.f32 %v4233, %v4905
    %v4907 = vpop.f32.mrb[0].mxu0
    %v4908 = vadd.f32 %v4235, %v4907
    %v4909 = vpop.f32.mrb[0].mxu0
    %v4910 = vadd.f32 %v4237, %v4909
    %4911 = vmatprep.mubr.bf16.mxu0 %v3317
    %4912 = vmatmul.mubr.bf16.gmra.mrb[0].mxu0 %v3316
    %v4913 = vpop.f32.mrb[0].mxu0
    %v4914 = vadd.f32 %v4241, %v4913
    %v4915 = vpop.f32.mrb[0].mxu0
    %v4916 = vadd.f32 %v4243, %v4915
    %v4917 = vpop.f32.mrb[0].mxu0
    %v4918 = vadd.f32 %v4245, %v4917
    %v4919 = vpop.f32.mrb[0].mxu0
    %v4920 = vadd.f32 %v4247, %v4919
    %4921 = vmatprep.mubr.bf16.mxu0 %v3321
    %4922 = vmatmul.mubr.bf16.gmra.mrb[0].mxu0 %v3320
    %v4923 = vpop.f32.mrb[0].mxu0
    %v4924 = vadd.f32 %v4251, %v4923
    %v4925 = vpop.f32.mrb[0].mxu0
    %v4926 = vadd.f32 %v4253, %v4925
    %v4927 = vpop.f32.mrb[0].mxu0
    %v4928 = vadd.f32 %v4255, %v4927
    %v4929 = vpop.f32.mrb[0].mxu0
    %v4930 = vadd.f32 %v4257, %v4929
    %4931 = vmatprep.mubr.bf16.mxu0 %v3325
    %4932 = vmatmul.mubr.bf16.gmra.mrb[0].mxu0 %v3324
    %v4933 = vpop.f32.mrb[0].mxu0
    %v4934 = vadd.f32 %v4261, %v4933
    %v4935 = vpop.f32.mrb[0].mxu0
    %v4936 = vadd.f32 %v4263, %v4935
    %v4937 = vpop.f32.mrb[0].mxu0
    %v4938 = vadd.f32 %v4265, %v4937
    %v4939 = vpop.f32.mrb[0].mxu0
    %v4940 = vadd.f32 %v4267, %v4939
    %4941 = vmatprep.mubr.bf16.mxu0 %v3329
    %4942 = vmatmul.mubr.bf16.gmra.mrb[0].mxu0 %v3328
    %v4943 = vpop.f32.mrb[0].mxu0
    %v4944 = vadd.f32 %v4271, %v4943
    %v4945 = vpop.f32.mrb[0].mxu0
    %v4946 = vadd.f32 %v4273, %v4945
    %v4947 = vpop.f32.mrb[0].mxu0
    %v4948 = vadd.f32 %v4275, %v4947
    %v4949 = vpop.f32.mrb[0].mxu0
    %v4950 = vadd.f32 %v4277, %v4949
    %4951 = vmatprep.mubr.bf16.mxu0 %v3333
    %4952 = vmatmul.mubr.bf16.gmra.mrb[0].mxu0 %v3332
    %v4953 = vpop.f32.mrb[0].mxu0
    %v4954 = vadd.f32 %v4281, %v4953
    %v4955 = vpop.f32.mrb[0].mxu0
    %v4956 = vadd.f32 %v4283, %v4955
    %v4957 = vpop.f32.mrb[0].mxu0
    %v4958 = vadd.f32 %v4285, %v4957
    %v4959 = vpop.f32.mrb[0].mxu0
    %v4960 = vadd.f32 %v4287, %v4959
    %4961 = vmatprep.mubr.bf16.mxu0 %v3337
    %4962 = vmatmul.mubr.bf16.gmra.mrb[0].mxu0 %v3336
    %v4963 = vpop.f32.mrb[0].mxu0
    %v4964 = vadd.f32 %v4291, %v4963
    %v4965 = vpop.f32.mrb[0].mxu0
    %v4966 = vadd.f32 %v4293, %v4965
    %v4967 = vpop.f32.mrb[0].mxu0
    %v4968 = vadd.f32 %v4295, %v4967
    %v4969 = vpop.f32.mrb[0].mxu0
    %v4970 = vadd.f32 %v4297, %v4969
    %4971 = vmatprep.mubr.bf16.mxu0 %v3341
    %4972 = vmatmul.mubr.bf16.gmra.mrb[0].mxu0 %v3340
    %v4973 = vpop.f32.mrb[0].mxu0
    %v4974 = vadd.f32 %v4301, %v4973
    %v4975 = vpop.f32.mrb[0].mxu0
    %v4976 = vadd.f32 %v4303, %v4975
    %v4977 = vpop.f32.mrb[0].mxu0
    %v4978 = vadd.f32 %v4305, %v4977
    %v4979 = vpop.f32.mrb[0].mxu0
    %v4980 = vadd.f32 %v4307, %v4979
    %4981 = vmatprep.mubr.bf16.mxu0 %v3345
    %4982 = vmatmul.mubr.bf16.gmra.mrb[0].mxu0 %v3344
    %v4983 = vpop.f32.mrb[0].mxu0
    %v4984 = vadd.f32 %v4311, %v4983
    %v4985 = vpop.f32.mrb[0].mxu0
    %v4986 = vadd.f32 %v4313, %v4985
    %v4987 = vpop.f32.mrb[0].mxu0
    %v4988 = vadd.f32 %v4315, %v4987
    %v4989 = vpop.f32.mrb[0].mxu0
    %v4990 = vadd.f32 %v4317, %v4989
    %4991 = vmatprep.mubr.bf16.mxu0 %v3349
    %4992 = vmatmul.mubr.bf16.gmra.mrb[0].mxu0 %v3348
    %v4993 = vpop.f32.mrb[0].mxu0
    %v4994 = vadd.f32 %v4321, %v4993
    %v4995 = vpop.f32.mrb[0].mxu0
    %v4996 = vadd.f32 %v4323, %v4995
    %v4997 = vpop.f32.mrb[0].mxu0
    %v4998 = vadd.f32 %v4325, %v4997
    %v4999 = vpop.f32.mrb[0].mxu0
    %v5000 = vadd.f32 %v4327, %v4999
    %5001 = vmatprep.mubr.bf16.mxu0 %v3353
    %5002 = vmatmul.mubr.bf16.gmra.mrb[0].mxu0 %v3352
    %v5003 = vpop.f32.mrb[0].mxu0
    %v5004 = vadd.f32 %v4331, %v5003
    %v5005 = vpop.f32.mrb[0].mxu0
    %v5006 = vadd.f32 %v4333, %v5005
    %v5007 = vpop.f32.mrb[0].mxu0
    %v5008 = vadd.f32 %v4335, %v5007
    %v5009 = vpop.f32.mrb[0].mxu0
    %v5010 = vadd.f32 %v4337, %v5009
    %5011 = vmatprep.mubr.bf16.mxu0 %v3357
    %5012 = vmatmul.mubr.bf16.gmra.mrb[0].mxu0 %v3356
    %v5013 = vpop.f32.mrb[0].mxu0
    %v5014 = vadd.f32 %v4341, %v5013
    %v5015 = vpop.f32.mrb[0].mxu0
    %v5016 = vadd.f32 %v4343, %v5015
    %v5017 = vpop.f32.mrb[0].mxu0
    %v5018 = vadd.f32 %v4345, %v5017
    %v5019 = vpop.f32.mrb[0].mxu0
    %v5020 = vadd.f32 %v4347, %v5019
    %5021 = vmatprep.mubr.bf16.mxu0 %v3361
    %5022 = vmatmul.mubr.bf16.gmra.mrb[0].mxu0 %v3360
    %v5023 = vpop.f32.mrb[0].mxu0
    %v5024 = vadd.f32 %v4351, %v5023
    %v5025 = vpop.f32.mrb[0].mxu0
    %v5026 = vadd.f32 %v4353, %v5025
    %v5027 = vpop.f32.mrb[0].mxu0
    %v5028 = vadd.f32 %v4355, %v5027
    %v5029 = vpop.f32.mrb[0].mxu0
    %v5030 = vadd.f32 %v4357, %v5029
    %5031 = vmatprep.mubr.bf16.mxu0 %v3365
    %5032 = vmatmul.mubr.bf16.gmra.mrb[0].mxu0 %v3364
    %v5033 = vpop.f32.mrb[0].mxu0
    %v5034 = vadd.f32 %v4361, %v5033
    %v5035 = vpop.f32.mrb[0].mxu0
    %v5036 = vadd.f32 %v4363, %v5035
    %v5037 = vpop.f32.mrb[0].mxu0
    %v5038 = vadd.f32 %v4365, %v5037
    %v5039 = vpop.f32.mrb[0].mxu0
    %v5040 = vadd.f32 %v4367, %v5039
    %5041 = vmatprep.mubr.bf16.mxu0 %v3369
    %5042 = vmatmul.mubr.bf16.gmra.mrb[0].mxu0 %v3368
    %v5043 = vpop.f32.mrb[0].mxu0
    %v5044 = vadd.f32 %v4371, %v5043
    %v5045 = vpop.f32.mrb[0].mxu0
    %v5046 = vadd.f32 %v4373, %v5045
    %v5047 = vpop.f32.mrb[0].mxu0
    %v5048 = vadd.f32 %v4375, %v5047
    %v5049 = vpop.f32.mrb[0].mxu0
    %v5050 = vadd.f32 %v4377, %v5049
    %5051 = vmatprep.mubr.bf16.mxu0 %v3373
    %5052 = vmatmul.mubr.bf16.gmra.mrb[0].mxu0 %v3372
    %v5053 = vpop.f32.mrb[0].mxu0
    %v5054 = vadd.f32 %v4381, %v5053
    %v5055 = vpop.f32.mrb[0].mxu0
    %v5056 = vadd.f32 %v4383, %v5055
    %v5057 = vpop.f32.mrb[0].mxu0
    %v5058 = vadd.f32 %v4385, %v5057
    %v5059 = vpop.f32.mrb[0].mxu0
    %v5060 = vadd.f32 %v4387, %v5059
    %5061 = vmatprep.mubr.bf16.mxu0 %v3377
    %5062 = vmatmul.mubr.bf16.gmra.mrb[0].mxu0 %v3376
    %v5063 = vpop.f32.mrb[0].mxu0
    %v5064 = vadd.f32 %v4391, %v5063
    %v5065 = vpop.f32.mrb[0].mxu0
    %v5066 = vadd.f32 %v4393, %v5065
    %v5067 = vpop.f32.mrb[0].mxu0
    %v5068 = vadd.f32 %v4395, %v5067
    %v5069 = vpop.f32.mrb[0].mxu0
    %v5070 = vadd.f32 %v4397, %v5069
    %5071 = vmatprep.mubr.bf16.mxu0 %v3381
    %5072 = vmatmul.mubr.bf16.gmra.mrb[0].mxu0 %v3380
    %v5073 = vpop.f32.mrb[0].mxu0
    %v5074 = vadd.f32 %v4401, %v5073
    %v5075 = vpop.f32.mrb[0].mxu0
    %v5076 = vadd.f32 %v4403, %v5075
    %v5077 = vpop.f32.mrb[0].mxu0
    %v5078 = vadd.f32 %v4405, %v5077
    %v5079 = vpop.f32.mrb[0].mxu0
    %v5080 = vadd.f32 %v4407, %v5079
    %5081 = vmatprep.mubr.bf16.mxu0 %v3385
    %5082 = vmatmul.mubr.bf16.gmra.mrb[0].mxu0 %v3384
    %v5083 = vpop.f32.mrb[0].mxu0
    %v5084 = vadd.f32 %v4411, %v5083
    %v5085 = vpop.f32.mrb[0].mxu0
    %v5086 = vadd.f32 %v4413, %v5085
    %v5087 = vpop.f32.mrb[0].mxu0
    %v5088 = vadd.f32 %v4415, %v5087
    %v5089 = vpop.f32.mrb[0].mxu0
    %v5090 = vadd.f32 %v4417, %v5089
    %5091 = vmatprep.mubr.bf16.mxu0 %v3389
    %5092 = vmatmul.mubr.bf16.gmra.mrb[0].mxu0 %v3388
    %v5093 = vpop.f32.mrb[0].mxu0
    %v5094 = vadd.f32 %v4421, %v5093
    %v5095 = vpop.f32.mrb[0].mxu0
    %v5096 = vadd.f32 %v4423, %v5095
    %v5097 = vpop.f32.mrb[0].mxu0
    %v5098 = vadd.f32 %v4425, %v5097
    %v5099 = vpop.f32.mrb[0].mxu0
    %v5100 = vadd.f32 %v4427, %v5099
    %5101 = vmatprep.mubr.bf16.mxu0 %v3393
    %5102 = vmatmul.mubr.bf16.gmra.mrb[0].mxu0 %v3392
    %v5103 = vpop.f32.mrb[0].mxu0
    %v5104 = vadd.f32 %v4431, %v5103
    %v5105 = vpop.f32.mrb[0].mxu0
    %v5106 = vadd.f32 %v4433, %v5105
    %v5107 = vpop.f32.mrb[0].mxu0
    %v5108 = vadd.f32 %v4435, %v5107
    %v5109 = vpop.f32.mrb[0].mxu0
    %v5110 = vadd.f32 %v4437, %v5109
    %5111 = vmatprep.mubr.bf16.mxu0 %v3397
    %5112 = vmatmul.mubr.bf16.gmra.mrb[0].mxu0 %v3396
    %v5113 = vpop.f32.mrb[0].mxu0
    %v5114 = vadd.f32 %v4441, %v5113
    %v5115 = vpop.f32.mrb[0].mxu0
    %v5116 = vadd.f32 %v4443, %v5115
    %v5117 = vpop.f32.mrb[0].mxu0
    %v5118 = vadd.f32 %v4445, %v5117
    %v5119 = vpop.f32.mrb[0].mxu0
    %v5120 = vadd.f32 %v4447, %v5119
    %5121 = vmatprep.mubr.bf16.mxu0 %v3401
    %5122 = vmatmul.mubr.bf16.gmra.mrb[0].mxu0 %v3400
    %v5123 = vpop.f32.mrb[0].mxu0
    %v5124 = vadd.f32 %v4451, %v5123
    %v5125 = vpop.f32.mrb[0].mxu0
    %v5126 = vadd.f32 %v4453, %v5125
    %v5127 = vpop.f32.mrb[0].mxu0
    %v5128 = vadd.f32 %v4455, %v5127
    %v5129 = vpop.f32.mrb[0].mxu0
    %v5130 = vadd.f32 %v4457, %v5129
    %5131 = vmatprep.mubr.bf16.mxu0 %v3405
    %5132 = vmatmul.mubr.bf16.gmra.mrb[0].mxu0 %v3404
    %v5133 = vpop.f32.mrb[0].mxu0
    %v5134 = vadd.f32 %v4461, %v5133
    %v5135 = vpop.f32.mrb[0].mxu0
    %v5136 = vadd.f32 %v4463, %v5135
    %v5137 = vpop.f32.mrb[0].mxu0
    %v5138 = vadd.f32 %v4465, %v5137
    %v5139 = vpop.f32.mrb[0].mxu0
    %v5140 = vadd.f32 %v4467, %v5139
    %5141 = vmatprep.mubr.bf16.mxu0 %v3409
    %5142 = vmatmul.mubr.bf16.gmra.mrb[0].mxu0 %v3408
    %v5143 = vpop.f32.mrb[0].mxu0
    %v5144 = vadd.f32 %v4471, %v5143
    %v5145 = vpop.f32.mrb[0].mxu0
    %v5146 = vadd.f32 %v4473, %v5145
    %v5147 = vpop.f32.mrb[0].mxu0
    %v5148 = vadd.f32 %v4475, %v5147
    %v5149 = vpop.f32.mrb[0].mxu0
    %v5150 = vadd.f32 %v4477, %v5149
    %5151 = vdwg.mxu0
    %v5152 = vmax.f32 %v4514, 0.0
    %v5153 = vmax.f32 %v4516, 0.0
    %v5154 = vmax.f32 %v4518, 0.0
    %v5155 = vmax.f32 %v4520, 0.0
    %v5156 = vmax.f32 %v4524, 0.0
    %v5157 = vmax.f32 %v4526, 0.0
    %v5158 = vmax.f32 %v4528, 0.0
    %v5159 = vmax.f32 %v4530, 0.0
    %v5160 = vmax.f32 %v4534, 0.0
    %v5161 = vmax.f32 %v4536, 0.0
    %v5162 = vmax.f32 %v4538, 0.0
    %v5163 = vmax.f32 %v4540, 0.0
    %v5164 = vmax.f32 %v4544, 0.0
    %v5165 = vmax.f32 %v4546, 0.0
    %v5166 = vmax.f32 %v4548, 0.0
    %v5167 = vmax.f32 %v4550, 0.0
    %v5168 = vmax.f32 %v4554, 0.0
    %v5169 = vmax.f32 %v4556, 0.0
    %v5170 = vmax.f32 %v4558, 0.0
    %v5171 = vmax.f32 %v4560, 0.0
    %v5172 = vmax.f32 %v4564, 0.0
    %v5173 = vmax.f32 %v4566, 0.0
    %v5174 = vmax.f32 %v4568, 0.0
    %v5175 = vmax.f32 %v4570, 0.0
    %v5176 = vmax.f32 %v4574, 0.0
    %v5177 = vmax.f32 %v4576, 0.0
    %v5178 = vmax.f32 %v4578, 0.0
    %v5179 = vmax.f32 %v4580, 0.0
    %v5180 = vmax.f32 %v4584, 0.0
    %v5181 = vmax.f32 %v4586, 0.0
    %v5182 = vmax.f32 %v4588, 0.0
    %v5183 = vmax.f32 %v4590, 0.0
    %v5184 = vmax.f32 %v4594, 0.0
    %v5185 = vmax.f32 %v4596, 0.0
    %v5186 = vmax.f32 %v4598, 0.0
    %v5187 = vmax.f32 %v4600, 0.0
    %v5188 = vmax.f32 %v4604, 0.0
    %v5189 = vmax.f32 %v4606, 0.0
    %v5190 = vmax.f32 %v4608, 0.0
    %v5191 = vmax.f32 %v4610, 0.0
    %v5192 = vmax.f32 %v4614, 0.0
    %v5193 = vmax.f32 %v4616, 0.0
    %v5194 = vmax.f32 %v4618, 0.0
    %v5195 = vmax.f32 %v4620, 0.0
    %v5196 = vmax.f32 %v4624, 0.0
    %v5197 = vmax.f32 %v4626, 0.0
    %v5198 = vmax.f32 %v4628, 0.0
    %v5199 = vmax.f32 %v4630, 0.0
    %v5200 = vmax.f32 %v4634, 0.0
    %v5201 = vmax.f32 %v4636, 0.0
    %v5202 = vmax.f32 %v4638, 0.0
    %v5203 = vmax.f32 %v4640, 0.0
    %v5204 = vmax.f32 %v4644, 0.0
    %v5205 = vmax.f32 %v4646, 0.0
    %v5206 = vmax.f32 %v4648, 0.0
    %v5207 = vmax.f32 %v4650, 0.0
    %v5208 = vmax.f32 %v4654, 0.0
    %v5209 = vmax.f32 %v4656, 0.0
    %v5210 = vmax.f32 %v4658, 0.0
    %v5211 = vmax.f32 %v4660, 0.0
    %v5212 = vmax.f32 %v4664, 0.0
    %v5213 = vmax.f32 %v4666, 0.0
    %v5214 = vmax.f32 %v4668, 0.0
    %v5215 = vmax.f32 %v4670, 0.0
    %v5216 = vmax.f32 %v4674, 0.0
    %v5217 = vmax.f32 %v4676, 0.0
    %v5218 = vmax.f32 %v4678, 0.0
    %v5219 = vmax.f32 %v4680, 0.0
    %v5220 = vmax.f32 %v4684, 0.0
    %v5221 = vmax.f32 %v4686, 0.0
    %v5222 = vmax.f32 %v4688, 0.0
    %v5223 = vmax.f32 %v4690, 0.0
    %v5224 = vmax.f32 %v4694, 0.0
    %v5225 = vmax.f32 %v4696, 0.0
    %v5226 = vmax.f32 %v4698, 0.0
    %v5227 = vmax.f32 %v4700, 0.0
    %v5228 = vmax.f32 %v4704, 0.0
    %v5229 = vmax.f32 %v4706, 0.0
    %v5230 = vmax.f32 %v4708, 0.0
    %v5231 = vmax.f32 %v4710, 0.0
    %v5232 = vmax.f32 %v4714, 0.0
    %v5233 = vmax.f32 %v4716, 0.0
    %v5234 = vmax.f32 %v4718, 0.0
    %v5235 = vmax.f32 %v4720, 0.0
    %v5236 = vmax.f32 %v4724, 0.0
    %v5237 = vmax.f32 %v4726, 0.0
    %v5238 = vmax.f32 %v4728, 0.0
    %v5239 = vmax.f32 %v4730, 0.0
    %v5240 = vmax.f32 %v4734, 0.0
    %v5241 = vmax.f32 %v4736, 0.0
    %v5242 = vmax.f32 %v4738, 0.0
    %v5243 = vmax.f32 %v4740, 0.0
    %v5244 = vmax.f32 %v4744, 0.0
    %v5245 = vmax.f32 %v4746, 0.0
    %v5246 = vmax.f32 %v4748, 0.0
    %v5247 = vmax.f32 %v4750, 0.0
    %v5248 = vmax.f32 %v4754, 0.0
    %v5249 = vmax.f32 %v4756, 0.0
    %v5250 = vmax.f32 %v4758, 0.0
    %v5251 = vmax.f32 %v4760, 0.0
    %v5252 = vmax.f32 %v4764, 0.0
    %v5253 = vmax.f32 %v4766, 0.0
    %v5254 = vmax.f32 %v4768, 0.0
    %v5255 = vmax.f32 %v4770, 0.0
    %v5256 = vmax.f32 %v4774, 0.0
    %v5257 = vmax.f32 %v4776, 0.0
    %v5258 = vmax.f32 %v4778, 0.0
    %v5259 = vmax.f32 %v4780, 0.0
    %v5260 = vmax.f32 %v4784, 0.0
    %v5261 = vmax.f32 %v4786, 0.0
    %v5262 = vmax.f32 %v4788, 0.0
    %v5263 = vmax.f32 %v4790, 0.0
    %v5264 = vmax.f32 %v4794, 0.0
    %v5265 = vmax.f32 %v4796, 0.0
    %v5266 = vmax.f32 %v4798, 0.0
    %v5267 = vmax.f32 %v4800, 0.0
    %v5268 = vmax.f32 %v4804, 0.0
    %v5269 = vmax.f32 %v4806, 0.0
    %v5270 = vmax.f32 %v4808, 0.0
    %v5271 = vmax.f32 %v4810, 0.0
    %v5272 = vmax.f32 %v4814, 0.0
    %v5273 = vmax.f32 %v4816, 0.0
    %v5274 = vmax.f32 %v4818, 0.0
    %v5275 = vmax.f32 %v4820, 0.0
    %v5276 = vmax.f32 %v4824, 0.0
    %v5277 = vmax.f32 %v4826, 0.0
    %v5278 = vmax.f32 %v4828, 0.0
    %v5279 = vmax.f32 %v4830, 0.0
    %v5280 = vmax.f32 %v4834, 0.0
    %v5281 = vmax.f32 %v4836, 0.0
    %v5282 = vmax.f32 %v4838, 0.0
    %v5283 = vmax.f32 %v4840, 0.0
    %v5284 = vmax.f32 %v4844, 0.0
    %v5285 = vmax.f32 %v4846, 0.0
    %v5286 = vmax.f32 %v4848, 0.0
    %v5287 = vmax.f32 %v4850, 0.0
    %v5288 = vmax.f32 %v4854, 0.0
    %v5289 = vmax.f32 %v4856, 0.0
    %v5290 = vmax.f32 %v4858, 0.0
    %v5291 = vmax.f32 %v4860, 0.0
    %v5292 = vmax.f32 %v4864, 0.0
    %v5293 = vmax.f32 %v4866, 0.0
    %v5294 = vmax.f32 %v4868, 0.0
    %v5295 = vmax.f32 %v4870, 0.0
    %v5296 = vmax.f32 %v4874, 0.0
    %v5297 = vmax.f32 %v4876, 0.0
    %v5298 = vmax.f32 %v4878, 0.0
    %v5299 = vmax.f32 %v4880, 0.0
    %v5300 = vmax.f32 %v4884, 0.0
    %v5301 = vmax.f32 %v4886, 0.0
    %v5302 = vmax.f32 %v4888, 0.0
    %v5303 = vmax.f32 %v4890, 0.0
    %v5304 = vmax.f32 %v4894, 0.0
    %v5305 = vmax.f32 %v4896, 0.0
    %v5306 = vmax.f32 %v4898, 0.0
    %v5307 = vmax.f32 %v4900, 0.0
    %v5308 = vmax.f32 %v4904, 0.0
    %v5309 = vmax.f32 %v4906, 0.0
    %v5310 = vmax.f32 %v4908, 0.0
    %v5311 = vmax.f32 %v4910, 0.0
    %v5312 = vmax.f32 %v4914, 0.0
    %v5313 = vmax.f32 %v4916, 0.0
    %v5314 = vmax.f32 %v4918, 0.0
    %v5315 = vmax.f32 %v4920, 0.0
    %v5316 = vmax.f32 %v4924, 0.0
    %v5317 = vmax.f32 %v4926, 0.0
    %v5318 = vmax.f32 %v4928, 0.0
    %v5319 = vmax.f32 %v4930, 0.0
    %v5320 = vmax.f32 %v4934, 0.0
    %v5321 = vmax.f32 %v4936, 0.0
    %v5322 = vmax.f32 %v4938, 0.0
    %v5323 = vmax.f32 %v4940, 0.0
    %v5324 = vmax.f32 %v4944, 0.0
    %v5325 = vmax.f32 %v4946, 0.0
    %v5326 = vmax.f32 %v4948, 0.0
    %v5327 = vmax.f32 %v4950, 0.0
    %v5328 = vmax.f32 %v4954, 0.0
    %v5329 = vmax.f32 %v4956, 0.0
    %v5330 = vmax.f32 %v4958, 0.0
    %v5331 = vmax.f32 %v4960, 0.0
    %v5332 = vmax.f32 %v4964, 0.0
    %v5333 = vmax.f32 %v4966, 0.0
    %v5334 = vmax.f32 %v4968, 0.0
    %v5335 = vmax.f32 %v4970, 0.0
    %v5336 = vmax.f32 %v4974, 0.0
    %v5337 = vmax.f32 %v4976, 0.0
    %v5338 = vmax.f32 %v4978, 0.0
    %v5339 = vmax.f32 %v4980, 0.0
    %v5340 = vmax.f32 %v4984, 0.0
    %v5341 = vmax.f32 %v4986, 0.0
    %v5342 = vmax.f32 %v4988, 0.0
    %v5343 = vmax.f32 %v4990, 0.0
    %v5344 = vmax.f32 %v4994, 0.0
    %v5345 = vmax.f32 %v4996, 0.0
    %v5346 = vmax.f32 %v4998, 0.0
    %v5347 = vmax.f32 %v5000, 0.0
    %v5348 = vmax.f32 %v5004, 0.0
    %v5349 = vmax.f32 %v5006, 0.0
    %v5350 = vmax.f32 %v5008, 0.0
    %v5351 = vmax.f32 %v5010, 0.0
    %v5352 = vmax.f32 %v5014, 0.0
    %v5353 = vmax.f32 %v5016, 0.0
    %v5354 = vmax.f32 %v5018, 0.0
    %v5355 = vmax.f32 %v5020, 0.0
    %v5356 = vmax.f32 %v5024, 0.0
    %v5357 = vmax.f32 %v5026, 0.0
    %v5358 = vmax.f32 %v5028, 0.0
    %v5359 = vmax.f32 %v5030, 0.0
    %v5360 = vmax.f32 %v5034, 0.0
    %v5361 = vmax.f32 %v5036, 0.0
    %v5362 = vmax.f32 %v5038, 0.0
    %v5363 = vmax.f32 %v5040, 0.0
    %v5364 = vmax.f32 %v5044, 0.0
    %v5365 = vmax.f32 %v5046, 0.0
    %v5366 = vmax.f32 %v5048, 0.0
    %v5367 = vmax.f32 %v5050, 0.0
    %v5368 = vmax.f32 %v5054, 0.0
    %v5369 = vmax.f32 %v5056, 0.0
    %v5370 = vmax.f32 %v5058, 0.0
    %v5371 = vmax.f32 %v5060, 0.0
    %v5372 = vmax.f32 %v5064, 0.0
    %v5373 = vmax.f32 %v5066, 0.0
    %v5374 = vmax.f32 %v5068, 0.0
    %v5375 = vmax.f32 %v5070, 0.0
    %v5376 = vmax.f32 %v5074, 0.0
    %v5377 = vmax.f32 %v5076, 0.0
    %v5378 = vmax.f32 %v5078, 0.0
    %v5379 = vmax.f32 %v5080, 0.0
    %v5380 = vmax.f32 %v5084, 0.0
    %v5381 = vmax.f32 %v5086, 0.0
    %v5382 = vmax.f32 %v5088, 0.0
    %v5383 = vmax.f32 %v5090, 0.0
    %v5384 = vmax.f32 %v5094, 0.0
    %v5385 = vmax.f32 %v5096, 0.0
    %v5386 = vmax.f32 %v5098, 0.0
    %v5387 = vmax.f32 %v5100, 0.0
    %v5388 = vmax.f32 %v5104, 0.0
    %v5389 = vmax.f32 %v5106, 0.0
    %v5390 = vmax.f32 %v5108, 0.0
    %v5391 = vmax.f32 %v5110, 0.0
    %v5392 = vmax.f32 %v5114, 0.0
    %v5393 = vmax.f32 %v5116, 0.0
    %v5394 = vmax.f32 %v5118, 0.0
    %v5395 = vmax.f32 %v5120, 0.0
    %v5396 = vmax.f32 %v5124, 0.0
    %v5397 = vmax.f32 %v5126, 0.0
    %v5398 = vmax.f32 %v5128, 0.0
    %v5399 = vmax.f32 %v5130, 0.0
    %v5400 = vmax.f32 %v5134, 0.0
    %v5401 = vmax.f32 %v5136, 0.0
    %v5402 = vmax.f32 %v5138, 0.0
    %v5403 = vmax.f32 %v5140, 0.0
    %v5404 = vmax.f32 %v5144, 0.0
    %v5405 = vmax.f32 %v5146, 0.0
    %v5406 = vmax.f32 %v5148, 0.0
    %v5407 = vmax.f32 %v5150, 0.0
    %v5408 = vpack.c.bf16 %v5154, %v5152
    %v5409 = vpack.c.bf16 %v5155, %v5153
    %v5410 = vpack.c.bf16 %v5158, %v5156
    %v5411 = vpack.c.bf16 %v5159, %v5157
    %v5412 = vpack.c.bf16 %v5162, %v5160
    %v5413 = vpack.c.bf16 %v5163, %v5161
    %v5414 = vpack.c.bf16 %v5166, %v5164
    %v5415 = vpack.c.bf16 %v5167, %v5165
    %v5416 = vpack.c.bf16 %v5170, %v5168
    %v5417 = vpack.c.bf16 %v5171, %v5169
    %v5418 = vpack.c.bf16 %v5174, %v5172
    %v5419 = vpack.c.bf16 %v5175, %v5173
    %v5420 = vpack.c.bf16 %v5178, %v5176
    %v5421 = vpack.c.bf16 %v5179, %v5177
    %v5422 = vpack.c.bf16 %v5182, %v5180
    %v5423 = vpack.c.bf16 %v5183, %v5181
    %v5424 = vpack.c.bf16 %v5186, %v5184
    %v5425 = vpack.c.bf16 %v5187, %v5185
    %v5426 = vpack.c.bf16 %v5190, %v5188
    %v5427 = vpack.c.bf16 %v5191, %v5189
    %v5428 = vpack.c.bf16 %v5194, %v5192
    %v5429 = vpack.c.bf16 %v5195, %v5193
    %v5430 = vpack.c.bf16 %v5198, %v5196
    %v5431 = vpack.c.bf16 %v5199, %v5197
    %v5432 = vpack.c.bf16 %v5202, %v5200
    %v5433 = vpack.c.bf16 %v5203, %v5201
    %v5434 = vpack.c.bf16 %v5206, %v5204
    %v5435 = vpack.c.bf16 %v5207, %v5205
    %v5436 = vpack.c.bf16 %v5210, %v5208
    %v5437 = vpack.c.bf16 %v5211, %v5209
    %v5438 = vpack.c.bf16 %v5214, %v5212
    %v5439 = vpack.c.bf16 %v5215, %v5213
    %v5440 = vpack.c.bf16 %v5218, %v5216
    %v5441 = vpack.c.bf16 %v5219, %v5217
    %v5442 = vpack.c.bf16 %v5222, %v5220
    %v5443 = vpack.c.bf16 %v5223, %v5221
    %v5444 = vpack.c.bf16 %v5226, %v5224
    %v5445 = vpack.c.bf16 %v5227, %v5225
    %v5446 = vpack.c.bf16 %v5230, %v5228
    %v5447 = vpack.c.bf16 %v5231, %v5229
    %v5448 = vpack.c.bf16 %v5234, %v5232
    %v5449 = vpack.c.bf16 %v5235, %v5233
    %v5450 = vpack.c.bf16 %v5238, %v5236
    %v5451 = vpack.c.bf16 %v5239, %v5237
    %v5452 = vpack.c.bf16 %v5242, %v5240
    %v5453 = vpack.c.bf16 %v5243, %v5241
    %v5454 = vpack.c.bf16 %v5246, %v5244
    %v5455 = vpack.c.bf16 %v5247, %v5245
    %v5456 = vpack.c.bf16 %v5250, %v5248
    %v5457 = vpack.c.bf16 %v5251, %v5249
    %v5458 = vpack.c.bf16 %v5254, %v5252
    %v5459 = vpack.c.bf16 %v5255, %v5253
    %v5460 = vpack.c.bf16 %v5258, %v5256
    %v5461 = vpack.c.bf16 %v5259, %v5257
    %v5462 = vpack.c.bf16 %v5262, %v5260
    %v5463 = vpack.c.bf16 %v5263, %v5261
    %v5464 = vpack.c.bf16 %v5266, %v5264
    %v5465 = vpack.c.bf16 %v5267, %v5265
    %v5466 = vpack.c.bf16 %v5270, %v5268
    %v5467 = vpack.c.bf16 %v5271, %v5269
    %v5468 = vpack.c.bf16 %v5274, %v5272
    %v5469 = vpack.c.bf16 %v5275, %v5273
    %v5470 = vpack.c.bf16 %v5278, %v5276
    %v5471 = vpack.c.bf16 %v5279, %v5277
    %v5472 = vpack.c.bf16 %v5282, %v5280
    %v5473 = vpack.c.bf16 %v5283, %v5281
    %v5474 = vpack.c.bf16 %v5286, %v5284
    %v5475 = vpack.c.bf16 %v5287, %v5285
    %v5476 = vpack.c.bf16 %v5290, %v5288
    %v5477 = vpack.c.bf16 %v5291, %v5289
    %v5478 = vpack.c.bf16 %v5294, %v5292
    %v5479 = vpack.c.bf16 %v5295, %v5293
    %v5480 = vpack.c.bf16 %v5298, %v5296
    %v5481 = vpack.c.bf16 %v5299, %v5297
    %v5482 = vpack.c.bf16 %v5302, %v5300
    %v5483 = vpack.c.bf16 %v5303, %v5301
    %v5484 = vpack.c.bf16 %v5306, %v5304
    %v5485 = vpack.c.bf16 %v5307, %v5305
    %v5486 = vpack.c.bf16 %v5310, %v5308
    %v5487 = vpack.c.bf16 %v5311, %v5309
    %v5488 = vpack.c.bf16 %v5314, %v5312
    %v5489 = vpack.c.bf16 %v5315, %v5313
    %v5490 = vpack.c.bf16 %v5318, %v5316
    %v5491 = vpack.c.bf16 %v5319, %v5317
    %v5492 = vpack.c.bf16 %v5322, %v5320
    %v5493 = vpack.c.bf16 %v5323, %v5321
    %v5494 = vpack.c.bf16 %v5326, %v5324
    %v5495 = vpack.c.bf16 %v5327, %v5325
    %v5496 = vpack.c.bf16 %v5330, %v5328
    %v5497 = vpack.c.bf16 %v5331, %v5329
    %v5498 = vpack.c.bf16 %v5334, %v5332
    %v5499 = vpack.c.bf16 %v5335, %v5333
    %v5500 = vpack.c.bf16 %v5338, %v5336
    %v5501 = vpack.c.bf16 %v5339, %v5337
    %v5502 = vpack.c.bf16 %v5342, %v5340
    %v5503 = vpack.c.bf16 %v5343, %v5341
    %v5504 = vpack.c.bf16 %v5346, %v5344
    %v5505 = vpack.c.bf16 %v5347, %v5345
    %v5506 = vpack.c.bf16 %v5350, %v5348
    %v5507 = vpack.c.bf16 %v5351, %v5349
    %v5508 = vpack.c.bf16 %v5354, %v5352
    %v5509 = vpack.c.bf16 %v5355, %v5353
    %v5510 = vpack.c.bf16 %v5358, %v5356
    %v5511 = vpack.c.bf16 %v5359, %v5357
    %v5512 = vpack.c.bf16 %v5362, %v5360
    %v5513 = vpack.c.bf16 %v5363, %v5361
    %v5514 = vpack.c.bf16 %v5366, %v5364
    %v5515 = vpack.c.bf16 %v5367, %v5365
    %v5516 = vpack.c.bf16 %v5370, %v5368
    %v5517 = vpack.c.bf16 %v5371, %v5369
    %v5518 = vpack.c.bf16 %v5374, %v5372
    %v5519 = vpack.c.bf16 %v5375, %v5373
    %v5520 = vpack.c.bf16 %v5378, %v5376
    %v5521 = vpack.c.bf16 %v5379, %v5377
    %v5522 = vpack.c.bf16 %v5382, %v5380
    %v5523 = vpack.c.bf16 %v5383, %v5381
    %v5524 = vpack.c.bf16 %v5386, %v5384
    %v5525 = vpack.c.bf16 %v5387, %v5385
    %v5526 = vpack.c.bf16 %v5390, %v5388
    %v5527 = vpack.c.bf16 %v5391, %v5389
    %v5528 = vpack.c.bf16 %v5394, %v5392
    %v5529 = vpack.c.bf16 %v5395, %v5393
    %v5530 = vpack.c.bf16 %v5398, %v5396
    %v5531 = vpack.c.bf16 %v5399, %v5397
    %v5532 = vpack.c.bf16 %v5402, %v5400
    %v5533 = vpack.c.bf16 %v5403, %v5401
    %v5534 = vpack.c.bf16 %v5406, %v5404
    %v5535 = vpack.c.bf16 %v5407, %v5405
    %v5536 = vld [vmem:[#allocation8] sm:$0xf]
    %v5537 = vld [vmem:[#allocation8 + $0x4] sm:$0xf]
    %v5538 = vld [vmem:[#allocation8 + $0x8] sm:$0xf]
    %v5539 = vld [vmem:[#allocation8 + $0xc] sm:$0xf]
    %v5540 = vld [vmem:[#allocation8 + $0x10] sm:$0xf]
    %v5541 = vld [vmem:[#allocation8 + $0x14] sm:$0xf]
    %v5542 = vld [vmem:[#allocation8 + $0x18] sm:$0xf]
    %v5543 = vld [vmem:[#allocation8 + $0x1c] sm:$0xf]
    %v5544 = vld [vmem:[#allocation8 + $0x20] sm:$0xf]
    %v5545 = vld [vmem:[#allocation8 + $0x24] sm:$0xf]
    %v5546 = vld [vmem:[#allocation8 + $0x28] sm:$0xf]
    %v5547 = vld [vmem:[#allocation8 + $0x2c] sm:$0xf]
    %v5548 = vld [vmem:[#allocation8 + $0x30] sm:$0xf]
    %v5549 = vld [vmem:[#allocation8 + $0x34] sm:$0xf]
    %v5550 = vld [vmem:[#allocation8 + $0x38] sm:$0xf]
    %v5551 = vld [vmem:[#allocation8 + $0x3c] sm:$0xf]
    %v5552 = vld [vmem:[#allocation8 + $0x40] sm:$0xf]
    %v5553 = vld [vmem:[#allocation8 + $0x44] sm:$0xf]
    %v5554 = vld [vmem:[#allocation8 + $0x48] sm:$0xf]
    %v5555 = vld [vmem:[#allocation8 + $0x4c] sm:$0xf]
    %v5556 = vld [vmem:[#allocation8 + $0x50] sm:$0xf]
    %v5557 = vld [vmem:[#allocation8 + $0x54] sm:$0xf]
    %v5558 = vld [vmem:[#allocation8 + $0x58] sm:$0xf]
    %v5559 = vld [vmem:[#allocation8 + $0x5c] sm:$0xf]
    %v5560 = vld [vmem:[#allocation8 + $0x60] sm:$0xf]
    %v5561 = vld [vmem:[#allocation8 + $0x64] sm:$0xf]
    %v5562 = vld [vmem:[#allocation8 + $0x68] sm:$0xf]
    %v5563 = vld [vmem:[#allocation8 + $0x6c] sm:$0xf]
    %v5564 = vld [vmem:[#allocation8 + $0x70] sm:$0xf]
    %v5565 = vld [vmem:[#allocation8 + $0x74] sm:$0xf]
    %v5566 = vld [vmem:[#allocation8 + $0x78] sm:$0xf]
    %v5567 = vld [vmem:[#allocation8 + $0x7c] sm:$0xf]
    %v5568 = vld [vmem:[%s6] sm:$0x1]
    %v5570 = vlaneseq
    %v5571 = vshrl.u32 %v5570, 7
    %v5572 = vsub.s32 0, %v5571
    %v5573 = vrot.slane %v5568, %v5572
    %v5607 = vunpack.c.l.b16 %v5536
    %v5608 = vunpack.c.l.b16 %v5537
    %v5609 = vunpack.c.l.b16 %v5538
    %v5610 = vunpack.c.l.b16 %v5539
    %v5611 = vunpack.c.l.b16 %v5540
    %v5612 = vunpack.c.l.b16 %v5541
    %v5613 = vunpack.c.l.b16 %v5542
    %v5614 = vunpack.c.l.b16 %v5543
    %v5615 = vunpack.c.l.b16 %v5544
    %v5616 = vunpack.c.l.b16 %v5545
    %v5617 = vunpack.c.l.b16 %v5546
    %v5618 = vunpack.c.l.b16 %v5547
    %v5619 = vunpack.c.l.b16 %v5548
    %v5620 = vunpack.c.l.b16 %v5549
    %v5621 = vunpack.c.l.b16 %v5550
    %v5622 = vunpack.c.l.b16 %v5551
    %v5623 = vunpack.c.l.b16 %v5552
    %v5624 = vunpack.c.l.b16 %v5553
    %v5625 = vunpack.c.l.b16 %v5554
    %v5626 = vunpack.c.l.b16 %v5555
    %v5627 = vunpack.c.l.b16 %v5556
    %v5628 = vunpack.c.l.b16 %v5557
    %v5629 = vunpack.c.l.b16 %v5558
    %v5630 = vunpack.c.l.b16 %v5559
    %v5631 = vunpack.c.l.b16 %v5560
    %v5632 = vunpack.c.l.b16 %v5561
    %v5633 = vunpack.c.l.b16 %v5562
    %v5634 = vunpack.c.l.b16 %v5563
    %v5635 = vunpack.c.l.b16 %v5564
    %v5636 = vunpack.c.l.b16 %v5565
    %v5637 = vunpack.c.l.b16 %v5566
    %v5638 = vunpack.c.l.b16 %v5567
    %v5639 = vpack.c.b16 %v5608, %v5607
    %v5640 = vpack.c.b16 %v5610, %v5609
    %v5641 = vpack.c.b16 %v5612, %v5611
    %v5642 = vpack.c.b16 %v5614, %v5613
    %v5643 = vpack.c.b16 %v5616, %v5615
    %v5644 = vpack.c.b16 %v5618, %v5617
    %v5645 = vpack.c.b16 %v5620, %v5619
    %v5646 = vpack.c.b16 %v5622, %v5621
    %v5647 = vpack.c.b16 %v5624, %v5623
    %v5648 = vpack.c.b16 %v5626, %v5625
    %v5649 = vpack.c.b16 %v5628, %v5627
    %v5650 = vpack.c.b16 %v5630, %v5629
    %v5651 = vpack.c.b16 %v5632, %v5631
    %v5652 = vpack.c.b16 %v5634, %v5633
    %v5653 = vpack.c.b16 %v5636, %v5635
    %v5654 = vpack.c.b16 %v5638, %v5637
    %5671 = vmatprep.subr.bf16.mxu0 0
    %5672 = vmatpush1.bf16.msra.mxu0 %v5639
    %5673 = vmatprep.subr.bf16.mxu0 0
    %5674 = vmatpush1.bf16.msra.mxu0 %v5640
    %5675 = vmatprep.subr.bf16.mxu0 0
    %5676 = vmatpush1.bf16.msra.mxu0 %v5641
    %5677 = vmatprep.subr.bf16.mxu0 0
    %5678 = vmatpush1.bf16.msra.mxu0 %v5642
    %5679 = vmatprep.subr.bf16.mxu0 0
    %5680 = vmatpush1.bf16.msra.mxu0 %v5643
    %5681 = vmatprep.subr.bf16.mxu0 0
    %5682 = vmatpush1.bf16.msra.mxu0 %v5644
    %5683 = vmatprep.subr.bf16.mxu0 0
    %5684 = vmatpush1.bf16.msra.mxu0 %v5645
    %5685 = vmatprep.subr.bf16.mxu0 0
    %5686 = vmatpush1.bf16.msra.mxu0 %v5646
    %5687 = vmatprep.subr.bf16.mxu0 0
    %5688 = vmatpush1.bf16.msra.mxu0 %v5647
    %5689 = vmatprep.subr.bf16.mxu0 0
    %5690 = vmatpush1.bf16.msra.mxu0 %v5648
    %5691 = vmatprep.subr.bf16.mxu0 0
    %5692 = vmatpush1.bf16.msra.mxu0 %v5649
    %5693 = vmatprep.subr.bf16.mxu0 0
    %5694 = vmatpush1.bf16.msra.mxu0 %v5650
    %5695 = vmatprep.subr.bf16.mxu0 0
    %5696 = vmatpush1.bf16.msra.mxu0 %v5651
    %5697 = vmatprep.subr.bf16.mxu0 0
    %5698 = vmatpush1.bf16.msra.mxu0 %v5652
    %5699 = vmatprep.subr.bf16.mxu0 0
    %5700 = vmatpush1.bf16.msra.mxu0 %v5653
    %5701 = vmatprep.subr.bf16.mxu0 0
    %5702 = vmatpush1.bf16.msra.mxu0 %v5654
    %5703 = vmatprep.mubr.bf16.mxu0 %v5409
    %5704 = vmatmul.mubr.bf16.gmra.mrb[0].mxu0 %v5408
    %v5705 = vpop.f32.mrb[0].mxu0
    %v5706 = vadd.f32 %v5573, %v5705
    %v5707 = vpop.f32.mrb[0].mxu0
    %v5708 = vpop.f32.mrb[0].mxu0
    %v5709 = vadd.f32 %v5573, %v5708
    %v5710 = vpop.f32.mrb[0].mxu0
    %5711 = vmatprep.mubr.bf16.mxu0 %v5411
    %5712 = vmatmul.mubr.bf16.gmra.mrb[0].mxu0 %v5410
    %v5713 = vpop.f32.mrb[0].mxu0
    %v5714 = vadd.f32 %v5573, %v5713
    %v5715 = vpop.f32.mrb[0].mxu0
    %v5716 = vpop.f32.mrb[0].mxu0
    %v5717 = vadd.f32 %v5573, %v5716
    %v5718 = vpop.f32.mrb[0].mxu0
    %5719 = vmatprep.mubr.bf16.mxu0 %v5413
    %5720 = vmatmul.mubr.bf16.gmra.mrb[0].mxu0 %v5412
    %v5721 = vpop.f32.mrb[0].mxu0
    %v5722 = vadd.f32 %v5573, %v5721
    %v5723 = vpop.f32.mrb[0].mxu0
    %v5724 = vpop.f32.mrb[0].mxu0
    %v5725 = vadd.f32 %v5573, %v5724
    %v5726 = vpop.f32.mrb[0].mxu0
    %5727 = vmatprep.mubr.bf16.mxu0 %v5415
    %5728 = vmatmul.mubr.bf16.gmra.mrb[0].mxu0 %v5414
    %v5729 = vpop.f32.mrb[0].mxu0
    %v5730 = vadd.f32 %v5573, %v5729
    %v5731 = vpop.f32.mrb[0].mxu0
    %v5732 = vpop.f32.mrb[0].mxu0
    %v5733 = vadd.f32 %v5573, %v5732
    %v5734 = vpop.f32.mrb[0].mxu0
    %5735 = vmatprep.mubr.bf16.mxu0 %v5417
    %5736 = vmatmul.mubr.bf16.gmra.mrb[0].mxu0 %v5416
    %v5737 = vpop.f32.mrb[0].mxu0
    %v5738 = vadd.f32 %v5573, %v5737
    %v5739 = vpop.f32.mrb[0].mxu0
    %v5740 = vpop.f32.mrb[0].mxu0
    %v5741 = vadd.f32 %v5573, %v5740
    %v5742 = vpop.f32.mrb[0].mxu0
    %5743 = vmatprep.mubr.bf16.mxu0 %v5419
    %5744 = vmatmul.mubr.bf16.gmra.mrb[0].mxu0 %v5418
    %v5745 = vpop.f32.mrb[0].mxu0
    %v5746 = vadd.f32 %v5573, %v5745
    %v5747 = vpop.f32.mrb[0].mxu0
    %v5748 = vpop.f32.mrb[0].mxu0
    %v5749 = vadd.f32 %v5573, %v5748
    %v5750 = vpop.f32.mrb[0].mxu0
    %5751 = vmatprep.mubr.bf16.mxu0 %v5421
    %5752 = vmatmul.mubr.bf16.gmra.mrb[0].mxu0 %v5420
    %v5753 = vpop.f32.mrb[0].mxu0
    %v5754 = vadd.f32 %v5573, %v5753
    %v5755 = vpop.f32.mrb[0].mxu0
    %v5756 = vpop.f32.mrb[0].mxu0
    %v5757 = vadd.f32 %v5573, %v5756
    %v5758 = vpop.f32.mrb[0].mxu0
    %5759 = vmatprep.mubr.bf16.mxu0 %v5423
    %5760 = vmatmul.mubr.bf16.gmra.mrb[0].mxu0 %v5422
    %v5761 = vpop.f32.mrb[0].mxu0
    %v5762 = vadd.f32 %v5573, %v5761
    %v5763 = vpop.f32.mrb[0].mxu0
    %v5764 = vpop.f32.mrb[0].mxu0
    %v5765 = vadd.f32 %v5573, %v5764
    %v5766 = vpop.f32.mrb[0].mxu0
    %5767 = vmatprep.mubr.bf16.mxu0 %v5425
    %5768 = vmatmul.mubr.bf16.gmra.mrb[0].mxu0 %v5424
    %v5769 = vpop.f32.mrb[0].mxu0
    %v5770 = vadd.f32 %v5573, %v5769
    %v5771 = vpop.f32.mrb[0].mxu0
    %v5772 = vpop.f32.mrb[0].mxu0
    %v5773 = vadd.f32 %v5573, %v5772
    %v5774 = vpop.f32.mrb[0].mxu0
    %5775 = vmatprep.mubr.bf16.mxu0 %v5427
    %5776 = vmatmul.mubr.bf16.gmra.mrb[0].mxu0 %v5426
    %v5777 = vpop.f32.mrb[0].mxu0
    %v5778 = vadd.f32 %v5573, %v5777
    %v5779 = vpop.f32.mrb[0].mxu0
    %v5780 = vpop.f32.mrb[0].mxu0
    %v5781 = vadd.f32 %v5573, %v5780
    %v5782 = vpop.f32.mrb[0].mxu0
    %5783 = vmatprep.mubr.bf16.mxu0 %v5429
    %5784 = vmatmul.mubr.bf16.gmra.mrb[0].mxu0 %v5428
    %v5785 = vpop.f32.mrb[0].mxu0
    %v5786 = vadd.f32 %v5573, %v5785
    %v5787 = vpop.f32.mrb[0].mxu0
    %v5788 = vpop.f32.mrb[0].mxu0
    %v5789 = vadd.f32 %v5573, %v5788
    %v5790 = vpop.f32.mrb[0].mxu0
    %5791 = vmatprep.mubr.bf16.mxu0 %v5431
    %5792 = vmatmul.mubr.bf16.gmra.mrb[0].mxu0 %v5430
    %v5793 = vpop.f32.mrb[0].mxu0
    %v5794 = vadd.f32 %v5573, %v5793
    %v5795 = vpop.f32.mrb[0].mxu0
    %v5796 = vpop.f32.mrb[0].mxu0
    %v5797 = vadd.f32 %v5573, %v5796
    %v5798 = vpop.f32.mrb[0].mxu0
    %5799 = vmatprep.mubr.bf16.mxu0 %v5433
    %5800 = vmatmul.mubr.bf16.gmra.mrb[0].mxu0 %v5432
    %v5801 = vpop.f32.mrb[0].mxu0
    %v5802 = vadd.f32 %v5573, %v5801
    %v5803 = vpop.f32.mrb[0].mxu0
    %v5804 = vpop.f32.mrb[0].mxu0
    %v5805 = vadd.f32 %v5573, %v5804
    %v5806 = vpop.f32.mrb[0].mxu0
    %5807 = vmatprep.mubr.bf16.mxu0 %v5435
    %5808 = vmatmul.mubr.bf16.gmra.mrb[0].mxu0 %v5434
    %v5809 = vpop.f32.mrb[0].mxu0
    %v5810 = vadd.f32 %v5573, %v5809
    %v5811 = vpop.f32.mrb[0].mxu0
    %v5812 = vpop.f32.mrb[0].mxu0
    %v5813 = vadd.f32 %v5573, %v5812
    %v5814 = vpop.f32.mrb[0].mxu0
    %5815 = vmatprep.mubr.bf16.mxu0 %v5437
    %5816 = vmatmul.mubr.bf16.gmra.mrb[0].mxu0 %v5436
    %v5817 = vpop.f32.mrb[0].mxu0
    %v5818 = vadd.f32 %v5573, %v5817
    %v5819 = vpop.f32.mrb[0].mxu0
    %v5820 = vpop.f32.mrb[0].mxu0
    %v5821 = vadd.f32 %v5573, %v5820
    %v5822 = vpop.f32.mrb[0].mxu0
    %5823 = vmatprep.mubr.bf16.mxu0 %v5439
    %5824 = vmatmul.mubr.bf16.gmra.mrb[0].mxu0 %v5438
    %v5825 = vpop.f32.mrb[0].mxu0
    %v5826 = vadd.f32 %v5573, %v5825
    %v5827 = vpop.f32.mrb[0].mxu0
    %v5828 = vpop.f32.mrb[0].mxu0
    %v5829 = vadd.f32 %v5573, %v5828
    %v5830 = vpop.f32.mrb[0].mxu0
    %5831 = vmatprep.mubr.bf16.mxu0 %v5441
    %5832 = vmatmul.mubr.bf16.gmra.mrb[0].mxu0 %v5440
    %v5833 = vpop.f32.mrb[0].mxu0
    %v5834 = vadd.f32 %v5573, %v5833
    %v5835 = vpop.f32.mrb[0].mxu0
    %v5836 = vpop.f32.mrb[0].mxu0
    %v5837 = vadd.f32 %v5573, %v5836
    %v5838 = vpop.f32.mrb[0].mxu0
    %5839 = vmatprep.mubr.bf16.mxu0 %v5443
    %5840 = vmatmul.mubr.bf16.gmra.mrb[0].mxu0 %v5442
    %v5841 = vpop.f32.mrb[0].mxu0
    %v5842 = vadd.f32 %v5573, %v5841
    %v5843 = vpop.f32.mrb[0].mxu0
    %v5844 = vpop.f32.mrb[0].mxu0
    %v5845 = vadd.f32 %v5573, %v5844
    %v5846 = vpop.f32.mrb[0].mxu0
    %5847 = vmatprep.mubr.bf16.mxu0 %v5445
    %5848 = vmatmul.mubr.bf16.gmra.mrb[0].mxu0 %v5444
    %v5849 = vpop.f32.mrb[0].mxu0
    %v5850 = vadd.f32 %v5573, %v5849
    %v5851 = vpop.f32.mrb[0].mxu0
    %v5852 = vpop.f32.mrb[0].mxu0
    %v5853 = vadd.f32 %v5573, %v5852
    %v5854 = vpop.f32.mrb[0].mxu0
    %5855 = vmatprep.mubr.bf16.mxu0 %v5447
    %5856 = vmatmul.mubr.bf16.gmra.mrb[0].mxu0 %v5446
    %v5857 = vpop.f32.mrb[0].mxu0
    %v5858 = vadd.f32 %v5573, %v5857
    %v5859 = vpop.f32.mrb[0].mxu0
    %v5860 = vpop.f32.mrb[0].mxu0
    %v5861 = vadd.f32 %v5573, %v5860
    %v5862 = vpop.f32.mrb[0].mxu0
    %5863 = vmatprep.mubr.bf16.mxu0 %v5449
    %5864 = vmatmul.mubr.bf16.gmra.mrb[0].mxu0 %v5448
    %v5865 = vpop.f32.mrb[0].mxu0
    %v5866 = vadd.f32 %v5573, %v5865
    %v5867 = vpop.f32.mrb[0].mxu0
    %v5868 = vpop.f32.mrb[0].mxu0
    %v5869 = vadd.f32 %v5573, %v5868
    %v5870 = vpop.f32.mrb[0].mxu0
    %5871 = vmatprep.mubr.bf16.mxu0 %v5451
    %5872 = vmatmul.mubr.bf16.gmra.mrb[0].mxu0 %v5450
    %v5873 = vpop.f32.mrb[0].mxu0
    %v5874 = vadd.f32 %v5573, %v5873
    %v5875 = vpop.f32.mrb[0].mxu0
    %v5876 = vpop.f32.mrb[0].mxu0
    %v5877 = vadd.f32 %v5573, %v5876
    %v5878 = vpop.f32.mrb[0].mxu0
    %5879 = vmatprep.mubr.bf16.mxu0 %v5453
    %5880 = vmatmul.mubr.bf16.gmra.mrb[0].mxu0 %v5452
    %v5881 = vpop.f32.mrb[0].mxu0
    %v5882 = vadd.f32 %v5573, %v5881
    %v5883 = vpop.f32.mrb[0].mxu0
    %v5884 = vpop.f32.mrb[0].mxu0
    %v5885 = vadd.f32 %v5573, %v5884
    %v5886 = vpop.f32.mrb[0].mxu0
    %5887 = vmatprep.mubr.bf16.mxu0 %v5455
    %5888 = vmatmul.mubr.bf16.gmra.mrb[0].mxu0 %v5454
    %v5889 = vpop.f32.mrb[0].mxu0
    %v5890 = vadd.f32 %v5573, %v5889
    %v5891 = vpop.f32.mrb[0].mxu0
    %v5892 = vpop.f32.mrb[0].mxu0
    %v5893 = vadd.f32 %v5573, %v5892
    %v5894 = vpop.f32.mrb[0].mxu0
    %5895 = vmatprep.mubr.bf16.mxu0 %v5457
    %5896 = vmatmul.mubr.bf16.gmra.mrb[0].mxu0 %v5456
    %v5897 = vpop.f32.mrb[0].mxu0
    %v5898 = vadd.f32 %v5573, %v5897
    %v5899 = vpop.f32.mrb[0].mxu0
    %v5900 = vpop.f32.mrb[0].mxu0
    %v5901 = vadd.f32 %v5573, %v5900
    %v5902 = vpop.f32.mrb[0].mxu0
    %5903 = vmatprep.mubr.bf16.mxu0 %v5459
    %5904 = vmatmul.mubr.bf16.gmra.mrb[0].mxu0 %v5458
    %v5905 = vpop.f32.mrb[0].mxu0
    %v5906 = vadd.f32 %v5573, %v5905
    %v5907 = vpop.f32.mrb[0].mxu0
    %v5908 = vpop.f32.mrb[0].mxu0
    %v5909 = vadd.f32 %v5573, %v5908
    %v5910 = vpop.f32.mrb[0].mxu0
    %5911 = vmatprep.mubr.bf16.mxu0 %v5461
    %5912 = vmatmul.mubr.bf16.gmra.mrb[0].mxu0 %v5460
    %v5913 = vpop.f32.mrb[0].mxu0
    %v5914 = vadd.f32 %v5573, %v5913
    %v5915 = vpop.f32.mrb[0].mxu0
    %v5916 = vpop.f32.mrb[0].mxu0
    %v5917 = vadd.f32 %v5573, %v5916
    %v5918 = vpop.f32.mrb[0].mxu0
    %5919 = vmatprep.mubr.bf16.mxu0 %v5463
    %5920 = vmatmul.mubr.bf16.gmra.mrb[0].mxu0 %v5462
    %v5921 = vpop.f32.mrb[0].mxu0
    %v5922 = vadd.f32 %v5573, %v5921
    %v5923 = vpop.f32.mrb[0].mxu0
    %v5924 = vpop.f32.mrb[0].mxu0
    %v5925 = vadd.f32 %v5573, %v5924
    %v5926 = vpop.f32.mrb[0].mxu0
    %5927 = vmatprep.mubr.bf16.mxu0 %v5465
    %5928 = vmatmul.mubr.bf16.gmra.mrb[0].mxu0 %v5464
    %v5929 = vpop.f32.mrb[0].mxu0
    %v5930 = vadd.f32 %v5573, %v5929
    %v5931 = vpop.f32.mrb[0].mxu0
    %v5932 = vpop.f32.mrb[0].mxu0
    %v5933 = vadd.f32 %v5573, %v5932
    %v5934 = vpop.f32.mrb[0].mxu0
    %5935 = vmatprep.mubr.bf16.mxu0 %v5467
    %5936 = vmatmul.mubr.bf16.gmra.mrb[0].mxu0 %v5466
    %v5937 = vpop.f32.mrb[0].mxu0
    %v5938 = vadd.f32 %v5573, %v5937
    %v5939 = vpop.f32.mrb[0].mxu0
    %v5940 = vpop.f32.mrb[0].mxu0
    %v5941 = vadd.f32 %v5573, %v5940
    %v5942 = vpop.f32.mrb[0].mxu0
    %5943 = vmatprep.mubr.bf16.mxu0 %v5469
    %5944 = vmatmul.mubr.bf16.gmra.mrb[0].mxu0 %v5468
    %v5945 = vpop.f32.mrb[0].mxu0
    %v5946 = vadd.f32 %v5573, %v5945
    %v5947 = vpop.f32.mrb[0].mxu0
    %v5948 = vpop.f32.mrb[0].mxu0
    %v5949 = vadd.f32 %v5573, %v5948
    %v5950 = vpop.f32.mrb[0].mxu0
    %5951 = vmatprep.mubr.bf16.mxu0 %v5471
    %5952 = vmatmul.mubr.bf16.gmra.mrb[0].mxu0 %v5470
    %v5953 = vpop.f32.mrb[0].mxu0
    %v5954 = vadd.f32 %v5573, %v5953
    %v5955 = vpop.f32.mrb[0].mxu0
    %v5956 = vpop.f32.mrb[0].mxu0
    %v5957 = vadd.f32 %v5573, %v5956
    %v5958 = vpop.f32.mrb[0].mxu0
    %5959 = vmatprep.mubr.bf16.mxu0 %v5473
    %5960 = vmatmul.mubr.bf16.gmra.mrb[0].mxu0 %v5472
    %v5961 = vpop.f32.mrb[0].mxu0
    %v5962 = vadd.f32 %v5573, %v5961
    %v5963 = vpop.f32.mrb[0].mxu0
    %v5964 = vpop.f32.mrb[0].mxu0
    %v5965 = vadd.f32 %v5573, %v5964
    %v5966 = vpop.f32.mrb[0].mxu0
    %5967 = vmatprep.mubr.bf16.mxu0 %v5475
    %5968 = vmatmul.mubr.bf16.gmra.mrb[0].mxu0 %v5474
    %v5969 = vpop.f32.mrb[0].mxu0
    %v5970 = vadd.f32 %v5573, %v5969
    %v5971 = vpop.f32.mrb[0].mxu0
    %v5972 = vpop.f32.mrb[0].mxu0
    %v5973 = vadd.f32 %v5573, %v5972
    %v5974 = vpop.f32.mrb[0].mxu0
    %5975 = vmatprep.mubr.bf16.mxu0 %v5477
    %5976 = vmatmul.mubr.bf16.gmra.mrb[0].mxu0 %v5476
    %v5977 = vpop.f32.mrb[0].mxu0
    %v5978 = vadd.f32 %v5573, %v5977
    %v5979 = vpop.f32.mrb[0].mxu0
    %v5980 = vpop.f32.mrb[0].mxu0
    %v5981 = vadd.f32 %v5573, %v5980
    %v5982 = vpop.f32.mrb[0].mxu0
    %5983 = vmatprep.mubr.bf16.mxu0 %v5479
    %5984 = vmatmul.mubr.bf16.gmra.mrb[0].mxu0 %v5478
    %v5985 = vpop.f32.mrb[0].mxu0
    %v5986 = vadd.f32 %v5573, %v5985
    %v5987 = vpop.f32.mrb[0].mxu0
    %v5988 = vpop.f32.mrb[0].mxu0
    %v5989 = vadd.f32 %v5573, %v5988
    %v5990 = vpop.f32.mrb[0].mxu0
    %5991 = vmatprep.mubr.bf16.mxu0 %v5481
    %5992 = vmatmul.mubr.bf16.gmra.mrb[0].mxu0 %v5480
    %v5993 = vpop.f32.mrb[0].mxu0
    %v5994 = vadd.f32 %v5573, %v5993
    %v5995 = vpop.f32.mrb[0].mxu0
    %v5996 = vpop.f32.mrb[0].mxu0
    %v5997 = vadd.f32 %v5573, %v5996
    %v5998 = vpop.f32.mrb[0].mxu0
    %5999 = vmatprep.mubr.bf16.mxu0 %v5483
    %6000 = vmatmul.mubr.bf16.gmra.mrb[0].mxu0 %v5482
    %v6001 = vpop.f32.mrb[0].mxu0
    %v6002 = vadd.f32 %v5573, %v6001
    %v6003 = vpop.f32.mrb[0].mxu0
    %v6004 = vpop.f32.mrb[0].mxu0
    %v6005 = vadd.f32 %v5573, %v6004
    %v6006 = vpop.f32.mrb[0].mxu0
    %6007 = vmatprep.mubr.bf16.mxu0 %v5485
    %6008 = vmatmul.mubr.bf16.gmra.mrb[0].mxu0 %v5484
    %v6009 = vpop.f32.mrb[0].mxu0
    %v6010 = vadd.f32 %v5573, %v6009
    %v6011 = vpop.f32.mrb[0].mxu0
    %v6012 = vpop.f32.mrb[0].mxu0
    %v6013 = vadd.f32 %v5573, %v6012
    %v6014 = vpop.f32.mrb[0].mxu0
    %6015 = vmatprep.mubr.bf16.mxu0 %v5487
    %6016 = vmatmul.mubr.bf16.gmra.mrb[0].mxu0 %v5486
    %v6017 = vpop.f32.mrb[0].mxu0
    %v6018 = vadd.f32 %v5573, %v6017
    %v6019 = vpop.f32.mrb[0].mxu0
    %v6020 = vpop.f32.mrb[0].mxu0
    %v6021 = vadd.f32 %v5573, %v6020
    %v6022 = vpop.f32.mrb[0].mxu0
    %6023 = vmatprep.mubr.bf16.mxu0 %v5489
    %6024 = vmatmul.mubr.bf16.gmra.mrb[0].mxu0 %v5488
    %v6025 = vpop.f32.mrb[0].mxu0
    %v6026 = vadd.f32 %v5573, %v6025
    %v6027 = vpop.f32.mrb[0].mxu0
    %v6028 = vpop.f32.mrb[0].mxu0
    %v6029 = vadd.f32 %v5573, %v6028
    %v6030 = vpop.f32.mrb[0].mxu0
    %6031 = vmatprep.mubr.bf16.mxu0 %v5491
    %6032 = vmatmul.mubr.bf16.gmra.mrb[0].mxu0 %v5490
    %v6033 = vpop.f32.mrb[0].mxu0
    %v6034 = vadd.f32 %v5573, %v6033
    %v6035 = vpop.f32.mrb[0].mxu0
    %v6036 = vpop.f32.mrb[0].mxu0
    %v6037 = vadd.f32 %v5573, %v6036
    %v6038 = vpop.f32.mrb[0].mxu0
    %6039 = vmatprep.mubr.bf16.mxu0 %v5493
    %6040 = vmatmul.mubr.bf16.gmra.mrb[0].mxu0 %v5492
    %v6041 = vpop.f32.mrb[0].mxu0
    %v6042 = vadd.f32 %v5573, %v6041
    %v6043 = vpop.f32.mrb[0].mxu0
    %v6044 = vpop.f32.mrb[0].mxu0
    %v6045 = vadd.f32 %v5573, %v6044
    %v6046 = vpop.f32.mrb[0].mxu0
    %6047 = vmatprep.mubr.bf16.mxu0 %v5495
    %6048 = vmatmul.mubr.bf16.gmra.mrb[0].mxu0 %v5494
    %v6049 = vpop.f32.mrb[0].mxu0
    %v6050 = vadd.f32 %v5573, %v6049
    %v6051 = vpop.f32.mrb[0].mxu0
    %v6052 = vpop.f32.mrb[0].mxu0
    %v6053 = vadd.f32 %v5573, %v6052
    %v6054 = vpop.f32.mrb[0].mxu0
    %6055 = vmatprep.mubr.bf16.mxu0 %v5497
    %6056 = vmatmul.mubr.bf16.gmra.mrb[0].mxu0 %v5496
    %v6057 = vpop.f32.mrb[0].mxu0
    %v6058 = vadd.f32 %v5573, %v6057
    %v6059 = vpop.f32.mrb[0].mxu0
    %v6060 = vpop.f32.mrb[0].mxu0
    %v6061 = vadd.f32 %v5573, %v6060
    %v6062 = vpop.f32.mrb[0].mxu0
    %6063 = vmatprep.mubr.bf16.mxu0 %v5499
    %6064 = vmatmul.mubr.bf16.gmra.mrb[0].mxu0 %v5498
    %v6065 = vpop.f32.mrb[0].mxu0
    %v6066 = vadd.f32 %v5573, %v6065
    %v6067 = vpop.f32.mrb[0].mxu0
    %v6068 = vpop.f32.mrb[0].mxu0
    %v6069 = vadd.f32 %v5573, %v6068
    %v6070 = vpop.f32.mrb[0].mxu0
    %6071 = vmatprep.mubr.bf16.mxu0 %v5501
    %6072 = vmatmul.mubr.bf16.gmra.mrb[0].mxu0 %v5500
    %v6073 = vpop.f32.mrb[0].mxu0
    %v6074 = vadd.f32 %v5573, %v6073
    %v6075 = vpop.f32.mrb[0].mxu0
    %v6076 = vpop.f32.mrb[0].mxu0
    %v6077 = vadd.f32 %v5573, %v6076
    %v6078 = vpop.f32.mrb[0].mxu0
    %6079 = vmatprep.mubr.bf16.mxu0 %v5503
    %6080 = vmatmul.mubr.bf16.gmra.mrb[0].mxu0 %v5502
    %v6081 = vpop.f32.mrb[0].mxu0
    %v6082 = vadd.f32 %v5573, %v6081
    %v6083 = vpop.f32.mrb[0].mxu0
    %v6084 = vpop.f32.mrb[0].mxu0
    %v6085 = vadd.f32 %v5573, %v6084
    %v6086 = vpop.f32.mrb[0].mxu0
    %6087 = vmatprep.mubr.bf16.mxu0 %v5505
    %6088 = vmatmul.mubr.bf16.gmra.mrb[0].mxu0 %v5504
    %v6089 = vpop.f32.mrb[0].mxu0
    %v6090 = vadd.f32 %v5573, %v6089
    %v6091 = vpop.f32.mrb[0].mxu0
    %v6092 = vpop.f32.mrb[0].mxu0
    %v6093 = vadd.f32 %v5573, %v6092
    %v6094 = vpop.f32.mrb[0].mxu0
    %6095 = vmatprep.mubr.bf16.mxu0 %v5507
    %6096 = vmatmul.mubr.bf16.gmra.mrb[0].mxu0 %v5506
    %v6097 = vpop.f32.mrb[0].mxu0
    %v6098 = vadd.f32 %v5573, %v6097
    %v6099 = vpop.f32.mrb[0].mxu0
    %v6100 = vpop.f32.mrb[0].mxu0
    %v6101 = vadd.f32 %v5573, %v6100
    %v6102 = vpop.f32.mrb[0].mxu0
    %6103 = vmatprep.mubr.bf16.mxu0 %v5509
    %6104 = vmatmul.mubr.bf16.gmra.mrb[0].mxu0 %v5508
    %v6105 = vpop.f32.mrb[0].mxu0
    %v6106 = vadd.f32 %v5573, %v6105
    %v6107 = vpop.f32.mrb[0].mxu0
    %v6108 = vpop.f32.mrb[0].mxu0
    %v6109 = vadd.f32 %v5573, %v6108
    %v6110 = vpop.f32.mrb[0].mxu0
    %6111 = vmatprep.mubr.bf16.mxu0 %v5511
    %6112 = vmatmul.mubr.bf16.gmra.mrb[0].mxu0 %v5510
    %v6113 = vpop.f32.mrb[0].mxu0
    %v6114 = vadd.f32 %v5573, %v6113
    %v6115 = vpop.f32.mrb[0].mxu0
    %v6116 = vpop.f32.mrb[0].mxu0
    %v6117 = vadd.f32 %v5573, %v6116
    %v6118 = vpop.f32.mrb[0].mxu0
    %6119 = vmatprep.mubr.bf16.mxu0 %v5513
    %6120 = vmatmul.mubr.bf16.gmra.mrb[0].mxu0 %v5512
    %v6121 = vpop.f32.mrb[0].mxu0
    %v6122 = vadd.f32 %v5573, %v6121
    %v6123 = vpop.f32.mrb[0].mxu0
    %v6124 = vpop.f32.mrb[0].mxu0
    %v6125 = vadd.f32 %v5573, %v6124
    %v6126 = vpop.f32.mrb[0].mxu0
    %6127 = vmatprep.mubr.bf16.mxu0 %v5515
    %6128 = vmatmul.mubr.bf16.gmra.mrb[0].mxu0 %v5514
    %v6129 = vpop.f32.mrb[0].mxu0
    %v6130 = vadd.f32 %v5573, %v6129
    %v6131 = vpop.f32.mrb[0].mxu0
    %v6132 = vpop.f32.mrb[0].mxu0
    %v6133 = vadd.f32 %v5573, %v6132
    %v6134 = vpop.f32.mrb[0].mxu0
    %6135 = vmatprep.mubr.bf16.mxu0 %v5517
    %6136 = vmatmul.mubr.bf16.gmra.mrb[0].mxu0 %v5516
    %v6137 = vpop.f32.mrb[0].mxu0
    %v6138 = vadd.f32 %v5573, %v6137
    %v6139 = vpop.f32.mrb[0].mxu0
    %v6140 = vpop.f32.mrb[0].mxu0
    %v6141 = vadd.f32 %v5573, %v6140
    %v6142 = vpop.f32.mrb[0].mxu0
    %6143 = vmatprep.mubr.bf16.mxu0 %v5519
    %6144 = vmatmul.mubr.bf16.gmra.mrb[0].mxu0 %v5518
    %v6145 = vpop.f32.mrb[0].mxu0
    %v6146 = vadd.f32 %v5573, %v6145
    %v6147 = vpop.f32.mrb[0].mxu0
    %v6148 = vpop.f32.mrb[0].mxu0
    %v6149 = vadd.f32 %v5573, %v6148
    %v6150 = vpop.f32.mrb[0].mxu0
    %6151 = vmatprep.mubr.bf16.mxu0 %v5521
    %6152 = vmatmul.mubr.bf16.gmra.mrb[0].mxu0 %v5520
    %v6153 = vpop.f32.mrb[0].mxu0
    %v6154 = vadd.f32 %v5573, %v6153
    %v6155 = vpop.f32.mrb[0].mxu0
    %v6156 = vpop.f32.mrb[0].mxu0
    %v6157 = vadd.f32 %v5573, %v6156
    %v6158 = vpop.f32.mrb[0].mxu0
    %6159 = vmatprep.mubr.bf16.mxu0 %v5523
    %6160 = vmatmul.mubr.bf16.gmra.mrb[0].mxu0 %v5522
    %v6161 = vpop.f32.mrb[0].mxu0
    %v6162 = vadd.f32 %v5573, %v6161
    %v6163 = vpop.f32.mrb[0].mxu0
    %v6164 = vpop.f32.mrb[0].mxu0
    %v6165 = vadd.f32 %v5573, %v6164
    %v6166 = vpop.f32.mrb[0].mxu0
    %6167 = vmatprep.mubr.bf16.mxu0 %v5525
    %6168 = vmatmul.mubr.bf16.gmra.mrb[0].mxu0 %v5524
    %v6169 = vpop.f32.mrb[0].mxu0
    %v6170 = vadd.f32 %v5573, %v6169
    %v6171 = vpop.f32.mrb[0].mxu0
    %v6172 = vpop.f32.mrb[0].mxu0
    %v6173 = vadd.f32 %v5573, %v6172
    %v6174 = vpop.f32.mrb[0].mxu0
    %6175 = vmatprep.mubr.bf16.mxu0 %v5527
    %6176 = vmatmul.mubr.bf16.gmra.mrb[0].mxu0 %v5526
    %v6177 = vpop.f32.mrb[0].mxu0
    %v6178 = vadd.f32 %v5573, %v6177
    %v6179 = vpop.f32.mrb[0].mxu0
    %v6180 = vpop.f32.mrb[0].mxu0
    %v6181 = vadd.f32 %v5573, %v6180
    %v6182 = vpop.f32.mrb[0].mxu0
    %6183 = vmatprep.mubr.bf16.mxu0 %v5529
    %6184 = vmatmul.mubr.bf16.gmra.mrb[0].mxu0 %v5528
    %v6185 = vpop.f32.mrb[0].mxu0
    %v6186 = vadd.f32 %v5573, %v6185
    %v6187 = vpop.f32.mrb[0].mxu0
    %v6188 = vpop.f32.mrb[0].mxu0
    %v6189 = vadd.f32 %v5573, %v6188
    %v6190 = vpop.f32.mrb[0].mxu0
    %6191 = vmatprep.mubr.bf16.mxu0 %v5531
    %6192 = vmatmul.mubr.bf16.gmra.mrb[0].mxu0 %v5530
    %v6193 = vpop.f32.mrb[0].mxu0
    %v6194 = vadd.f32 %v5573, %v6193
    %v6195 = vpop.f32.mrb[0].mxu0
    %v6196 = vpop.f32.mrb[0].mxu0
    %v6197 = vadd.f32 %v5573, %v6196
    %v6198 = vpop.f32.mrb[0].mxu0
    %6199 = vmatprep.mubr.bf16.mxu0 %v5533
    %6200 = vmatmul.mubr.bf16.gmra.mrb[0].mxu0 %v5532
    %v6201 = vpop.f32.mrb[0].mxu0
    %v6202 = vadd.f32 %v5573, %v6201
    %v6203 = vpop.f32.mrb[0].mxu0
    %v6204 = vpop.f32.mrb[0].mxu0
    %v6205 = vadd.f32 %v5573, %v6204
    %v6206 = vpop.f32.mrb[0].mxu0
    %6207 = vmatprep.mubr.bf16.mxu0 %v5535
    %6208 = vmatmul.mubr.bf16.gmra.mrb[0].mxu0 %v5534
    %v6209 = vpop.f32.mrb[0].mxu0
    %v6210 = vadd.f32 %v5573, %v6209
    %v6211 = vpop.f32.mrb[0].mxu0
    %v6212 = vpop.f32.mrb[0].mxu0
    %v6213 = vadd.f32 %v5573, %v6212
    %v6214 = vpop.f32.mrb[0].mxu0
    %6215 = vdwg.mxu0
    %v6216 = vmax.f32 %v5706, 0.0
    %v6217 = vmax.f32 %v5709, 0.0
    %v6218 = vmax.f32 %v5714, 0.0
    %v6219 = vmax.f32 %v5717, 0.0
    %v6220 = vmax.f32 %v5722, 0.0
    %v6221 = vmax.f32 %v5725, 0.0
    %v6222 = vmax.f32 %v5730, 0.0
    %v6223 = vmax.f32 %v5733, 0.0
    %v6224 = vmax.f32 %v5738, 0.0
    %v6225 = vmax.f32 %v5741, 0.0
    %v6226 = vmax.f32 %v5746, 0.0
    %v6227 = vmax.f32 %v5749, 0.0
    %v6228 = vmax.f32 %v5754, 0.0
    %v6229 = vmax.f32 %v5757, 0.0
    %v6230 = vmax.f32 %v5762, 0.0
    %v6231 = vmax.f32 %v5765, 0.0
    %v6232 = vmax.f32 %v5770, 0.0
    %v6233 = vmax.f32 %v5773, 0.0
    %v6234 = vmax.f32 %v5778, 0.0
    %v6235 = vmax.f32 %v5781, 0.0
    %v6236 = vmax.f32 %v5786, 0.0
    %v6237 = vmax.f32 %v5789, 0.0
    %v6238 = vmax.f32 %v5794, 0.0
    %v6239 = vmax.f32 %v5797, 0.0
    %v6240 = vmax.f32 %v5802, 0.0
    %v6241 = vmax.f32 %v5805, 0.0
    %v6242 = vmax.f32 %v5810, 0.0
    %v6243 = vmax.f32 %v5813, 0.0
    %v6244 = vmax.f32 %v5818, 0.0
    %v6245 = vmax.f32 %v5821, 0.0
    %v6246 = vmax.f32 %v5826, 0.0
    %v6247 = vmax.f32 %v5829, 0.0
    %v6248 = vmax.f32 %v5834, 0.0
    %v6249 = vmax.f32 %v5837, 0.0
    %v6250 = vmax.f32 %v5842, 0.0
    %v6251 = vmax.f32 %v5845, 0.0
    %v6252 = vmax.f32 %v5850, 0.0
    %v6253 = vmax.f32 %v5853, 0.0
    %v6254 = vmax.f32 %v5858, 0.0
    %v6255 = vmax.f32 %v5861, 0.0
    %v6256 = vmax.f32 %v5866, 0.0
    %v6257 = vmax.f32 %v5869, 0.0
    %v6258 = vmax.f32 %v5874, 0.0
    %v6259 = vmax.f32 %v5877, 0.0
    %v6260 = vmax.f32 %v5882, 0.0
    %v6261 = vmax.f32 %v5885, 0.0
    %v6262 = vmax.f32 %v5890, 0.0
    %v6263 = vmax.f32 %v5893, 0.0
    %v6264 = vmax.f32 %v5898, 0.0
    %v6265 = vmax.f32 %v5901, 0.0
    %v6266 = vmax.f32 %v5906, 0.0
    %v6267 = vmax.f32 %v5909, 0.0
    %v6268 = vmax.f32 %v5914, 0.0
    %v6269 = vmax.f32 %v5917, 0.0
    %v6270 = vmax.f32 %v5922, 0.0
    %v6271 = vmax.f32 %v5925, 0.0
    %v6272 = vmax.f32 %v5930, 0.0
    %v6273 = vmax.f32 %v5933, 0.0
    %v6274 = vmax.f32 %v5938, 0.0
    %v6275 = vmax.f32 %v5941, 0.0
    %v6276 = vmax.f32 %v5946, 0.0
    %v6277 = vmax.f32 %v5949, 0.0
    %v6278 = vmax.f32 %v5954, 0.0
    %v6279 = vmax.f32 %v5957, 0.0
    %v6280 = vmax.f32 %v5962, 0.0
    %v6281 = vmax.f32 %v5965, 0.0
    %v6282 = vmax.f32 %v5970, 0.0
    %v6283 = vmax.f32 %v5973, 0.0
    %v6284 = vmax.f32 %v5978, 0.0
    %v6285 = vmax.f32 %v5981, 0.0
    %v6286 = vmax.f32 %v5986, 0.0
    %v6287 = vmax.f32 %v5989, 0.0
    %v6288 = vmax.f32 %v5994, 0.0
    %v6289 = vmax.f32 %v5997, 0.0
    %v6290 = vmax.f32 %v6002, 0.0
    %v6291 = vmax.f32 %v6005, 0.0
    %v6292 = vmax.f32 %v6010, 0.0
    %v6293 = vmax.f32 %v6013, 0.0
    %v6294 = vmax.f32 %v6018, 0.0
    %v6295 = vmax.f32 %v6021, 0.0
    %v6296 = vmax.f32 %v6026, 0.0
    %v6297 = vmax.f32 %v6029, 0.0
    %v6298 = vmax.f32 %v6034, 0.0
    %v6299 = vmax.f32 %v6037, 0.0
    %v6300 = vmax.f32 %v6042, 0.0
    %v6301 = vmax.f32 %v6045, 0.0
    %v6302 = vmax.f32 %v6050, 0.0
    %v6303 = vmax.f32 %v6053, 0.0
    %v6304 = vmax.f32 %v6058, 0.0
    %v6305 = vmax.f32 %v6061, 0.0
    %v6306 = vmax.f32 %v6066, 0.0
    %v6307 = vmax.f32 %v6069, 0.0
    %v6308 = vmax.f32 %v6074, 0.0
    %v6309 = vmax.f32 %v6077, 0.0
    %v6310 = vmax.f32 %v6082, 0.0
    %v6311 = vmax.f32 %v6085, 0.0
    %v6312 = vmax.f32 %v6090, 0.0
    %v6313 = vmax.f32 %v6093, 0.0
    %v6314 = vmax.f32 %v6098, 0.0
    %v6315 = vmax.f32 %v6101, 0.0
    %v6316 = vmax.f32 %v6106, 0.0
    %v6317 = vmax.f32 %v6109, 0.0
    %v6318 = vmax.f32 %v6114, 0.0
    %v6319 = vmax.f32 %v6117, 0.0
    %v6320 = vmax.f32 %v6122, 0.0
    %v6321 = vmax.f32 %v6125, 0.0
    %v6322 = vmax.f32 %v6130, 0.0
    %v6323 = vmax.f32 %v6133, 0.0
    %v6324 = vmax.f32 %v6138, 0.0
    %v6325 = vmax.f32 %v6141, 0.0
    %v6326 = vmax.f32 %v6146, 0.0
    %v6327 = vmax.f32 %v6149, 0.0
    %v6328 = vmax.f32 %v6154, 0.0
    %v6329 = vmax.f32 %v6157, 0.0
    %v6330 = vmax.f32 %v6162, 0.0
    %v6331 = vmax.f32 %v6165, 0.0
    %v6332 = vmax.f32 %v6170, 0.0
    %v6333 = vmax.f32 %v6173, 0.0
    %v6334 = vmax.f32 %v6178, 0.0
    %v6335 = vmax.f32 %v6181, 0.0
    %v6336 = vmax.f32 %v6186, 0.0
    %v6337 = vmax.f32 %v6189, 0.0
    %v6338 = vmax.f32 %v6194, 0.0
    %v6339 = vmax.f32 %v6197, 0.0
    %v6340 = vmax.f32 %v6202, 0.0
    %v6341 = vmax.f32 %v6205, 0.0
    %v6342 = vmax.f32 %v6210, 0.0
    %v6343 = vmax.f32 %v6213, 0.0
    %v6344 = vpack.c.bf16 %v6217, %v6216
    %v6345 = vpack.c.bf16 %v6219, %v6218
    %v6346 = vpack.c.bf16 %v6221, %v6220
    %v6347 = vpack.c.bf16 %v6223, %v6222
    %v6348 = vpack.c.bf16 %v6225, %v6224
    %v6349 = vpack.c.bf16 %v6227, %v6226
    %v6350 = vpack.c.bf16 %v6229, %v6228
    %v6351 = vpack.c.bf16 %v6231, %v6230
    %v6352 = vpack.c.bf16 %v6233, %v6232
    %v6353 = vpack.c.bf16 %v6235, %v6234
    %v6354 = vpack.c.bf16 %v6237, %v6236
    %v6355 = vpack.c.bf16 %v6239, %v6238
    %v6356 = vpack.c.bf16 %v6241, %v6240
    %v6357 = vpack.c.bf16 %v6243, %v6242
    %v6358 = vpack.c.bf16 %v6245, %v6244
    %v6359 = vpack.c.bf16 %v6247, %v6246
    %v6360 = vpack.c.bf16 %v6249, %v6248
    %v6361 = vpack.c.bf16 %v6251, %v6250
    %v6362 = vpack.c.bf16 %v6253, %v6252
    %v6363 = vpack.c.bf16 %v6255, %v6254
    %v6364 = vpack.c.bf16 %v6257, %v6256
    %v6365 = vpack.c.bf16 %v6259, %v6258
    %v6366 = vpack.c.bf16 %v6261, %v6260
    %v6367 = vpack.c.bf16 %v6263, %v6262
    %v6368 = vpack.c.bf16 %v6265, %v6264
    %v6369 = vpack.c.bf16 %v6267, %v6266
    %v6370 = vpack.c.bf16 %v6269, %v6268
    %v6371 = vpack.c.bf16 %v6271, %v6270
    %v6372 = vpack.c.bf16 %v6273, %v6272
    %v6373 = vpack.c.bf16 %v6275, %v6274
    %v6374 = vpack.c.bf16 %v6277, %v6276
    %v6375 = vpack.c.bf16 %v6279, %v6278
    %v6376 = vpack.c.bf16 %v6281, %v6280
    %v6377 = vpack.c.bf16 %v6283, %v6282
    %v6378 = vpack.c.bf16 %v6285, %v6284
    %v6379 = vpack.c.bf16 %v6287, %v6286
    %v6380 = vpack.c.bf16 %v6289, %v6288
    %v6381 = vpack.c.bf16 %v6291, %v6290
    %v6382 = vpack.c.bf16 %v6293, %v6292
    %v6383 = vpack.c.bf16 %v6295, %v6294
    %v6384 = vpack.c.bf16 %v6297, %v6296
    %v6385 = vpack.c.bf16 %v6299, %v6298
    %v6386 = vpack.c.bf16 %v6301, %v6300
    %v6387 = vpack.c.bf16 %v6303, %v6302
    %v6388 = vpack.c.bf16 %v6305, %v6304
    %v6389 = vpack.c.bf16 %v6307, %v6306
    %v6390 = vpack.c.bf16 %v6309, %v6308
    %v6391 = vpack.c.bf16 %v6311, %v6310
    %v6392 = vpack.c.bf16 %v6313, %v6312
    %v6393 = vpack.c.bf16 %v6315, %v6314
    %v6394 = vpack.c.bf16 %v6317, %v6316
    %v6395 = vpack.c.bf16 %v6319, %v6318
    %v6396 = vpack.c.bf16 %v6321, %v6320
    %v6397 = vpack.c.bf16 %v6323, %v6322
    %v6398 = vpack.c.bf16 %v6325, %v6324
    %v6399 = vpack.c.bf16 %v6327, %v6326
    %v6400 = vpack.c.bf16 %v6329, %v6328
    %v6401 = vpack.c.bf16 %v6331, %v6330
    %v6402 = vpack.c.bf16 %v6333, %v6332
    %v6403 = vpack.c.bf16 %v6335, %v6334
    %v6404 = vpack.c.bf16 %v6337, %v6336
    %v6405 = vpack.c.bf16 %v6339, %v6338
    %v6406 = vpack.c.bf16 %v6341, %v6340
    %v6407 = vpack.c.bf16 %v6343, %v6342
    %v6408 = vld [vmem:[#allocation10] sm:$0xf]
    %v6409 = vld [vmem:[#allocation10 + $0x4] sm:$0xf]
    %v6410 = vld [vmem:[#allocation10 + $0x8] sm:$0xf]
    %v6411 = vld [vmem:[#allocation10 + $0xc] sm:$0xf]
    %v6412 = vld [vmem:[#allocation10 + $0x10] sm:$0xf]
    %v6413 = vld [vmem:[#allocation10 + $0x14] sm:$0xf]
    %v6414 = vld [vmem:[#allocation10 + $0x18] sm:$0xf]
    %v6415 = vld [vmem:[#allocation10 + $0x1c] sm:$0xf]
    %v6416 = vld [vmem:[#allocation10 + $0x20] sm:$0xf]
    %v6417 = vld [vmem:[#allocation10 + $0x24] sm:$0xf]
    %v6418 = vld [vmem:[#allocation10 + $0x28] sm:$0xf]
    %v6419 = vld [vmem:[#allocation10 + $0x2c] sm:$0xf]
    %v6420 = vld [vmem:[#allocation10 + $0x30] sm:$0xf]
    %v6421 = vld [vmem:[#allocation10 + $0x34] sm:$0xf]
    %v6422 = vld [vmem:[#allocation10 + $0x38] sm:$0xf]
    %v6423 = vld [vmem:[#allocation10 + $0x3c] sm:$0xf]
    %v6424 = vld [vmem:[%s8] sm:$0x1]
    %v6426 = vlaneseq
    %v6427 = vshrl.u32 %v6426, 7
    %v6428 = vsub.s32 0, %v6427
    %v6429 = vrot.slane %v6424, %v6428
    %v6447 = vunpack.c.l.b16 %v6408
    %v6448 = vunpack.c.l.b16 %v6409
    %v6449 = vunpack.c.l.b16 %v6410
    %v6450 = vunpack.c.l.b16 %v6411
    %v6451 = vunpack.c.l.b16 %v6412
    %v6452 = vunpack.c.l.b16 %v6413
    %v6453 = vunpack.c.l.b16 %v6414
    %v6454 = vunpack.c.l.b16 %v6415
    %v6455 = vunpack.c.l.b16 %v6416
    %v6456 = vunpack.c.l.b16 %v6417
    %v6457 = vunpack.c.l.b16 %v6418
    %v6458 = vunpack.c.l.b16 %v6419
    %v6459 = vunpack.c.l.b16 %v6420
    %v6460 = vunpack.c.l.b16 %v6421
    %v6461 = vunpack.c.l.b16 %v6422
    %v6462 = vunpack.c.l.b16 %v6423
    %v6463 = vpack.c.b16 %v6448, %v6447
    %v6464 = vpack.c.b16 %v6450, %v6449
    %v6465 = vpack.c.b16 %v6452, %v6451
    %v6466 = vpack.c.b16 %v6454, %v6453
    %v6467 = vpack.c.b16 %v6456, %v6455
    %v6468 = vpack.c.b16 %v6458, %v6457
    %v6469 = vpack.c.b16 %v6460, %v6459
    %v6470 = vpack.c.b16 %v6462, %v6461
    %6479 = vmatprep.subr.bf16.mxu0 0
    %6480 = vmatpush1.bf16.msra.mxu0 %v6463
    %6481 = vmatprep.subr.bf16.mxu0 0
    %6482 = vmatpush1.bf16.msra.mxu0 %v6464
    %6483 = vmatprep.subr.bf16.mxu0 0
    %6484 = vmatpush1.bf16.msra.mxu0 %v6465
    %6485 = vmatprep.subr.bf16.mxu0 0
    %6486 = vmatpush1.bf16.msra.mxu0 %v6466
    %6487 = vmatprep.subr.bf16.mxu0 0
    %6488 = vmatpush1.bf16.msra.mxu0 %v6467
    %6489 = vmatprep.subr.bf16.mxu0 0
    %6490 = vmatpush1.bf16.msra.mxu0 %v6468
    %6491 = vmatprep.subr.bf16.mxu0 0
    %6492 = vmatpush1.bf16.msra.mxu0 %v6469
    %6493 = vmatprep.subr.bf16.mxu0 0
    %6494 = vmatpush1.bf16.msra.mxu0 %v6470
    %6495 = vmatprep.subr.bf16.mxu0 0
    %6496 = vmatpush1.bf16.msra.mxu0 0
    %6497 = vmatprep.subr.bf16.mxu0 0
    %6498 = vmatpush1.bf16.msra.mxu0 0
    %6499 = vmatprep.subr.bf16.mxu0 0
    %6500 = vmatpush1.bf16.msra.mxu0 0
    %6501 = vmatprep.subr.bf16.mxu0 0
    %6502 = vmatpush1.bf16.msra.mxu0 0
    %6503 = vmatprep.subr.bf16.mxu0 0
    %6504 = vmatpush1.bf16.msra.mxu0 0
    %6505 = vmatprep.subr.bf16.mxu0 0
    %6506 = vmatpush1.bf16.msra.mxu0 0
    %6507 = vmatprep.subr.bf16.mxu0 0
    %6508 = vmatpush1.bf16.msra.mxu0 0
    %6509 = vmatprep.subr.bf16.mxu0 0
    %6510 = vmatpush1.bf16.msra.mxu0 0
    %6511 = vmatprep.mubr.bf16.mxu0 0
    %6512 = vmatmul.mubr.bf16.gmra.mrb[0].mxu0 %v6344
    %v6513 = vpop.f32.mrb[0].mxu0
    %v6514 = vadd.f32 %v6429, %v6513
    %v6515 = vpop.f32.mrb[0].mxu0
    %v6516 = vpop.f32.mrb[0].mxu0
    %v6517 = vadd.f32 %v6429, %v6516
    %v6518 = vpop.f32.mrb[0].mxu0
    %6519 = vmatprep.mubr.bf16.mxu0 0
    %6520 = vmatmul.mubr.bf16.gmra.mrb[0].mxu0 %v6345
    %v6521 = vpop.f32.mrb[0].mxu0
    %v6522 = vadd.f32 %v6429, %v6521
    %v6523 = vpop.f32.mrb[0].mxu0
    %v6524 = vpop.f32.mrb[0].mxu0
    %v6525 = vadd.f32 %v6429, %v6524
    %v6526 = vpop.f32.mrb[0].mxu0
    %6527 = vmatprep.mubr.bf16.mxu0 0
    %6528 = vmatmul.mubr.bf16.gmra.mrb[0].mxu0 %v6346
    %v6529 = vpop.f32.mrb[0].mxu0
    %v6530 = vadd.f32 %v6429, %v6529
    %v6531 = vpop.f32.mrb[0].mxu0
    %v6532 = vpop.f32.mrb[0].mxu0
    %v6533 = vadd.f32 %v6429, %v6532
    %v6534 = vpop.f32.mrb[0].mxu0
    %6535 = vmatprep.mubr.bf16.mxu0 0
    %6536 = vmatmul.mubr.bf16.gmra.mrb[0].mxu0 %v6347
    %v6537 = vpop.f32.mrb[0].mxu0
    %v6538 = vadd.f32 %v6429, %v6537
    %v6539 = vpop.f32.mrb[0].mxu0
    %v6540 = vpop.f32.mrb[0].mxu0
    %v6541 = vadd.f32 %v6429, %v6540
    %v6542 = vpop.f32.mrb[0].mxu0
    %6543 = vmatprep.mubr.bf16.mxu0 0
    %6544 = vmatmul.mubr.bf16.gmra.mrb[0].mxu0 %v6348
    %v6545 = vpop.f32.mrb[0].mxu0
    %v6546 = vadd.f32 %v6429, %v6545
    %v6547 = vpop.f32.mrb[0].mxu0
    %v6548 = vpop.f32.mrb[0].mxu0
    %v6549 = vadd.f32 %v6429, %v6548
    %v6550 = vpop.f32.mrb[0].mxu0
    %6551 = vmatprep.mubr.bf16.mxu0 0
    %6552 = vmatmul.mubr.bf16.gmra.mrb[0].mxu0 %v6349
    %v6553 = vpop.f32.mrb[0].mxu0
    %v6554 = vadd.f32 %v6429, %v6553
    %v6555 = vpop.f32.mrb[0].mxu0
    %v6556 = vpop.f32.mrb[0].mxu0
    %v6557 = vadd.f32 %v6429, %v6556
    %v6558 = vpop.f32.mrb[0].mxu0
    %6559 = vmatprep.mubr.bf16.mxu0 0
    %6560 = vmatmul.mubr.bf16.gmra.mrb[0].mxu0 %v6350
    %v6561 = vpop.f32.mrb[0].mxu0
    %v6562 = vadd.f32 %v6429, %v6561
    %v6563 = vpop.f32.mrb[0].mxu0
    %v6564 = vpop.f32.mrb[0].mxu0
    %v6565 = vadd.f32 %v6429, %v6564
    %v6566 = vpop.f32.mrb[0].mxu0
    %6567 = vmatprep.mubr.bf16.mxu0 0
    %6568 = vmatmul.mubr.bf16.gmra.mrb[0].mxu0 %v6351
    %v6569 = vpop.f32.mrb[0].mxu0
    %v6570 = vadd.f32 %v6429, %v6569
    %v6571 = vpop.f32.mrb[0].mxu0
    %v6572 = vpop.f32.mrb[0].mxu0
    %v6573 = vadd.f32 %v6429, %v6572
    %v6574 = vpop.f32.mrb[0].mxu0
    %6575 = vmatprep.mubr.bf16.mxu0 0
    %6576 = vmatmul.mubr.bf16.gmra.mrb[0].mxu0 %v6352
    %v6577 = vpop.f32.mrb[0].mxu0
    %v6578 = vadd.f32 %v6429, %v6577
    %v6579 = vpop.f32.mrb[0].mxu0
    %v6580 = vpop.f32.mrb[0].mxu0
    %v6581 = vadd.f32 %v6429, %v6580
    %v6582 = vpop.f32.mrb[0].mxu0
    %6583 = vmatprep.mubr.bf16.mxu0 0
    %6584 = vmatmul.mubr.bf16.gmra.mrb[0].mxu0 %v6353
    %v6585 = vpop.f32.mrb[0].mxu0
    %v6586 = vadd.f32 %v6429, %v6585
    %v6587 = vpop.f32.mrb[0].mxu0
    %v6588 = vpop.f32.mrb[0].mxu0
    %v6589 = vadd.f32 %v6429, %v6588
    %v6590 = vpop.f32.mrb[0].mxu0
    %6591 = vmatprep.mubr.bf16.mxu0 0
    %6592 = vmatmul.mubr.bf16.gmra.mrb[0].mxu0 %v6354
    %v6593 = vpop.f32.mrb[0].mxu0
    %v6594 = vadd.f32 %v6429, %v6593
    %v6595 = vpop.f32.mrb[0].mxu0
    %v6596 = vpop.f32.mrb[0].mxu0
    %v6597 = vadd.f32 %v6429, %v6596
    %v6598 = vpop.f32.mrb[0].mxu0
    %6599 = vmatprep.mubr.bf16.mxu0 0
    %6600 = vmatmul.mubr.bf16.gmra.mrb[0].mxu0 %v6355
    %v6601 = vpop.f32.mrb[0].mxu0
    %v6602 = vadd.f32 %v6429, %v6601
    %v6603 = vpop.f32.mrb[0].mxu0
    %v6604 = vpop.f32.mrb[0].mxu0
    %v6605 = vadd.f32 %v6429, %v6604
    %v6606 = vpop.f32.mrb[0].mxu0
    %6607 = vmatprep.mubr.bf16.mxu0 0
    %6608 = vmatmul.mubr.bf16.gmra.mrb[0].mxu0 %v6356
    %v6609 = vpop.f32.mrb[0].mxu0
    %v6610 = vadd.f32 %v6429, %v6609
    %v6611 = vpop.f32.mrb[0].mxu0
    %v6612 = vpop.f32.mrb[0].mxu0
    %v6613 = vadd.f32 %v6429, %v6612
    %v6614 = vpop.f32.mrb[0].mxu0
    %6615 = vmatprep.mubr.bf16.mxu0 0
    %6616 = vmatmul.mubr.bf16.gmra.mrb[0].mxu0 %v6357
    %v6617 = vpop.f32.mrb[0].mxu0
    %v6618 = vadd.f32 %v6429, %v6617
    %v6619 = vpop.f32.mrb[0].mxu0
    %v6620 = vpop.f32.mrb[0].mxu0
    %v6621 = vadd.f32 %v6429, %v6620
    %v6622 = vpop.f32.mrb[0].mxu0
    %6623 = vmatprep.mubr.bf16.mxu0 0
    %6624 = vmatmul.mubr.bf16.gmra.mrb[0].mxu0 %v6358
    %v6625 = vpop.f32.mrb[0].mxu0
    %v6626 = vadd.f32 %v6429, %v6625
    %v6627 = vpop.f32.mrb[0].mxu0
    %v6628 = vpop.f32.mrb[0].mxu0
    %v6629 = vadd.f32 %v6429, %v6628
    %v6630 = vpop.f32.mrb[0].mxu0
    %6631 = vmatprep.mubr.bf16.mxu0 0
    %6632 = vmatmul.mubr.bf16.gmra.mrb[0].mxu0 %v6359
    %v6633 = vpop.f32.mrb[0].mxu0
    %v6634 = vadd.f32 %v6429, %v6633
    %v6635 = vpop.f32.mrb[0].mxu0
    %v6636 = vpop.f32.mrb[0].mxu0
    %v6637 = vadd.f32 %v6429, %v6636
    %v6638 = vpop.f32.mrb[0].mxu0
    %6639 = vmatprep.mubr.bf16.mxu0 0
    %6640 = vmatmul.mubr.bf16.gmra.mrb[0].mxu0 %v6360
    %v6641 = vpop.f32.mrb[0].mxu0
    %v6642 = vadd.f32 %v6429, %v6641
    %v6643 = vpop.f32.mrb[0].mxu0
    %v6644 = vpop.f32.mrb[0].mxu0
    %v6645 = vadd.f32 %v6429, %v6644
    %v6646 = vpop.f32.mrb[0].mxu0
    %6647 = vmatprep.mubr.bf16.mxu0 0
    %6648 = vmatmul.mubr.bf16.gmra.mrb[0].mxu0 %v6361
    %v6649 = vpop.f32.mrb[0].mxu0
    %v6650 = vadd.f32 %v6429, %v6649
    %v6651 = vpop.f32.mrb[0].mxu0
    %v6652 = vpop.f32.mrb[0].mxu0
    %v6653 = vadd.f32 %v6429, %v6652
    %v6654 = vpop.f32.mrb[0].mxu0
    %6655 = vmatprep.mubr.bf16.mxu0 0
    %6656 = vmatmul.mubr.bf16.gmra.mrb[0].mxu0 %v6362
    %v6657 = vpop.f32.mrb[0].mxu0
    %v6658 = vadd.f32 %v6429, %v6657
    %v6659 = vpop.f32.mrb[0].mxu0
    %v6660 = vpop.f32.mrb[0].mxu0
    %v6661 = vadd.f32 %v6429, %v6660
    %v6662 = vpop.f32.mrb[0].mxu0
    %6663 = vmatprep.mubr.bf16.mxu0 0
    %6664 = vmatmul.mubr.bf16.gmra.mrb[0].mxu0 %v6363
    %v6665 = vpop.f32.mrb[0].mxu0
    %v6666 = vadd.f32 %v6429, %v6665
    %v6667 = vpop.f32.mrb[0].mxu0
    %v6668 = vpop.f32.mrb[0].mxu0
    %v6669 = vadd.f32 %v6429, %v6668
    %v6670 = vpop.f32.mrb[0].mxu0
    %6671 = vmatprep.mubr.bf16.mxu0 0
    %6672 = vmatmul.mubr.bf16.gmra.mrb[0].mxu0 %v6364
    %v6673 = vpop.f32.mrb[0].mxu0
    %v6674 = vadd.f32 %v6429, %v6673
    %v6675 = vpop.f32.mrb[0].mxu0
    %v6676 = vpop.f32.mrb[0].mxu0
    %v6677 = vadd.f32 %v6429, %v6676
    %v6678 = vpop.f32.mrb[0].mxu0
    %6679 = vmatprep.mubr.bf16.mxu0 0
    %6680 = vmatmul.mubr.bf16.gmra.mrb[0].mxu0 %v6365
    %v6681 = vpop.f32.mrb[0].mxu0
    %v6682 = vadd.f32 %v6429, %v6681
    %v6683 = vpop.f32.mrb[0].mxu0
    %v6684 = vpop.f32.mrb[0].mxu0
    %v6685 = vadd.f32 %v6429, %v6684
    %v6686 = vpop.f32.mrb[0].mxu0
    %6687 = vmatprep.mubr.bf16.mxu0 0
    %6688 = vmatmul.mubr.bf16.gmra.mrb[0].mxu0 %v6366
    %v6689 = vpop.f32.mrb[0].mxu0
    %v6690 = vadd.f32 %v6429, %v6689
    %v6691 = vpop.f32.mrb[0].mxu0
    %v6692 = vpop.f32.mrb[0].mxu0
    %v6693 = vadd.f32 %v6429, %v6692
    %v6694 = vpop.f32.mrb[0].mxu0
    %6695 = vmatprep.mubr.bf16.mxu0 0
    %6696 = vmatmul.mubr.bf16.gmra.mrb[0].mxu0 %v6367
    %v6697 = vpop.f32.mrb[0].mxu0
    %v6698 = vadd.f32 %v6429, %v6697
    %v6699 = vpop.f32.mrb[0].mxu0
    %v6700 = vpop.f32.mrb[0].mxu0
    %v6701 = vadd.f32 %v6429, %v6700
    %v6702 = vpop.f32.mrb[0].mxu0
    %6703 = vmatprep.mubr.bf16.mxu0 0
    %6704 = vmatmul.mubr.bf16.gmra.mrb[0].mxu0 %v6368
    %v6705 = vpop.f32.mrb[0].mxu0
    %v6706 = vadd.f32 %v6429, %v6705
    %v6707 = vpop.f32.mrb[0].mxu0
    %v6708 = vpop.f32.mrb[0].mxu0
    %v6709 = vadd.f32 %v6429, %v6708
    %v6710 = vpop.f32.mrb[0].mxu0
    %6711 = vmatprep.mubr.bf16.mxu0 0
    %6712 = vmatmul.mubr.bf16.gmra.mrb[0].mxu0 %v6369
    %v6713 = vpop.f32.mrb[0].mxu0
    %v6714 = vadd.f32 %v6429, %v6713
    %v6715 = vpop.f32.mrb[0].mxu0
    %v6716 = vpop.f32.mrb[0].mxu0
    %v6717 = vadd.f32 %v6429, %v6716
    %v6718 = vpop.f32.mrb[0].mxu0
    %6719 = vmatprep.mubr.bf16.mxu0 0
    %6720 = vmatmul.mubr.bf16.gmra.mrb[0].mxu0 %v6370
    %v6721 = vpop.f32.mrb[0].mxu0
    %v6722 = vadd.f32 %v6429, %v6721
    %v6723 = vpop.f32.mrb[0].mxu0
    %v6724 = vpop.f32.mrb[0].mxu0
    %v6725 = vadd.f32 %v6429, %v6724
    %v6726 = vpop.f32.mrb[0].mxu0
    %6727 = vmatprep.mubr.bf16.mxu0 0
    %6728 = vmatmul.mubr.bf16.gmra.mrb[0].mxu0 %v6371
    %v6729 = vpop.f32.mrb[0].mxu0
    %v6730 = vadd.f32 %v6429, %v6729
    %v6731 = vpop.f32.mrb[0].mxu0
    %v6732 = vpop.f32.mrb[0].mxu0
    %v6733 = vadd.f32 %v6429, %v6732
    %v6734 = vpop.f32.mrb[0].mxu0
    %6735 = vmatprep.mubr.bf16.mxu0 0
    %6736 = vmatmul.mubr.bf16.gmra.mrb[0].mxu0 %v6372
    %v6737 = vpop.f32.mrb[0].mxu0
    %v6738 = vadd.f32 %v6429, %v6737
    %v6739 = vpop.f32.mrb[0].mxu0
    %v6740 = vpop.f32.mrb[0].mxu0
    %v6741 = vadd.f32 %v6429, %v6740
    %v6742 = vpop.f32.mrb[0].mxu0
    %6743 = vmatprep.mubr.bf16.mxu0 0
    %6744 = vmatmul.mubr.bf16.gmra.mrb[0].mxu0 %v6373
    %v6745 = vpop.f32.mrb[0].mxu0
    %v6746 = vadd.f32 %v6429, %v6745
    %v6747 = vpop.f32.mrb[0].mxu0
    %v6748 = vpop.f32.mrb[0].mxu0
    %v6749 = vadd.f32 %v6429, %v6748
    %v6750 = vpop.f32.mrb[0].mxu0
    %6751 = vmatprep.mubr.bf16.mxu0 0
    %6752 = vmatmul.mubr.bf16.gmra.mrb[0].mxu0 %v6374
    %v6753 = vpop.f32.mrb[0].mxu0
    %v6754 = vadd.f32 %v6429, %v6753
    %v6755 = vpop.f32.mrb[0].mxu0
    %v6756 = vpop.f32.mrb[0].mxu0
    %v6757 = vadd.f32 %v6429, %v6756
    %v6758 = vpop.f32.mrb[0].mxu0
    %6759 = vmatprep.mubr.bf16.mxu0 0
    %6760 = vmatmul.mubr.bf16.gmra.mrb[0].mxu0 %v6375
    %v6761 = vpop.f32.mrb[0].mxu0
    %v6762 = vadd.f32 %v6429, %v6761
    %v6763 = vpop.f32.mrb[0].mxu0
    %v6764 = vpop.f32.mrb[0].mxu0
    %v6765 = vadd.f32 %v6429, %v6764
    %v6766 = vpop.f32.mrb[0].mxu0
    %6767 = vmatprep.mubr.bf16.mxu0 0
    %6768 = vmatmul.mubr.bf16.gmra.mrb[0].mxu0 %v6376
    %v6769 = vpop.f32.mrb[0].mxu0
    %v6770 = vadd.f32 %v6429, %v6769
    %v6771 = vpop.f32.mrb[0].mxu0
    %v6772 = vpop.f32.mrb[0].mxu0
    %v6773 = vadd.f32 %v6429, %v6772
    %v6774 = vpop.f32.mrb[0].mxu0
    %6775 = vmatprep.mubr.bf16.mxu0 0
    %6776 = vmatmul.mubr.bf16.gmra.mrb[0].mxu0 %v6377
    %v6777 = vpop.f32.mrb[0].mxu0
    %v6778 = vadd.f32 %v6429, %v6777
    %v6779 = vpop.f32.mrb[0].mxu0
    %v6780 = vpop.f32.mrb[0].mxu0
    %v6781 = vadd.f32 %v6429, %v6780
    %v6782 = vpop.f32.mrb[0].mxu0
    %6783 = vmatprep.mubr.bf16.mxu0 0
    %6784 = vmatmul.mubr.bf16.gmra.mrb[0].mxu0 %v6378
    %v6785 = vpop.f32.mrb[0].mxu0
    %v6786 = vadd.f32 %v6429, %v6785
    %v6787 = vpop.f32.mrb[0].mxu0
    %v6788 = vpop.f32.mrb[0].mxu0
    %v6789 = vadd.f32 %v6429, %v6788
    %v6790 = vpop.f32.mrb[0].mxu0
    %6791 = vmatprep.mubr.bf16.mxu0 0
    %6792 = vmatmul.mubr.bf16.gmra.mrb[0].mxu0 %v6379
    %v6793 = vpop.f32.mrb[0].mxu0
    %v6794 = vadd.f32 %v6429, %v6793
    %v6795 = vpop.f32.mrb[0].mxu0
    %v6796 = vpop.f32.mrb[0].mxu0
    %v6797 = vadd.f32 %v6429, %v6796
    %v6798 = vpop.f32.mrb[0].mxu0
    %6799 = vmatprep.mubr.bf16.mxu0 0
    %6800 = vmatmul.mubr.bf16.gmra.mrb[0].mxu0 %v6380
    %v6801 = vpop.f32.mrb[0].mxu0
    %v6802 = vadd.f32 %v6429, %v6801
    %v6803 = vpop.f32.mrb[0].mxu0
    %v6804 = vpop.f32.mrb[0].mxu0
    %v6805 = vadd.f32 %v6429, %v6804
    %v6806 = vpop.f32.mrb[0].mxu0
    %6807 = vmatprep.mubr.bf16.mxu0 0
    %6808 = vmatmul.mubr.bf16.gmra.mrb[0].mxu0 %v6381
    %v6809 = vpop.f32.mrb[0].mxu0
    %v6810 = vadd.f32 %v6429, %v6809
    %v6811 = vpop.f32.mrb[0].mxu0
    %v6812 = vpop.f32.mrb[0].mxu0
    %v6813 = vadd.f32 %v6429, %v6812
    %v6814 = vpop.f32.mrb[0].mxu0
    %6815 = vmatprep.mubr.bf16.mxu0 0
    %6816 = vmatmul.mubr.bf16.gmra.mrb[0].mxu0 %v6382
    %v6817 = vpop.f32.mrb[0].mxu0
    %v6818 = vadd.f32 %v6429, %v6817
    %v6819 = vpop.f32.mrb[0].mxu0
    %v6820 = vpop.f32.mrb[0].mxu0
    %v6821 = vadd.f32 %v6429, %v6820
    %v6822 = vpop.f32.mrb[0].mxu0
    %6823 = vmatprep.mubr.bf16.mxu0 0
    %6824 = vmatmul.mubr.bf16.gmra.mrb[0].mxu0 %v6383
    %v6825 = vpop.f32.mrb[0].mxu0
    %v6826 = vadd.f32 %v6429, %v6825
    %v6827 = vpop.f32.mrb[0].mxu0
    %v6828 = vpop.f32.mrb[0].mxu0
    %v6829 = vadd.f32 %v6429, %v6828
    %v6830 = vpop.f32.mrb[0].mxu0
    %6831 = vmatprep.mubr.bf16.mxu0 0
    %6832 = vmatmul.mubr.bf16.gmra.mrb[0].mxu0 %v6384
    %v6833 = vpop.f32.mrb[0].mxu0
    %v6834 = vadd.f32 %v6429, %v6833
    %v6835 = vpop.f32.mrb[0].mxu0
    %v6836 = vpop.f32.mrb[0].mxu0
    %v6837 = vadd.f32 %v6429, %v6836
    %v6838 = vpop.f32.mrb[0].mxu0
    %6839 = vmatprep.mubr.bf16.mxu0 0
    %6840 = vmatmul.mubr.bf16.gmra.mrb[0].mxu0 %v6385
    %v6841 = vpop.f32.mrb[0].mxu0
    %v6842 = vadd.f32 %v6429, %v6841
    %v6843 = vpop.f32.mrb[0].mxu0
    %v6844 = vpop.f32.mrb[0].mxu0
    %v6845 = vadd.f32 %v6429, %v6844
    %v6846 = vpop.f32.mrb[0].mxu0
    %6847 = vmatprep.mubr.bf16.mxu0 0
    %6848 = vmatmul.mubr.bf16.gmra.mrb[0].mxu0 %v6386
    %v6849 = vpop.f32.mrb[0].mxu0
    %v6850 = vadd.f32 %v6429, %v6849
    %v6851 = vpop.f32.mrb[0].mxu0
    %v6852 = vpop.f32.mrb[0].mxu0
    %v6853 = vadd.f32 %v6429, %v6852
    %v6854 = vpop.f32.mrb[0].mxu0
    %6855 = vmatprep.mubr.bf16.mxu0 0
    %6856 = vmatmul.mubr.bf16.gmra.mrb[0].mxu0 %v6387
    %v6857 = vpop.f32.mrb[0].mxu0
    %v6858 = vadd.f32 %v6429, %v6857
    %v6859 = vpop.f32.mrb[0].mxu0
    %v6860 = vpop.f32.mrb[0].mxu0
    %v6861 = vadd.f32 %v6429, %v6860
    %v6862 = vpop.f32.mrb[0].mxu0
    %6863 = vmatprep.mubr.bf16.mxu0 0
    %6864 = vmatmul.mubr.bf16.gmra.mrb[0].mxu0 %v6388
    %v6865 = vpop.f32.mrb[0].mxu0
    %v6866 = vadd.f32 %v6429, %v6865
    %v6867 = vpop.f32.mrb[0].mxu0
    %v6868 = vpop.f32.mrb[0].mxu0
    %v6869 = vadd.f32 %v6429, %v6868
    %v6870 = vpop.f32.mrb[0].mxu0
    %6871 = vmatprep.mubr.bf16.mxu0 0
    %6872 = vmatmul.mubr.bf16.gmra.mrb[0].mxu0 %v6389
    %v6873 = vpop.f32.mrb[0].mxu0
    %v6874 = vadd.f32 %v6429, %v6873
    %v6875 = vpop.f32.mrb[0].mxu0
    %v6876 = vpop.f32.mrb[0].mxu0
    %v6877 = vadd.f32 %v6429, %v6876
    %v6878 = vpop.f32.mrb[0].mxu0
    %6879 = vmatprep.mubr.bf16.mxu0 0
    %6880 = vmatmul.mubr.bf16.gmra.mrb[0].mxu0 %v6390
    %v6881 = vpop.f32.mrb[0].mxu0
    %v6882 = vadd.f32 %v6429, %v6881
    %v6883 = vpop.f32.mrb[0].mxu0
    %v6884 = vpop.f32.mrb[0].mxu0
    %v6885 = vadd.f32 %v6429, %v6884
    %v6886 = vpop.f32.mrb[0].mxu0
    %6887 = vmatprep.mubr.bf16.mxu0 0
    %6888 = vmatmul.mubr.bf16.gmra.mrb[0].mxu0 %v6391
    %v6889 = vpop.f32.mrb[0].mxu0
    %v6890 = vadd.f32 %v6429, %v6889
    %v6891 = vpop.f32.mrb[0].mxu0
    %v6892 = vpop.f32.mrb[0].mxu0
    %v6893 = vadd.f32 %v6429, %v6892
    %v6894 = vpop.f32.mrb[0].mxu0
    %6895 = vmatprep.mubr.bf16.mxu0 0
    %6896 = vmatmul.mubr.bf16.gmra.mrb[0].mxu0 %v6392
    %v6897 = vpop.f32.mrb[0].mxu0
    %v6898 = vadd.f32 %v6429, %v6897
    %v6899 = vpop.f32.mrb[0].mxu0
    %v6900 = vpop.f32.mrb[0].mxu0
    %v6901 = vadd.f32 %v6429, %v6900
    %v6902 = vpop.f32.mrb[0].mxu0
    %6903 = vmatprep.mubr.bf16.mxu0 0
    %6904 = vmatmul.mubr.bf16.gmra.mrb[0].mxu0 %v6393
    %v6905 = vpop.f32.mrb[0].mxu0
    %v6906 = vadd.f32 %v6429, %v6905
    %v6907 = vpop.f32.mrb[0].mxu0
    %v6908 = vpop.f32.mrb[0].mxu0
    %v6909 = vadd.f32 %v6429, %v6908
    %v6910 = vpop.f32.mrb[0].mxu0
    %6911 = vmatprep.mubr.bf16.mxu0 0
    %6912 = vmatmul.mubr.bf16.gmra.mrb[0].mxu0 %v6394
    %v6913 = vpop.f32.mrb[0].mxu0
    %v6914 = vadd.f32 %v6429, %v6913
    %v6915 = vpop.f32.mrb[0].mxu0
    %v6916 = vpop.f32.mrb[0].mxu0
    %v6917 = vadd.f32 %v6429, %v6916
    %v6918 = vpop.f32.mrb[0].mxu0
    %6919 = vmatprep.mubr.bf16.mxu0 0
    %6920 = vmatmul.mubr.bf16.gmra.mrb[0].mxu0 %v6395
    %v6921 = vpop.f32.mrb[0].mxu0
    %v6922 = vadd.f32 %v6429, %v6921
    %v6923 = vpop.f32.mrb[0].mxu0
    %v6924 = vpop.f32.mrb[0].mxu0
    %v6925 = vadd.f32 %v6429, %v6924
    %v6926 = vpop.f32.mrb[0].mxu0
    %6927 = vmatprep.mubr.bf16.mxu0 0
    %6928 = vmatmul.mubr.bf16.gmra.mrb[0].mxu0 %v6396
    %v6929 = vpop.f32.mrb[0].mxu0
    %v6930 = vadd.f32 %v6429, %v6929
    %v6931 = vpop.f32.mrb[0].mxu0
    %v6932 = vpop.f32.mrb[0].mxu0
    %v6933 = vadd.f32 %v6429, %v6932
    %v6934 = vpop.f32.mrb[0].mxu0
    %6935 = vmatprep.mubr.bf16.mxu0 0
    %6936 = vmatmul.mubr.bf16.gmra.mrb[0].mxu0 %v6397
    %v6937 = vpop.f32.mrb[0].mxu0
    %v6938 = vadd.f32 %v6429, %v6937
    %v6939 = vpop.f32.mrb[0].mxu0
    %v6940 = vpop.f32.mrb[0].mxu0
    %v6941 = vadd.f32 %v6429, %v6940
    %v6942 = vpop.f32.mrb[0].mxu0
    %6943 = vmatprep.mubr.bf16.mxu0 0
    %6944 = vmatmul.mubr.bf16.gmra.mrb[0].mxu0 %v6398
    %v6945 = vpop.f32.mrb[0].mxu0
    %v6946 = vadd.f32 %v6429, %v6945
    %v6947 = vpop.f32.mrb[0].mxu0
    %v6948 = vpop.f32.mrb[0].mxu0
    %v6949 = vadd.f32 %v6429, %v6948
    %v6950 = vpop.f32.mrb[0].mxu0
    %6951 = vmatprep.mubr.bf16.mxu0 0
    %6952 = vmatmul.mubr.bf16.gmra.mrb[0].mxu0 %v6399
    %v6953 = vpop.f32.mrb[0].mxu0
    %v6954 = vadd.f32 %v6429, %v6953
    %v6955 = vpop.f32.mrb[0].mxu0
    %v6956 = vpop.f32.mrb[0].mxu0
    %v6957 = vadd.f32 %v6429, %v6956
    %v6958 = vpop.f32.mrb[0].mxu0
    %6959 = vmatprep.mubr.bf16.mxu0 0
    %6960 = vmatmul.mubr.bf16.gmra.mrb[0].mxu0 %v6400
    %v6961 = vpop.f32.mrb[0].mxu0
    %v6962 = vadd.f32 %v6429, %v6961
    %v6963 = vpop.f32.mrb[0].mxu0
    %v6964 = vpop.f32.mrb[0].mxu0
    %v6965 = vadd.f32 %v6429, %v6964
    %v6966 = vpop.f32.mrb[0].mxu0
    %6967 = vmatprep.mubr.bf16.mxu0 0
    %6968 = vmatmul.mubr.bf16.gmra.mrb[0].mxu0 %v6401
    %v6969 = vpop.f32.mrb[0].mxu0
    %v6970 = vadd.f32 %v6429, %v6969
    %v6971 = vpop.f32.mrb[0].mxu0
    %v6972 = vpop.f32.mrb[0].mxu0
    %v6973 = vadd.f32 %v6429, %v6972
    %v6974 = vpop.f32.mrb[0].mxu0
    %6975 = vmatprep.mubr.bf16.mxu0 0
    %6976 = vmatmul.mubr.bf16.gmra.mrb[0].mxu0 %v6402
    %v6977 = vpop.f32.mrb[0].mxu0
    %v6978 = vadd.f32 %v6429, %v6977
    %v6979 = vpop.f32.mrb[0].mxu0
    %v6980 = vpop.f32.mrb[0].mxu0
    %v6981 = vadd.f32 %v6429, %v6980
    %v6982 = vpop.f32.mrb[0].mxu0
    %6983 = vmatprep.mubr.bf16.mxu0 0
    %6984 = vmatmul.mubr.bf16.gmra.mrb[0].mxu0 %v6403
    %v6985 = vpop.f32.mrb[0].mxu0
    %v6986 = vadd.f32 %v6429, %v6985
    %v6987 = vpop.f32.mrb[0].mxu0
    %v6988 = vpop.f32.mrb[0].mxu0
    %v6989 = vadd.f32 %v6429, %v6988
    %v6990 = vpop.f32.mrb[0].mxu0
    %6991 = vmatprep.mubr.bf16.mxu0 0
    %6992 = vmatmul.mubr.bf16.gmra.mrb[0].mxu0 %v6404
    %v6993 = vpop.f32.mrb[0].mxu0
    %v6994 = vadd.f32 %v6429, %v6993
    %v6995 = vpop.f32.mrb[0].mxu0
    %v6996 = vpop.f32.mrb[0].mxu0
    %v6997 = vadd.f32 %v6429, %v6996
    %v6998 = vpop.f32.mrb[0].mxu0
    %6999 = vmatprep.mubr.bf16.mxu0 0
    %7000 = vmatmul.mubr.bf16.gmra.mrb[0].mxu0 %v6405
    %v7001 = vpop.f32.mrb[0].mxu0
    %v7002 = vadd.f32 %v6429, %v7001
    %v7003 = vpop.f32.mrb[0].mxu0
    %v7004 = vpop.f32.mrb[0].mxu0
    %v7005 = vadd.f32 %v6429, %v7004
    %v7006 = vpop.f32.mrb[0].mxu0
    %7007 = vmatprep.mubr.bf16.mxu0 0
    %7008 = vmatmul.mubr.bf16.gmra.mrb[0].mxu0 %v6406
    %v7009 = vpop.f32.mrb[0].mxu0
    %v7010 = vadd.f32 %v6429, %v7009
    %v7011 = vpop.f32.mrb[0].mxu0
    %v7012 = vpop.f32.mrb[0].mxu0
    %v7013 = vadd.f32 %v6429, %v7012
    %v7014 = vpop.f32.mrb[0].mxu0
    %7015 = vmatprep.mubr.bf16.mxu0 0
    %7016 = vmatmul.mubr.bf16.gmra.mrb[0].mxu0 %v6407
    %v7017 = vpop.f32.mrb[0].mxu0
    %v7018 = vadd.f32 %v6429, %v7017
    %v7019 = vpop.f32.mrb[0].mxu0
    %v7020 = vpop.f32.mrb[0].mxu0
    %v7021 = vadd.f32 %v6429, %v7020
    %v7022 = vpop.f32.mrb[0].mxu0
    %7023 = vdwg.mxu0
    %v7024 = vmax.f32 %v6514, 0.0
    %v7025 = vmax.f32 %v6517, 0.0
    %v7026 = vmax.f32 %v6522, 0.0
    %v7027 = vmax.f32 %v6525, 0.0
    %v7028 = vmax.f32 %v6530, 0.0
    %v7029 = vmax.f32 %v6533, 0.0
    %v7030 = vmax.f32 %v6538, 0.0
    %v7031 = vmax.f32 %v6541, 0.0
    %v7032 = vmax.f32 %v6546, 0.0
    %v7033 = vmax.f32 %v6549, 0.0
    %v7034 = vmax.f32 %v6554, 0.0
    %v7035 = vmax.f32 %v6557, 0.0
    %v7036 = vmax.f32 %v6562, 0.0
    %v7037 = vmax.f32 %v6565, 0.0
    %v7038 = vmax.f32 %v6570, 0.0
    %v7039 = vmax.f32 %v6573, 0.0
    %v7040 = vmax.f32 %v6578, 0.0
    %v7041 = vmax.f32 %v6581, 0.0
    %v7042 = vmax.f32 %v6586, 0.0
    %v7043 = vmax.f32 %v6589, 0.0
    %v7044 = vmax.f32 %v6594, 0.0
    %v7045 = vmax.f32 %v6597, 0.0
    %v7046 = vmax.f32 %v6602, 0.0
    %v7047 = vmax.f32 %v6605, 0.0
    %v7048 = vmax.f32 %v6610, 0.0
    %v7049 = vmax.f32 %v6613, 0.0
    %v7050 = vmax.f32 %v6618, 0.0
    %v7051 = vmax.f32 %v6621, 0.0
    %v7052 = vmax.f32 %v6626, 0.0
    %v7053 = vmax.f32 %v6629, 0.0
    %v7054 = vmax.f32 %v6634, 0.0
    %v7055 = vmax.f32 %v6637, 0.0
    %v7056 = vmax.f32 %v6642, 0.0
    %v7057 = vmax.f32 %v6645, 0.0
    %v7058 = vmax.f32 %v6650, 0.0
    %v7059 = vmax.f32 %v6653, 0.0
    %v7060 = vmax.f32 %v6658, 0.0
    %v7061 = vmax.f32 %v6661, 0.0
    %v7062 = vmax.f32 %v6666, 0.0
    %v7063 = vmax.f32 %v6669, 0.0
    %v7064 = vmax.f32 %v6674, 0.0
    %v7065 = vmax.f32 %v6677, 0.0
    %v7066 = vmax.f32 %v6682, 0.0
    %v7067 = vmax.f32 %v6685, 0.0
    %v7068 = vmax.f32 %v6690, 0.0
    %v7069 = vmax.f32 %v6693, 0.0
    %v7070 = vmax.f32 %v6698, 0.0
    %v7071 = vmax.f32 %v6701, 0.0
    %v7072 = vmax.f32 %v6706, 0.0
    %v7073 = vmax.f32 %v6709, 0.0
    %v7074 = vmax.f32 %v6714, 0.0
    %v7075 = vmax.f32 %v6717, 0.0
    %v7076 = vmax.f32 %v6722, 0.0
    %v7077 = vmax.f32 %v6725, 0.0
    %v7078 = vmax.f32 %v6730, 0.0
    %v7079 = vmax.f32 %v6733, 0.0
    %v7080 = vmax.f32 %v6738, 0.0
    %v7081 = vmax.f32 %v6741, 0.0
    %v7082 = vmax.f32 %v6746, 0.0
    %v7083 = vmax.f32 %v6749, 0.0
    %v7084 = vmax.f32 %v6754, 0.0
    %v7085 = vmax.f32 %v6757, 0.0
    %v7086 = vmax.f32 %v6762, 0.0
    %v7087 = vmax.f32 %v6765, 0.0
    %v7088 = vmax.f32 %v6770, 0.0
    %v7089 = vmax.f32 %v6773, 0.0
    %v7090 = vmax.f32 %v6778, 0.0
    %v7091 = vmax.f32 %v6781, 0.0
    %v7092 = vmax.f32 %v6786, 0.0
    %v7093 = vmax.f32 %v6789, 0.0
    %v7094 = vmax.f32 %v6794, 0.0
    %v7095 = vmax.f32 %v6797, 0.0
    %v7096 = vmax.f32 %v6802, 0.0
    %v7097 = vmax.f32 %v6805, 0.0
    %v7098 = vmax.f32 %v6810, 0.0
    %v7099 = vmax.f32 %v6813, 0.0
    %v7100 = vmax.f32 %v6818, 0.0
    %v7101 = vmax.f32 %v6821, 0.0
    %v7102 = vmax.f32 %v6826, 0.0
    %v7103 = vmax.f32 %v6829, 0.0
    %v7104 = vmax.f32 %v6834, 0.0
    %v7105 = vmax.f32 %v6837, 0.0
    %v7106 = vmax.f32 %v6842, 0.0
    %v7107 = vmax.f32 %v6845, 0.0
    %v7108 = vmax.f32 %v6850, 0.0
    %v7109 = vmax.f32 %v6853, 0.0
    %v7110 = vmax.f32 %v6858, 0.0
    %v7111 = vmax.f32 %v6861, 0.0
    %v7112 = vmax.f32 %v6866, 0.0
    %v7113 = vmax.f32 %v6869, 0.0
    %v7114 = vmax.f32 %v6874, 0.0
    %v7115 = vmax.f32 %v6877, 0.0
    %v7116 = vmax.f32 %v6882, 0.0
    %v7117 = vmax.f32 %v6885, 0.0
    %v7118 = vmax.f32 %v6890, 0.0
    %v7119 = vmax.f32 %v6893, 0.0
    %v7120 = vmax.f32 %v6898, 0.0
    %v7121 = vmax.f32 %v6901, 0.0
    %v7122 = vmax.f32 %v6906, 0.0
    %v7123 = vmax.f32 %v6909, 0.0
    %v7124 = vmax.f32 %v6914, 0.0
    %v7125 = vmax.f32 %v6917, 0.0
    %v7126 = vmax.f32 %v6922, 0.0
    %v7127 = vmax.f32 %v6925, 0.0
    %v7128 = vmax.f32 %v6930, 0.0
    %v7129 = vmax.f32 %v6933, 0.0
    %v7130 = vmax.f32 %v6938, 0.0
    %v7131 = vmax.f32 %v6941, 0.0
    %v7132 = vmax.f32 %v6946, 0.0
    %v7133 = vmax.f32 %v6949, 0.0
    %v7134 = vmax.f32 %v6954, 0.0
    %v7135 = vmax.f32 %v6957, 0.0
    %v7136 = vmax.f32 %v6962, 0.0
    %v7137 = vmax.f32 %v6965, 0.0
    %v7138 = vmax.f32 %v6970, 0.0
    %v7139 = vmax.f32 %v6973, 0.0
    %v7140 = vmax.f32 %v6978, 0.0
    %v7141 = vmax.f32 %v6981, 0.0
    %v7142 = vmax.f32 %v6986, 0.0
    %v7143 = vmax.f32 %v6989, 0.0
    %v7144 = vmax.f32 %v6994, 0.0
    %v7145 = vmax.f32 %v6997, 0.0
    %v7146 = vmax.f32 %v7002, 0.0
    %v7147 = vmax.f32 %v7005, 0.0
    %v7148 = vmax.f32 %v7010, 0.0
    %v7149 = vmax.f32 %v7013, 0.0
    %v7150 = vmax.f32 %v7018, 0.0
    %v7151 = vmax.f32 %v7021, 0.0
    %v7152 = vpack.c.bf16 %v7025, %v7024
    %v7153 = vpack.c.bf16 %v7027, %v7026
    %v7154 = vpack.c.bf16 %v7029, %v7028
    %v7155 = vpack.c.bf16 %v7031, %v7030
    %v7156 = vpack.c.bf16 %v7033, %v7032
    %v7157 = vpack.c.bf16 %v7035, %v7034
    %v7158 = vpack.c.bf16 %v7037, %v7036
    %v7159 = vpack.c.bf16 %v7039, %v7038
    %v7160 = vpack.c.bf16 %v7041, %v7040
    %v7161 = vpack.c.bf16 %v7043, %v7042
    %v7162 = vpack.c.bf16 %v7045, %v7044
    %v7163 = vpack.c.bf16 %v7047, %v7046
    %v7164 = vpack.c.bf16 %v7049, %v7048
    %v7165 = vpack.c.bf16 %v7051, %v7050
    %v7166 = vpack.c.bf16 %v7053, %v7052
    %v7167 = vpack.c.bf16 %v7055, %v7054
    %v7168 = vpack.c.bf16 %v7057, %v7056
    %v7169 = vpack.c.bf16 %v7059, %v7058
    %v7170 = vpack.c.bf16 %v7061, %v7060
    %v7171 = vpack.c.bf16 %v7063, %v7062
    %v7172 = vpack.c.bf16 %v7065, %v7064
    %v7173 = vpack.c.bf16 %v7067, %v7066
    %v7174 = vpack.c.bf16 %v7069, %v7068
    %v7175 = vpack.c.bf16 %v7071, %v7070
    %v7176 = vpack.c.bf16 %v7073, %v7072
    %v7177 = vpack.c.bf16 %v7075, %v7074
    %v7178 = vpack.c.bf16 %v7077, %v7076
    %v7179 = vpack.c.bf16 %v7079, %v7078
    %v7180 = vpack.c.bf16 %v7081, %v7080
    %v7181 = vpack.c.bf16 %v7083, %v7082
    %v7182 = vpack.c.bf16 %v7085, %v7084
    %v7183 = vpack.c.bf16 %v7087, %v7086
    %v7184 = vpack.c.bf16 %v7089, %v7088
    %v7185 = vpack.c.bf16 %v7091, %v7090
    %v7186 = vpack.c.bf16 %v7093, %v7092
    %v7187 = vpack.c.bf16 %v7095, %v7094
    %v7188 = vpack.c.bf16 %v7097, %v7096
    %v7189 = vpack.c.bf16 %v7099, %v7098
    %v7190 = vpack.c.bf16 %v7101, %v7100
    %v7191 = vpack.c.bf16 %v7103, %v7102
    %v7192 = vpack.c.bf16 %v7105, %v7104
    %v7193 = vpack.c.bf16 %v7107, %v7106
    %v7194 = vpack.c.bf16 %v7109, %v7108
    %v7195 = vpack.c.bf16 %v7111, %v7110
    %v7196 = vpack.c.bf16 %v7113, %v7112
    %v7197 = vpack.c.bf16 %v7115, %v7114
    %v7198 = vpack.c.bf16 %v7117, %v7116
    %v7199 = vpack.c.bf16 %v7119, %v7118
    %v7200 = vpack.c.bf16 %v7121, %v7120
    %v7201 = vpack.c.bf16 %v7123, %v7122
    %v7202 = vpack.c.bf16 %v7125, %v7124
    %v7203 = vpack.c.bf16 %v7127, %v7126
    %v7204 = vpack.c.bf16 %v7129, %v7128
    %v7205 = vpack.c.bf16 %v7131, %v7130
    %v7206 = vpack.c.bf16 %v7133, %v7132
    %v7207 = vpack.c.bf16 %v7135, %v7134
    %v7208 = vpack.c.bf16 %v7137, %v7136
    %v7209 = vpack.c.bf16 %v7139, %v7138
    %v7210 = vpack.c.bf16 %v7141, %v7140
    %v7211 = vpack.c.bf16 %v7143, %v7142
    %v7212 = vpack.c.bf16 %v7145, %v7144
    %v7213 = vpack.c.bf16 %v7147, %v7146
    %v7214 = vpack.c.bf16 %v7149, %v7148
    %v7215 = vpack.c.bf16 %v7151, %v7150
    %v7216 = vld [vmem:[#allocation11] sm:$0xf]
    %v7217 = vld [vmem:[#allocation11 + $0x4] sm:$0xf]
    %v7218 = vld [vmem:[#allocation11 + $0x8] sm:$0xf]
    %v7219 = vld [vmem:[#allocation11 + $0xc] sm:$0xf]
    %v7220 = vld [vmem:[#allocation11 + $0x10] sm:$0xf]
    %v7221 = vld [vmem:[#allocation11 + $0x14] sm:$0xf]
    %v7222 = vld [vmem:[#allocation11 + $0x18] sm:$0xf]
    %v7223 = vld [vmem:[#allocation11 + $0x1c] sm:$0xf]
    %v7224 = vld [vmem:[#allocation11 + $0x20] sm:$0xf]
    %v7225 = vld [vmem:[#allocation11 + $0x24] sm:$0xf]
    %v7226 = vld [vmem:[#allocation11 + $0x28] sm:$0xf]
    %v7227 = vld [vmem:[#allocation11 + $0x2c] sm:$0xf]
    %v7228 = vld [vmem:[#allocation11 + $0x30] sm:$0xf]
    %v7229 = vld [vmem:[#allocation11 + $0x34] sm:$0xf]
    %v7230 = vld [vmem:[#allocation11 + $0x38] sm:$0xf]
    %v7231 = vld [vmem:[#allocation11 + $0x3c] sm:$0xf]
    %v7232 = vld [vmem:[%s10] sm:$0x1]
    %v7234 = vlaneseq
    %v7235 = vshrl.u32 %v7234, 7
    %v7236 = vsub.s32 0, %v7235
    %v7237 = vrot.slane %v7232, %v7236
    %v7255 = vunpack.c.l.b16 %v7216
    %v7256 = vunpack.c.l.b16 %v7217
    %v7257 = vunpack.c.l.b16 %v7218
    %v7258 = vunpack.c.l.b16 %v7219
    %v7259 = vunpack.c.l.b16 %v7220
    %v7260 = vunpack.c.l.b16 %v7221
    %v7261 = vunpack.c.l.b16 %v7222
    %v7262 = vunpack.c.l.b16 %v7223
    %v7263 = vunpack.c.l.b16 %v7224
    %v7264 = vunpack.c.l.b16 %v7225
    %v7265 = vunpack.c.l.b16 %v7226
    %v7266 = vunpack.c.l.b16 %v7227
    %v7267 = vunpack.c.l.b16 %v7228
    %v7268 = vunpack.c.l.b16 %v7229
    %v7269 = vunpack.c.l.b16 %v7230
    %v7270 = vunpack.c.l.b16 %v7231
    %v7271 = vpack.c.b16 %v7256, %v7255
    %v7272 = vpack.c.b16 %v7258, %v7257
    %v7273 = vpack.c.b16 %v7260, %v7259
    %v7274 = vpack.c.b16 %v7262, %v7261
    %v7275 = vpack.c.b16 %v7264, %v7263
    %v7276 = vpack.c.b16 %v7266, %v7265
    %v7277 = vpack.c.b16 %v7268, %v7267
    %v7278 = vpack.c.b16 %v7270, %v7269
    %7287 = vmatprep.subr.bf16.mxu0 0
    %7288 = vmatpush1.bf16.msra.mxu0 %v7271
    %7289 = vmatprep.subr.bf16.mxu0 0
    %7290 = vmatpush1.bf16.msra.mxu0 %v7272
    %7291 = vmatprep.subr.bf16.mxu0 0
    %7292 = vmatpush1.bf16.msra.mxu0 %v7273
    %7293 = vmatprep.subr.bf16.mxu0 0
    %7294 = vmatpush1.bf16.msra.mxu0 %v7274
    %7295 = vmatprep.subr.bf16.mxu0 0
    %7296 = vmatpush1.bf16.msra.mxu0 %v7275
    %7297 = vmatprep.subr.bf16.mxu0 0
    %7298 = vmatpush1.bf16.msra.mxu0 %v7276
    %7299 = vmatprep.subr.bf16.mxu0 0
    %7300 = vmatpush1.bf16.msra.mxu0 %v7277
    %7301 = vmatprep.subr.bf16.mxu0 0
    %7302 = vmatpush1.bf16.msra.mxu0 %v7278
    %7303 = vmatprep.subr.bf16.mxu0 0
    %7304 = vmatpush1.bf16.msra.mxu0 0
    %7305 = vmatprep.subr.bf16.mxu0 0
    %7306 = vmatpush1.bf16.msra.mxu0 0
    %7307 = vmatprep.subr.bf16.mxu0 0
    %7308 = vmatpush1.bf16.msra.mxu0 0
    %7309 = vmatprep.subr.bf16.mxu0 0
    %7310 = vmatpush1.bf16.msra.mxu0 0
    %7311 = vmatprep.subr.bf16.mxu0 0
    %7312 = vmatpush1.bf16.msra.mxu0 0
    %7313 = vmatprep.subr.bf16.mxu0 0
    %7314 = vmatpush1.bf16.msra.mxu0 0
    %7315 = vmatprep.subr.bf16.mxu0 0
    %7316 = vmatpush1.bf16.msra.mxu0 0
    %7317 = vmatprep.subr.bf16.mxu0 0
    %7318 = vmatpush1.bf16.msra.mxu0 0
    %7319 = vmatprep.mubr.bf16.mxu0 0
    %7320 = vmatmul.mubr.bf16.gmra.mrb[0].mxu0 %v7152
    %v7321 = vpop.f32.mrb[0].mxu0
    %v7322 = vadd.f32 %v7237, %v7321
    %v7323 = vpop.f32.mrb[0].mxu0
    %v7324 = vpop.f32.mrb[0].mxu0
    %v7325 = vadd.f32 %v7237, %v7324
    %v7326 = vpop.f32.mrb[0].mxu0
    %7327 = vmatprep.mubr.bf16.mxu0 0
    %7328 = vmatmul.mubr.bf16.gmra.mrb[0].mxu0 %v7153
    %v7329 = vpop.f32.mrb[0].mxu0
    %v7330 = vadd.f32 %v7237, %v7329
    %v7331 = vpop.f32.mrb[0].mxu0
    %v7332 = vpop.f32.mrb[0].mxu0
    %v7333 = vadd.f32 %v7237, %v7332
    %v7334 = vpop.f32.mrb[0].mxu0
    %7335 = vmatprep.mubr.bf16.mxu0 0
    %7336 = vmatmul.mubr.bf16.gmra.mrb[0].mxu0 %v7154
    %v7337 = vpop.f32.mrb[0].mxu0
    %v7338 = vadd.f32 %v7237, %v7337
    %v7339 = vpop.f32.mrb[0].mxu0
    %v7340 = vpop.f32.mrb[0].mxu0
    %v7341 = vadd.f32 %v7237, %v7340
    %v7342 = vpop.f32.mrb[0].mxu0
    %7343 = vmatprep.mubr.bf16.mxu0 0
    %7344 = vmatmul.mubr.bf16.gmra.mrb[0].mxu0 %v7155
    %v7345 = vpop.f32.mrb[0].mxu0
    %v7346 = vadd.f32 %v7237, %v7345
    %v7347 = vpop.f32.mrb[0].mxu0
    %v7348 = vpop.f32.mrb[0].mxu0
    %v7349 = vadd.f32 %v7237, %v7348
    %v7350 = vpop.f32.mrb[0].mxu0
    %7351 = vmatprep.mubr.bf16.mxu0 0
    %7352 = vmatmul.mubr.bf16.gmra.mrb[0].mxu0 %v7156
    %v7353 = vpop.f32.mrb[0].mxu0
    %v7354 = vadd.f32 %v7237, %v7353
    %v7355 = vpop.f32.mrb[0].mxu0
    %v7356 = vpop.f32.mrb[0].mxu0
    %v7357 = vadd.f32 %v7237, %v7356
    %v7358 = vpop.f32.mrb[0].mxu0
    %7359 = vmatprep.mubr.bf16.mxu0 0
    %7360 = vmatmul.mubr.bf16.gmra.mrb[0].mxu0 %v7157
    %v7361 = vpop.f32.mrb[0].mxu0
    %v7362 = vadd.f32 %v7237, %v7361
    %v7363 = vpop.f32.mrb[0].mxu0
    %v7364 = vpop.f32.mrb[0].mxu0
    %v7365 = vadd.f32 %v7237, %v7364
    %v7366 = vpop.f32.mrb[0].mxu0
    %7367 = vmatprep.mubr.bf16.mxu0 0
    %7368 = vmatmul.mubr.bf16.gmra.mrb[0].mxu0 %v7158
    %v7369 = vpop.f32.mrb[0].mxu0
    %v7370 = vadd.f32 %v7237, %v7369
    %v7371 = vpop.f32.mrb[0].mxu0
    %v7372 = vpop.f32.mrb[0].mxu0
    %v7373 = vadd.f32 %v7237, %v7372
    %v7374 = vpop.f32.mrb[0].mxu0
    %7375 = vmatprep.mubr.bf16.mxu0 0
    %7376 = vmatmul.mubr.bf16.gmra.mrb[0].mxu0 %v7159
    %v7377 = vpop.f32.mrb[0].mxu0
    %v7378 = vadd.f32 %v7237, %v7377
    %v7379 = vpop.f32.mrb[0].mxu0
    %v7380 = vpop.f32.mrb[0].mxu0
    %v7381 = vadd.f32 %v7237, %v7380
    %v7382 = vpop.f32.mrb[0].mxu0
    %7383 = vmatprep.mubr.bf16.mxu0 0
    %7384 = vmatmul.mubr.bf16.gmra.mrb[0].mxu0 %v7160
    %v7385 = vpop.f32.mrb[0].mxu0
    %v7386 = vadd.f32 %v7237, %v7385
    %v7387 = vpop.f32.mrb[0].mxu0
    %v7388 = vpop.f32.mrb[0].mxu0
    %v7389 = vadd.f32 %v7237, %v7388
    %v7390 = vpop.f32.mrb[0].mxu0
    %7391 = vmatprep.mubr.bf16.mxu0 0
    %7392 = vmatmul.mubr.bf16.gmra.mrb[0].mxu0 %v7161
    %v7393 = vpop.f32.mrb[0].mxu0
    %v7394 = vadd.f32 %v7237, %v7393
    %v7395 = vpop.f32.mrb[0].mxu0
    %v7396 = vpop.f32.mrb[0].mxu0
    %v7397 = vadd.f32 %v7237, %v7396
    %v7398 = vpop.f32.mrb[0].mxu0
    %7399 = vmatprep.mubr.bf16.mxu0 0
    %7400 = vmatmul.mubr.bf16.gmra.mrb[0].mxu0 %v7162
    %v7401 = vpop.f32.mrb[0].mxu0
    %v7402 = vadd.f32 %v7237, %v7401
    %v7403 = vpop.f32.mrb[0].mxu0
    %v7404 = vpop.f32.mrb[0].mxu0
    %v7405 = vadd.f32 %v7237, %v7404
    %v7406 = vpop.f32.mrb[0].mxu0
    %7407 = vmatprep.mubr.bf16.mxu0 0
    %7408 = vmatmul.mubr.bf16.gmra.mrb[0].mxu0 %v7163
    %v7409 = vpop.f32.mrb[0].mxu0
    %v7410 = vadd.f32 %v7237, %v7409
    %v7411 = vpop.f32.mrb[0].mxu0
    %v7412 = vpop.f32.mrb[0].mxu0
    %v7413 = vadd.f32 %v7237, %v7412
    %v7414 = vpop.f32.mrb[0].mxu0
    %7415 = vmatprep.mubr.bf16.mxu0 0
    %7416 = vmatmul.mubr.bf16.gmra.mrb[0].mxu0 %v7164
    %v7417 = vpop.f32.mrb[0].mxu0
    %v7418 = vadd.f32 %v7237, %v7417
    %v7419 = vpop.f32.mrb[0].mxu0
    %v7420 = vpop.f32.mrb[0].mxu0
    %v7421 = vadd.f32 %v7237, %v7420
    %v7422 = vpop.f32.mrb[0].mxu0
    %7423 = vmatprep.mubr.bf16.mxu0 0
    %7424 = vmatmul.mubr.bf16.gmra.mrb[0].mxu0 %v7165
    %v7425 = vpop.f32.mrb[0].mxu0
    %v7426 = vadd.f32 %v7237, %v7425
    %v7427 = vpop.f32.mrb[0].mxu0
    %v7428 = vpop.f32.mrb[0].mxu0
    %v7429 = vadd.f32 %v7237, %v7428
    %v7430 = vpop.f32.mrb[0].mxu0
    %7431 = vmatprep.mubr.bf16.mxu0 0
    %7432 = vmatmul.mubr.bf16.gmra.mrb[0].mxu0 %v7166
    %v7433 = vpop.f32.mrb[0].mxu0
    %v7434 = vadd.f32 %v7237, %v7433
    %v7435 = vpop.f32.mrb[0].mxu0
    %v7436 = vpop.f32.mrb[0].mxu0
    %v7437 = vadd.f32 %v7237, %v7436
    %v7438 = vpop.f32.mrb[0].mxu0
    %7439 = vmatprep.mubr.bf16.mxu0 0
    %7440 = vmatmul.mubr.bf16.gmra.mrb[0].mxu0 %v7167
    %v7441 = vpop.f32.mrb[0].mxu0
    %v7442 = vadd.f32 %v7237, %v7441
    %v7443 = vpop.f32.mrb[0].mxu0
    %v7444 = vpop.f32.mrb[0].mxu0
    %v7445 = vadd.f32 %v7237, %v7444
    %v7446 = vpop.f32.mrb[0].mxu0
    %7447 = vmatprep.mubr.bf16.mxu0 0
    %7448 = vmatmul.mubr.bf16.gmra.mrb[0].mxu0 %v7168
    %v7449 = vpop.f32.mrb[0].mxu0
    %v7450 = vadd.f32 %v7237, %v7449
    %v7451 = vpop.f32.mrb[0].mxu0
    %v7452 = vpop.f32.mrb[0].mxu0
    %v7453 = vadd.f32 %v7237, %v7452
    %v7454 = vpop.f32.mrb[0].mxu0
    %7455 = vmatprep.mubr.bf16.mxu0 0
    %7456 = vmatmul.mubr.bf16.gmra.mrb[0].mxu0 %v7169
    %v7457 = vpop.f32.mrb[0].mxu0
    %v7458 = vadd.f32 %v7237, %v7457
    %v7459 = vpop.f32.mrb[0].mxu0
    %v7460 = vpop.f32.mrb[0].mxu0
    %v7461 = vadd.f32 %v7237, %v7460
    %v7462 = vpop.f32.mrb[0].mxu0
    %7463 = vmatprep.mubr.bf16.mxu0 0
    %7464 = vmatmul.mubr.bf16.gmra.mrb[0].mxu0 %v7170
    %v7465 = vpop.f32.mrb[0].mxu0
    %v7466 = vadd.f32 %v7237, %v7465
    %v7467 = vpop.f32.mrb[0].mxu0
    %v7468 = vpop.f32.mrb[0].mxu0
    %v7469 = vadd.f32 %v7237, %v7468
    %v7470 = vpop.f32.mrb[0].mxu0
    %7471 = vmatprep.mubr.bf16.mxu0 0
    %7472 = vmatmul.mubr.bf16.gmra.mrb[0].mxu0 %v7171
    %v7473 = vpop.f32.mrb[0].mxu0
    %v7474 = vadd.f32 %v7237, %v7473
    %v7475 = vpop.f32.mrb[0].mxu0
    %v7476 = vpop.f32.mrb[0].mxu0
    %v7477 = vadd.f32 %v7237, %v7476
    %v7478 = vpop.f32.mrb[0].mxu0
    %7479 = vmatprep.mubr.bf16.mxu0 0
    %7480 = vmatmul.mubr.bf16.gmra.mrb[0].mxu0 %v7172
    %v7481 = vpop.f32.mrb[0].mxu0
    %v7482 = vadd.f32 %v7237, %v7481
    %v7483 = vpop.f32.mrb[0].mxu0
    %v7484 = vpop.f32.mrb[0].mxu0
    %v7485 = vadd.f32 %v7237, %v7484
    %v7486 = vpop.f32.mrb[0].mxu0
    %7487 = vmatprep.mubr.bf16.mxu0 0
    %7488 = vmatmul.mubr.bf16.gmra.mrb[0].mxu0 %v7173
    %v7489 = vpop.f32.mrb[0].mxu0
    %v7490 = vadd.f32 %v7237, %v7489
    %v7491 = vpop.f32.mrb[0].mxu0
    %v7492 = vpop.f32.mrb[0].mxu0
    %v7493 = vadd.f32 %v7237, %v7492
    %v7494 = vpop.f32.mrb[0].mxu0
    %7495 = vmatprep.mubr.bf16.mxu0 0
    %7496 = vmatmul.mubr.bf16.gmra.mrb[0].mxu0 %v7174
    %v7497 = vpop.f32.mrb[0].mxu0
    %v7498 = vadd.f32 %v7237, %v7497
    %v7499 = vpop.f32.mrb[0].mxu0
    %v7500 = vpop.f32.mrb[0].mxu0
    %v7501 = vadd.f32 %v7237, %v7500
    %v7502 = vpop.f32.mrb[0].mxu0
    %7503 = vmatprep.mubr.bf16.mxu0 0
    %7504 = vmatmul.mubr.bf16.gmra.mrb[0].mxu0 %v7175
    %v7505 = vpop.f32.mrb[0].mxu0
    %v7506 = vadd.f32 %v7237, %v7505
    %v7507 = vpop.f32.mrb[0].mxu0
    %v7508 = vpop.f32.mrb[0].mxu0
    %v7509 = vadd.f32 %v7237, %v7508
    %v7510 = vpop.f32.mrb[0].mxu0
    %7511 = vmatprep.mubr.bf16.mxu0 0
    %7512 = vmatmul.mubr.bf16.gmra.mrb[0].mxu0 %v7176
    %v7513 = vpop.f32.mrb[0].mxu0
    %v7514 = vadd.f32 %v7237, %v7513
    %v7515 = vpop.f32.mrb[0].mxu0
    %v7516 = vpop.f32.mrb[0].mxu0
    %v7517 = vadd.f32 %v7237, %v7516
    %v7518 = vpop.f32.mrb[0].mxu0
    %7519 = vmatprep.mubr.bf16.mxu0 0
    %7520 = vmatmul.mubr.bf16.gmra.mrb[0].mxu0 %v7177
    %v7521 = vpop.f32.mrb[0].mxu0
    %v7522 = vadd.f32 %v7237, %v7521
    %v7523 = vpop.f32.mrb[0].mxu0
    %v7524 = vpop.f32.mrb[0].mxu0
    %v7525 = vadd.f32 %v7237, %v7524
    %v7526 = vpop.f32.mrb[0].mxu0
    %7527 = vmatprep.mubr.bf16.mxu0 0
    %7528 = vmatmul.mubr.bf16.gmra.mrb[0].mxu0 %v7178
    %v7529 = vpop.f32.mrb[0].mxu0
    %v7530 = vadd.f32 %v7237, %v7529
    %v7531 = vpop.f32.mrb[0].mxu0
    %v7532 = vpop.f32.mrb[0].mxu0
    %v7533 = vadd.f32 %v7237, %v7532
    %v7534 = vpop.f32.mrb[0].mxu0
    %7535 = vmatprep.mubr.bf16.mxu0 0
    %7536 = vmatmul.mubr.bf16.gmra.mrb[0].mxu0 %v7179
    %v7537 = vpop.f32.mrb[0].mxu0
    %v7538 = vadd.f32 %v7237, %v7537
    %v7539 = vpop.f32.mrb[0].mxu0
    %v7540 = vpop.f32.mrb[0].mxu0
    %v7541 = vadd.f32 %v7237, %v7540
    %v7542 = vpop.f32.mrb[0].mxu0
    %7543 = vmatprep.mubr.bf16.mxu0 0
    %7544 = vmatmul.mubr.bf16.gmra.mrb[0].mxu0 %v7180
    %v7545 = vpop.f32.mrb[0].mxu0
    %v7546 = vadd.f32 %v7237, %v7545
    %v7547 = vpop.f32.mrb[0].mxu0
    %v7548 = vpop.f32.mrb[0].mxu0
    %v7549 = vadd.f32 %v7237, %v7548
    %v7550 = vpop.f32.mrb[0].mxu0
    %7551 = vmatprep.mubr.bf16.mxu0 0
    %7552 = vmatmul.mubr.bf16.gmra.mrb[0].mxu0 %v7181
    %v7553 = vpop.f32.mrb[0].mxu0
    %v7554 = vadd.f32 %v7237, %v7553
    %v7555 = vpop.f32.mrb[0].mxu0
    %v7556 = vpop.f32.mrb[0].mxu0
    %v7557 = vadd.f32 %v7237, %v7556
    %v7558 = vpop.f32.mrb[0].mxu0
    %7559 = vmatprep.mubr.bf16.mxu0 0
    %7560 = vmatmul.mubr.bf16.gmra.mrb[0].mxu0 %v7182
    %v7561 = vpop.f32.mrb[0].mxu0
    %v7562 = vadd.f32 %v7237, %v7561
    %v7563 = vpop.f32.mrb[0].mxu0
    %v7564 = vpop.f32.mrb[0].mxu0
    %v7565 = vadd.f32 %v7237, %v7564
    %v7566 = vpop.f32.mrb[0].mxu0
    %7567 = vmatprep.mubr.bf16.mxu0 0
    %7568 = vmatmul.mubr.bf16.gmra.mrb[0].mxu0 %v7183
    %v7569 = vpop.f32.mrb[0].mxu0
    %v7570 = vadd.f32 %v7237, %v7569
    %v7571 = vpop.f32.mrb[0].mxu0
    %v7572 = vpop.f32.mrb[0].mxu0
    %v7573 = vadd.f32 %v7237, %v7572
    %v7574 = vpop.f32.mrb[0].mxu0
    %7575 = vmatprep.mubr.bf16.mxu0 0
    %7576 = vmatmul.mubr.bf16.gmra.mrb[0].mxu0 %v7184
    %v7577 = vpop.f32.mrb[0].mxu0
    %v7578 = vadd.f32 %v7237, %v7577
    %v7579 = vpop.f32.mrb[0].mxu0
    %v7580 = vpop.f32.mrb[0].mxu0
    %v7581 = vadd.f32 %v7237, %v7580
    %v7582 = vpop.f32.mrb[0].mxu0
    %7583 = vmatprep.mubr.bf16.mxu0 0
    %7584 = vmatmul.mubr.bf16.gmra.mrb[0].mxu0 %v7185
    %v7585 = vpop.f32.mrb[0].mxu0
    %v7586 = vadd.f32 %v7237, %v7585
    %v7587 = vpop.f32.mrb[0].mxu0
    %v7588 = vpop.f32.mrb[0].mxu0
    %v7589 = vadd.f32 %v7237, %v7588
    %v7590 = vpop.f32.mrb[0].mxu0
    %7591 = vmatprep.mubr.bf16.mxu0 0
    %7592 = vmatmul.mubr.bf16.gmra.mrb[0].mxu0 %v7186
    %v7593 = vpop.f32.mrb[0].mxu0
    %v7594 = vadd.f32 %v7237, %v7593
    %v7595 = vpop.f32.mrb[0].mxu0
    %v7596 = vpop.f32.mrb[0].mxu0
    %v7597 = vadd.f32 %v7237, %v7596
    %v7598 = vpop.f32.mrb[0].mxu0
    %7599 = vmatprep.mubr.bf16.mxu0 0
    %7600 = vmatmul.mubr.bf16.gmra.mrb[0].mxu0 %v7187
    %v7601 = vpop.f32.mrb[0].mxu0
    %v7602 = vadd.f32 %v7237, %v7601
    %v7603 = vpop.f32.mrb[0].mxu0
    %v7604 = vpop.f32.mrb[0].mxu0
    %v7605 = vadd.f32 %v7237, %v7604
    %v7606 = vpop.f32.mrb[0].mxu0
    %7607 = vmatprep.mubr.bf16.mxu0 0
    %7608 = vmatmul.mubr.bf16.gmra.mrb[0].mxu0 %v7188
    %v7609 = vpop.f32.mrb[0].mxu0
    %v7610 = vadd.f32 %v7237, %v7609
    %v7611 = vpop.f32.mrb[0].mxu0
    %v7612 = vpop.f32.mrb[0].mxu0
    %v7613 = vadd.f32 %v7237, %v7612
    %v7614 = vpop.f32.mrb[0].mxu0
    %7615 = vmatprep.mubr.bf16.mxu0 0
    %7616 = vmatmul.mubr.bf16.gmra.mrb[0].mxu0 %v7189
    %v7617 = vpop.f32.mrb[0].mxu0
    %v7618 = vadd.f32 %v7237, %v7617
    %v7619 = vpop.f32.mrb[0].mxu0
    %v7620 = vpop.f32.mrb[0].mxu0
    %v7621 = vadd.f32 %v7237, %v7620
    %v7622 = vpop.f32.mrb[0].mxu0
    %7623 = vmatprep.mubr.bf16.mxu0 0
    %7624 = vmatmul.mubr.bf16.gmra.mrb[0].mxu0 %v7190
    %v7625 = vpop.f32.mrb[0].mxu0
    %v7626 = vadd.f32 %v7237, %v7625
    %v7627 = vpop.f32.mrb[0].mxu0
    %v7628 = vpop.f32.mrb[0].mxu0
    %v7629 = vadd.f32 %v7237, %v7628
    %v7630 = vpop.f32.mrb[0].mxu0
    %7631 = vmatprep.mubr.bf16.mxu0 0
    %7632 = vmatmul.mubr.bf16.gmra.mrb[0].mxu0 %v7191
    %v7633 = vpop.f32.mrb[0].mxu0
    %v7634 = vadd.f32 %v7237, %v7633
    %v7635 = vpop.f32.mrb[0].mxu0
    %v7636 = vpop.f32.mrb[0].mxu0
    %v7637 = vadd.f32 %v7237, %v7636
    %v7638 = vpop.f32.mrb[0].mxu0
    %7639 = vmatprep.mubr.bf16.mxu0 0
    %7640 = vmatmul.mubr.bf16.gmra.mrb[0].mxu0 %v7192
    %v7641 = vpop.f32.mrb[0].mxu0
    %v7642 = vadd.f32 %v7237, %v7641
    %v7643 = vpop.f32.mrb[0].mxu0
    %v7644 = vpop.f32.mrb[0].mxu0
    %v7645 = vadd.f32 %v7237, %v7644
    %v7646 = vpop.f32.mrb[0].mxu0
    %7647 = vmatprep.mubr.bf16.mxu0 0
    %7648 = vmatmul.mubr.bf16.gmra.mrb[0].mxu0 %v7193
    %v7649 = vpop.f32.mrb[0].mxu0
    %v7650 = vadd.f32 %v7237, %v7649
    %v7651 = vpop.f32.mrb[0].mxu0
    %v7652 = vpop.f32.mrb[0].mxu0
    %v7653 = vadd.f32 %v7237, %v7652
    %v7654 = vpop.f32.mrb[0].mxu0
    %7655 = vmatprep.mubr.bf16.mxu0 0
    %7656 = vmatmul.mubr.bf16.gmra.mrb[0].mxu0 %v7194
    %v7657 = vpop.f32.mrb[0].mxu0
    %v7658 = vadd.f32 %v7237, %v7657
    %v7659 = vpop.f32.mrb[0].mxu0
    %v7660 = vpop.f32.mrb[0].mxu0
    %v7661 = vadd.f32 %v7237, %v7660
    %v7662 = vpop.f32.mrb[0].mxu0
    %7663 = vmatprep.mubr.bf16.mxu0 0
    %7664 = vmatmul.mubr.bf16.gmra.mrb[0].mxu0 %v7195
    %v7665 = vpop.f32.mrb[0].mxu0
    %v7666 = vadd.f32 %v7237, %v7665
    %v7667 = vpop.f32.mrb[0].mxu0
    %v7668 = vpop.f32.mrb[0].mxu0
    %v7669 = vadd.f32 %v7237, %v7668
    %v7670 = vpop.f32.mrb[0].mxu0
    %7671 = vmatprep.mubr.bf16.mxu0 0
    %7672 = vmatmul.mubr.bf16.gmra.mrb[0].mxu0 %v7196
    %v7673 = vpop.f32.mrb[0].mxu0
    %v7674 = vadd.f32 %v7237, %v7673
    %v7675 = vpop.f32.mrb[0].mxu0
    %v7676 = vpop.f32.mrb[0].mxu0
    %v7677 = vadd.f32 %v7237, %v7676
    %v7678 = vpop.f32.mrb[0].mxu0
    %7679 = vmatprep.mubr.bf16.mxu0 0
    %7680 = vmatmul.mubr.bf16.gmra.mrb[0].mxu0 %v7197
    %v7681 = vpop.f32.mrb[0].mxu0
    %v7682 = vadd.f32 %v7237, %v7681
    %v7683 = vpop.f32.mrb[0].mxu0
    %v7684 = vpop.f32.mrb[0].mxu0
    %v7685 = vadd.f32 %v7237, %v7684
    %v7686 = vpop.f32.mrb[0].mxu0
    %7687 = vmatprep.mubr.bf16.mxu0 0
    %7688 = vmatmul.mubr.bf16.gmra.mrb[0].mxu0 %v7198
    %v7689 = vpop.f32.mrb[0].mxu0
    %v7690 = vadd.f32 %v7237, %v7689
    %v7691 = vpop.f32.mrb[0].mxu0
    %v7692 = vpop.f32.mrb[0].mxu0
    %v7693 = vadd.f32 %v7237, %v7692
    %v7694 = vpop.f32.mrb[0].mxu0
    %7695 = vmatprep.mubr.bf16.mxu0 0
    %7696 = vmatmul.mubr.bf16.gmra.mrb[0].mxu0 %v7199
    %v7697 = vpop.f32.mrb[0].mxu0
    %v7698 = vadd.f32 %v7237, %v7697
    %v7699 = vpop.f32.mrb[0].mxu0
    %v7700 = vpop.f32.mrb[0].mxu0
    %v7701 = vadd.f32 %v7237, %v7700
    %v7702 = vpop.f32.mrb[0].mxu0
    %7703 = vmatprep.mubr.bf16.mxu0 0
    %7704 = vmatmul.mubr.bf16.gmra.mrb[0].mxu0 %v7200
    %v7705 = vpop.f32.mrb[0].mxu0
    %v7706 = vadd.f32 %v7237, %v7705
    %v7707 = vpop.f32.mrb[0].mxu0
    %v7708 = vpop.f32.mrb[0].mxu0
    %v7709 = vadd.f32 %v7237, %v7708
    %v7710 = vpop.f32.mrb[0].mxu0
    %7711 = vmatprep.mubr.bf16.mxu0 0
    %7712 = vmatmul.mubr.bf16.gmra.mrb[0].mxu0 %v7201
    %v7713 = vpop.f32.mrb[0].mxu0
    %v7714 = vadd.f32 %v7237, %v7713
    %v7715 = vpop.f32.mrb[0].mxu0
    %v7716 = vpop.f32.mrb[0].mxu0
    %v7717 = vadd.f32 %v7237, %v7716
    %v7718 = vpop.f32.mrb[0].mxu0
    %7719 = vmatprep.mubr.bf16.mxu0 0
    %7720 = vmatmul.mubr.bf16.gmra.mrb[0].mxu0 %v7202
    %v7721 = vpop.f32.mrb[0].mxu0
    %v7722 = vadd.f32 %v7237, %v7721
    %v7723 = vpop.f32.mrb[0].mxu0
    %v7724 = vpop.f32.mrb[0].mxu0
    %v7725 = vadd.f32 %v7237, %v7724
    %v7726 = vpop.f32.mrb[0].mxu0
    %7727 = vmatprep.mubr.bf16.mxu0 0
    %7728 = vmatmul.mubr.bf16.gmra.mrb[0].mxu0 %v7203
    %v7729 = vpop.f32.mrb[0].mxu0
    %v7730 = vadd.f32 %v7237, %v7729
    %v7731 = vpop.f32.mrb[0].mxu0
    %v7732 = vpop.f32.mrb[0].mxu0
    %v7733 = vadd.f32 %v7237, %v7732
    %v7734 = vpop.f32.mrb[0].mxu0
    %7735 = vmatprep.mubr.bf16.mxu0 0
    %7736 = vmatmul.mubr.bf16.gmra.mrb[0].mxu0 %v7204
    %v7737 = vpop.f32.mrb[0].mxu0
    %v7738 = vadd.f32 %v7237, %v7737
    %v7739 = vpop.f32.mrb[0].mxu0
    %v7740 = vpop.f32.mrb[0].mxu0
    %v7741 = vadd.f32 %v7237, %v7740
    %v7742 = vpop.f32.mrb[0].mxu0
    %7743 = vmatprep.mubr.bf16.mxu0 0
    %7744 = vmatmul.mubr.bf16.gmra.mrb[0].mxu0 %v7205
    %v7745 = vpop.f32.mrb[0].mxu0
    %v7746 = vadd.f32 %v7237, %v7745
    %v7747 = vpop.f32.mrb[0].mxu0
    %v7748 = vpop.f32.mrb[0].mxu0
    %v7749 = vadd.f32 %v7237, %v7748
    %v7750 = vpop.f32.mrb[0].mxu0
    %7751 = vmatprep.mubr.bf16.mxu0 0
    %7752 = vmatmul.mubr.bf16.gmra.mrb[0].mxu0 %v7206
    %v7753 = vpop.f32.mrb[0].mxu0
    %v7754 = vadd.f32 %v7237, %v7753
    %v7755 = vpop.f32.mrb[0].mxu0
    %v7756 = vpop.f32.mrb[0].mxu0
    %v7757 = vadd.f32 %v7237, %v7756
    %v7758 = vpop.f32.mrb[0].mxu0
    %7759 = vmatprep.mubr.bf16.mxu0 0
    %7760 = vmatmul.mubr.bf16.gmra.mrb[0].mxu0 %v7207
    %v7761 = vpop.f32.mrb[0].mxu0
    %v7762 = vadd.f32 %v7237, %v7761
    %v7763 = vpop.f32.mrb[0].mxu0
    %v7764 = vpop.f32.mrb[0].mxu0
    %v7765 = vadd.f32 %v7237, %v7764
    %v7766 = vpop.f32.mrb[0].mxu0
    %7767 = vmatprep.mubr.bf16.mxu0 0
    %7768 = vmatmul.mubr.bf16.gmra.mrb[0].mxu0 %v7208
    %v7769 = vpop.f32.mrb[0].mxu0
    %v7770 = vadd.f32 %v7237, %v7769
    %v7771 = vpop.f32.mrb[0].mxu0
    %v7772 = vpop.f32.mrb[0].mxu0
    %v7773 = vadd.f32 %v7237, %v7772
    %v7774 = vpop.f32.mrb[0].mxu0
    %7775 = vmatprep.mubr.bf16.mxu0 0
    %7776 = vmatmul.mubr.bf16.gmra.mrb[0].mxu0 %v7209
    %v7777 = vpop.f32.mrb[0].mxu0
    %v7778 = vadd.f32 %v7237, %v7777
    %v7779 = vpop.f32.mrb[0].mxu0
    %v7780 = vpop.f32.mrb[0].mxu0
    %v7781 = vadd.f32 %v7237, %v7780
    %v7782 = vpop.f32.mrb[0].mxu0
    %7783 = vmatprep.mubr.bf16.mxu0 0
    %7784 = vmatmul.mubr.bf16.gmra.mrb[0].mxu0 %v7210
    %v7785 = vpop.f32.mrb[0].mxu0
    %v7786 = vadd.f32 %v7237, %v7785
    %v7787 = vpop.f32.mrb[0].mxu0
    %v7788 = vpop.f32.mrb[0].mxu0
    %v7789 = vadd.f32 %v7237, %v7788
    %v7790 = vpop.f32.mrb[0].mxu0
    %7791 = vmatprep.mubr.bf16.mxu0 0
    %7792 = vmatmul.mubr.bf16.gmra.mrb[0].mxu0 %v7211
    %v7793 = vpop.f32.mrb[0].mxu0
    %v7794 = vadd.f32 %v7237, %v7793
    %v7795 = vpop.f32.mrb[0].mxu0
    %v7796 = vpop.f32.mrb[0].mxu0
    %v7797 = vadd.f32 %v7237, %v7796
    %v7798 = vpop.f32.mrb[0].mxu0
    %7799 = vmatprep.mubr.bf16.mxu0 0
    %7800 = vmatmul.mubr.bf16.gmra.mrb[0].mxu0 %v7212
    %v7801 = vpop.f32.mrb[0].mxu0
    %v7802 = vadd.f32 %v7237, %v7801
    %v7803 = vpop.f32.mrb[0].mxu0
    %v7804 = vpop.f32.mrb[0].mxu0
    %v7805 = vadd.f32 %v7237, %v7804
    %v7806 = vpop.f32.mrb[0].mxu0
    %7807 = vmatprep.mubr.bf16.mxu0 0
    %7808 = vmatmul.mubr.bf16.gmra.mrb[0].mxu0 %v7213
    %v7809 = vpop.f32.mrb[0].mxu0
    %v7810 = vadd.f32 %v7237, %v7809
    %v7811 = vpop.f32.mrb[0].mxu0
    %v7812 = vpop.f32.mrb[0].mxu0
    %v7813 = vadd.f32 %v7237, %v7812
    %v7814 = vpop.f32.mrb[0].mxu0
    %7815 = vmatprep.mubr.bf16.mxu0 0
    %7816 = vmatmul.mubr.bf16.gmra.mrb[0].mxu0 %v7214
    %v7817 = vpop.f32.mrb[0].mxu0
    %v7818 = vadd.f32 %v7237, %v7817
    %v7819 = vpop.f32.mrb[0].mxu0
    %v7820 = vpop.f32.mrb[0].mxu0
    %v7821 = vadd.f32 %v7237, %v7820
    %v7822 = vpop.f32.mrb[0].mxu0
    %7823 = vmatprep.mubr.bf16.mxu0 0
    %7824 = vmatmul.mubr.bf16.gmra.mrb[0].mxu0 %v7215
    %v7825 = vpop.f32.mrb[0].mxu0
    %v7826 = vadd.f32 %v7237, %v7825
    %v7827 = vpop.f32.mrb[0].mxu0
    %v7828 = vpop.f32.mrb[0].mxu0
    %v7829 = vadd.f32 %v7237, %v7828
    %v7830 = vpop.f32.mrb[0].mxu0
    %7831 = vdwg.mxu0
    %7832 = vst [vmem:[#allocation13] sm:$0xff] %v7322
    %7833 = vst [vmem:[#allocation13 + $0x8] sm:$0xff] %v7325
    %7834 = vst [vmem:[#allocation13 + $0x10] sm:$0xff] %v7330
    %7835 = vst [vmem:[#allocation13 + $0x18] sm:$0xff] %v7333
    %7836 = vst [vmem:[#allocation13 + $0x20] sm:$0xff] %v7338
    %7837 = vst [vmem:[#allocation13 + $0x28] sm:$0xff] %v7341
    %7838 = vst [vmem:[#allocation13 + $0x30] sm:$0xff] %v7346
    %7839 = vst [vmem:[#allocation13 + $0x38] sm:$0xff] %v7349
    %7840 = vst [vmem:[#allocation13 + $0x40] sm:$0xff] %v7354
    %7841 = vst [vmem:[#allocation13 + $0x48] sm:$0xff] %v7357
    %7842 = vst [vmem:[#allocation13 + $0x50] sm:$0xff] %v7362
    %7843 = vst [vmem:[#allocation13 + $0x58] sm:$0xff] %v7365
    %7844 = vst [vmem:[#allocation13 + $0x60] sm:$0xff] %v7370
    %7845 = vst [vmem:[#allocation13 + $0x68] sm:$0xff] %v7373
    %7846 = vst [vmem:[#allocation13 + $0x70] sm:$0xff] %v7378
    %7847 = vst [vmem:[#allocation13 + $0x78] sm:$0xff] %v7381
    %7848 = vst [vmem:[#allocation13 + $0x80] sm:$0xff] %v7386
    %7849 = vst [vmem:[#allocation13 + $0x88] sm:$0xff] %v7389
    %7850 = vst [vmem:[#allocation13 + $0x90] sm:$0xff] %v7394
    %7851 = vst [vmem:[#allocation13 + $0x98] sm:$0xff] %v7397
    %7852 = vst [vmem:[#allocation13 + $0xa0] sm:$0xff] %v7402
    %7853 = vst [vmem:[#allocation13 + $0xa8] sm:$0xff] %v7405
    %7854 = vst [vmem:[#allocation13 + $0xb0] sm:$0xff] %v7410
    %7855 = vst [vmem:[#allocation13 + $0xb8] sm:$0xff] %v7413
    %7856 = vst [vmem:[#allocation13 + $0xc0] sm:$0xff] %v7418
    %7857 = vst [vmem:[#allocation13 + $0xc8] sm:$0xff] %v7421
    %7858 = vst [vmem:[#allocation13 + $0xd0] sm:$0xff] %v7426
    %7859 = vst [vmem:[#allocation13 + $0xd8] sm:$0xff] %v7429
    %7860 = vst [vmem:[#allocation13 + $0xe0] sm:$0xff] %v7434
    %7861 = vst [vmem:[#allocation13 + $0xe8] sm:$0xff] %v7437
    %7862 = vst [vmem:[#allocation13 + $0xf0] sm:$0xff] %v7442
    %7863 = vst [vmem:[#allocation13 + $0xf8] sm:$0xff] %v7445
    %7864 = vst [vmem:[#allocation13 + $0x100] sm:$0xff] %v7450
    %7865 = vst [vmem:[#allocation13 + $0x108] sm:$0xff] %v7453
    %7866 = vst [vmem:[#allocation13 + $0x110] sm:$0xff] %v7458
    %7867 = vst [vmem:[#allocation13 + $0x118] sm:$0xff] %v7461
    %7868 = vst [vmem:[#allocation13 + $0x120] sm:$0xff] %v7466
    %7869 = vst [vmem:[#allocation13 + $0x128] sm:$0xff] %v7469
    %7870 = vst [vmem:[#allocation13 + $0x130] sm:$0xff] %v7474
    %7871 = vst [vmem:[#allocation13 + $0x138] sm:$0xff] %v7477
    %7872 = vst [vmem:[#allocation13 + $0x140] sm:$0xff] %v7482
    %7873 = vst [vmem:[#allocation13 + $0x148] sm:$0xff] %v7485
    %7874 = vst [vmem:[#allocation13 + $0x150] sm:$0xff] %v7490
    %7875 = vst [vmem:[#allocation13 + $0x158] sm:$0xff] %v7493
    %7876 = vst [vmem:[#allocation13 + $0x160] sm:$0xff] %v7498
    %7877 = vst [vmem:[#allocation13 + $0x168] sm:$0xff] %v7501
    %7878 = vst [vmem:[#allocation13 + $0x170] sm:$0xff] %v7506
    %7879 = vst [vmem:[#allocation13 + $0x178] sm:$0xff] %v7509
    %7880 = vst [vmem:[#allocation13 + $0x180] sm:$0xff] %v7514
    %7881 = vst [vmem:[#allocation13 + $0x188] sm:$0xff] %v7517
    %7882 = vst [vmem:[#allocation13 + $0x190] sm:$0xff] %v7522
    %7883 = vst [vmem:[#allocation13 + $0x198] sm:$0xff] %v7525
    %7884 = vst [vmem:[#allocation13 + $0x1a0] sm:$0xff] %v7530
    %7885 = vst [vmem:[#allocation13 + $0x1a8] sm:$0xff] %v7533
    %7886 = vst [vmem:[#allocation13 + $0x1b0] sm:$0xff] %v7538
    %7887 = vst [vmem:[#allocation13 + $0x1b8] sm:$0xff] %v7541
    %7888 = vst [vmem:[#allocation13 + $0x1c0] sm:$0xff] %v7546
    %7889 = vst [vmem:[#allocation13 + $0x1c8] sm:$0xff] %v7549
    %7890 = vst [vmem:[#allocation13 + $0x1d0] sm:$0xff] %v7554
    %7891 = vst [vmem:[#allocation13 + $0x1d8] sm:$0xff] %v7557
    %7892 = vst [vmem:[#allocation13 + $0x1e0] sm:$0xff] %v7562
    %7893 = vst [vmem:[#allocation13 + $0x1e8] sm:$0xff] %v7565
    %7894 = vst [vmem:[#allocation13 + $0x1f0] sm:$0xff] %v7570
    %7895 = vst [vmem:[#allocation13 + $0x1f8] sm:$0xff] %v7573
    %7896 = vst [vmem:[#allocation13 + $0x200] sm:$0xff] %v7578
    %7897 = vst [vmem:[#allocation13 + $0x208] sm:$0xff] %v7581
    %7898 = vst [vmem:[#allocation13 + $0x210] sm:$0xff] %v7586
    %7899 = vst [vmem:[#allocation13 + $0x218] sm:$0xff] %v7589
    %7900 = vst [vmem:[#allocation13 + $0x220] sm:$0xff] %v7594
    %7901 = vst [vmem:[#allocation13 + $0x228] sm:$0xff] %v7597
    %7902 = vst [vmem:[#allocation13 + $0x230] sm:$0xff] %v7602
    %7903 = vst [vmem:[#allocation13 + $0x238] sm:$0xff] %v7605
    %7904 = vst [vmem:[#allocation13 + $0x240] sm:$0xff] %v7610
    %7905 = vst [vmem:[#allocation13 + $0x248] sm:$0xff] %v7613
    %7906 = vst [vmem:[#allocation13 + $0x250] sm:$0xff] %v7618
    %7907 = vst [vmem:[#allocation13 + $0x258] sm:$0xff] %v7621
    %7908 = vst [vmem:[#allocation13 + $0x260] sm:$0xff] %v7626
    %7909 = vst [vmem:[#allocation13 + $0x268] sm:$0xff] %v7629
    %7910 = vst [vmem:[#allocation13 + $0x270] sm:$0xff] %v7634
    %7911 = vst [vmem:[#allocation13 + $0x278] sm:$0xff] %v7637
    %7912 = vst [vmem:[#allocation13 + $0x280] sm:$0xff] %v7642
    %7913 = vst [vmem:[#allocation13 + $0x288] sm:$0xff] %v7645
    %7914 = vst [vmem:[#allocation13 + $0x290] sm:$0xff] %v7650
    %7915 = vst [vmem:[#allocation13 + $0x298] sm:$0xff] %v7653
    %7916 = vst [vmem:[#allocation13 + $0x2a0] sm:$0xff] %v7658
    %7917 = vst [vmem:[#allocation13 + $0x2a8] sm:$0xff] %v7661
    %7918 = vst [vmem:[#allocation13 + $0x2b0] sm:$0xff] %v7666
    %7919 = vst [vmem:[#allocation13 + $0x2b8] sm:$0xff] %v7669
    %7920 = vst [vmem:[#allocation13 + $0x2c0] sm:$0xff] %v7674
    %7921 = vst [vmem:[#allocation13 + $0x2c8] sm:$0xff] %v7677
    %7922 = vst [vmem:[#allocation13 + $0x2d0] sm:$0xff] %v7682
    %7923 = vst [vmem:[#allocation13 + $0x2d8] sm:$0xff] %v7685
    %7924 = vst [vmem:[#allocation13 + $0x2e0] sm:$0xff] %v7690
    %7925 = vst [vmem:[#allocation13 + $0x2e8] sm:$0xff] %v7693
    %7926 = vst [vmem:[#allocation13 + $0x2f0] sm:$0xff] %v7698
    %7927 = vst [vmem:[#allocation13 + $0x2f8] sm:$0xff] %v7701
    %7928 = vst [vmem:[#allocation13 + $0x300] sm:$0xff] %v7706
    %7929 = vst [vmem:[#allocation13 + $0x308] sm:$0xff] %v7709
    %7930 = vst [vmem:[#allocation13 + $0x310] sm:$0xff] %v7714
    %7931 = vst [vmem:[#allocation13 + $0x318] sm:$0xff] %v7717
    %7932 = vst [vmem:[#allocation13 + $0x320] sm:$0xff] %v7722
    %7933 = vst [vmem:[#allocation13 + $0x328] sm:$0xff] %v7725
    %7934 = vst [vmem:[#allocation13 + $0x330] sm:$0xff] %v7730
    %7935 = vst [vmem:[#allocation13 + $0x338] sm:$0xff] %v7733
    %7936 = vst [vmem:[#allocation13 + $0x340] sm:$0xff] %v7738
    %7937 = vst [vmem:[#allocation13 + $0x348] sm:$0xff] %v7741
    %7938 = vst [vmem:[#allocation13 + $0x350] sm:$0xff] %v7746
    %7939 = vst [vmem:[#allocation13 + $0x358] sm:$0xff] %v7749
    %7940 = vst [vmem:[#allocation13 + $0x360] sm:$0xff] %v7754
    %7941 = vst [vmem:[#allocation13 + $0x368] sm:$0xff] %v7757
    %7942 = vst [vmem:[#allocation13 + $0x370] sm:$0xff] %v7762
    %7943 = vst [vmem:[#allocation13 + $0x378] sm:$0xff] %v7765
    %7944 = vst [vmem:[#allocation13 + $0x380] sm:$0xff] %v7770
    %7945 = vst [vmem:[#allocation13 + $0x388] sm:$0xff] %v7773
    %7946 = vst [vmem:[#allocation13 + $0x390] sm:$0xff] %v7778
    %7947 = vst [vmem:[#allocation13 + $0x398] sm:$0xff] %v7781
    %7948 = vst [vmem:[#allocation13 + $0x3a0] sm:$0xff] %v7786
    %7949 = vst [vmem:[#allocation13 + $0x3a8] sm:$0xff] %v7789
    %7950 = vst [vmem:[#allocation13 + $0x3b0] sm:$0xff] %v7794
    %7951 = vst [vmem:[#allocation13 + $0x3b8] sm:$0xff] %v7797
    %7952 = vst [vmem:[#allocation13 + $0x3c0] sm:$0xff] %v7802
    %7953 = vst [vmem:[#allocation13 + $0x3c8] sm:$0xff] %v7805
    %7954 = vst [vmem:[#allocation13 + $0x3d0] sm:$0xff] %v7810
    %7955 = vst [vmem:[#allocation13 + $0x3d8] sm:$0xff] %v7813
    %7956 = vst [vmem:[#allocation13 + $0x3e0] sm:$0xff] %v7818
    %7957 = vst [vmem:[#allocation13 + $0x3e8] sm:$0xff] %v7821
    %7958 = vst [vmem:[#allocation13 + $0x3f0] sm:$0xff] %v7826
    %7959 = vst [vmem:[#allocation13 + $0x3f8] sm:$0xff] %v7829
    // Predicated region
    $region70: #{tpu_custom_call.1} parent=1 // pred_check
      _
    $region71: #{tpu_custom_call.1} parent=1 // pred_check_branch
      %7961 = sbr.rel (0) target = $region73
    $region72: #{tpu_custom_call.1} parent=1 // pred_region
      %s7963 = ssub.s32 16384, 16384
      %7964 = vsyncadd [#allocation4], %s7963
      %s7965 = sshll.u32 [#allocation13], 4
      %s7966 = int_to_ptr.vmem [resolvable:$true] %s7965
      %7971 = dma.vmem_to_hbm [thread:$0]  %s7966, 16384, %s11, [#allocation4], 128, 128, 8
    $region73: #{tpu_custom_call.1} parent=1 // pred_fallthru
      _
    // Predicated region
    $region74: #{tpu_custom_call.1} parent=1 // pred_check
      _
    $region75: #{tpu_custom_call.1} parent=1 // pred_check_branch
      %7973 = sbr.rel (0) target = $region77
    $region76: #{tpu_custom_call.1} parent=1 // pred_region
      %7974 = dma.done [#allocation4], 16384
    $region77: #{tpu_custom_call.1} parent=1 // pred_fallthru
      _
    %7975 = vsyncpa [#allocation3], 1
    %7976 = vsyncpa [#allocation6], 1
    %7977 = vsyncpa [#allocation9], 1
    %7978 = vsyncpa [#allocation12], 1
    %7979 = vsyncpa [#allocation4], 1

</llo_original>
